<compile_context>
chip_gen: v5e
topology: v5e:2x2
jax: 0.10.0
libtpu: 0.0.40
codegen_flags: <defaults>
</compile_context>

<pallas_src>
import functools
import math

import jax
import jax.numpy as jnp
from jax import lax
from jax.experimental import pallas as pl
from jax.experimental.pallas import tpu as pltpu


# ---------------------------------------------------------------------------
# Pallas kernels
# ---------------------------------------------------------------------------

def _round_up(x, m):
    return ((x + m - 1) // m) * m


def _pick_inner_tile(tm):
    """Largest divisor of tm that is <= 512 and a multiple of 8 (bounds vreg pressure)."""
    if tm <= 512:
        return tm
    for cand in range(512, 7, -8):
        if tm % cand == 0:
            return cand
    return tm


def _mm_bias_act_kernel(a_ref, w_ref, b_ref, o_ref, *, activation, im, n_inner):
    """o = act(a @ w + b) for one (stream, M-tile) block; inner loop over M sub-tiles."""

    def compute(r0):
        acc = jnp.dot(a_ref[0, pl.ds(r0, im), :], w_ref[0],
                      preferred_element_type=jnp.float32) + b_ref[0]
        if activation == "tanh":
            acc = jnp.tanh(acc)
        o_ref[0, pl.ds(r0, im), :] = acc.astype(o_ref.dtype)

    if n_inner == 1:
        compute(0)
    else:
        def body(i, carry):
            compute(pl.multiple_of(i * im, im))
            return carry
        lax.fori_loop(0, n_inner, body, 0)


def stacked_matmul_bias_act(a, w, b, activation=None):
    """act(a[s] @ w[s] + b[s]) for s in {rgb, flow}.

    a: (S, M, K)  w: (S, K, N)  b: (S, 1, N)  ->  (S, M, N)   (all f32, K/N 128-aligned
    for the conv layers; big M tiles, both grid axes parallel for megacore).
    """
    S, M, K = a.shape
    N = w.shape[-1]
    gm = 2 if (M >= 2048 and M % 16 == 0) else 1
    tm = M // gm
    im = _pick_inner_tile(tm)
    n_inner = tm // im
    kernel = functools.partial(_mm_bias_act_kernel, activation=activation,
                               im=im, n_inner=n_inner)
    return pl.pallas_call(
        kernel,
        out_shape=jax.ShapeDtypeStruct((S, M, N), jnp.float32),
        grid=(S, gm),
        in_specs=[
            pl.BlockSpec((1, tm, K), lambda s, i: (s, i, 0)),
            pl.BlockSpec((1, K, N), lambda s, i: (s, 0, 0)),
            pl.BlockSpec((1, 1, N), lambda s, i: (s, 0, 0)),
        ],
        out_specs=pl.BlockSpec((1, tm, N), lambda s, i: (s, i, 0)),
        compiler_params=pltpu.CompilerParams(
            dimension_semantics=("parallel", "parallel"),
            vmem_limit_bytes=40 * 1024 * 1024),
    )(a, w, b)


def _rnn_head_kernel(x_ref, wih_ref, whh_ref, bih_ref, bhh_ref, h0_ref,
                     wc_ref, bc_ref, fea_ref, cls_ref, *, T):
    """Per person: vanilla RNN over T steps, then mean + classify + log_softmax."""
    x = x_ref[0]                                                    # (T, D)
    # Input projection for all timesteps at once (MXU).
    xp = jnp.dot(x, wih_ref[...], preferred_element_type=jnp.float32) + bih_ref[...]
    h = h0_ref[0]                                                   # (1, H), stays in vregs
    acc = jnp.zeros_like(h)
    for t in range(T):                                              # static unroll (T small)
        h = jnp.tanh(xp[t:t + 1, :]
                     + jnp.dot(h, whh_ref[...], preferred_element_type=jnp.float32)
                     + bhh_ref[...])
        fea_ref[0, pl.ds(t, 1), :] = h.astype(fea_ref.dtype)
        acc = acc + h
    v = acc * (1.0 / T)                                             # mean over time
    z = jnp.dot(v, wc_ref[...], preferred_element_type=jnp.float32) + bc_ref[...]
    z = z - jnp.max(z, axis=-1, keepdims=True)
    cls_ref[0] = (z - jnp.log(jnp.sum(jnp.exp(z), axis=-1, keepdims=True))
                  ).astype(cls_ref.dtype)


def rnn_head_forward(x, wih, whh, bih, bhh, h0, wc, bc):
    """x: (B, T, D) person-batched sequences; h0: (B, 1, H).  Returns fea (B,T,H), cls (B,1,P)."""
    B, T, D = x.shape
    H = whh.shape[0]
    P = wc.shape[-1]
    kernel = functools.partial(_rnn_head_kernel, T=T)
    return pl.pallas_call(
        kernel,
        out_shape=(jax.ShapeDtypeStruct((B, T, H), jnp.float32),
                   jax.ShapeDtypeStruct((B, 1, P), jnp.float32)),
        grid=(B,),
        in_specs=[
            pl.BlockSpec((1, T, D), lambda b: (b, 0, 0)),
            pl.BlockSpec((D, H), lambda b: (0, 0)),
            pl.BlockSpec((H, H), lambda b: (0, 0)),
            pl.BlockSpec((1, H), lambda b: (0, 0)),
            pl.BlockSpec((1, H), lambda b: (0, 0)),
            pl.BlockSpec((1, 1, H), lambda b: (b, 0, 0)),
            pl.BlockSpec((H, P), lambda b: (0, 0)),
            pl.BlockSpec((1, P), lambda b: (0, 0)),
        ],
        out_specs=(pl.BlockSpec((1, T, H), lambda b: (b, 0, 0)),
                   pl.BlockSpec((1, 1, P), lambda b: (b, 0, 0))),
        compiler_params=pltpu.CompilerParams(dimension_semantics=("parallel",)),
    )(x, wih, whh, bih, bhh, h0, wc, bc)


# ---------------------------------------------------------------------------
# JAX glue (padding, im2col, pooling) + model wiring
# ---------------------------------------------------------------------------

def _im2col(xp, kh, kw):
    N, Hp, Wp, C = xp.shape
    Ho, Wo = Hp - kh + 1, Wp - kw + 1
    cols = [xp[:, dy:dy + Ho, dx:dx + Wo, :] for dy in range(kh) for dx in range(kw)]
    p = jnp.stack(cols, axis=3)                        # (N, Ho, Wo, kh*kw, C)
    return p.reshape(N * Ho * Wo, kh * kw * C), (N, Ho, Wo)


def _maxpool2x2(x):
    N, H, W, C = x.shape
    return jnp.max(x.reshape(N, H // 2, 2, W // 2, 2, C), axis=(2, 4))


def two_stream_cnn(x_rgb, x_flow, p_rgb, p_flow):
    """Run both CNN streams (shared structure, distinct weights) through stacked kernels.

    x_rgb / x_flow: (Nb, 3, H, W) NCHW, Nb = 2 persons * seqlen.   Returns (Nb, 256).
    """
    Nb = x_rgb.shape[0]
    x = jnp.concatenate([x_rgb, x_flow], axis=0)                   # (2Nb, 3, H, W)
    x = jnp.transpose(x, (0, 2, 3, 1)).astype(jnp.float32)         # NHWC (channels on lanes)

    for lw, lb in (("w1", "b1"), ("w2", "b2"), ("w3", "b3")):
        w_r, b_r = p_rgb[lw], p_rgb[lb]
        w_f, b_f = p_flow[lw], p_flow[lb]
        cout = w_r.shape[-1]
        xp = jnp.pad(x, ((0, 0), (4, 4), (4, 4), (0, 0)))          # nn.ZeroPad2d(4)
        cols, (_, Ho, Wo) = _im2col(xp, 5, 5)                      # (2Nb*Ho*Wo, K)
        K = cols.shape[1]
        Kp = _round_up(K, 128)                                     # lane-aligned contraction
        cols = jnp.pad(cols, ((0, 0), (0, Kp - K)))
        a = cols.reshape(2, Nb * Ho * Wo, Kp)                      # stream-major rows
        w = jnp.stack([w_r.reshape(K, cout), w_f.reshape(K, cout)], axis=0)
        w = jnp.pad(w, ((0, 0), (0, Kp - K), (0, 128 - cout)))     # pad cout -> 128 lanes
        b = jnp.stack([b_r, b_f], axis=0).reshape(2, 1, cout)
        b = jnp.pad(b, ((0, 0), (0, 0), (0, 128 - cout)))
        y = stacked_matmul_bias_act(a, w, b, activation="tanh")    # (2, Nb*Ho*Wo, 128)
        y = y[:, :, :cout].reshape(2 * Nb, Ho, Wo, cout)
        x = _maxpool2x2(y)                                         # max_pool2d(2, 2)

    # Flatten in torch's NCHW .view order, then the final Linear(2560, 128) for both streams.
    flat = jnp.transpose(x, (0, 3, 1, 2)).reshape(2, Nb, -1)       # (2, Nb, 2560)
    wl = jnp.stack([p_rgb["wl"], p_flow["wl"]], axis=0)            # (2, 2560, 128)
    bl = jnp.stack([p_rgb["bl"], p_flow["bl"]], axis=0).reshape(2, 1, -1)
    # TODO(synk): F.dropout(p=0.6) before the linear is stochastic; realized as eval identity.
    out = stacked_matmul_bias_act(flat, wl, bl, activation=None)   # (2, Nb, 128)
    return jnp.concatenate([out[0], out[1]], axis=1)               # (Nb, 256)


def model_forward(params, input1_rgb, input1_flow, hidden1,
                  input2_rgb, input2_flow, hidden2):
    # Note: bn1/bn2 are constructed in the PyTorch module but never applied in forward.
    T = input1_rgb.shape[0]
    rgb_in = jnp.concatenate([input1_rgb, input2_rgb], axis=0)     # (2T, 3, H, W)
    flow_in = jnp.concatenate([input1_flow, input2_flow], axis=0)

    out_cnn = two_stream_cnn(rgb_in, flow_in,
                             params["rgb_cnn"], params["flow_cnn"])  # (2T, 256)
    x_rnn = out_cnn.reshape(2, T, 256)                             # person-batched sequences
    h0 = jnp.stack([hidden1.reshape(1, 128).astype(jnp.float32),
                    hidden2.reshape(1, 128).astype(jnp.float32)], axis=0)  # (2, 1, 128)

    fea, cls = rnn_head_forward(
        x_rnn,
        params["rnn"]["wih"], params["rnn"]["whh"],
        params["rnn"]["bih"].reshape(1, -1), params["rnn"]["bhh"].reshape(1, -1),
        h0,
        params["cls"]["w"], params["cls"]["b"].reshape(1, -1))
    # fea: (2, T, 128); cls: (2, 1, 150)
    return (fea[0], cls[0]), (fea[1], cls[1])


# ---------------------------------------------------------------------------
# Deterministic parameter init (synthetic, PyTorch-like fan-in uniform)
# ---------------------------------------------------------------------------

def _uniform(key, shape, fan_in):
    bound = 1.0 / math.sqrt(fan_in)
    return jax.random.uniform(key, shape, jnp.float32, -bound, bound)


def init_cnn_params(key):
    ks = jax.random.split(key, 8)
    return {
        "w1": _uniform(ks[0], (5, 5, 3, 16), 5 * 5 * 3),           # HWIO
        "b1": _uniform(ks[1], (16,), 5 * 5 * 3),
        "w2": _uniform(ks[2], (5, 5, 16, 32), 5 * 5 * 16),
        "b2": _uniform(ks[3], (32,), 5 * 5 * 16),
        "w3": _uniform(ks[4], (5, 5, 32, 32), 5 * 5 * 32),
        "b3": _uniform(ks[5], (32,), 5 * 5 * 32),
        "wl": _uniform(ks[6], (32 * 10 * 8, 128), 32 * 10 * 8),
        "bl": _uniform(ks[7], (128,), 32 * 10 * 8),
    }


def init_params(key, person_num=150):
    krgb, kflow, krnn, kcls = jax.random.split(key, 4)
    r = jax.random.split(krnn, 4)
    c = jax.random.split(kcls, 2)
    return {
        "rgb_cnn": init_cnn_params(krgb),
        "flow_cnn": init_cnn_params(kflow),
        "rnn": {
            "wih": _uniform(r[0], (256, 128), 128),
            "whh": _uniform(r[1], (128, 128), 128),
            "bih": _uniform(r[2], (128,), 128),
            "bhh": _uniform(r[3], (128,), 128),
        },
        "cls": {
            "w": _uniform(c[0], (128, person_num), 128),
            "b": _uniform(c[1], (person_num,), 128),
        },
    }


if __name__ == "__main__":
    key = jax.random.PRNGKey(0)
    kp, k1, k2, k3, k4 = jax.random.split(key, 5)
    params = init_params(kp, person_num=150)

    seqlen = 4                 # cnn batch per person = rnn sequence length (kept small)
    H_img, W_img = 52, 36      # spatial size implied by Linear(32*10*8, 128)
    input1_rgb = jax.random.normal(k1, (seqlen, 3, H_img, W_img), jnp.float32)
    input1_flow = jax.random.normal(k2, (seqlen, 3, H_img, W_img), jnp.float32)
    input2_rgb = jax.random.normal(k3, (seqlen, 3, H_img, W_img), jnp.float32)
    input2_flow = jax.random.normal(k4, (seqlen, 3, H_img, W_img), jnp.float32)
    hidden1 = jnp.zeros((1, 1, 128), jnp.float32)   # get_hidden() for rnn_type='RNN'
    hidden2 = jnp.zeros((1, 1, 128), jnp.float32)

    (p1_fea, p1_cls), (p2_fea, p2_cls) = jax.jit(model_forward)(
        params, input1_rgb, input1_flow, hidden1,
        input2_rgb, input2_flow, hidden2)
    jax.block_until_ready((p1_fea, p1_cls, p2_fea, p2_cls))

    assert p1_fea.shape == (seqlen, 128) and p1_cls.shape == (1, 150)
    assert p2_fea.shape == (seqlen, 128) and p2_cls.shape == (1, 150)
    print("KERNEL_OK")
</pallas_src>

<mosaic_0001>
module attributes {stable_mosaic.version = 11 : i64} {
  func.func @_mm_bias_act_kernel(%arg0: i32, %arg1: i32, %arg2: memref<1x8960x128xf32, #tpu.memory_space<vmem>>, %arg3: memref<1x128x128xf32, #tpu.memory_space<vmem>>, %arg4: memref<1x1x128xf32, #tpu.memory_space<vmem>>, %arg5: memref<1x8960x128xf32, #tpu.memory_space<vmem>>) attributes {dimension_semantics = [#tpu.dimension_semantics<parallel>, #tpu.dimension_semantics<parallel>], iteration_bounds = array<i64: 2, 2>, scalar_prefetch = 0 : i64, scratch_operands = 0 : i64, tpu.core_type = #tpu.core_type<tc>, window_params = [{transform_indices = @transform_0, window_bounds = array<i64: 1, 8960, 128>}, {transform_indices = @transform_1, window_bounds = array<i64: 1, 128, 128>}, {transform_indices = @transform_2, window_bounds = array<i64: 1, 1, 128>}, {transform_indices = @transform_3, window_bounds = array<i64: 1, 8960, 128>}]} {
    %c0_i32 = arith.constant 0 : i32
    %c20_i32 = arith.constant 20 : i32
    %0 = arith.addi %c0_i32, %c20_i32 : i32
    %c1_i32 = arith.constant 1 : i32
    scf.for %arg6 = %c0_i32 to %0 step %c1_i32  : i32 {
      %c448_i32 = arith.constant 448 : i32
      %1 = arith.muli %arg6, %c448_i32 : i32
      %2 = tpu.assume_multiple %1, 448 : i32
      %c0 = arith.constant 0 : index
      %3 = arith.index_cast %2 : i32 to index
      %c0_1 = arith.constant 0 : index
      %4 = vector.load %arg2[%c0, %3, %c0_1] : memref<1x8960x128xf32, #tpu.memory_space<vmem>>, vector<1x448x128xf32>
      %5 = vector.shape_cast %4 : vector<1x448x128xf32> to vector<448x128xf32>
      %c0_2 = arith.constant 0 : index
      %c0_3 = arith.constant 0 : index
      %c0_4 = arith.constant 0 : index
      %6 = vector.load %arg3[%c0_2, %c0_3, %c0_4] : memref<1x128x128xf32, #tpu.memory_space<vmem>>, vector<1x128x128xf32>
      %7 = vector.shape_cast %6 : vector<1x128x128xf32> to vector<128x128xf32>
      %cst = arith.constant dense<0.000000e+00> : vector<448x128xf32>
      %8 = tpu.matmul %5, %7, %cst {dimension_numbers = #tpu.dot_dimension_numbers<[1], [0], [0], [1], [0, 0, 1, 1], [], []>} : vector<448x128xf32>, vector<128x128xf32>, vector<448x128xf32> -> vector<448x128xf32>
      %c0_5 = arith.constant 0 : index
      %c0_6 = arith.constant 0 : index
      %c0_7 = arith.constant 0 : index
      %9 = vector.load %arg4[%c0_5, %c0_6, %c0_7] : memref<1x1x128xf32, #tpu.memory_space<vmem>>, vector<1x1x128xf32>
      %10 = vector.shape_cast %9 : vector<1x1x128xf32> to vector<1x128xf32>
      %11 = vector.broadcast %10 : vector<1x128xf32> to vector<448x128xf32>
      %12 = arith.addf %8, %11 : vector<448x128xf32>
      %13 = math.tanh %12 : vector<448x128xf32>
      %c0_8 = arith.constant 0 : index
      %14 = arith.index_cast %2 : i32 to index
      %c0_9 = arith.constant 0 : index
      %15 = vector.load %arg5[%c0_8, %14, %c0_9] : memref<1x8960x128xf32, #tpu.memory_space<vmem>>, vector<1x448x128xf32>
      %16 = vector.shape_cast %15 : vector<1x448x128xf32> to vector<448x128xf32>
      %17 = vector.shape_cast %13 : vector<448x128xf32> to vector<1x448x128xf32>
      tpu.vector_store %arg5[%c0_8, %14, %c0_9], %17 {strides = array<i32>} : memref<1x8960x128xf32, #tpu.memory_space<vmem>>, vector<1x448x128xf32>,
    }
    %c20_i32_0 = arith.constant 20 : i32
    return
  }
  func.func @transform_0(%arg0: i32, %arg1: i32) -> (i32, i32, i32) {
    %c0_i32 = arith.constant 0 : i32
    %c0_i32_0 = arith.constant 0 : i32
    return %arg0, %arg1, %c0_i32 : i32, i32, i32
  }
  func.func @transform_1(%arg0: i32, %arg1: i32) -> (i32, i32, i32) {
    %c0_i32 = arith.constant 0 : i32
    %c0_i32_0 = arith.constant 0 : i32
    %c0_i32_1 = arith.constant 0 : i32
    return %arg0, %c0_i32, %c0_i32_0 : i32, i32, i32
  }
  func.func @transform_2(%arg0: i32, %arg1: i32) -> (i32, i32, i32) {
    %c0_i32 = arith.constant 0 : i32
    %c0_i32_0 = arith.constant 0 : i32
    %c0_i32_1 = arith.constant 0 : i32
    return %arg0, %c0_i32, %c0_i32_0 : i32, i32, i32
  }
  func.func @transform_3(%arg0: i32, %arg1: i32) -> (i32, i32, i32) {
    %c0_i32 = arith.constant 0 : i32
    %c0_i32_0 = arith.constant 0 : i32
    return %arg0, %arg1, %c0_i32 : i32, i32, i32
  }
}

module attributes {stable_mosaic.version = 11 : i64} {
  func.func @_mm_bias_act_kernel(%arg0: i32, %arg1: i32, %arg2: memref<1x3072x512xf32, #tpu.memory_space<vmem>>, %arg3: memref<1x512x128xf32, #tpu.memory_space<vmem>>, %arg4: memref<1x1x128xf32, #tpu.memory_space<vmem>>, %arg5: memref<1x3072x128xf32, #tpu.memory_space<vmem>>) attributes {dimension_semantics = [#tpu.dimension_semantics<parallel>, #tpu.dimension_semantics<parallel>], iteration_bounds = array<i64: 2, 2>, scalar_prefetch = 0 : i64, scratch_operands = 0 : i64, tpu.core_type = #tpu.core_type<tc>, window_params = [{transform_indices = @transform_0, window_bounds = array<i64: 1, 3072, 512>}, {transform_indices = @transform_1, window_bounds = array<i64: 1, 512, 128>}, {transform_indices = @transform_2, window_bounds = array<i64: 1, 1, 128>}, {transform_indices = @transform_3, window_bounds = array<i64: 1, 3072, 128>}]} {
    %c0_i32 = arith.constant 0 : i32
    %c6_i32 = arith.constant 6 : i32
    %0 = arith.addi %c0_i32, %c6_i32 : i32
    %c1_i32 = arith.constant 1 : i32
    scf.for %arg6 = %c0_i32 to %0 step %c1_i32  : i32 {
      %c512_i32 = arith.constant 512 : i32
      %1 = arith.muli %arg6, %c512_i32 : i32
      %2 = tpu.assume_multiple %1, 512 : i32
      %c0 = arith.constant 0 : index
      %3 = arith.index_cast %2 : i32 to index
      %c0_1 = arith.constant 0 : index
      %4 = vector.load %arg2[%c0, %3, %c0_1] : memref<1x3072x512xf32, #tpu.memory_space<vmem>>, vector<1x512x512xf32>
      %5 = vector.shape_cast %4 : vector<1x512x512xf32> to vector<512x512xf32>
      %c0_2 = arith.constant 0 : index
      %c0_3 = arith.constant 0 : index
      %c0_4 = arith.constant 0 : index
      %6 = vector.load %arg3[%c0_2, %c0_3, %c0_4] : memref<1x512x128xf32, #tpu.memory_space<vmem>>, vector<1x512x128xf32>
      %7 = vector.shape_cast %6 : vector<1x512x128xf32> to vector<512x128xf32>
      %cst = arith.constant dense<0.000000e+00> : vector<512x128xf32>
      %8 = tpu.matmul %5, %7, %cst {dimension_numbers = #tpu.dot_dimension_numbers<[1], [0], [0], [1], [0, 0, 1, 1], [], []>} : vector<512x512xf32>, vector<512x128xf32>, vector<512x128xf32> -> vector<512x128xf32>
      %c0_5 = arith.constant 0 : index
      %c0_6 = arith.constant 0 : index
      %c0_7 = arith.constant 0 : index
      %9 = vector.load %arg4[%c0_5, %c0_6, %c0_7] : memref<1x1x128xf32, #tpu.memory_space<vmem>>, vector<1x1x128xf32>
      %10 = vector.shape_cast %9 : vector<1x1x128xf32> to vector<1x128xf32>
      %11 = vector.broadcast %10 : vector<1x128xf32> to vector<512x128xf32>
      %12 = arith.addf %8, %11 : vector<512x128xf32>
      %13 = math.tanh %12 : vector<512x128xf32>
      %c0_8 = arith.constant 0 : index
      %14 = arith.index_cast %2 : i32 to index
      %c0_9 = arith.constant 0 : index
      %15 = vector.load %arg5[%c0_8, %14, %c0_9] : memref<1x3072x128xf32, #tpu.memory_space<vmem>>, vector<1x512x128xf32>
      %16 = vector.shape_cast %15 : vector<1x512x128xf32> to vector<512x128xf32>
      %17 = vector.shape_cast %13 : vector<512x128xf32> to vector<1x512x128xf32>
      tpu.vector_store %arg5[%c0_8, %14, %c0_9], %17 {strides = array<i32>} : memref<1x3072x128xf32, #tpu.memory_space<vmem>>, vector<1x512x128xf32>,
    }
    %c6_i32_0 = arith.constant 6 : i32
    return
  }
  func.func @transform_0(%arg0: i32, %arg1: i32) -> (i32, i32, i32) {
    %c0_i32 = arith.constant 0 : i32
    %c0_i32_0 = arith.constant 0 : i32
    return %arg0, %arg1, %c0_i32 : i32, i32, i32
  }
  func.func @transform_1(%arg0: i32, %arg1: i32) -> (i32, i32, i32) {
    %c0_i32 = arith.constant 0 : i32
    %c0_i32_0 = arith.constant 0 : i32
    %c0_i32_1 = arith.constant 0 : i32
    return %arg0, %c0_i32, %c0_i32_0 : i32, i32, i32
  }
  func.func @transform_2(%arg0: i32, %arg1: i32) -> (i32, i32, i32) {
    %c0_i32 = arith.constant 0 : i32
    %c0_i32_0 = arith.constant 0 : i32
    %c0_i32_1 = arith.constant 0 : i32
    return %arg0, %c0_i32, %c0_i32_0 : i32, i32, i32
  }
  func.func @transform_3(%arg0: i32, %arg1: i32) -> (i32, i32, i32) {
    %c0_i32 = arith.constant 0 : i32
    %c0_i32_0 = arith.constant 0 : i32
    return %arg0, %arg1, %c0_i32 : i32, i32, i32
  }
}

module attributes {stable_mosaic.version = 11 : i64} {
  func.func @_mm_bias_act_kernel(%arg0: i32, %arg1: i32, %arg2: memref<1x1280x896xf32, #tpu.memory_space<vmem>>, %arg3: memref<1x896x128xf32, #tpu.memory_space<vmem>>, %arg4: memref<1x1x128xf32, #tpu.memory_space<vmem>>, %arg5: memref<1x1280x128xf32, #tpu.memory_space<vmem>>) attributes {dimension_semantics = [#tpu.dimension_semantics<parallel>, #tpu.dimension_semantics<parallel>], iteration_bounds = array<i64: 2, 2>, scalar_prefetch = 0 : i64, scratch_operands = 0 : i64, tpu.core_type = #tpu.core_type<tc>, window_params = [{transform_indices = @transform_0, window_bounds = array<i64: 1, 1280, 896>}, {transform_indices = @transform_1, window_bounds = array<i64: 1, 896, 128>}, {transform_indices = @transform_2, window_bounds = array<i64: 1, 1, 128>}, {transform_indices = @transform_3, window_bounds = array<i64: 1, 1280, 128>}]} {
    %c0_i32 = arith.constant 0 : i32
    %c4_i32 = arith.constant 4 : i32
    %0 = arith.addi %c0_i32, %c4_i32 : i32
    %c1_i32 = arith.constant 1 : i32
    scf.for %arg6 = %c0_i32 to %0 step %c1_i32  : i32 {
      %c320_i32 = arith.constant 320 : i32
      %1 = arith.muli %arg6, %c320_i32 : i32
      %2 = tpu.assume_multiple %1, 320 : i32
      %c0 = arith.constant 0 : index
      %3 = arith.index_cast %2 : i32 to index
      %c0_1 = arith.constant 0 : index
      %4 = vector.load %arg2[%c0, %3, %c0_1] : memref<1x1280x896xf32, #tpu.memory_space<vmem>>, vector<1x320x896xf32>
      %5 = vector.shape_cast %4 : vector<1x320x896xf32> to vector<320x896xf32>
      %c0_2 = arith.constant 0 : index
      %c0_3 = arith.constant 0 : index
      %c0_4 = arith.constant 0 : index
      %6 = vector.load %arg3[%c0_2, %c0_3, %c0_4] : memref<1x896x128xf32, #tpu.memory_space<vmem>>, vector<1x896x128xf32>
      %7 = vector.shape_cast %6 : vector<1x896x128xf32> to vector<896x128xf32>
      %cst = arith.constant dense<0.000000e+00> : vector<320x128xf32>
      %8 = tpu.matmul %5, %7, %cst {dimension_numbers = #tpu.dot_dimension_numbers<[1], [0], [0], [1], [0, 0, 1, 1], [], []>} : vector<320x896xf32>, vector<896x128xf32>, vector<320x128xf32> -> vector<320x128xf32>
      %c0_5 = arith.constant 0 : index
      %c0_6 = arith.constant 0 : index
      %c0_7 = arith.constant 0 : index
      %9 = vector.load %arg4[%c0_5, %c0_6, %c0_7] : memref<1x1x128xf32, #tpu.memory_space<vmem>>, vector<1x1x128xf32>
      %10 = vector.shape_cast %9 : vector<1x1x128xf32> to vector<1x128xf32>
      %11 = vector.broadcast %10 : vector<1x128xf32> to vector<320x128xf32>
      %12 = arith.addf %8, %11 : vector<320x128xf32>
      %13 = math.tanh %12 : vector<320x128xf32>
      %c0_8 = arith.constant 0 : index
      %14 = arith.index_cast %2 : i32 to index
      %c0_9 = arith.constant 0 : index
      %15 = vector.load %arg5[%c0_8, %14, %c0_9] : memref<1x1280x128xf32, #tpu.memory_space<vmem>>, vector<1x320x128xf32>
      %16 = vector.shape_cast %15 : vector<1x320x128xf32> to vector<320x128xf32>
      %17 = vector.shape_cast %13 : vector<320x128xf32> to vector<1x320x128xf32>
      tpu.vector_store %arg5[%c0_8, %14, %c0_9], %17 {strides = array<i32>} : memref<1x1280x128xf32, #tpu.memory_space<vmem>>, vector<1x320x128xf32>,
    }
    %c4_i32_0 = arith.constant 4 : i32
    return
  }
  func.func @transform_0(%arg0: i32, %arg1: i32) -> (i32, i32, i32) {
    %c0_i32 = arith.constant 0 : i32
    %c0_i32_0 = arith.constant 0 : i32
    return %arg0, %arg1, %c0_i32 : i32, i32, i32
  }
  func.func @transform_1(%arg0: i32, %arg1: i32) -> (i32, i32, i32) {
    %c0_i32 = arith.constant 0 : i32
    %c0_i32_0 = arith.constant 0 : i32
    %c0_i32_1 = arith.constant 0 : i32
    return %arg0, %c0_i32, %c0_i32_0 : i32, i32, i32
  }
  func.func @transform_2(%arg0: i32, %arg1: i32) -> (i32, i32, i32) {
    %c0_i32 = arith.constant 0 : i32
    %c0_i32_0 = arith.constant 0 : i32
    %c0_i32_1 = arith.constant 0 : i32
    return %arg0, %c0_i32, %c0_i32_0 : i32, i32, i32
  }
  func.func @transform_3(%arg0: i32, %arg1: i32) -> (i32, i32, i32) {
    %c0_i32 = arith.constant 0 : i32
    %c0_i32_0 = arith.constant 0 : i32
    return %arg0, %arg1, %c0_i32 : i32, i32, i32
  }
}

module attributes {stable_mosaic.version = 11 : i64} {
  func.func @_mm_bias_act_kernel(%arg0: i32, %arg1: i32, %arg2: memref<1x8x2560xf32, #tpu.memory_space<vmem>>, %arg3: memref<1x2560x128xf32, #tpu.memory_space<vmem>>, %arg4: memref<1x1x128xf32, #tpu.memory_space<vmem>>, %arg5: memref<1x8x128xf32, #tpu.memory_space<vmem>>) attributes {dimension_semantics = [#tpu.dimension_semantics<parallel>, #tpu.dimension_semantics<parallel>], iteration_bounds = array<i64: 2, 1>, scalar_prefetch = 0 : i64, scratch_operands = 0 : i64, tpu.core_type = #tpu.core_type<tc>, window_params = [{transform_indices = @transform_0, window_bounds = array<i64: 1, 8, 2560>}, {transform_indices = @transform_1, window_bounds = array<i64: 1, 2560, 128>}, {transform_indices = @transform_2, window_bounds = array<i64: 1, 1, 128>}, {transform_indices = @transform_3, window_bounds = array<i64: 1, 8, 128>}]} {
    %c0 = arith.constant 0 : index
    %c0_0 = arith.constant 0 : index
    %c0_1 = arith.constant 0 : index
    %0 = vector.load %arg2[%c0, %c0_0, %c0_1] : memref<1x8x2560xf32, #tpu.memory_space<vmem>>, vector<1x8x2560xf32>
    %1 = vector.shape_cast %0 : vector<1x8x2560xf32> to vector<8x2560xf32>
    %c0_2 = arith.constant 0 : index
    %c0_3 = arith.constant 0 : index
    %c0_4 = arith.constant 0 : index
    %2 = vector.load %arg3[%c0_2, %c0_3, %c0_4] : memref<1x2560x128xf32, #tpu.memory_space<vmem>>, vector<1x2560x128xf32>
    %3 = vector.shape_cast %2 : vector<1x2560x128xf32> to vector<2560x128xf32>
    %cst = arith.constant dense<0.000000e+00> : vector<8x128xf32>
    %4 = tpu.matmul %1, %3, %cst {dimension_numbers = #tpu.dot_dimension_numbers<[1], [0], [0], [1], [0, 0, 1, 1], [], []>} : vector<8x2560xf32>, vector<2560x128xf32>, vector<8x128xf32> -> vector<8x128xf32>
    %c0_5 = arith.constant 0 : index
    %c0_6 = arith.constant 0 : index
    %c0_7 = arith.constant 0 : index
    %5 = vector.load %arg4[%c0_5, %c0_6, %c0_7] : memref<1x1x128xf32, #tpu.memory_space<vmem>>, vector<1x1x128xf32>
    %6 = vector.shape_cast %5 : vector<1x1x128xf32> to vector<1x128xf32>
    %7 = vector.broadcast %6 : vector<1x128xf32> to vector<8x128xf32>
    %8 = arith.addf %4, %7 : vector<8x128xf32>
    %c0_8 = arith.constant 0 : index
    %c0_9 = arith.constant 0 : index
    %c0_10 = arith.constant 0 : index
    %9 = vector.load %arg5[%c0_8, %c0_9, %c0_10] : memref<1x8x128xf32, #tpu.memory_space<vmem>>, vector<1x8x128xf32>
    %10 = vector.shape_cast %9 : vector<1x8x128xf32> to vector<8x128xf32>
    %11 = vector.shape_cast %8 : vector<8x128xf32> to vector<1x8x128xf32>
    tpu.vector_store %arg5[%c0_8, %c0_9, %c0_10], %11 {strides = array<i32>} : memref<1x8x128xf32, #tpu.memory_space<vmem>>, vector<1x8x128xf32>,
    return
  }
  func.func @transform_0(%arg0: i32, %arg1: i32) -> (i32, i32, i32) {
    %c0_i32 = arith.constant 0 : i32
    %c0_i32_0 = arith.constant 0 : i32
    return %arg0, %arg1, %c0_i32 : i32, i32, i32
  }
  func.func @transform_1(%arg0: i32, %arg1: i32) -> (i32, i32, i32) {
    %c0_i32 = arith.constant 0 : i32
    %c0_i32_0 = arith.constant 0 : i32
    %c0_i32_1 = arith.constant 0 : i32
    return %arg0, %c0_i32, %c0_i32_0 : i32, i32, i32
  }
  func.func @transform_2(%arg0: i32, %arg1: i32) -> (i32, i32, i32) {
    %c0_i32 = arith.constant 0 : i32
    %c0_i32_0 = arith.constant 0 : i32
    %c0_i32_1 = arith.constant 0 : i32
    return %arg0, %c0_i32, %c0_i32_0 : i32, i32, i32
  }
  func.func @transform_3(%arg0: i32, %arg1: i32) -> (i32, i32, i32) {
    %c0_i32 = arith.constant 0 : i32
    %c0_i32_0 = arith.constant 0 : i32
    return %arg0, %arg1, %c0_i32 : i32, i32, i32
  }
}

module attributes {stable_mosaic.version = 11 : i64} {
  func.func @_rnn_head_kernel(%arg0: i32, %arg1: memref<1x4x256xf32, #tpu.memory_space<vmem>>, %arg2: memref<256x128xf32, #tpu.memory_space<vmem>>, %arg3: memref<128x128xf32, #tpu.memory_space<vmem>>, %arg4: memref<1x128xf32, #tpu.memory_space<vmem>>, %arg5: memref<1x128xf32, #tpu.memory_space<vmem>>, %arg6: memref<1x1x128xf32, #tpu.memory_space<vmem>>, %arg7: memref<128x150xf32, #tpu.memory_space<vmem>>, %arg8: memref<1x150xf32, #tpu.memory_space<vmem>>, %arg9: memref<1x4x128xf32, #tpu.memory_space<vmem>>, %arg10: memref<1x1x150xf32, #tpu.memory_space<vmem>>) attributes {dimension_semantics = [#tpu.dimension_semantics<parallel>], iteration_bounds = array<i64: 2>, scalar_prefetch = 0 : i64, scratch_operands = 0 : i64, tpu.core_type = #tpu.core_type<tc>, window_params = [{transform_indices = @transform_0, window_bounds = array<i64: 1, 4, 256>}, {pipeline_mode = #tpu.pipeline_mode<synchronous>, transform_indices = @transform_1, window_bounds = array<i64: 256, 128>}, {pipeline_mode = #tpu.pipeline_mode<synchronous>, transform_indices = @transform_2, window_bounds = array<i64: 128, 128>}, {pipeline_mode = #tpu.pipeline_mode<synchronous>, transform_indices = @transform_3, window_bounds = array<i64: 1, 128>}, {pipeline_mode = #tpu.pipeline_mode<synchronous>, transform_indices = @transform_4, window_bounds = array<i64: 1, 128>}, {transform_indices = @transform_5, window_bounds = array<i64: 1, 1, 128>}, {pipeline_mode = #tpu.pipeline_mode<synchronous>, transform_indices = @transform_6, window_bounds = array<i64: 128, 150>}, {pipeline_mode = #tpu.pipeline_mode<synchronous>, transform_indices = @transform_7, window_bounds = array<i64: 1, 150>}, {transform_indices = @transform_8, window_bounds = array<i64: 1, 4, 128>}, {transform_indices = @transform_9, window_bounds = array<i64: 1, 1, 150>}]} {
    %c0 = arith.constant 0 : index
    %c0_0 = arith.constant 0 : index
    %c0_1 = arith.constant 0 : index
    %0 = vector.load %arg1[%c0, %c0_0, %c0_1] : memref<1x4x256xf32, #tpu.memory_space<vmem>>, vector<1x4x256xf32>
    %1 = vector.shape_cast %0 : vector<1x4x256xf32> to vector<4x256xf32>
    %c0_2 = arith.constant 0 : index
    %c0_3 = arith.constant 0 : index
    %2 = vector.load %arg2[%c0_2, %c0_3] : memref<256x128xf32, #tpu.memory_space<vmem>>, vector<256x128xf32>
    %cst = arith.constant dense<0.000000e+00> : vector<4x128xf32>
    %3 = tpu.matmul %1, %2, %cst {dimension_numbers = #tpu.dot_dimension_numbers<[1], [0], [0], [1], [0, 0, 1, 1], [], []>} : vector<4x256xf32>, vector<256x128xf32>, vector<4x128xf32> -> vector<4x128xf32>
    %c0_4 = arith.constant 0 : index
    %c0_5 = arith.constant 0 : index
    %4 = vector.load %arg4[%c0_4, %c0_5] : memref<1x128xf32, #tpu.memory_space<vmem>>, vector<1x128xf32>
    %5 = vector.broadcast %4 : vector<1x128xf32> to vector<4x128xf32>
    %6 = arith.addf %3, %5 : vector<4x128xf32>
    %c0_6 = arith.constant 0 : index
    %c0_7 = arith.constant 0 : index
    %c0_8 = arith.constant 0 : index
    %7 = vector.load %arg6[%c0_6, %c0_7, %c0_8] : memref<1x1x128xf32, #tpu.memory_space<vmem>>, vector<1x1x128xf32>
    %8 = vector.shape_cast %7 : vector<1x1x128xf32> to vector<1x128xf32>
    %cst_9 = arith.constant 0.000000e+00 : f32
    %9 = vector.broadcast %cst_9 : f32 to vector<1x128xf32>
    %10 = vector.extract_strided_slice %6 {offsets = [0, 0], sizes = [1, 128], strides = [1, 1]} : vector<4x128xf32> to vector<1x128xf32>
    %c0_10 = arith.constant 0 : index
    %c0_11 = arith.constant 0 : index
    %11 = vector.load %arg3[%c0_10, %c0_11] : memref<128x128xf32, #tpu.memory_space<vmem>>, vector<128x128xf32>
    %cst_12 = arith.constant dense<0.000000e+00> : vector<1x128xf32>
    %12 = tpu.matmul %8, %11, %cst_12 {dimension_numbers = #tpu.dot_dimension_numbers<[1], [0], [0], [1], [0, 0, 1, 1], [], []>} : vector<1x128xf32>, vector<128x128xf32>, vector<1x128xf32> -> vector<1x128xf32>
    %13 = arith.addf %10, %12 : vector<1x128xf32>
    %c0_13 = arith.constant 0 : index
    %c0_14 = arith.constant 0 : index
    %14 = vector.load %arg5[%c0_13, %c0_14] : memref<1x128xf32, #tpu.memory_space<vmem>>, vector<1x128xf32>
    %15 = arith.addf %13, %14 : vector<1x128xf32>
    %16 = math.tanh %15 : vector<1x128xf32>
    %c0_15 = arith.constant 0 : index
    %c0_16 = arith.constant 0 : index
    %c0_17 = arith.constant 0 : index
    %17 = vector.load %arg9[%c0_15, %c0_16, %c0_17] : memref<1x4x128xf32, #tpu.memory_space<vmem>>, vector<1x1x128xf32>
    %18 = vector.shape_cast %17 : vector<1x1x128xf32> to vector<1x128xf32>
    %19 = vector.shape_cast %16 : vector<1x128xf32> to vector<1x1x128xf32>
    tpu.vector_store %arg9[%c0_15, %c0_16, %c0_17], %19 {strides = array<i32>} : memref<1x4x128xf32, #tpu.memory_space<vmem>>, vector<1x1x128xf32>,
    %20 = arith.addf %9, %16 : vector<1x128xf32>
    %21 = vector.extract_strided_slice %6 {offsets = [1, 0], sizes = [1, 128], strides = [1, 1]} : vector<4x128xf32> to vector<1x128xf32>
    %c0_18 = arith.constant 0 : index
    %c0_19 = arith.constant 0 : index
    %22 = vector.load %arg3[%c0_18, %c0_19] : memref<128x128xf32, #tpu.memory_space<vmem>>, vector<128x128xf32>
    %cst_20 = arith.constant dense<0.000000e+00> : vector<1x128xf32>
    %23 = tpu.matmul %16, %22, %cst_20 {dimension_numbers = #tpu.dot_dimension_numbers<[1], [0], [0], [1], [0, 0, 1, 1], [], []>} : vector<1x128xf32>, vector<128x128xf32>, vector<1x128xf32> -> vector<1x128xf32>
    %24 = arith.addf %21, %23 : vector<1x128xf32>
    %c0_21 = arith.constant 0 : index
    %c0_22 = arith.constant 0 : index
    %25 = vector.load %arg5[%c0_21, %c0_22] : memref<1x128xf32, #tpu.memory_space<vmem>>, vector<1x128xf32>
    %26 = arith.addf %24, %25 : vector<1x128xf32>
    %27 = math.tanh %26 : vector<1x128xf32>
    %c0_23 = arith.constant 0 : index
    %c1 = arith.constant 1 : index
    %c0_24 = arith.constant 0 : index
    %28 = vector.load %arg9[%c0_23, %c1, %c0_24] : memref<1x4x128xf32, #tpu.memory_space<vmem>>, vector<1x1x128xf32>
    %29 = vector.shape_cast %28 : vector<1x1x128xf32> to vector<1x128xf32>
    %30 = vector.shape_cast %27 : vector<1x128xf32> to vector<1x1x128xf32>
    tpu.vector_store %arg9[%c0_23, %c1, %c0_24], %30 {strides = array<i32>} : memref<1x4x128xf32, #tpu.memory_space<vmem>>, vector<1x1x128xf32>,
    %31 = arith.addf %20, %27 : vector<1x128xf32>
    %32 = vector.extract_strided_slice %6 {offsets = [2, 0], sizes = [1, 128], strides = [1, 1]} : vector<4x128xf32> to vector<1x128xf32>
    %c0_25 = arith.constant 0 : index
    %c0_26 = arith.constant 0 : index
    %33 = vector.load %arg3[%c0_25, %c0_26] : memref<128x128xf32, #tpu.memory_space<vmem>>, vector<128x128xf32>
    %cst_27 = arith.constant dense<0.000000e+00> : vector<1x128xf32>
    %34 = tpu.matmul %27, %33, %cst_27 {dimension_numbers = #tpu.dot_dimension_numbers<[1], [0], [0], [1], [0, 0, 1, 1], [], []>} : vector<1x128xf32>, vector<128x128xf32>, vector<1x128xf32> -> vector<1x128xf32>
    %35 = arith.addf %32, %34 : vector<1x128xf32>
    %c0_28 = arith.constant 0 : index
    %c0_29 = arith.constant 0 : index
    %36 = vector.load %arg5[%c0_28, %c0_29] : memref<1x128xf32, #tpu.memory_space<vmem>>, vector<1x128xf32>
    %37 = arith.addf %35, %36 : vector<1x128xf32>
    %38 = math.tanh %37 : vector<1x128xf32>
    %c0_30 = arith.constant 0 : index
    %c2 = arith.constant 2 : index
    %c0_31 = arith.constant 0 : index
    %39 = vector.load %arg9[%c0_30, %c2, %c0_31] : memref<1x4x128xf32, #tpu.memory_space<vmem>>, vector<1x1x128xf32>
    %40 = vector.shape_cast %39 : vector<1x1x128xf32> to vector<1x128xf32>
    %41 = vector.shape_cast %38 : vector<1x128xf32> to vector<1x1x128xf32>
    tpu.vector_store %arg9[%c0_30, %c2, %c0_31], %41 {strides = array<i32>} : memref<1x4x128xf32, #tpu.memory_space<vmem>>, vector<1x1x128xf32>,
    %42 = arith.addf %31, %38 : vector<1x128xf32>
    %43 = vector.extract_strided_slice %6 {offsets = [3, 0], sizes = [1, 128], strides = [1, 1]} : vector<4x128xf32> to vector<1x128xf32>
    %c0_32 = arith.constant 0 : index
    %c0_33 = arith.constant 0 : index
    %44 = vector.load %arg3[%c0_32, %c0_33] : memref<128x128xf32, #tpu.memory_space<vmem>>, vector<128x128xf32>
    %cst_34 = arith.constant dense<0.000000e+00> : vector<1x128xf32>
    %45 = tpu.matmul %38, %44, %cst_34 {dimension_numbers = #tpu.dot_dimension_numbers<[1], [0], [0], [1], [0, 0, 1, 1], [], []>} : vector<1x128xf32>, vector<128x128xf32>, vector<1x128xf32> -> vector<1x128xf32>
    %46 = arith.addf %43, %45 : vector<1x128xf32>
    %c0_35 = arith.constant 0 : index
    %c0_36 = arith.constant 0 : index
    %47 = vector.load %arg5[%c0_35, %c0_36] : memref<1x128xf32, #tpu.memory_space<vmem>>, vector<1x128xf32>
    %48 = arith.addf %46, %47 : vector<1x128xf32>
    %49 = math.tanh %48 : vector<1x128xf32>
    %c0_37 = arith.constant 0 : index
    %c3 = arith.constant 3 : index
    %c0_38 = arith.constant 0 : index
    %50 = vector.load %arg9[%c0_37, %c3, %c0_38] : memref<1x4x128xf32, #tpu.memory_space<vmem>>, vector<1x1x128xf32>
    %51 = vector.shape_cast %50 : vector<1x1x128xf32> to vector<1x128xf32>
    %52 = vector.shape_cast %49 : vector<1x128xf32> to vector<1x1x128xf32>
    tpu.vector_store %arg9[%c0_37, %c3, %c0_38], %52 {strides = array<i32>} : memref<1x4x128xf32, #tpu.memory_space<vmem>>, vector<1x1x128xf32>,
    %53 = arith.addf %42, %49 : vector<1x128xf32>
    %cst_39 = arith.constant 2.500000e-01 : f32
    %54 = vector.broadcast %cst_39 : f32 to vector<1x128xf32>
    %55 = arith.mulf %53, %54 : vector<1x128xf32>
    %c0_40 = arith.constant 0 : index
    %c0_41 = arith.constant 0 : index
    %56 = vector.load %arg7[%c0_40, %c0_41] : memref<128x150xf32, #tpu.memory_space<vmem>>, vector<128x150xf32>
    %cst_42 = arith.constant dense<0.000000e+00> : vector<1x150xf32>
    %57 = tpu.matmul %55, %56, %cst_42 {dimension_numbers = #tpu.dot_dimension_numbers<[1], [0], [0], [1], [0, 0, 1, 1], [], []>} : vector<1x128xf32>, vector<128x150xf32>, vector<1x150xf32> -> vector<1x150xf32>
    %c0_43 = arith.constant 0 : index
    %c0_44 = arith.constant 0 : index
    %58 = vector.load %arg8[%c0_43, %c0_44] : memref<1x150xf32, #tpu.memory_space<vmem>>, vector<1x150xf32>
    %59 = arith.addf %57, %58 : vector<1x150xf32>
    %cst_45 = arith.constant dense<0xFF800000> : vector<1xf32>
    %60 = vector.multi_reduction <maximumf>, %59, %cst_45 [1] : vector<1x150xf32> to vector<1xf32>
    %61 = vector.shape_cast %60 : vector<1xf32> to vector<1x1xf32>
    %62 = vector.broadcast %61 : vector<1x1xf32> to vector<1x150xf32>
    %63 = arith.subf %59, %62 : vector<1x150xf32>
    %64 = math.exp %63 : vector<1x150xf32>
    %cst_46 = arith.constant dense<0.000000e+00> : vector<1xf32>
    %65 = vector.multi_reduction <add>, %64, %cst_46 [1] : vector<1x150xf32> to vector<1xf32>
    %66 = vector.shape_cast %65 : vector<1xf32> to vector<1x1xf32>
    %67 = math.log %66 : vector<1x1xf32>
    %68 = vector.broadcast %67 : vector<1x1xf32> to vector<1x150xf32>
    %69 = arith.subf %63, %68 : vector<1x150xf32>
    %c0_47 = arith.constant 0 : index
    %c0_48 = arith.constant 0 : index
    %c0_49 = arith.constant 0 : index
    %70 = vector.load %arg10[%c0_47, %c0_48, %c0_49] : memref<1x1x150xf32, #tpu.memory_space<vmem>>, vector<1x1x150xf32>
    %71 = vector.shape_cast %70 : vector<1x1x150xf32> to vector<1x150xf32>
    %72 = vector.shape_cast %69 : vector<1x150xf32> to vector<1x1x150xf32>
    tpu.vector_store %arg10[%c0_47, %c0_48, %c0_49], %72 {strides = array<i32>} : memref<1x1x150xf32, #tpu.memory_space<vmem>>, vector<1x1x150xf32>,
    return
  }
  func.func @transform_0(%arg0: i32) -> (i32, i32, i32) {
    %c0_i32 = arith.constant 0 : i32
    %c0_i32_0 = arith.constant 0 : i32
    %c0_i32_1 = arith.constant 0 : i32
    return %arg0, %c0_i32, %c0_i32_0 : i32, i32, i32
  }
  func.func @transform_1(%arg0: i32) -> (i32, i32) {
    %c0_i32 = arith.constant 0 : i32
    %c0_i32_0 = arith.constant 0 : i32
    %c0_i32_1 = arith.constant 0 : i32
    return %c0_i32, %c0_i32_0 : i32, i32
  }
  func.func @transform_2(%arg0: i32) -> (i32, i32) {
    %c0_i32 = arith.constant 0 : i32
    %c0_i32_0 = arith.constant 0 : i32
    %c0_i32_1 = arith.constant 0 : i32
    return %c0_i32, %c0_i32_0 : i32, i32
  }
  func.func @transform_3(%arg0: i32) -> (i32, i32) {
    %c0_i32 = arith.constant 0 : i32
    %c0_i32_0 = arith.constant 0 : i32
    %c0_i32_1 = arith.constant 0 : i32
    return %c0_i32, %c0_i32_0 : i32, i32
  }
  func.func @transform_4(%arg0: i32) -> (i32, i32) {
    %c0_i32 = arith.constant 0 : i32
    %c0_i32_0 = arith.constant 0 : i32
    %c0_i32_1 = arith.constant 0 : i32
    return %c0_i32, %c0_i32_0 : i32, i32
  }
  func.func @transform_5(%arg0: i32) -> (i32, i32, i32) {
    %c0_i32 = arith.constant 0 : i32
    %c0_i32_0 = arith.constant 0 : i32
    %c0_i32_1 = arith.constant 0 : i32
    return %arg0, %c0_i32, %c0_i32_0 : i32, i32, i32
  }
  func.func @transform_6(%arg0: i32) -> (i32, i32) {
    %c0_i32 = arith.constant 0 : i32
    %c0_i32_0 = arith.constant 0 : i32
    %c0_i32_1 = arith.constant 0 : i32
    return %c0_i32, %c0_i32_0 : i32, i32
  }
  func.func @transform_7(%arg0: i32) -> (i32, i32) {
    %c0_i32 = arith.constant 0 : i32
    %c0_i32_0 = arith.constant 0 : i32
    %c0_i32_1 = arith.constant 0 : i32
    return %c0_i32, %c0_i32_0 : i32, i32
  }
  func.func @transform_8(%arg0: i32) -> (i32, i32, i32) {
    %c0_i32 = arith.constant 0 : i32
    %c0_i32_0 = arith.constant 0 : i32
    %c0_i32_1 = arith.constant 0 : i32
    return %arg0, %c0_i32, %c0_i32_0 : i32, i32, i32
  }
  func.func @transform_9(%arg0: i32) -> (i32, i32, i32) {
    %c0_i32 = arith.constant 0 : i32
    %c0_i32_0 = arith.constant 0 : i32
    %c0_i32_1 = arith.constant 0 : i32
    return %arg0, %c0_i32, %c0_i32_0 : i32, i32, i32
  }
}

</mosaic_0001>

<llo_original>
// kernel: model_forward.5
$region0: #{model_forward.5}
  #allocation0 [shape = 'u32[]', space=smem, size = 0x4, offset = 0x4, fixed_abs, tag = 'smem constant byte address 0x4 - core index']
  #allocation1 [shape = 'u32[72,128]{1,0:T(1,128)}', space=vmem, size = 0x9000, scoped, tag = 'internal scratch']
  %s0 = inlined_call_operand.vmem [shape: f32[2,17920,128], index: 0, kind: input, shape index: {}]
  %s1 = inlined_call_operand.vmem [shape: f32[2,128,128], index: 1, kind: input, shape index: {}]
  %s2 = inlined_call_operand.vmem [shape: f32[2,1,128], index: 2, kind: input, shape index: {}]
  %s3 = inlined_call_operand.vmem [shape: f32[2,17920,128], index: 3, kind: output, shape index: {}]
  %s4 = sld [smem:[#allocation0]]
  $region52: #{model_forward.5} parent=0
    _
  %s6 = ssub.s32 1, %s4
  %s7 = scalar_select 0, %s6, %s4
  loop: start=0, step=1, limit=6
  $region2: #{model_forward.5} parent=0 // loop_pre_header
    _
  $region3: #{model_forward.5} parent=0 // loop_header
    %s9 = sphi 0, %s13
    %p10 = scmp.ge.s32.totalorder %s9, 6
    %s16 = sphi 0, %s28
    %s17 = sphi 0, %s24
    %s18 = sphi 0, %s16
    %s19 = sphi 0, %s17
    %s20 = sphi 0, %s18
    %s21 = sphi 0, %s19
    %s33 = sphi 0, %s35
    %s36 = sphi 0, %s33
    %s37 = sphi 0, %s36
    %s53 = sphi 0, %s37
    %s59 = sphi 0, %s61
    %s62 = sphi 0, %s59
    %s63 = sphi 0, %s62
    %s79 = sphi 0, %s63
    %s85 = sphi 0, %s87
    %s88 = sphi 0, %s85
    %s89 = sphi 0, %s88
    %s105 = sphi 0, %s89
    %s113 = sphi 0, %s115
    %s116 = sphi 0, %s113
    %s117 = sphi 0, %s116
    %s133 = sphi 0, %s117
  $region4: #{model_forward.5} parent=0 // loop_header_branch
    %12 = sbr.rel (%p10) target = $region8
  $region5: #{model_forward.5} parent=0 // loop_body
    %s14 = ssub.s32 %s9, 1
    %s15 = ssub.s32 %s9, 2
    %s22 = sadd.s32 1, %s17
    %p23 = scmp.ge.s32.totalorder %s22, 2
    %s24 = scalar_select %p23, 0, %s22
    %s25 = sadd.s32 1, %s16
    %s26 = scalar_select %p23, %s25, %s16
    %p27 = scmp.ge.s32.totalorder %s26, 2
    %s28 = scalar_select %p27, 0, %s26
    %s29 = ssub.s32 %s16, %s28
    %s30 = ssub.s32 %s17, %s24
    %s31 = sor.u32 %s29, %s30
    %p32 = scmp.eq.s32.totalorder %s31, 0
    %s34 = sadd.s32 %s33, 1
    %s35 = scalar_select %p32, %s33, %s34
    %p38 = pneg %p32
    %p39 = scmp.eq.s32.totalorder %s9, 3
    %p40 = por %p38, %p39
    %p41 = scmp.ne.s32.totalorder %s33, %s36
    %p42 = scmp.eq.s32.totalorder %s9, 0
    %p43 = por %p41, %p42
    %p44 = scmp.ne.s32.totalorder %s33, %s36
    %p45 = scmp.eq.s32.totalorder %s14, 3
    %p46 = por %p44, %p45
    %p47 = scmp.ne.s32.totalorder %s36, %s37
    %p48 = scmp.eq.s32.totalorder %s14, 0
    %p49 = por %p47, %p48
    %p50 = scmp.ne.s32.totalorder %s36, %s37
    %p51 = scmp.eq.s32.totalorder %s15, 3
    %p52 = por %p50, %p51
    %p54 = scmp.ne.s32.totalorder %s37, %s53
    %p55 = scmp.eq.s32.totalorder %s15, 0
    %p56 = por %p54, %p55
    %s57 = ssub.s32 %s16, %s28
    %p58 = scmp.eq.s32.totalorder %s57, 0
    %s60 = sadd.s32 %s59, 1
    %s61 = scalar_select %p58, %s59, %s60
    %p64 = pneg %p58
    %p65 = scmp.eq.s32.totalorder %s9, 3
    %p66 = por %p64, %p65
    %p67 = scmp.ne.s32.totalorder %s59, %s62
    %p68 = scmp.eq.s32.totalorder %s9, 0
    %p69 = por %p67, %p68
    %p70 = scmp.ne.s32.totalorder %s59, %s62
    %p71 = scmp.eq.s32.totalorder %s14, 3
    %p72 = por %p70, %p71
    %p73 = scmp.ne.s32.totalorder %s62, %s63
    %p74 = scmp.eq.s32.totalorder %s14, 0
    %p75 = por %p73, %p74
    %p76 = scmp.ne.s32.totalorder %s62, %s63
    %p77 = scmp.eq.s32.totalorder %s15, 3
    %p78 = por %p76, %p77
    %p80 = scmp.ne.s32.totalorder %s63, %s79
    %p81 = scmp.eq.s32.totalorder %s15, 0
    %p82 = por %p80, %p81
    %s83 = ssub.s32 %s16, %s28
    %p84 = scmp.eq.s32.totalorder %s83, 0
    %s86 = sadd.s32 %s85, 1
    %s87 = scalar_select %p84, %s85, %s86
    %p90 = pneg %p84
    %p91 = scmp.eq.s32.totalorder %s9, 3
    %p92 = por %p90, %p91
    %p93 = scmp.ne.s32.totalorder %s85, %s88
    %p94 = scmp.eq.s32.totalorder %s9, 0
    %p95 = por %p93, %p94
    %p96 = scmp.ne.s32.totalorder %s85, %s88
    %p97 = scmp.eq.s32.totalorder %s14, 3
    %p98 = por %p96, %p97
    %p99 = scmp.ne.s32.totalorder %s88, %s89
    %p100 = scmp.eq.s32.totalorder %s14, 0
    %p101 = por %p99, %p100
    %p102 = scmp.ne.s32.totalorder %s88, %s89
    %p103 = scmp.eq.s32.totalorder %s15, 3
    %p104 = por %p102, %p103
    %p106 = scmp.ne.s32.totalorder %s89, %s105
    %p107 = scmp.eq.s32.totalorder %s15, 0
    %p108 = por %p106, %p107
    %s109 = ssub.s32 %s16, %s28
    %s110 = ssub.s32 %s17, %s24
    %s111 = sor.u32 %s109, %s110
    %p112 = scmp.eq.s32.totalorder %s111, 0
    %s114 = sadd.s32 %s113, 1
    %s115 = scalar_select %p112, %s113, %s114
    %p118 = pneg %p112
    %p119 = scmp.eq.s32.totalorder %s9, 3
    %p120 = por %p118, %p119
    %p121 = scmp.ne.s32.totalorder %s113, %s116
    %p122 = scmp.eq.s32.totalorder %s9, 0
    %p123 = por %p121, %p122
    %p124 = scmp.ne.s32.totalorder %s113, %s116
    %p125 = scmp.eq.s32.totalorder %s14, 3
    %p126 = por %p124, %p125
    %p127 = scmp.ne.s32.totalorder %s116, %s117
    %p128 = scmp.eq.s32.totalorder %s14, 0
    %p129 = por %p127, %p128
    %p130 = scmp.ne.s32.totalorder %s116, %s117
    %p131 = scmp.eq.s32.totalorder %s15, 3
    %p132 = por %p130, %p131
    %p134 = scmp.ne.s32.totalorder %s117, %s133
    %p135 = scmp.eq.s32.totalorder %s15, 0
    %p136 = por %p134, %p135
    %p137 = scmp.le.s32.totalorder 1, %s9
    %p138 = scmp.lt.s32.totalorder %s9, 5
    %p139 = pnand %p137, %p138
    %p140 = pneg %p139
    // Predicated region
    $region9: #{model_forward.5} parent=5 // pred_check
      _
    $region10: #{model_forward.5} parent=5 // pred_check_branch
      %142 = sbr.rel (%p139) target = $region12
    $region11: #{model_forward.5} parent=5 // pred_region
      %s143 = ssub.s32 %s9, 1
    $region12: #{model_forward.5} parent=5 // pred_fallthru
      _
    %p144 = scmp.lt.s32.totalorder %s9, 4
    // Predicated region
    $region13: #{model_forward.5} parent=5 // pred_check
      %p145 = pneg %p144
    $region14: #{model_forward.5} parent=5 // pred_check_branch
      %147 = sbr.rel (%p145) target = $region16
    $region15: #{model_forward.5} parent=5 // pred_region
      // Predicated region
      $region17: #{model_forward.5} parent=15 // pred_check
        %p148 = pneg %p43
      $region18: #{model_forward.5} parent=15 // pred_check_branch
        %150 = sbr.rel (%p148) target = $region20
      $region19: #{model_forward.5} parent=15 // pred_region
        %s151 = smul.u32 1120, %s17
        %p152 = scmp.lt.s32.totalorder %s16, 1
        %s153 = scalar_select %p152, %s16, 1
        %p154 = scmp.lt.s32.totalorder %s151, 2239
        %s155 = scalar_select %p154, %s151, 2239
        %s156 = smul.addr %s153, 2240
        %s157 = sadd.s32 %s155, %s156
        %s158 = smul.addr %s157, 8
        %s159 = scalar_lea.vmem %s0, %s158
        %s160 = smul.u32 1120, %s17
      $region20: #{model_forward.5} parent=15 // pred_fallthru
        _
      // Predicated region
      $region21: #{model_forward.5} parent=15 // pred_check
        %p161 = pneg %p69
      $region22: #{model_forward.5} parent=15 // pred_check_branch
        %163 = sbr.rel (%p161) target = $region24
      $region23: #{model_forward.5} parent=15 // pred_region
        %p164 = scmp.lt.s32.totalorder %s16, 1
        %s165 = scalar_select %p164, %s16, 1
        %s166 = smul.addr %s165, 16
        %s167 = smul.addr %s166, 8
        %s168 = scalar_lea.vmem %s1, %s167
      $region24: #{model_forward.5} parent=15 // pred_fallthru
        _
      // Predicated region
      $region25: #{model_forward.5} parent=15 // pred_check
        %p169 = pneg %p95
      $region26: #{model_forward.5} parent=15 // pred_check_branch
        %171 = sbr.rel (%p169) target = $region28
      $region27: #{model_forward.5} parent=15 // pred_region
        %p172 = scmp.lt.s32.totalorder %s16, 1
        %s173 = scalar_select %p172, %s16, 1
        %s174 = scalar_lea.vmem %s2, %s173
      $region28: #{model_forward.5} parent=15 // pred_fallthru
        _
    $region16: #{model_forward.5} parent=5 // pred_fallthru
      _
    %p175 = scmp.le.s32.totalorder 1, %s9
    %p176 = scmp.lt.s32.totalorder %s9, 5
    %p177 = pnand %p175, %p176
    %p178 = pneg %p177
    // Predicated region
    $region29: #{model_forward.5} parent=5 // pred_check
      _
    $region30: #{model_forward.5} parent=5 // pred_check_branch
      %180 = sbr.rel (%p177) target = $region32
    $region31: #{model_forward.5} parent=5 // pred_region
      %s181 = ssub.s32 %s9, 1
      %s182 = smul.u32 1120, %s19
      %p183 = scmp.lt.s32.totalorder %s18, 1
      %s184 = scalar_select %p183, %s18, 1
      %p185 = scmp.lt.s32.totalorder %s182, 2239
      %s186 = scalar_select %p185, %s182, 2239
      %s187 = smul.addr %s184, 2240
      %s188 = sadd.s32 %s186, %s187
      %s189 = smul.addr %s188, 8
      %s190 = scalar_lea.vmem %s0, %s189
      %p191 = pneg %p49
      %p192 = pneg %p46
      %p193 = scmp.lt.s32.totalorder %s18, 1
      %s194 = scalar_select %p193, %s18, 1
      %s195 = smul.addr %s194, 16
      %s196 = smul.addr %s195, 8
      %s197 = scalar_lea.vmem %s1, %s196
      %p198 = pneg %p75
      %p199 = pneg %p72
      %p200 = scmp.lt.s32.totalorder %s18, 1
      %s201 = scalar_select %p200, %s18, 1
      %s202 = scalar_lea.vmem %s2, %s201
      %p203 = pneg %p101
      %p204 = pneg %p98
      %p205 = pneg %p129
      %p206 = pneg %p126
      %s207 = smul.u32 1120, %s19
      %p208 = scmp.lt.s32.totalorder %s18, 1
      %s209 = scalar_select %p208, %s18, 1
      %p210 = scmp.lt.s32.totalorder %s207, 2239
      %s211 = scalar_select %p210, %s207, 2239
      %s212 = smul.addr %s209, 2240
      %s213 = sadd.s32 %s211, %s212
      %s214 = smul.addr %s213, 8
      %s215 = scalar_lea.vmem %s3, %s214
      %s216 = smul.u32 1120, %s19
      %p217 = scmp.lt.s32.totalorder %s18, 1
      %s218 = scalar_select %p217, %s18, 1
      %p219 = scmp.lt.s32.totalorder %s216, 2239
      %s220 = scalar_select %p219, %s216, 2239
      %s221 = smul.addr %s218, 2240
      %s222 = sadd.s32 %s220, %s221
      %s223 = smul.addr %s222, 8
      %s224 = scalar_lea.vmem %s0, %s223
      %s225 = smul.u32 1120, %s19
      %p226 = scmp.lt.s32.totalorder %s18, 1
      %s227 = scalar_select %p226, %s18, 1
      %s228 = smul.addr %s227, 16
      %s229 = smul.addr %s228, 8
      %s230 = scalar_lea.vmem %s1, %s229
      %p231 = scmp.lt.s32.totalorder %s18, 1
      %s232 = scalar_select %p231, %s18, 1
      %s233 = scalar_lea.vmem %s2, %s232
      %s234 = smul.u32 1120, %s19
      %p235 = scmp.lt.s32.totalorder %s18, 1
      %s236 = scalar_select %p235, %s18, 1
      %p237 = scmp.lt.s32.totalorder %s234, 2239
      %s238 = scalar_select %p237, %s234, 2239
      %s239 = smul.addr %s236, 2240
      %s240 = sadd.s32 %s238, %s239
      %s241 = smul.addr %s240, 8
      %s242 = scalar_lea.vmem %s3, %s241
      %s243 = smul.u32 1120, %s19
      loop: start=0, step=1, limit=20
      $region33: #{model_forward.5} parent=31 // loop_pre_header
        _
      $region34: #{model_forward.5} parent=31 // loop_header
        %s245 = sphi 0, %s249
        %p246 = scmp.ge.s32.totalorder %s245, 20
      $region35: #{model_forward.5} parent=31 // loop_header_branch
        %248 = sbr.rel (%p246) target = $region39
      $region36: #{model_forward.5} parent=31 // loop_body
        %s250 = smul.u32 %s245, 448
        %s251 = scalar_lea.vmem %s224, %s250
        %v252 = vld [vmem:[%s251] sm:$0xff]
        %v253 = vld [vmem:[%s251 + $0x8] sm:$0xff]
        %v254 = vld [vmem:[%s251 + $0x10] sm:$0xff]
        %v255 = vld [vmem:[%s251 + $0x18] sm:$0xff]
        %v256 = vld [vmem:[%s251 + $0x20] sm:$0xff]
        %v257 = vld [vmem:[%s251 + $0x28] sm:$0xff]
        %v258 = vld [vmem:[%s251 + $0x30] sm:$0xff]
        %v259 = vld [vmem:[%s251 + $0x38] sm:$0xff]
        %v260 = vld [vmem:[%s251 + $0x40] sm:$0xff]
        %v261 = vld [vmem:[%s251 + $0x48] sm:$0xff]
        %v262 = vld [vmem:[%s251 + $0x50] sm:$0xff]
        %v263 = vld [vmem:[%s251 + $0x58] sm:$0xff]
        %v264 = vld [vmem:[%s251 + $0x60] sm:$0xff]
        %v265 = vld [vmem:[%s251 + $0x68] sm:$0xff]
        %v266 = vld [vmem:[%s251 + $0x70] sm:$0xff]
        %v267 = vld [vmem:[%s251 + $0x78] sm:$0xff]
        %v268 = vld [vmem:[%s251 + $0x80] sm:$0xff]
        %v269 = vld [vmem:[%s251 + $0x88] sm:$0xff]
        %v270 = vld [vmem:[%s251 + $0x90] sm:$0xff]
        %v271 = vld [vmem:[%s251 + $0x98] sm:$0xff]
        %v272 = vld [vmem:[%s251 + $0xa0] sm:$0xff]
        %v273 = vld [vmem:[%s251 + $0xa8] sm:$0xff]
        %v274 = vld [vmem:[%s251 + $0xb0] sm:$0xff]
        %v275 = vld [vmem:[%s251 + $0xb8] sm:$0xff]
        %v276 = vld [vmem:[%s251 + $0xc0] sm:$0xff]
        %v277 = vld [vmem:[%s251 + $0xc8] sm:$0xff]
        %v278 = vld [vmem:[%s251 + $0xd0] sm:$0xff]
        %v279 = vld [vmem:[%s251 + $0xd8] sm:$0xff]
        %v280 = vld [vmem:[%s251 + $0xe0] sm:$0xff]
        %v281 = vld [vmem:[%s251 + $0xe8] sm:$0xff]
        %v282 = vld [vmem:[%s251 + $0xf0] sm:$0xff]
        %v283 = vld [vmem:[%s251 + $0xf8] sm:$0xff]
        %v284 = vld [vmem:[%s251 + $0x100] sm:$0xff]
        %v285 = vld [vmem:[%s251 + $0x108] sm:$0xff]
        %v286 = vld [vmem:[%s251 + $0x110] sm:$0xff]
        %v287 = vld [vmem:[%s251 + $0x118] sm:$0xff]
        %v288 = vld [vmem:[%s251 + $0x120] sm:$0xff]
        %v289 = vld [vmem:[%s251 + $0x128] sm:$0xff]
        %v290 = vld [vmem:[%s251 + $0x130] sm:$0xff]
        %v291 = vld [vmem:[%s251 + $0x138] sm:$0xff]
        %v292 = vld [vmem:[%s251 + $0x140] sm:$0xff]
        %v293 = vld [vmem:[%s251 + $0x148] sm:$0xff]
        %v294 = vld [vmem:[%s251 + $0x150] sm:$0xff]
        %v295 = vld [vmem:[%s251 + $0x158] sm:$0xff]
        %v296 = vld [vmem:[%s251 + $0x160] sm:$0xff]
        %v297 = vld [vmem:[%s251 + $0x168] sm:$0xff]
        %v298 = vld [vmem:[%s251 + $0x170] sm:$0xff]
        %v299 = vld [vmem:[%s251 + $0x178] sm:$0xff]
        %v300 = vld [vmem:[%s251 + $0x180] sm:$0xff]
        %v301 = vld [vmem:[%s251 + $0x188] sm:$0xff]
        %v302 = vld [vmem:[%s251 + $0x190] sm:$0xff]
        %v303 = vld [vmem:[%s251 + $0x198] sm:$0xff]
        %v304 = vld [vmem:[%s251 + $0x1a0] sm:$0xff]
        %v305 = vld [vmem:[%s251 + $0x1a8] sm:$0xff]
        %v306 = vld [vmem:[%s251 + $0x1b0] sm:$0xff]
        %v307 = vld [vmem:[%s251 + $0x1b8] sm:$0xff]
        %v308 = vld [vmem:[%s230] sm:$0xff]
        %v309 = vld [vmem:[%s230 + $0x8] sm:$0xff]
        %v310 = vld [vmem:[%s230 + $0x10] sm:$0xff]
        %v311 = vld [vmem:[%s230 + $0x18] sm:$0xff]
        %v312 = vld [vmem:[%s230 + $0x20] sm:$0xff]
        %v313 = vld [vmem:[%s230 + $0x28] sm:$0xff]
        %v314 = vld [vmem:[%s230 + $0x30] sm:$0xff]
        %v315 = vld [vmem:[%s230 + $0x38] sm:$0xff]
        %v316 = vld [vmem:[%s230 + $0x40] sm:$0xff]
        %v317 = vld [vmem:[%s230 + $0x48] sm:$0xff]
        %v318 = vld [vmem:[%s230 + $0x50] sm:$0xff]
        %v319 = vld [vmem:[%s230 + $0x58] sm:$0xff]
        %v320 = vld [vmem:[%s230 + $0x60] sm:$0xff]
        %v321 = vld [vmem:[%s230 + $0x68] sm:$0xff]
        %v322 = vld [vmem:[%s230 + $0x70] sm:$0xff]
        %v323 = vld [vmem:[%s230 + $0x78] sm:$0xff]
        %v324 = vld [vmem:[%s233] sm:$0x1]
        %v326 = vperm.slane %v324, 0
        %328 = vmatpush.msra.mxu0 %v323
        %329 = vmatpush.msra.mxu0 %v322
        %330 = vmatpush.msra.mxu0 %v321
        %331 = vmatpush.msra.mxu0 %v320
        %332 = vmatpush.msra.mxu0 %v319
        %333 = vmatpush.msra.mxu0 %v318
        %334 = vmatpush.msra.mxu0 %v317
        %335 = vmatpush.msra.mxu0 %v316
        %336 = vmatpush.msra.mxu0 %v315
        %337 = vmatpush.msra.mxu0 %v314
        %338 = vmatpush.msra.mxu0 %v313
        %339 = vmatpush.msra.mxu0 %v312
        %340 = vmatpush.msra.mxu0 %v311
        %341 = vmatpush.msra.mxu0 %v310
        %342 = vmatpush.msra.mxu0 %v309
        %343 = vmatpush.msra.mxu0 %v308
        %344 = vmatmul.f32.gmra.mxu0 %v252
        %v345 = vpop.f32.mrf.mxu0
        %v346 = vadd.f32 %v326, %v345
        %347 = vmatmul.f32.gmra.mxu0 %v253
        %v348 = vpop.f32.mrf.mxu0
        %v349 = vadd.f32 %v326, %v348
        %350 = vmatmul.f32.gmra.mxu0 %v254
        %v351 = vpop.f32.mrf.mxu0
        %v352 = vadd.f32 %v326, %v351
        %353 = vmatmul.f32.gmra.mxu0 %v255
        %v354 = vpop.f32.mrf.mxu0
        %v355 = vadd.f32 %v326, %v354
        %356 = vmatmul.f32.gmra.mxu0 %v256
        %v357 = vpop.f32.mrf.mxu0
        %v358 = vadd.f32 %v326, %v357
        %359 = vmatmul.f32.gmra.mxu0 %v257
        %v360 = vpop.f32.mrf.mxu0
        %v361 = vadd.f32 %v326, %v360
        %362 = vmatmul.f32.gmra.mxu0 %v258
        %v363 = vpop.f32.mrf.mxu0
        %v364 = vadd.f32 %v326, %v363
        %365 = vmatmul.f32.gmra.mxu0 %v259
        %v366 = vpop.f32.mrf.mxu0
        %v367 = vadd.f32 %v326, %v366
        %368 = vmatmul.f32.gmra.mxu0 %v260
        %v369 = vpop.f32.mrf.mxu0
        %v370 = vadd.f32 %v326, %v369
        %371 = vmatmul.f32.gmra.mxu0 %v261
        %v372 = vpop.f32.mrf.mxu0
        %v373 = vadd.f32 %v326, %v372
        %374 = vmatmul.f32.gmra.mxu0 %v262
        %v375 = vpop.f32.mrf.mxu0
        %v376 = vadd.f32 %v326, %v375
        %377 = vmatmul.f32.gmra.mxu0 %v263
        %v378 = vpop.f32.mrf.mxu0
        %v379 = vadd.f32 %v326, %v378
        %380 = vmatmul.f32.gmra.mxu0 %v264
        %v381 = vpop.f32.mrf.mxu0
        %v382 = vadd.f32 %v326, %v381
        %383 = vmatmul.f32.gmra.mxu0 %v265
        %v384 = vpop.f32.mrf.mxu0
        %v385 = vadd.f32 %v326, %v384
        %386 = vmatmul.f32.gmra.mxu0 %v266
        %v387 = vpop.f32.mrf.mxu0
        %v388 = vadd.f32 %v326, %v387
        %389 = vmatmul.f32.gmra.mxu0 %v267
        %v390 = vpop.f32.mrf.mxu0
        %v391 = vadd.f32 %v326, %v390
        %392 = vmatmul.f32.gmra.mxu0 %v268
        %v393 = vpop.f32.mrf.mxu0
        %v394 = vadd.f32 %v326, %v393
        %395 = vmatmul.f32.gmra.mxu0 %v269
        %v396 = vpop.f32.mrf.mxu0
        %v397 = vadd.f32 %v326, %v396
        %398 = vmatmul.f32.gmra.mxu0 %v270
        %v399 = vpop.f32.mrf.mxu0
        %v400 = vadd.f32 %v326, %v399
        %401 = vmatmul.f32.gmra.mxu0 %v271
        %v402 = vpop.f32.mrf.mxu0
        %v403 = vadd.f32 %v326, %v402
        %404 = vmatmul.f32.gmra.mxu0 %v272
        %v405 = vpop.f32.mrf.mxu0
        %v406 = vadd.f32 %v326, %v405
        %407 = vmatmul.f32.gmra.mxu0 %v273
        %v408 = vpop.f32.mrf.mxu0
        %v409 = vadd.f32 %v326, %v408
        %410 = vmatmul.f32.gmra.mxu0 %v274
        %v411 = vpop.f32.mrf.mxu0
        %v412 = vadd.f32 %v326, %v411
        %413 = vmatmul.f32.gmra.mxu0 %v275
        %v414 = vpop.f32.mrf.mxu0
        %v415 = vadd.f32 %v326, %v414
        %416 = vmatmul.f32.gmra.mxu0 %v276
        %v417 = vpop.f32.mrf.mxu0
        %v418 = vadd.f32 %v326, %v417
        %419 = vmatmul.f32.gmra.mxu0 %v277
        %v420 = vpop.f32.mrf.mxu0
        %v421 = vadd.f32 %v326, %v420
        %422 = vmatmul.f32.gmra.mxu0 %v278
        %v423 = vpop.f32.mrf.mxu0
        %v424 = vadd.f32 %v326, %v423
        %425 = vmatmul.f32.gmra.mxu0 %v279
        %v426 = vpop.f32.mrf.mxu0
        %v427 = vadd.f32 %v326, %v426
        %428 = vmatmul.f32.gmra.mxu0 %v280
        %v429 = vpop.f32.mrf.mxu0
        %v430 = vadd.f32 %v326, %v429
        %431 = vmatmul.f32.gmra.mxu0 %v281
        %v432 = vpop.f32.mrf.mxu0
        %v433 = vadd.f32 %v326, %v432
        %434 = vmatmul.f32.gmra.mxu0 %v282
        %v435 = vpop.f32.mrf.mxu0
        %v436 = vadd.f32 %v326, %v435
        %437 = vmatmul.f32.gmra.mxu0 %v283
        %v438 = vpop.f32.mrf.mxu0
        %v439 = vadd.f32 %v326, %v438
        %440 = vmatmul.f32.gmra.mxu0 %v284
        %v441 = vpop.f32.mrf.mxu0
        %v442 = vadd.f32 %v326, %v441
        %443 = vmatmul.f32.gmra.mxu0 %v285
        %v444 = vpop.f32.mrf.mxu0
        %v445 = vadd.f32 %v326, %v444
        %446 = vmatmul.f32.gmra.mxu0 %v286
        %v447 = vpop.f32.mrf.mxu0
        %v448 = vadd.f32 %v326, %v447
        %449 = vmatmul.f32.gmra.mxu0 %v287
        %v450 = vpop.f32.mrf.mxu0
        %v451 = vadd.f32 %v326, %v450
        %452 = vmatmul.f32.gmra.mxu0 %v288
        %v453 = vpop.f32.mrf.mxu0
        %v454 = vadd.f32 %v326, %v453
        %455 = vmatmul.f32.gmra.mxu0 %v289
        %v456 = vpop.f32.mrf.mxu0
        %v457 = vadd.f32 %v326, %v456
        %458 = vmatmul.f32.gmra.mxu0 %v290
        %v459 = vpop.f32.mrf.mxu0
        %v460 = vadd.f32 %v326, %v459
        %461 = vmatmul.f32.gmra.mxu0 %v291
        %v462 = vpop.f32.mrf.mxu0
        %v463 = vadd.f32 %v326, %v462
        %464 = vmatmul.f32.gmra.mxu0 %v292
        %v465 = vpop.f32.mrf.mxu0
        %v466 = vadd.f32 %v326, %v465
        %467 = vmatmul.f32.gmra.mxu0 %v293
        %v468 = vpop.f32.mrf.mxu0
        %v469 = vadd.f32 %v326, %v468
        %470 = vmatmul.f32.gmra.mxu0 %v294
        %v471 = vpop.f32.mrf.mxu0
        %v472 = vadd.f32 %v326, %v471
        %473 = vmatmul.f32.gmra.mxu0 %v295
        %v474 = vpop.f32.mrf.mxu0
        %v475 = vadd.f32 %v326, %v474
        %476 = vmatmul.f32.gmra.mxu0 %v296
        %v477 = vpop.f32.mrf.mxu0
        %v478 = vadd.f32 %v326, %v477
        %479 = vmatmul.f32.gmra.mxu0 %v297
        %v480 = vpop.f32.mrf.mxu0
        %v481 = vadd.f32 %v326, %v480
        %482 = vmatmul.f32.gmra.mxu0 %v298
        %v483 = vpop.f32.mrf.mxu0
        %v484 = vadd.f32 %v326, %v483
        %485 = vmatmul.f32.gmra.mxu0 %v299
        %v486 = vpop.f32.mrf.mxu0
        %v487 = vadd.f32 %v326, %v486
        %488 = vmatmul.f32.gmra.mxu0 %v300
        %v489 = vpop.f32.mrf.mxu0
        %v490 = vadd.f32 %v326, %v489
        %491 = vmatmul.f32.gmra.mxu0 %v301
        %v492 = vpop.f32.mrf.mxu0
        %v493 = vadd.f32 %v326, %v492
        %494 = vmatmul.f32.gmra.mxu0 %v302
        %v495 = vpop.f32.mrf.mxu0
        %v496 = vadd.f32 %v326, %v495
        %497 = vmatmul.f32.gmra.mxu0 %v303
        %v498 = vpop.f32.mrf.mxu0
        %v499 = vadd.f32 %v326, %v498
        %500 = vmatmul.f32.gmra.mxu0 %v304
        %v501 = vpop.f32.mrf.mxu0
        %v502 = vadd.f32 %v326, %v501
        %503 = vmatmul.f32.gmra.mxu0 %v305
        %v504 = vpop.f32.mrf.mxu0
        %v505 = vadd.f32 %v326, %v504
        %506 = vmatmul.f32.gmra.mxu0 %v306
        %v507 = vpop.f32.mrf.mxu0
        %v508 = vadd.f32 %v326, %v507
        %509 = vmatmul.f32.gmra.mxu0 %v307
        %v510 = vpop.f32.mrf.mxu0
        %v511 = vadd.f32 %v326, %v510
        %512 = vdwg.mxu0
        %v513 = vtanh.pop %v346
        %v514 = vtanh.pop %v349
        %v515 = vtanh.pop %v352
        %v516 = vtanh.pop %v355
        %v517 = vtanh.pop %v358
        %v518 = vtanh.pop %v361
        %v519 = vtanh.pop %v364
        %v520 = vtanh.pop %v367
        %v521 = vtanh.pop %v370
        %v522 = vtanh.pop %v373
        %v523 = vtanh.pop %v376
        %v524 = vtanh.pop %v379
        %v525 = vtanh.pop %v382
        %v526 = vtanh.pop %v385
        %v527 = vtanh.pop %v388
        %v528 = vtanh.pop %v391
        %v529 = vtanh.pop %v394
        %v530 = vtanh.pop %v397
        %v531 = vtanh.pop %v400
        %v532 = vtanh.pop %v403
        %v533 = vtanh.pop %v406
        %v534 = vtanh.pop %v409
        %v535 = vtanh.pop %v412
        %v536 = vtanh.pop %v415
        %v537 = vtanh.pop %v418
        %v538 = vtanh.pop %v421
        %v539 = vtanh.pop %v424
        %v540 = vtanh.pop %v427
        %v541 = vtanh.pop %v430
        %v542 = vtanh.pop %v433
        %v543 = vtanh.pop %v436
        %v544 = vtanh.pop %v439
        %v545 = vtanh.pop %v442
        %v546 = vtanh.pop %v445
        %v547 = vtanh.pop %v448
        %v548 = vtanh.pop %v451
        %v549 = vtanh.pop %v454
        %v550 = vtanh.pop %v457
        %v551 = vtanh.pop %v460
        %v552 = vtanh.pop %v463
        %v553 = vtanh.pop %v466
        %v554 = vtanh.pop %v469
        %v555 = vtanh.pop %v472
        %v556 = vtanh.pop %v475
        %v557 = vtanh.pop %v478
        %v558 = vtanh.pop %v481
        %v559 = vtanh.pop %v484
        %v560 = vtanh.pop %v487
        %v561 = vtanh.pop %v490
        %v562 = vtanh.pop %v493
        %v563 = vtanh.pop %v496
        %v564 = vtanh.pop %v499
        %v565 = vtanh.pop %v502
        %v566 = vtanh.pop %v505
        %v567 = vtanh.pop %v508
        %v568 = vtanh.pop %v511
        %s569 = scalar_lea.vmem %s242, %s250
        %570 = vst [vmem:[%s569] sm:$0xff] %v513
        %571 = vst [vmem:[%s569 + $0x8] sm:$0xff] %v514
        %572 = vst [vmem:[%s569 + $0x10] sm:$0xff] %v515
        %573 = vst [vmem:[%s569 + $0x18] sm:$0xff] %v516
        %574 = vst [vmem:[%s569 + $0x20] sm:$0xff] %v517
        %575 = vst [vmem:[%s569 + $0x28] sm:$0xff] %v518
        %576 = vst [vmem:[%s569 + $0x30] sm:$0xff] %v519
        %577 = vst [vmem:[%s569 + $0x38] sm:$0xff] %v520
        %578 = vst [vmem:[%s569 + $0x40] sm:$0xff] %v521
        %579 = vst [vmem:[%s569 + $0x48] sm:$0xff] %v522
        %580 = vst [vmem:[%s569 + $0x50] sm:$0xff] %v523
        %581 = vst [vmem:[%s569 + $0x58] sm:$0xff] %v524
        %582 = vst [vmem:[%s569 + $0x60] sm:$0xff] %v525
        %583 = vst [vmem:[%s569 + $0x68] sm:$0xff] %v526
        %584 = vst [vmem:[%s569 + $0x70] sm:$0xff] %v527
        %585 = vst [vmem:[%s569 + $0x78] sm:$0xff] %v528
        %586 = vst [vmem:[%s569 + $0x80] sm:$0xff] %v529
        %587 = vst [vmem:[%s569 + $0x88] sm:$0xff] %v530
        %588 = vst [vmem:[%s569 + $0x90] sm:$0xff] %v531
        %589 = vst [vmem:[%s569 + $0x98] sm:$0xff] %v532
        %590 = vst [vmem:[%s569 + $0xa0] sm:$0xff] %v533
        %591 = vst [vmem:[%s569 + $0xa8] sm:$0xff] %v534
        %592 = vst [vmem:[%s569 + $0xb0] sm:$0xff] %v535
        %593 = vst [vmem:[%s569 + $0xb8] sm:$0xff] %v536
        %594 = vst [vmem:[%s569 + $0xc0] sm:$0xff] %v537
        %595 = vst [vmem:[%s569 + $0xc8] sm:$0xff] %v538
        %596 = vst [vmem:[%s569 + $0xd0] sm:$0xff] %v539
        %597 = vst [vmem:[%s569 + $0xd8] sm:$0xff] %v540
        %598 = vst [vmem:[%s569 + $0xe0] sm:$0xff] %v541
        %599 = vst [vmem:[%s569 + $0xe8] sm:$0xff] %v542
        %600 = vst [vmem:[%s569 + $0xf0] sm:$0xff] %v543
        %601 = vst [vmem:[%s569 + $0xf8] sm:$0xff] %v544
        %602 = vst [vmem:[%s569 + $0x100] sm:$0xff] %v545
        %603 = vst [vmem:[%s569 + $0x108] sm:$0xff] %v546
        %604 = vst [vmem:[%s569 + $0x110] sm:$0xff] %v547
        %605 = vst [vmem:[%s569 + $0x118] sm:$0xff] %v548
        %606 = vst [vmem:[%s569 + $0x120] sm:$0xff] %v549
        %607 = vst [vmem:[%s569 + $0x128] sm:$0xff] %v550
        %608 = vst [vmem:[%s569 + $0x130] sm:$0xff] %v551
        %609 = vst [vmem:[%s569 + $0x138] sm:$0xff] %v552
        %610 = vst [vmem:[%s569 + $0x140] sm:$0xff] %v553
        %611 = vst [vmem:[%s569 + $0x148] sm:$0xff] %v554
        %612 = vst [vmem:[%s569 + $0x150] sm:$0xff] %v555
        %613 = vst [vmem:[%s569 + $0x158] sm:$0xff] %v556
        %614 = vst [vmem:[%s569 + $0x160] sm:$0xff] %v557
        %615 = vst [vmem:[%s569 + $0x168] sm:$0xff] %v558
        %616 = vst [vmem:[%s569 + $0x170] sm:$0xff] %v559
        %617 = vst [vmem:[%s569 + $0x178] sm:$0xff] %v560
        %618 = vst [vmem:[%s569 + $0x180] sm:$0xff] %v561
        %619 = vst [vmem:[%s569 + $0x188] sm:$0xff] %v562
        %620 = vst [vmem:[%s569 + $0x190] sm:$0xff] %v563
        %621 = vst [vmem:[%s569 + $0x198] sm:$0xff] %v564
        %622 = vst [vmem:[%s569 + $0x1a0] sm:$0xff] %v565
        %623 = vst [vmem:[%s569 + $0x1a8] sm:$0xff] %v566
        %624 = vst [vmem:[%s569 + $0x1b0] sm:$0xff] %v567
        %625 = vst [vmem:[%s569 + $0x1b8] sm:$0xff] %v568
      $region37: #{model_forward.5} parent=31 // loop_footer
        %s249 = sadd.s32 1, %s245
      $region38: #{model_forward.5} parent=31 // loop_footer_branch
        %244 = sbr.rel target = $region34
      $region39: #{model_forward.5} parent=31 // loop_exit
        _
      %s626 = smul.u32 1120, %s19
      %p627 = scmp.lt.s32.totalorder %s18, 1
      %s628 = scalar_select %p627, %s18, 1
      %p629 = scmp.lt.s32.totalorder %s626, 2239
      %s630 = scalar_select %p629, %s626, 2239
      %s631 = smul.addr %s628, 2240
      %s632 = sadd.s32 %s630, %s631
      %s633 = smul.addr %s632, 8
      %s634 = scalar_lea.vmem %s3, %s633
      // Predicated region
      $region40: #{model_forward.5} parent=31 // pred_check
        %p635 = pneg %p126
      $region41: #{model_forward.5} parent=31 // pred_check_branch
        %637 = sbr.rel (%p635) target = $region43
      $region42: #{model_forward.5} parent=31 // pred_region
        %s638 = smul.u32 1120, %s19
      $region43: #{model_forward.5} parent=31 // pred_fallthru
        _
    $region32: #{model_forward.5} parent=5 // pred_fallthru
      _
    %p639 = scmp.le.s32.totalorder 2, %s9
    // Predicated region
    $region44: #{model_forward.5} parent=5 // pred_check
      %p640 = pneg %p639
    $region45: #{model_forward.5} parent=5 // pred_check_branch
      %642 = sbr.rel (%p640) target = $region47
    $region46: #{model_forward.5} parent=5 // pred_region
      %s643 = ssub.s32 %s9, 2
      // Predicated region
      $region48: #{model_forward.5} parent=46 // pred_check
        %p644 = pneg %p132
      $region49: #{model_forward.5} parent=46 // pred_check_branch
        %646 = sbr.rel (%p644) target = $region51
      $region50: #{model_forward.5} parent=46 // pred_region
        %s647 = smul.u32 1120, %s21
        %p648 = scmp.lt.s32.totalorder %s20, 1
        %s649 = scalar_select %p648, %s20, 1
        %p650 = scmp.lt.s32.totalorder %s647, 2239
        %s651 = scalar_select %p650, %s647, 2239
        %s652 = smul.addr %s649, 2240
        %s653 = sadd.s32 %s651, %s652
        %s654 = smul.addr %s653, 8
        %s655 = scalar_lea.vmem %s3, %s654
      $region51: #{model_forward.5} parent=46 // pred_fallthru
        _
    $region47: #{model_forward.5} parent=5 // pred_fallthru
      _
  $region6: #{model_forward.5} parent=0 // loop_footer
    %s13 = sadd.s32 1, %s9
  $region7: #{model_forward.5} parent=0 // loop_footer_branch
    %8 = sbr.rel target = $region3
  $region8: #{model_forward.5} parent=0 // loop_exit
    _

// kernel: model_forward.6
$region0: #{model_forward.6}
  #allocation0 [shape = 'u32[]', space=smem, size = 0x4, offset = 0x4, fixed_abs, tag = 'smem constant byte address 0x4 - core index']
  #allocation1 [shape = 'u32[72,128]{1,0:T(1,128)}', space=vmem, size = 0x9000, scoped, tag = 'internal scratch']
  %s0 = inlined_call_operand.vmem [shape: f32[2,6144,512], index: 0, kind: input, shape index: {}]
  %s1 = inlined_call_operand.vmem [shape: f32[2,512,128], index: 1, kind: input, shape index: {}]
  %s2 = inlined_call_operand.vmem [shape: f32[2,1,128], index: 2, kind: input, shape index: {}]
  %s3 = inlined_call_operand.vmem [shape: f32[2,6144,128], index: 3, kind: output, shape index: {}]
  %s4 = sld [smem:[#allocation0]]
  $region52: #{model_forward.6} parent=0
    _
  %s6 = ssub.s32 1, %s4
  %s7 = scalar_select 0, %s6, %s4
  loop: start=0, step=1, limit=6
  $region2: #{model_forward.6} parent=0 // loop_pre_header
    _
  $region3: #{model_forward.6} parent=0 // loop_header
    %s9 = sphi 0, %s13
    %p10 = scmp.ge.s32.totalorder %s9, 6
    %s16 = sphi 0, %s28
    %s17 = sphi 0, %s24
    %s18 = sphi 0, %s16
    %s19 = sphi 0, %s17
    %s20 = sphi 0, %s18
    %s21 = sphi 0, %s19
    %s33 = sphi 0, %s35
    %s36 = sphi 0, %s33
    %s37 = sphi 0, %s36
    %s53 = sphi 0, %s37
    %s59 = sphi 0, %s61
    %s62 = sphi 0, %s59
    %s63 = sphi 0, %s62
    %s79 = sphi 0, %s63
    %s85 = sphi 0, %s87
    %s88 = sphi 0, %s85
    %s89 = sphi 0, %s88
    %s105 = sphi 0, %s89
    %s113 = sphi 0, %s115
    %s116 = sphi 0, %s113
    %s117 = sphi 0, %s116
    %s133 = sphi 0, %s117
  $region4: #{model_forward.6} parent=0 // loop_header_branch
    %12 = sbr.rel (%p10) target = $region8
  $region5: #{model_forward.6} parent=0 // loop_body
    %s14 = ssub.s32 %s9, 1
    %s15 = ssub.s32 %s9, 2
    %s22 = sadd.s32 1, %s17
    %p23 = scmp.ge.s32.totalorder %s22, 2
    %s24 = scalar_select %p23, 0, %s22
    %s25 = sadd.s32 1, %s16
    %s26 = scalar_select %p23, %s25, %s16
    %p27 = scmp.ge.s32.totalorder %s26, 2
    %s28 = scalar_select %p27, 0, %s26
    %s29 = ssub.s32 %s16, %s28
    %s30 = ssub.s32 %s17, %s24
    %s31 = sor.u32 %s29, %s30
    %p32 = scmp.eq.s32.totalorder %s31, 0
    %s34 = sadd.s32 %s33, 1
    %s35 = scalar_select %p32, %s33, %s34
    %p38 = pneg %p32
    %p39 = scmp.eq.s32.totalorder %s9, 3
    %p40 = por %p38, %p39
    %p41 = scmp.ne.s32.totalorder %s33, %s36
    %p42 = scmp.eq.s32.totalorder %s9, 0
    %p43 = por %p41, %p42
    %p44 = scmp.ne.s32.totalorder %s33, %s36
    %p45 = scmp.eq.s32.totalorder %s14, 3
    %p46 = por %p44, %p45
    %p47 = scmp.ne.s32.totalorder %s36, %s37
    %p48 = scmp.eq.s32.totalorder %s14, 0
    %p49 = por %p47, %p48
    %p50 = scmp.ne.s32.totalorder %s36, %s37
    %p51 = scmp.eq.s32.totalorder %s15, 3
    %p52 = por %p50, %p51
    %p54 = scmp.ne.s32.totalorder %s37, %s53
    %p55 = scmp.eq.s32.totalorder %s15, 0
    %p56 = por %p54, %p55
    %s57 = ssub.s32 %s16, %s28
    %p58 = scmp.eq.s32.totalorder %s57, 0
    %s60 = sadd.s32 %s59, 1
    %s61 = scalar_select %p58, %s59, %s60
    %p64 = pneg %p58
    %p65 = scmp.eq.s32.totalorder %s9, 3
    %p66 = por %p64, %p65
    %p67 = scmp.ne.s32.totalorder %s59, %s62
    %p68 = scmp.eq.s32.totalorder %s9, 0
    %p69 = por %p67, %p68
    %p70 = scmp.ne.s32.totalorder %s59, %s62
    %p71 = scmp.eq.s32.totalorder %s14, 3
    %p72 = por %p70, %p71
    %p73 = scmp.ne.s32.totalorder %s62, %s63
    %p74 = scmp.eq.s32.totalorder %s14, 0
    %p75 = por %p73, %p74
    %p76 = scmp.ne.s32.totalorder %s62, %s63
    %p77 = scmp.eq.s32.totalorder %s15, 3
    %p78 = por %p76, %p77
    %p80 = scmp.ne.s32.totalorder %s63, %s79
    %p81 = scmp.eq.s32.totalorder %s15, 0
    %p82 = por %p80, %p81
    %s83 = ssub.s32 %s16, %s28
    %p84 = scmp.eq.s32.totalorder %s83, 0
    %s86 = sadd.s32 %s85, 1
    %s87 = scalar_select %p84, %s85, %s86
    %p90 = pneg %p84
    %p91 = scmp.eq.s32.totalorder %s9, 3
    %p92 = por %p90, %p91
    %p93 = scmp.ne.s32.totalorder %s85, %s88
    %p94 = scmp.eq.s32.totalorder %s9, 0
    %p95 = por %p93, %p94
    %p96 = scmp.ne.s32.totalorder %s85, %s88
    %p97 = scmp.eq.s32.totalorder %s14, 3
    %p98 = por %p96, %p97
    %p99 = scmp.ne.s32.totalorder %s88, %s89
    %p100 = scmp.eq.s32.totalorder %s14, 0
    %p101 = por %p99, %p100
    %p102 = scmp.ne.s32.totalorder %s88, %s89
    %p103 = scmp.eq.s32.totalorder %s15, 3
    %p104 = por %p102, %p103
    %p106 = scmp.ne.s32.totalorder %s89, %s105
    %p107 = scmp.eq.s32.totalorder %s15, 0
    %p108 = por %p106, %p107
    %s109 = ssub.s32 %s16, %s28
    %s110 = ssub.s32 %s17, %s24
    %s111 = sor.u32 %s109, %s110
    %p112 = scmp.eq.s32.totalorder %s111, 0
    %s114 = sadd.s32 %s113, 1
    %s115 = scalar_select %p112, %s113, %s114
    %p118 = pneg %p112
    %p119 = scmp.eq.s32.totalorder %s9, 3
    %p120 = por %p118, %p119
    %p121 = scmp.ne.s32.totalorder %s113, %s116
    %p122 = scmp.eq.s32.totalorder %s9, 0
    %p123 = por %p121, %p122
    %p124 = scmp.ne.s32.totalorder %s113, %s116
    %p125 = scmp.eq.s32.totalorder %s14, 3
    %p126 = por %p124, %p125
    %p127 = scmp.ne.s32.totalorder %s116, %s117
    %p128 = scmp.eq.s32.totalorder %s14, 0
    %p129 = por %p127, %p128
    %p130 = scmp.ne.s32.totalorder %s116, %s117
    %p131 = scmp.eq.s32.totalorder %s15, 3
    %p132 = por %p130, %p131
    %p134 = scmp.ne.s32.totalorder %s117, %s133
    %p135 = scmp.eq.s32.totalorder %s15, 0
    %p136 = por %p134, %p135
    %p137 = scmp.le.s32.totalorder 1, %s9
    %p138 = scmp.lt.s32.totalorder %s9, 5
    %p139 = pnand %p137, %p138
    %p140 = pneg %p139
    // Predicated region
    $region9: #{model_forward.6} parent=5 // pred_check
      _
    $region10: #{model_forward.6} parent=5 // pred_check_branch
      %142 = sbr.rel (%p139) target = $region12
    $region11: #{model_forward.6} parent=5 // pred_region
      %s143 = ssub.s32 %s9, 1
    $region12: #{model_forward.6} parent=5 // pred_fallthru
      _
    %p144 = scmp.lt.s32.totalorder %s9, 4
    // Predicated region
    $region13: #{model_forward.6} parent=5 // pred_check
      %p145 = pneg %p144
    $region14: #{model_forward.6} parent=5 // pred_check_branch
      %147 = sbr.rel (%p145) target = $region16
    $region15: #{model_forward.6} parent=5 // pred_region
      // Predicated region
      $region17: #{model_forward.6} parent=15 // pred_check
        %p148 = pneg %p43
      $region18: #{model_forward.6} parent=15 // pred_check_branch
        %150 = sbr.rel (%p148) target = $region20
      $region19: #{model_forward.6} parent=15 // pred_region
        %s151 = smul.u32 384, %s17
        %p152 = scmp.lt.s32.totalorder %s16, 1
        %s153 = scalar_select %p152, %s16, 1
        %p154 = scmp.lt.s32.totalorder %s151, 767
        %s155 = scalar_select %p154, %s151, 767
        %s156 = smul.addr %s155, 4
        %s157 = smul.addr %s153, 3072
        %s158 = sadd.s32 %s156, %s157
        %s159 = smul.addr %s158, 8
        %s160 = scalar_lea.vmem %s0, %s159
        %s161 = smul.u32 384, %s17
      $region20: #{model_forward.6} parent=15 // pred_fallthru
        _
      // Predicated region
      $region21: #{model_forward.6} parent=15 // pred_check
        %p162 = pneg %p69
      $region22: #{model_forward.6} parent=15 // pred_check_branch
        %164 = sbr.rel (%p162) target = $region24
      $region23: #{model_forward.6} parent=15 // pred_region
        %p165 = scmp.lt.s32.totalorder %s16, 1
        %s166 = scalar_select %p165, %s16, 1
        %s167 = smul.addr %s166, 64
        %s168 = smul.addr %s167, 8
        %s169 = scalar_lea.vmem %s1, %s168
      $region24: #{model_forward.6} parent=15 // pred_fallthru
        _
      // Predicated region
      $region25: #{model_forward.6} parent=15 // pred_check
        %p170 = pneg %p95
      $region26: #{model_forward.6} parent=15 // pred_check_branch
        %172 = sbr.rel (%p170) target = $region28
      $region27: #{model_forward.6} parent=15 // pred_region
        %p173 = scmp.lt.s32.totalorder %s16, 1
        %s174 = scalar_select %p173, %s16, 1
        %s175 = scalar_lea.vmem %s2, %s174
      $region28: #{model_forward.6} parent=15 // pred_fallthru
        _
    $region16: #{model_forward.6} parent=5 // pred_fallthru
      _
    %p176 = scmp.le.s32.totalorder 1, %s9
    %p177 = scmp.lt.s32.totalorder %s9, 5
    %p178 = pnand %p176, %p177
    %p179 = pneg %p178
    // Predicated region
    $region29: #{model_forward.6} parent=5 // pred_check
      _
    $region30: #{model_forward.6} parent=5 // pred_check_branch
      %181 = sbr.rel (%p178) target = $region32
    $region31: #{model_forward.6} parent=5 // pred_region
      %s182 = ssub.s32 %s9, 1
      %s183 = smul.u32 384, %s19
      %p184 = scmp.lt.s32.totalorder %s18, 1
      %s185 = scalar_select %p184, %s18, 1
      %p186 = scmp.lt.s32.totalorder %s183, 767
      %s187 = scalar_select %p186, %s183, 767
      %s188 = smul.addr %s187, 4
      %s189 = smul.addr %s185, 3072
      %s190 = sadd.s32 %s188, %s189
      %s191 = smul.addr %s190, 8
      %s192 = scalar_lea.vmem %s0, %s191
      %p193 = pneg %p49
      %p194 = pneg %p46
      %p195 = scmp.lt.s32.totalorder %s18, 1
      %s196 = scalar_select %p195, %s18, 1
      %s197 = smul.addr %s196, 64
      %s198 = smul.addr %s197, 8
      %s199 = scalar_lea.vmem %s1, %s198
      %p200 = pneg %p75
      %p201 = pneg %p72
      %p202 = scmp.lt.s32.totalorder %s18, 1
      %s203 = scalar_select %p202, %s18, 1
      %s204 = scalar_lea.vmem %s2, %s203
      %p205 = pneg %p101
      %p206 = pneg %p98
      %p207 = pneg %p129
      %p208 = pneg %p126
      %s209 = smul.u32 384, %s19
      %p210 = scmp.lt.s32.totalorder %s18, 1
      %s211 = scalar_select %p210, %s18, 1
      %p212 = scmp.lt.s32.totalorder %s209, 767
      %s213 = scalar_select %p212, %s209, 767
      %s214 = smul.addr %s211, 768
      %s215 = sadd.s32 %s213, %s214
      %s216 = smul.addr %s215, 8
      %s217 = scalar_lea.vmem %s3, %s216
      %s218 = smul.u32 384, %s19
      %p219 = scmp.lt.s32.totalorder %s18, 1
      %s220 = scalar_select %p219, %s18, 1
      %p221 = scmp.lt.s32.totalorder %s218, 767
      %s222 = scalar_select %p221, %s218, 767
      %s223 = smul.addr %s222, 4
      %s224 = smul.addr %s220, 3072
      %s225 = sadd.s32 %s223, %s224
      %s226 = smul.addr %s225, 8
      %s227 = scalar_lea.vmem %s0, %s226
      %s228 = smul.u32 384, %s19
      %p229 = scmp.lt.s32.totalorder %s18, 1
      %s230 = scalar_select %p229, %s18, 1
      %s231 = smul.addr %s230, 64
      %s232 = smul.addr %s231, 8
      %s233 = scalar_lea.vmem %s1, %s232
      %p234 = scmp.lt.s32.totalorder %s18, 1
      %s235 = scalar_select %p234, %s18, 1
      %s236 = scalar_lea.vmem %s2, %s235
      %s237 = smul.u32 384, %s19
      %p238 = scmp.lt.s32.totalorder %s18, 1
      %s239 = scalar_select %p238, %s18, 1
      %p240 = scmp.lt.s32.totalorder %s237, 767
      %s241 = scalar_select %p240, %s237, 767
      %s242 = smul.addr %s239, 768
      %s243 = sadd.s32 %s241, %s242
      %s244 = smul.addr %s243, 8
      %s245 = scalar_lea.vmem %s3, %s244
      %s246 = smul.u32 384, %s19
      loop: start=0, step=1, limit=6
      $region33: #{model_forward.6} parent=31 // loop_pre_header
        _
      $region34: #{model_forward.6} parent=31 // loop_header
        %s248 = sphi 0, %s252
        %p249 = scmp.ge.s32.totalorder %s248, 6
      $region35: #{model_forward.6} parent=31 // loop_header_branch
        %251 = sbr.rel (%p249) target = $region39
      $region36: #{model_forward.6} parent=31 // loop_body
        %s253 = smul.u32 %s248, 512
        %s254 = sshra.s32 %s253, 3
        %s255 = sand.u32 %s253, 7
        %s256 = smul.u32 %s254, 4
        %s257 = smul.addr %s256, 8
        %s258 = scalar_lea.vmem %s227, %s257
        %v259 = vld [vmem:[%s258] sm:$0xff]
        %v260 = vld [vmem:[%s258 + $0x8] sm:$0xff]
        %v261 = vld [vmem:[%s258 + $0x10] sm:$0xff]
        %v262 = vld [vmem:[%s258 + $0x18] sm:$0xff]
        %v263 = vld [vmem:[%s258 + $0x20] sm:$0xff]
        %v264 = vld [vmem:[%s258 + $0x28] sm:$0xff]
        %v265 = vld [vmem:[%s258 + $0x30] sm:$0xff]
        %v266 = vld [vmem:[%s258 + $0x38] sm:$0xff]
        %v267 = vld [vmem:[%s258 + $0x40] sm:$0xff]
        %v268 = vld [vmem:[%s258 + $0x48] sm:$0xff]
        %v269 = vld [vmem:[%s258 + $0x50] sm:$0xff]
        %v270 = vld [vmem:[%s258 + $0x58] sm:$0xff]
        %v271 = vld [vmem:[%s258 + $0x60] sm:$0xff]
        %v272 = vld [vmem:[%s258 + $0x68] sm:$0xff]
        %v273 = vld [vmem:[%s258 + $0x70] sm:$0xff]
        %v274 = vld [vmem:[%s258 + $0x78] sm:$0xff]
        %v275 = vld [vmem:[%s258 + $0x80] sm:$0xff]
        %v276 = vld [vmem:[%s258 + $0x88] sm:$0xff]
        %v277 = vld [vmem:[%s258 + $0x90] sm:$0xff]
        %v278 = vld [vmem:[%s258 + $0x98] sm:$0xff]
        %v279 = vld [vmem:[%s258 + $0xa0] sm:$0xff]
        %v280 = vld [vmem:[%s258 + $0xa8] sm:$0xff]
        %v281 = vld [vmem:[%s258 + $0xb0] sm:$0xff]
        %v282 = vld [vmem:[%s258 + $0xb8] sm:$0xff]
        %v283 = vld [vmem:[%s258 + $0xc0] sm:$0xff]
        %v284 = vld [vmem:[%s258 + $0xc8] sm:$0xff]
        %v285 = vld [vmem:[%s258 + $0xd0] sm:$0xff]
        %v286 = vld [vmem:[%s258 + $0xd8] sm:$0xff]
        %v287 = vld [vmem:[%s258 + $0xe0] sm:$0xff]
        %v288 = vld [vmem:[%s258 + $0xe8] sm:$0xff]
        %v289 = vld [vmem:[%s258 + $0xf0] sm:$0xff]
        %v290 = vld [vmem:[%s258 + $0xf8] sm:$0xff]
        %v291 = vld [vmem:[%s258 + $0x100] sm:$0xff]
        %v292 = vld [vmem:[%s258 + $0x108] sm:$0xff]
        %v293 = vld [vmem:[%s258 + $0x110] sm:$0xff]
        %v294 = vld [vmem:[%s258 + $0x118] sm:$0xff]
        %v295 = vld [vmem:[%s258 + $0x120] sm:$0xff]
        %v296 = vld [vmem:[%s258 + $0x128] sm:$0xff]
        %v297 = vld [vmem:[%s258 + $0x130] sm:$0xff]
        %v298 = vld [vmem:[%s258 + $0x138] sm:$0xff]
        %v299 = vld [vmem:[%s258 + $0x140] sm:$0xff]
        %v300 = vld [vmem:[%s258 + $0x148] sm:$0xff]
        %v301 = vld [vmem:[%s258 + $0x150] sm:$0xff]
        %v302 = vld [vmem:[%s258 + $0x158] sm:$0xff]
        %v303 = vld [vmem:[%s258 + $0x160] sm:$0xff]
        %v304 = vld [vmem:[%s258 + $0x168] sm:$0xff]
        %v305 = vld [vmem:[%s258 + $0x170] sm:$0xff]
        %v306 = vld [vmem:[%s258 + $0x178] sm:$0xff]
        %v307 = vld [vmem:[%s258 + $0x180] sm:$0xff]
        %v308 = vld [vmem:[%s258 + $0x188] sm:$0xff]
        %v309 = vld [vmem:[%s258 + $0x190] sm:$0xff]
        %v310 = vld [vmem:[%s258 + $0x198] sm:$0xff]
        %v311 = vld [vmem:[%s258 + $0x1a0] sm:$0xff]
        %v312 = vld [vmem:[%s258 + $0x1a8] sm:$0xff]
        %v313 = vld [vmem:[%s258 + $0x1b0] sm:$0xff]
        %v314 = vld [vmem:[%s258 + $0x1b8] sm:$0xff]
        %v315 = vld [vmem:[%s258 + $0x1c0] sm:$0xff]
        %v316 = vld [vmem:[%s258 + $0x1c8] sm:$0xff]
        %v317 = vld [vmem:[%s258 + $0x1d0] sm:$0xff]
        %v318 = vld [vmem:[%s258 + $0x1d8] sm:$0xff]
        %v319 = vld [vmem:[%s258 + $0x1e0] sm:$0xff]
        %v320 = vld [vmem:[%s258 + $0x1e8] sm:$0xff]
        %v321 = vld [vmem:[%s258 + $0x1f0] sm:$0xff]
        %v322 = vld [vmem:[%s258 + $0x1f8] sm:$0xff]
        %v323 = vld [vmem:[%s258 + $0x200] sm:$0xff]
        %v324 = vld [vmem:[%s258 + $0x208] sm:$0xff]
        %v325 = vld [vmem:[%s258 + $0x210] sm:$0xff]
        %v326 = vld [vmem:[%s258 + $0x218] sm:$0xff]
        %v327 = vld [vmem:[%s258 + $0x220] sm:$0xff]
        %v328 = vld [vmem:[%s258 + $0x228] sm:$0xff]
        %v329 = vld [vmem:[%s258 + $0x230] sm:$0xff]
        %v330 = vld [vmem:[%s258 + $0x238] sm:$0xff]
        %v331 = vld [vmem:[%s258 + $0x240] sm:$0xff]
        %v332 = vld [vmem:[%s258 + $0x248] sm:$0xff]
        %v333 = vld [vmem:[%s258 + $0x250] sm:$0xff]
        %v334 = vld [vmem:[%s258 + $0x258] sm:$0xff]
        %v335 = vld [vmem:[%s258 + $0x260] sm:$0xff]
        %v336 = vld [vmem:[%s258 + $0x268] sm:$0xff]
        %v337 = vld [vmem:[%s258 + $0x270] sm:$0xff]
        %v338 = vld [vmem:[%s258 + $0x278] sm:$0xff]
        %v339 = vld [vmem:[%s258 + $0x280] sm:$0xff]
        %v340 = vld [vmem:[%s258 + $0x288] sm:$0xff]
        %v341 = vld [vmem:[%s258 + $0x290] sm:$0xff]
        %v342 = vld [vmem:[%s258 + $0x298] sm:$0xff]
        %v343 = vld [vmem:[%s258 + $0x2a0] sm:$0xff]
        %v344 = vld [vmem:[%s258 + $0x2a8] sm:$0xff]
        %v345 = vld [vmem:[%s258 + $0x2b0] sm:$0xff]
        %v346 = vld [vmem:[%s258 + $0x2b8] sm:$0xff]
        %v347 = vld [vmem:[%s258 + $0x2c0] sm:$0xff]
        %v348 = vld [vmem:[%s258 + $0x2c8] sm:$0xff]
        %v349 = vld [vmem:[%s258 + $0x2d0] sm:$0xff]
        %v350 = vld [vmem:[%s258 + $0x2d8] sm:$0xff]
        %v351 = vld [vmem:[%s258 + $0x2e0] sm:$0xff]
        %v352 = vld [vmem:[%s258 + $0x2e8] sm:$0xff]
        %v353 = vld [vmem:[%s258 + $0x2f0] sm:$0xff]
        %v354 = vld [vmem:[%s258 + $0x2f8] sm:$0xff]
        %v355 = vld [vmem:[%s258 + $0x300] sm:$0xff]
        %v356 = vld [vmem:[%s258 + $0x308] sm:$0xff]
        %v357 = vld [vmem:[%s258 + $0x310] sm:$0xff]
        %v358 = vld [vmem:[%s258 + $0x318] sm:$0xff]
        %v359 = vld [vmem:[%s258 + $0x320] sm:$0xff]
        %v360 = vld [vmem:[%s258 + $0x328] sm:$0xff]
        %v361 = vld [vmem:[%s258 + $0x330] sm:$0xff]
        %v362 = vld [vmem:[%s258 + $0x338] sm:$0xff]
        %v363 = vld [vmem:[%s258 + $0x340] sm:$0xff]
        %v364 = vld [vmem:[%s258 + $0x348] sm:$0xff]
        %v365 = vld [vmem:[%s258 + $0x350] sm:$0xff]
        %v366 = vld [vmem:[%s258 + $0x358] sm:$0xff]
        %v367 = vld [vmem:[%s258 + $0x360] sm:$0xff]
        %v368 = vld [vmem:[%s258 + $0x368] sm:$0xff]
        %v369 = vld [vmem:[%s258 + $0x370] sm:$0xff]
        %v370 = vld [vmem:[%s258 + $0x378] sm:$0xff]
        %v371 = vld [vmem:[%s258 + $0x380] sm:$0xff]
        %v372 = vld [vmem:[%s258 + $0x388] sm:$0xff]
        %v373 = vld [vmem:[%s258 + $0x390] sm:$0xff]
        %v374 = vld [vmem:[%s258 + $0x398] sm:$0xff]
        %v375 = vld [vmem:[%s258 + $0x3a0] sm:$0xff]
        %v376 = vld [vmem:[%s258 + $0x3a8] sm:$0xff]
        %v377 = vld [vmem:[%s258 + $0x3b0] sm:$0xff]
        %v378 = vld [vmem:[%s258 + $0x3b8] sm:$0xff]
        %v379 = vld [vmem:[%s258 + $0x3c0] sm:$0xff]
        %v380 = vld [vmem:[%s258 + $0x3c8] sm:$0xff]
        %v381 = vld [vmem:[%s258 + $0x3d0] sm:$0xff]
        %v382 = vld [vmem:[%s258 + $0x3d8] sm:$0xff]
        %v383 = vld [vmem:[%s258 + $0x3e0] sm:$0xff]
        %v384 = vld [vmem:[%s258 + $0x3e8] sm:$0xff]
        %v385 = vld [vmem:[%s258 + $0x3f0] sm:$0xff]
        %v386 = vld [vmem:[%s258 + $0x3f8] sm:$0xff]
        %v387 = vld [vmem:[%s258 + $0x400] sm:$0xff]
        %v388 = vld [vmem:[%s258 + $0x408] sm:$0xff]
        %v389 = vld [vmem:[%s258 + $0x410] sm:$0xff]
        %v390 = vld [vmem:[%s258 + $0x418] sm:$0xff]
        %v391 = vld [vmem:[%s258 + $0x420] sm:$0xff]
        %v392 = vld [vmem:[%s258 + $0x428] sm:$0xff]
        %v393 = vld [vmem:[%s258 + $0x430] sm:$0xff]
        %v394 = vld [vmem:[%s258 + $0x438] sm:$0xff]
        %v395 = vld [vmem:[%s258 + $0x440] sm:$0xff]
        %v396 = vld [vmem:[%s258 + $0x448] sm:$0xff]
        %v397 = vld [vmem:[%s258 + $0x450] sm:$0xff]
        %v398 = vld [vmem:[%s258 + $0x458] sm:$0xff]
        %v399 = vld [vmem:[%s258 + $0x460] sm:$0xff]
        %v400 = vld [vmem:[%s258 + $0x468] sm:$0xff]
        %v401 = vld [vmem:[%s258 + $0x470] sm:$0xff]
        %v402 = vld [vmem:[%s258 + $0x478] sm:$0xff]
        %v403 = vld [vmem:[%s258 + $0x480] sm:$0xff]
        %v404 = vld [vmem:[%s258 + $0x488] sm:$0xff]
        %v405 = vld [vmem:[%s258 + $0x490] sm:$0xff]
        %v406 = vld [vmem:[%s258 + $0x498] sm:$0xff]
        %v407 = vld [vmem:[%s258 + $0x4a0] sm:$0xff]
        %v408 = vld [vmem:[%s258 + $0x4a8] sm:$0xff]
        %v409 = vld [vmem:[%s258 + $0x4b0] sm:$0xff]
        %v410 = vld [vmem:[%s258 + $0x4b8] sm:$0xff]
        %v411 = vld [vmem:[%s258 + $0x4c0] sm:$0xff]
        %v412 = vld [vmem:[%s258 + $0x4c8] sm:$0xff]
        %v413 = vld [vmem:[%s258 + $0x4d0] sm:$0xff]
        %v414 = vld [vmem:[%s258 + $0x4d8] sm:$0xff]
        %v415 = vld [vmem:[%s258 + $0x4e0] sm:$0xff]
        %v416 = vld [vmem:[%s258 + $0x4e8] sm:$0xff]
        %v417 = vld [vmem:[%s258 + $0x4f0] sm:$0xff]
        %v418 = vld [vmem:[%s258 + $0x4f8] sm:$0xff]
        %v419 = vld [vmem:[%s258 + $0x500] sm:$0xff]
        %v420 = vld [vmem:[%s258 + $0x508] sm:$0xff]
        %v421 = vld [vmem:[%s258 + $0x510] sm:$0xff]
        %v422 = vld [vmem:[%s258 + $0x518] sm:$0xff]
        %v423 = vld [vmem:[%s258 + $0x520] sm:$0xff]
        %v424 = vld [vmem:[%s258 + $0x528] sm:$0xff]
        %v425 = vld [vmem:[%s258 + $0x530] sm:$0xff]
        %v426 = vld [vmem:[%s258 + $0x538] sm:$0xff]
        %v427 = vld [vmem:[%s258 + $0x540] sm:$0xff]
        %v428 = vld [vmem:[%s258 + $0x548] sm:$0xff]
        %v429 = vld [vmem:[%s258 + $0x550] sm:$0xff]
        %v430 = vld [vmem:[%s258 + $0x558] sm:$0xff]
        %v431 = vld [vmem:[%s258 + $0x560] sm:$0xff]
        %v432 = vld [vmem:[%s258 + $0x568] sm:$0xff]
        %v433 = vld [vmem:[%s258 + $0x570] sm:$0xff]
        %v434 = vld [vmem:[%s258 + $0x578] sm:$0xff]
        %v435 = vld [vmem:[%s258 + $0x580] sm:$0xff]
        %v436 = vld [vmem:[%s258 + $0x588] sm:$0xff]
        %v437 = vld [vmem:[%s258 + $0x590] sm:$0xff]
        %v438 = vld [vmem:[%s258 + $0x598] sm:$0xff]
        %v439 = vld [vmem:[%s258 + $0x5a0] sm:$0xff]
        %v440 = vld [vmem:[%s258 + $0x5a8] sm:$0xff]
        %v441 = vld [vmem:[%s258 + $0x5b0] sm:$0xff]
        %v442 = vld [vmem:[%s258 + $0x5b8] sm:$0xff]
        %v443 = vld [vmem:[%s258 + $0x5c0] sm:$0xff]
        %v444 = vld [vmem:[%s258 + $0x5c8] sm:$0xff]
        %v445 = vld [vmem:[%s258 + $0x5d0] sm:$0xff]
        %v446 = vld [vmem:[%s258 + $0x5d8] sm:$0xff]
        %v447 = vld [vmem:[%s258 + $0x5e0] sm:$0xff]
        %v448 = vld [vmem:[%s258 + $0x5e8] sm:$0xff]
        %v449 = vld [vmem:[%s258 + $0x5f0] sm:$0xff]
        %v450 = vld [vmem:[%s258 + $0x5f8] sm:$0xff]
        %v451 = vld [vmem:[%s258 + $0x600] sm:$0xff]
        %v452 = vld [vmem:[%s258 + $0x608] sm:$0xff]
        %v453 = vld [vmem:[%s258 + $0x610] sm:$0xff]
        %v454 = vld [vmem:[%s258 + $0x618] sm:$0xff]
        %v455 = vld [vmem:[%s258 + $0x620] sm:$0xff]
        %v456 = vld [vmem:[%s258 + $0x628] sm:$0xff]
        %v457 = vld [vmem:[%s258 + $0x630] sm:$0xff]
        %v458 = vld [vmem:[%s258 + $0x638] sm:$0xff]
        %v459 = vld [vmem:[%s258 + $0x640] sm:$0xff]
        %v460 = vld [vmem:[%s258 + $0x648] sm:$0xff]
        %v461 = vld [vmem:[%s258 + $0x650] sm:$0xff]
        %v462 = vld [vmem:[%s258 + $0x658] sm:$0xff]
        %v463 = vld [vmem:[%s258 + $0x660] sm:$0xff]
        %v464 = vld [vmem:[%s258 + $0x668] sm:$0xff]
        %v465 = vld [vmem:[%s258 + $0x670] sm:$0xff]
        %v466 = vld [vmem:[%s258 + $0x678] sm:$0xff]
        %v467 = vld [vmem:[%s258 + $0x680] sm:$0xff]
        %v468 = vld [vmem:[%s258 + $0x688] sm:$0xff]
        %v469 = vld [vmem:[%s258 + $0x690] sm:$0xff]
        %v470 = vld [vmem:[%s258 + $0x698] sm:$0xff]
        %v471 = vld [vmem:[%s258 + $0x6a0] sm:$0xff]
        %v472 = vld [vmem:[%s258 + $0x6a8] sm:$0xff]
        %v473 = vld [vmem:[%s258 + $0x6b0] sm:$0xff]
        %v474 = vld [vmem:[%s258 + $0x6b8] sm:$0xff]
        %v475 = vld [vmem:[%s258 + $0x6c0] sm:$0xff]
        %v476 = vld [vmem:[%s258 + $0x6c8] sm:$0xff]
        %v477 = vld [vmem:[%s258 + $0x6d0] sm:$0xff]
        %v478 = vld [vmem:[%s258 + $0x6d8] sm:$0xff]
        %v479 = vld [vmem:[%s258 + $0x6e0] sm:$0xff]
        %v480 = vld [vmem:[%s258 + $0x6e8] sm:$0xff]
        %v481 = vld [vmem:[%s258 + $0x6f0] sm:$0xff]
        %v482 = vld [vmem:[%s258 + $0x6f8] sm:$0xff]
        %v483 = vld [vmem:[%s258 + $0x700] sm:$0xff]
        %v484 = vld [vmem:[%s258 + $0x708] sm:$0xff]
        %v485 = vld [vmem:[%s258 + $0x710] sm:$0xff]
        %v486 = vld [vmem:[%s258 + $0x718] sm:$0xff]
        %v487 = vld [vmem:[%s258 + $0x720] sm:$0xff]
        %v488 = vld [vmem:[%s258 + $0x728] sm:$0xff]
        %v489 = vld [vmem:[%s258 + $0x730] sm:$0xff]
        %v490 = vld [vmem:[%s258 + $0x738] sm:$0xff]
        %v491 = vld [vmem:[%s258 + $0x740] sm:$0xff]
        %v492 = vld [vmem:[%s258 + $0x748] sm:$0xff]
        %v493 = vld [vmem:[%s258 + $0x750] sm:$0xff]
        %v494 = vld [vmem:[%s258 + $0x758] sm:$0xff]
        %v495 = vld [vmem:[%s258 + $0x760] sm:$0xff]
        %v496 = vld [vmem:[%s258 + $0x768] sm:$0xff]
        %v497 = vld [vmem:[%s258 + $0x770] sm:$0xff]
        %v498 = vld [vmem:[%s258 + $0x778] sm:$0xff]
        %v499 = vld [vmem:[%s258 + $0x780] sm:$0xff]
        %v500 = vld [vmem:[%s258 + $0x788] sm:$0xff]
        %v501 = vld [vmem:[%s258 + $0x790] sm:$0xff]
        %v502 = vld [vmem:[%s258 + $0x798] sm:$0xff]
        %v503 = vld [vmem:[%s258 + $0x7a0] sm:$0xff]
        %v504 = vld [vmem:[%s258 + $0x7a8] sm:$0xff]
        %v505 = vld [vmem:[%s258 + $0x7b0] sm:$0xff]
        %v506 = vld [vmem:[%s258 + $0x7b8] sm:$0xff]
        %v507 = vld [vmem:[%s258 + $0x7c0] sm:$0xff]
        %v508 = vld [vmem:[%s258 + $0x7c8] sm:$0xff]
        %v509 = vld [vmem:[%s258 + $0x7d0] sm:$0xff]
        %v510 = vld [vmem:[%s258 + $0x7d8] sm:$0xff]
        %v511 = vld [vmem:[%s258 + $0x7e0] sm:$0xff]
        %v512 = vld [vmem:[%s258 + $0x7e8] sm:$0xff]
        %v513 = vld [vmem:[%s258 + $0x7f0] sm:$0xff]
        %v514 = vld [vmem:[%s258 + $0x7f8] sm:$0xff]
        %v515 = vld [vmem:[%s233] sm:$0xff]
        %v516 = vld [vmem:[%s233 + $0x8] sm:$0xff]
        %v517 = vld [vmem:[%s233 + $0x10] sm:$0xff]
        %v518 = vld [vmem:[%s233 + $0x18] sm:$0xff]
        %v519 = vld [vmem:[%s233 + $0x20] sm:$0xff]
        %v520 = vld [vmem:[%s233 + $0x28] sm:$0xff]
        %v521 = vld [vmem:[%s233 + $0x30] sm:$0xff]
        %v522 = vld [vmem:[%s233 + $0x38] sm:$0xff]
        %v523 = vld [vmem:[%s233 + $0x40] sm:$0xff]
        %v524 = vld [vmem:[%s233 + $0x48] sm:$0xff]
        %v525 = vld [vmem:[%s233 + $0x50] sm:$0xff]
        %v526 = vld [vmem:[%s233 + $0x58] sm:$0xff]
        %v527 = vld [vmem:[%s233 + $0x60] sm:$0xff]
        %v528 = vld [vmem:[%s233 + $0x68] sm:$0xff]
        %v529 = vld [vmem:[%s233 + $0x70] sm:$0xff]
        %v530 = vld [vmem:[%s233 + $0x78] sm:$0xff]
        %v531 = vld [vmem:[%s233 + $0x80] sm:$0xff]
        %v532 = vld [vmem:[%s233 + $0x88] sm:$0xff]
        %v533 = vld [vmem:[%s233 + $0x90] sm:$0xff]
        %v534 = vld [vmem:[%s233 + $0x98] sm:$0xff]
        %v535 = vld [vmem:[%s233 + $0xa0] sm:$0xff]
        %v536 = vld [vmem:[%s233 + $0xa8] sm:$0xff]
        %v537 = vld [vmem:[%s233 + $0xb0] sm:$0xff]
        %v538 = vld [vmem:[%s233 + $0xb8] sm:$0xff]
        %v539 = vld [vmem:[%s233 + $0xc0] sm:$0xff]
        %v540 = vld [vmem:[%s233 + $0xc8] sm:$0xff]
        %v541 = vld [vmem:[%s233 + $0xd0] sm:$0xff]
        %v542 = vld [vmem:[%s233 + $0xd8] sm:$0xff]
        %v543 = vld [vmem:[%s233 + $0xe0] sm:$0xff]
        %v544 = vld [vmem:[%s233 + $0xe8] sm:$0xff]
        %v545 = vld [vmem:[%s233 + $0xf0] sm:$0xff]
        %v546 = vld [vmem:[%s233 + $0xf8] sm:$0xff]
        %v547 = vld [vmem:[%s233 + $0x100] sm:$0xff]
        %v548 = vld [vmem:[%s233 + $0x108] sm:$0xff]
        %v549 = vld [vmem:[%s233 + $0x110] sm:$0xff]
        %v550 = vld [vmem:[%s233 + $0x118] sm:$0xff]
        %v551 = vld [vmem:[%s233 + $0x120] sm:$0xff]
        %v552 = vld [vmem:[%s233 + $0x128] sm:$0xff]
        %v553 = vld [vmem:[%s233 + $0x130] sm:$0xff]
        %v554 = vld [vmem:[%s233 + $0x138] sm:$0xff]
        %v555 = vld [vmem:[%s233 + $0x140] sm:$0xff]
        %v556 = vld [vmem:[%s233 + $0x148] sm:$0xff]
        %v557 = vld [vmem:[%s233 + $0x150] sm:$0xff]
        %v558 = vld [vmem:[%s233 + $0x158] sm:$0xff]
        %v559 = vld [vmem:[%s233 + $0x160] sm:$0xff]
        %v560 = vld [vmem:[%s233 + $0x168] sm:$0xff]
        %v561 = vld [vmem:[%s233 + $0x170] sm:$0xff]
        %v562 = vld [vmem:[%s233 + $0x178] sm:$0xff]
        %v563 = vld [vmem:[%s233 + $0x180] sm:$0xff]
        %v564 = vld [vmem:[%s233 + $0x188] sm:$0xff]
        %v565 = vld [vmem:[%s233 + $0x190] sm:$0xff]
        %v566 = vld [vmem:[%s233 + $0x198] sm:$0xff]
        %v567 = vld [vmem:[%s233 + $0x1a0] sm:$0xff]
        %v568 = vld [vmem:[%s233 + $0x1a8] sm:$0xff]
        %v569 = vld [vmem:[%s233 + $0x1b0] sm:$0xff]
        %v570 = vld [vmem:[%s233 + $0x1b8] sm:$0xff]
        %v571 = vld [vmem:[%s233 + $0x1c0] sm:$0xff]
        %v572 = vld [vmem:[%s233 + $0x1c8] sm:$0xff]
        %v573 = vld [vmem:[%s233 + $0x1d0] sm:$0xff]
        %v574 = vld [vmem:[%s233 + $0x1d8] sm:$0xff]
        %v575 = vld [vmem:[%s233 + $0x1e0] sm:$0xff]
        %v576 = vld [vmem:[%s233 + $0x1e8] sm:$0xff]
        %v577 = vld [vmem:[%s233 + $0x1f0] sm:$0xff]
        %v578 = vld [vmem:[%s233 + $0x1f8] sm:$0xff]
        %v579 = vld [vmem:[%s236] sm:$0x1]
        %v581 = vperm.slane %v579, 0
        %583 = vmatpush.msra.mxu0 %v530
        %584 = vmatpush.msra.mxu0 %v529
        %585 = vmatpush.msra.mxu0 %v528
        %586 = vmatpush.msra.mxu0 %v527
        %587 = vmatpush.msra.mxu0 %v526
        %588 = vmatpush.msra.mxu0 %v525
        %589 = vmatpush.msra.mxu0 %v524
        %590 = vmatpush.msra.mxu0 %v523
        %591 = vmatpush.msra.mxu0 %v522
        %592 = vmatpush.msra.mxu0 %v521
        %593 = vmatpush.msra.mxu0 %v520
        %594 = vmatpush.msra.mxu0 %v519
        %595 = vmatpush.msra.mxu0 %v518
        %596 = vmatpush.msra.mxu0 %v517
        %597 = vmatpush.msra.mxu0 %v516
        %598 = vmatpush.msra.mxu0 %v515
        %599 = vmatmul.f32.gmra.mxu0 %v259
        %v600 = vpop.f32.mrf.mxu0
        %v601 = vadd.f32 %v581, %v600
        %602 = vmatmul.f32.gmra.mxu0 %v263
        %v603 = vpop.f32.mrf.mxu0
        %v604 = vadd.f32 %v581, %v603
        %605 = vmatmul.f32.gmra.mxu0 %v267
        %v606 = vpop.f32.mrf.mxu0
        %v607 = vadd.f32 %v581, %v606
        %608 = vmatmul.f32.gmra.mxu0 %v271
        %v609 = vpop.f32.mrf.mxu0
        %v610 = vadd.f32 %v581, %v609
        %611 = vmatmul.f32.gmra.mxu0 %v275
        %v612 = vpop.f32.mrf.mxu0
        %v613 = vadd.f32 %v581, %v612
        %614 = vmatmul.f32.gmra.mxu0 %v279
        %v615 = vpop.f32.mrf.mxu0
        %v616 = vadd.f32 %v581, %v615
        %617 = vmatmul.f32.gmra.mxu0 %v283
        %v618 = vpop.f32.mrf.mxu0
        %v619 = vadd.f32 %v581, %v618
        %620 = vmatmul.f32.gmra.mxu0 %v287
        %v621 = vpop.f32.mrf.mxu0
        %v622 = vadd.f32 %v581, %v621
        %623 = vmatmul.f32.gmra.mxu0 %v291
        %v624 = vpop.f32.mrf.mxu0
        %v625 = vadd.f32 %v581, %v624
        %626 = vmatmul.f32.gmra.mxu0 %v295
        %v627 = vpop.f32.mrf.mxu0
        %v628 = vadd.f32 %v581, %v627
        %629 = vmatmul.f32.gmra.mxu0 %v299
        %v630 = vpop.f32.mrf.mxu0
        %v631 = vadd.f32 %v581, %v630
        %632 = vmatmul.f32.gmra.mxu0 %v303
        %v633 = vpop.f32.mrf.mxu0
        %v634 = vadd.f32 %v581, %v633
        %635 = vmatmul.f32.gmra.mxu0 %v307
        %v636 = vpop.f32.mrf.mxu0
        %v637 = vadd.f32 %v581, %v636
        %638 = vmatmul.f32.gmra.mxu0 %v311
        %v639 = vpop.f32.mrf.mxu0
        %v640 = vadd.f32 %v581, %v639
        %641 = vmatmul.f32.gmra.mxu0 %v315
        %v642 = vpop.f32.mrf.mxu0
        %v643 = vadd.f32 %v581, %v642
        %644 = vmatmul.f32.gmra.mxu0 %v319
        %v645 = vpop.f32.mrf.mxu0
        %v646 = vadd.f32 %v581, %v645
        %647 = vmatmul.f32.gmra.mxu0 %v323
        %v648 = vpop.f32.mrf.mxu0
        %v649 = vadd.f32 %v581, %v648
        %650 = vmatmul.f32.gmra.mxu0 %v327
        %v651 = vpop.f32.mrf.mxu0
        %v652 = vadd.f32 %v581, %v651
        %653 = vmatmul.f32.gmra.mxu0 %v331
        %v654 = vpop.f32.mrf.mxu0
        %v655 = vadd.f32 %v581, %v654
        %656 = vmatmul.f32.gmra.mxu0 %v335
        %v657 = vpop.f32.mrf.mxu0
        %v658 = vadd.f32 %v581, %v657
        %659 = vmatmul.f32.gmra.mxu0 %v339
        %v660 = vpop.f32.mrf.mxu0
        %v661 = vadd.f32 %v581, %v660
        %662 = vmatmul.f32.gmra.mxu0 %v343
        %v663 = vpop.f32.mrf.mxu0
        %v664 = vadd.f32 %v581, %v663
        %665 = vmatmul.f32.gmra.mxu0 %v347
        %v666 = vpop.f32.mrf.mxu0
        %v667 = vadd.f32 %v581, %v666
        %668 = vmatmul.f32.gmra.mxu0 %v351
        %v669 = vpop.f32.mrf.mxu0
        %v670 = vadd.f32 %v581, %v669
        %671 = vmatmul.f32.gmra.mxu0 %v355
        %v672 = vpop.f32.mrf.mxu0
        %v673 = vadd.f32 %v581, %v672
        %674 = vmatmul.f32.gmra.mxu0 %v359
        %v675 = vpop.f32.mrf.mxu0
        %v676 = vadd.f32 %v581, %v675
        %677 = vmatmul.f32.gmra.mxu0 %v363
        %v678 = vpop.f32.mrf.mxu0
        %v679 = vadd.f32 %v581, %v678
        %680 = vmatmul.f32.gmra.mxu0 %v367
        %v681 = vpop.f32.mrf.mxu0
        %v682 = vadd.f32 %v581, %v681
        %683 = vmatmul.f32.gmra.mxu0 %v371
        %v684 = vpop.f32.mrf.mxu0
        %v685 = vadd.f32 %v581, %v684
        %686 = vmatmul.f32.gmra.mxu0 %v375
        %v687 = vpop.f32.mrf.mxu0
        %v688 = vadd.f32 %v581, %v687
        %689 = vmatmul.f32.gmra.mxu0 %v379
        %v690 = vpop.f32.mrf.mxu0
        %v691 = vadd.f32 %v581, %v690
        %692 = vmatmul.f32.gmra.mxu0 %v383
        %v693 = vpop.f32.mrf.mxu0
        %v694 = vadd.f32 %v581, %v693
        %695 = vmatmul.f32.gmra.mxu0 %v387
        %v696 = vpop.f32.mrf.mxu0
        %v697 = vadd.f32 %v581, %v696
        %698 = vmatmul.f32.gmra.mxu0 %v391
        %v699 = vpop.f32.mrf.mxu0
        %v700 = vadd.f32 %v581, %v699
        %701 = vmatmul.f32.gmra.mxu0 %v395
        %v702 = vpop.f32.mrf.mxu0
        %v703 = vadd.f32 %v581, %v702
        %704 = vmatmul.f32.gmra.mxu0 %v399
        %v705 = vpop.f32.mrf.mxu0
        %v706 = vadd.f32 %v581, %v705
        %707 = vmatmul.f32.gmra.mxu0 %v403
        %v708 = vpop.f32.mrf.mxu0
        %v709 = vadd.f32 %v581, %v708
        %710 = vmatmul.f32.gmra.mxu0 %v407
        %v711 = vpop.f32.mrf.mxu0
        %v712 = vadd.f32 %v581, %v711
        %713 = vmatmul.f32.gmra.mxu0 %v411
        %v714 = vpop.f32.mrf.mxu0
        %v715 = vadd.f32 %v581, %v714
        %716 = vmatmul.f32.gmra.mxu0 %v415
        %v717 = vpop.f32.mrf.mxu0
        %v718 = vadd.f32 %v581, %v717
        %719 = vmatmul.f32.gmra.mxu0 %v419
        %v720 = vpop.f32.mrf.mxu0
        %v721 = vadd.f32 %v581, %v720
        %722 = vmatmul.f32.gmra.mxu0 %v423
        %v723 = vpop.f32.mrf.mxu0
        %v724 = vadd.f32 %v581, %v723
        %725 = vmatmul.f32.gmra.mxu0 %v427
        %v726 = vpop.f32.mrf.mxu0
        %v727 = vadd.f32 %v581, %v726
        %728 = vmatmul.f32.gmra.mxu0 %v431
        %v729 = vpop.f32.mrf.mxu0
        %v730 = vadd.f32 %v581, %v729
        %731 = vmatmul.f32.gmra.mxu0 %v435
        %v732 = vpop.f32.mrf.mxu0
        %v733 = vadd.f32 %v581, %v732
        %734 = vmatmul.f32.gmra.mxu0 %v439
        %v735 = vpop.f32.mrf.mxu0
        %v736 = vadd.f32 %v581, %v735
        %737 = vmatmul.f32.gmra.mxu0 %v443
        %v738 = vpop.f32.mrf.mxu0
        %v739 = vadd.f32 %v581, %v738
        %740 = vmatmul.f32.gmra.mxu0 %v447
        %v741 = vpop.f32.mrf.mxu0
        %v742 = vadd.f32 %v581, %v741
        %743 = vmatmul.f32.gmra.mxu0 %v451
        %v744 = vpop.f32.mrf.mxu0
        %v745 = vadd.f32 %v581, %v744
        %746 = vmatmul.f32.gmra.mxu0 %v455
        %v747 = vpop.f32.mrf.mxu0
        %v748 = vadd.f32 %v581, %v747
        %749 = vmatmul.f32.gmra.mxu0 %v459
        %v750 = vpop.f32.mrf.mxu0
        %v751 = vadd.f32 %v581, %v750
        %752 = vmatmul.f32.gmra.mxu0 %v463
        %v753 = vpop.f32.mrf.mxu0
        %v754 = vadd.f32 %v581, %v753
        %755 = vmatmul.f32.gmra.mxu0 %v467
        %v756 = vpop.f32.mrf.mxu0
        %v757 = vadd.f32 %v581, %v756
        %758 = vmatmul.f32.gmra.mxu0 %v471
        %v759 = vpop.f32.mrf.mxu0
        %v760 = vadd.f32 %v581, %v759
        %761 = vmatmul.f32.gmra.mxu0 %v475
        %v762 = vpop.f32.mrf.mxu0
        %v763 = vadd.f32 %v581, %v762
        %764 = vmatmul.f32.gmra.mxu0 %v479
        %v765 = vpop.f32.mrf.mxu0
        %v766 = vadd.f32 %v581, %v765
        %767 = vmatmul.f32.gmra.mxu0 %v483
        %v768 = vpop.f32.mrf.mxu0
        %v769 = vadd.f32 %v581, %v768
        %770 = vmatmul.f32.gmra.mxu0 %v487
        %v771 = vpop.f32.mrf.mxu0
        %v772 = vadd.f32 %v581, %v771
        %773 = vmatmul.f32.gmra.mxu0 %v491
        %v774 = vpop.f32.mrf.mxu0
        %v775 = vadd.f32 %v581, %v774
        %776 = vmatmul.f32.gmra.mxu0 %v495
        %v777 = vpop.f32.mrf.mxu0
        %v778 = vadd.f32 %v581, %v777
        %779 = vmatmul.f32.gmra.mxu0 %v499
        %v780 = vpop.f32.mrf.mxu0
        %v781 = vadd.f32 %v581, %v780
        %782 = vmatmul.f32.gmra.mxu0 %v503
        %v783 = vpop.f32.mrf.mxu0
        %v784 = vadd.f32 %v581, %v783
        %785 = vmatmul.f32.gmra.mxu0 %v507
        %v786 = vpop.f32.mrf.mxu0
        %v787 = vadd.f32 %v581, %v786
        %788 = vmatmul.f32.gmra.mxu0 %v511
        %v789 = vpop.f32.mrf.mxu0
        %v790 = vadd.f32 %v581, %v789
        %791 = vdwg.mxu0
        %792 = vmatpush.msra.mxu0 %v546
        %793 = vmatpush.msra.mxu0 %v545
        %794 = vmatpush.msra.mxu0 %v544
        %795 = vmatpush.msra.mxu0 %v543
        %796 = vmatpush.msra.mxu0 %v542
        %797 = vmatpush.msra.mxu0 %v541
        %798 = vmatpush.msra.mxu0 %v540
        %799 = vmatpush.msra.mxu0 %v539
        %800 = vmatpush.msra.mxu0 %v538
        %801 = vmatpush.msra.mxu0 %v537
        %802 = vmatpush.msra.mxu0 %v536
        %803 = vmatpush.msra.mxu0 %v535
        %804 = vmatpush.msra.mxu0 %v534
        %805 = vmatpush.msra.mxu0 %v533
        %806 = vmatpush.msra.mxu0 %v532
        %807 = vmatpush.msra.mxu0 %v531
        %808 = vmatmul.f32.gmra.mxu0 %v260
        %v809 = vpop.f32.mrf.mxu0
        %v810 = vadd.f32 %v601, %v809
        %811 = vmatmul.f32.gmra.mxu0 %v264
        %v812 = vpop.f32.mrf.mxu0
        %v813 = vadd.f32 %v604, %v812
        %814 = vmatmul.f32.gmra.mxu0 %v268
        %v815 = vpop.f32.mrf.mxu0
        %v816 = vadd.f32 %v607, %v815
        %817 = vmatmul.f32.gmra.mxu0 %v272
        %v818 = vpop.f32.mrf.mxu0
        %v819 = vadd.f32 %v610, %v818
        %820 = vmatmul.f32.gmra.mxu0 %v276
        %v821 = vpop.f32.mrf.mxu0
        %v822 = vadd.f32 %v613, %v821
        %823 = vmatmul.f32.gmra.mxu0 %v280
        %v824 = vpop.f32.mrf.mxu0
        %v825 = vadd.f32 %v616, %v824
        %826 = vmatmul.f32.gmra.mxu0 %v284
        %v827 = vpop.f32.mrf.mxu0
        %v828 = vadd.f32 %v619, %v827
        %829 = vmatmul.f32.gmra.mxu0 %v288
        %v830 = vpop.f32.mrf.mxu0
        %v831 = vadd.f32 %v622, %v830
        %832 = vmatmul.f32.gmra.mxu0 %v292
        %v833 = vpop.f32.mrf.mxu0
        %v834 = vadd.f32 %v625, %v833
        %835 = vmatmul.f32.gmra.mxu0 %v296
        %v836 = vpop.f32.mrf.mxu0
        %v837 = vadd.f32 %v628, %v836
        %838 = vmatmul.f32.gmra.mxu0 %v300
        %v839 = vpop.f32.mrf.mxu0
        %v840 = vadd.f32 %v631, %v839
        %841 = vmatmul.f32.gmra.mxu0 %v304
        %v842 = vpop.f32.mrf.mxu0
        %v843 = vadd.f32 %v634, %v842
        %844 = vmatmul.f32.gmra.mxu0 %v308
        %v845 = vpop.f32.mrf.mxu0
        %v846 = vadd.f32 %v637, %v845
        %847 = vmatmul.f32.gmra.mxu0 %v312
        %v848 = vpop.f32.mrf.mxu0
        %v849 = vadd.f32 %v640, %v848
        %850 = vmatmul.f32.gmra.mxu0 %v316
        %v851 = vpop.f32.mrf.mxu0
        %v852 = vadd.f32 %v643, %v851
        %853 = vmatmul.f32.gmra.mxu0 %v320
        %v854 = vpop.f32.mrf.mxu0
        %v855 = vadd.f32 %v646, %v854
        %856 = vmatmul.f32.gmra.mxu0 %v324
        %v857 = vpop.f32.mrf.mxu0
        %v858 = vadd.f32 %v649, %v857
        %859 = vmatmul.f32.gmra.mxu0 %v328
        %v860 = vpop.f32.mrf.mxu0
        %v861 = vadd.f32 %v652, %v860
        %862 = vmatmul.f32.gmra.mxu0 %v332
        %v863 = vpop.f32.mrf.mxu0
        %v864 = vadd.f32 %v655, %v863
        %865 = vmatmul.f32.gmra.mxu0 %v336
        %v866 = vpop.f32.mrf.mxu0
        %v867 = vadd.f32 %v658, %v866
        %868 = vmatmul.f32.gmra.mxu0 %v340
        %v869 = vpop.f32.mrf.mxu0
        %v870 = vadd.f32 %v661, %v869
        %871 = vmatmul.f32.gmra.mxu0 %v344
        %v872 = vpop.f32.mrf.mxu0
        %v873 = vadd.f32 %v664, %v872
        %874 = vmatmul.f32.gmra.mxu0 %v348
        %v875 = vpop.f32.mrf.mxu0
        %v876 = vadd.f32 %v667, %v875
        %877 = vmatmul.f32.gmra.mxu0 %v352
        %v878 = vpop.f32.mrf.mxu0
        %v879 = vadd.f32 %v670, %v878
        %880 = vmatmul.f32.gmra.mxu0 %v356
        %v881 = vpop.f32.mrf.mxu0
        %v882 = vadd.f32 %v673, %v881
        %883 = vmatmul.f32.gmra.mxu0 %v360
        %v884 = vpop.f32.mrf.mxu0
        %v885 = vadd.f32 %v676, %v884
        %886 = vmatmul.f32.gmra.mxu0 %v364
        %v887 = vpop.f32.mrf.mxu0
        %v888 = vadd.f32 %v679, %v887
        %889 = vmatmul.f32.gmra.mxu0 %v368
        %v890 = vpop.f32.mrf.mxu0
        %v891 = vadd.f32 %v682, %v890
        %892 = vmatmul.f32.gmra.mxu0 %v372
        %v893 = vpop.f32.mrf.mxu0
        %v894 = vadd.f32 %v685, %v893
        %895 = vmatmul.f32.gmra.mxu0 %v376
        %v896 = vpop.f32.mrf.mxu0
        %v897 = vadd.f32 %v688, %v896
        %898 = vmatmul.f32.gmra.mxu0 %v380
        %v899 = vpop.f32.mrf.mxu0
        %v900 = vadd.f32 %v691, %v899
        %901 = vmatmul.f32.gmra.mxu0 %v384
        %v902 = vpop.f32.mrf.mxu0
        %v903 = vadd.f32 %v694, %v902
        %904 = vmatmul.f32.gmra.mxu0 %v388
        %v905 = vpop.f32.mrf.mxu0
        %v906 = vadd.f32 %v697, %v905
        %907 = vmatmul.f32.gmra.mxu0 %v392
        %v908 = vpop.f32.mrf.mxu0
        %v909 = vadd.f32 %v700, %v908
        %910 = vmatmul.f32.gmra.mxu0 %v396
        %v911 = vpop.f32.mrf.mxu0
        %v912 = vadd.f32 %v703, %v911
        %913 = vmatmul.f32.gmra.mxu0 %v400
        %v914 = vpop.f32.mrf.mxu0
        %v915 = vadd.f32 %v706, %v914
        %916 = vmatmul.f32.gmra.mxu0 %v404
        %v917 = vpop.f32.mrf.mxu0
        %v918 = vadd.f32 %v709, %v917
        %919 = vmatmul.f32.gmra.mxu0 %v408
        %v920 = vpop.f32.mrf.mxu0
        %v921 = vadd.f32 %v712, %v920
        %922 = vmatmul.f32.gmra.mxu0 %v412
        %v923 = vpop.f32.mrf.mxu0
        %v924 = vadd.f32 %v715, %v923
        %925 = vmatmul.f32.gmra.mxu0 %v416
        %v926 = vpop.f32.mrf.mxu0
        %v927 = vadd.f32 %v718, %v926
        %928 = vmatmul.f32.gmra.mxu0 %v420
        %v929 = vpop.f32.mrf.mxu0
        %v930 = vadd.f32 %v721, %v929
        %931 = vmatmul.f32.gmra.mxu0 %v424
        %v932 = vpop.f32.mrf.mxu0
        %v933 = vadd.f32 %v724, %v932
        %934 = vmatmul.f32.gmra.mxu0 %v428
        %v935 = vpop.f32.mrf.mxu0
        %v936 = vadd.f32 %v727, %v935
        %937 = vmatmul.f32.gmra.mxu0 %v432
        %v938 = vpop.f32.mrf.mxu0
        %v939 = vadd.f32 %v730, %v938
        %940 = vmatmul.f32.gmra.mxu0 %v436
        %v941 = vpop.f32.mrf.mxu0
        %v942 = vadd.f32 %v733, %v941
        %943 = vmatmul.f32.gmra.mxu0 %v440
        %v944 = vpop.f32.mrf.mxu0
        %v945 = vadd.f32 %v736, %v944
        %946 = vmatmul.f32.gmra.mxu0 %v444
        %v947 = vpop.f32.mrf.mxu0
        %v948 = vadd.f32 %v739, %v947
        %949 = vmatmul.f32.gmra.mxu0 %v448
        %v950 = vpop.f32.mrf.mxu0
        %v951 = vadd.f32 %v742, %v950
        %952 = vmatmul.f32.gmra.mxu0 %v452
        %v953 = vpop.f32.mrf.mxu0
        %v954 = vadd.f32 %v745, %v953
        %955 = vmatmul.f32.gmra.mxu0 %v456
        %v956 = vpop.f32.mrf.mxu0
        %v957 = vadd.f32 %v748, %v956
        %958 = vmatmul.f32.gmra.mxu0 %v460
        %v959 = vpop.f32.mrf.mxu0
        %v960 = vadd.f32 %v751, %v959
        %961 = vmatmul.f32.gmra.mxu0 %v464
        %v962 = vpop.f32.mrf.mxu0
        %v963 = vadd.f32 %v754, %v962
        %964 = vmatmul.f32.gmra.mxu0 %v468
        %v965 = vpop.f32.mrf.mxu0
        %v966 = vadd.f32 %v757, %v965
        %967 = vmatmul.f32.gmra.mxu0 %v472
        %v968 = vpop.f32.mrf.mxu0
        %v969 = vadd.f32 %v760, %v968
        %970 = vmatmul.f32.gmra.mxu0 %v476
        %v971 = vpop.f32.mrf.mxu0
        %v972 = vadd.f32 %v763, %v971
        %973 = vmatmul.f32.gmra.mxu0 %v480
        %v974 = vpop.f32.mrf.mxu0
        %v975 = vadd.f32 %v766, %v974
        %976 = vmatmul.f32.gmra.mxu0 %v484
        %v977 = vpop.f32.mrf.mxu0
        %v978 = vadd.f32 %v769, %v977
        %979 = vmatmul.f32.gmra.mxu0 %v488
        %v980 = vpop.f32.mrf.mxu0
        %v981 = vadd.f32 %v772, %v980
        %982 = vmatmul.f32.gmra.mxu0 %v492
        %v983 = vpop.f32.mrf.mxu0
        %v984 = vadd.f32 %v775, %v983
        %985 = vmatmul.f32.gmra.mxu0 %v496
        %v986 = vpop.f32.mrf.mxu0
        %v987 = vadd.f32 %v778, %v986
        %988 = vmatmul.f32.gmra.mxu0 %v500
        %v989 = vpop.f32.mrf.mxu0
        %v990 = vadd.f32 %v781, %v989
        %991 = vmatmul.f32.gmra.mxu0 %v504
        %v992 = vpop.f32.mrf.mxu0
        %v993 = vadd.f32 %v784, %v992
        %994 = vmatmul.f32.gmra.mxu0 %v508
        %v995 = vpop.f32.mrf.mxu0
        %v996 = vadd.f32 %v787, %v995
        %997 = vmatmul.f32.gmra.mxu0 %v512
        %v998 = vpop.f32.mrf.mxu0
        %v999 = vadd.f32 %v790, %v998
        %1000 = vdwg.mxu0
        %1001 = vmatpush.msra.mxu0 %v562
        %1002 = vmatpush.msra.mxu0 %v561
        %1003 = vmatpush.msra.mxu0 %v560
        %1004 = vmatpush.msra.mxu0 %v559
        %1005 = vmatpush.msra.mxu0 %v558
        %1006 = vmatpush.msra.mxu0 %v557
        %1007 = vmatpush.msra.mxu0 %v556
        %1008 = vmatpush.msra.mxu0 %v555
        %1009 = vmatpush.msra.mxu0 %v554
        %1010 = vmatpush.msra.mxu0 %v553
        %1011 = vmatpush.msra.mxu0 %v552
        %1012 = vmatpush.msra.mxu0 %v551
        %1013 = vmatpush.msra.mxu0 %v550
        %1014 = vmatpush.msra.mxu0 %v549
        %1015 = vmatpush.msra.mxu0 %v548
        %1016 = vmatpush.msra.mxu0 %v547
        %1017 = vmatmul.f32.gmra.mxu0 %v261
        %v1018 = vpop.f32.mrf.mxu0
        %v1019 = vadd.f32 %v810, %v1018
        %1020 = vmatmul.f32.gmra.mxu0 %v265
        %v1021 = vpop.f32.mrf.mxu0
        %v1022 = vadd.f32 %v813, %v1021
        %1023 = vmatmul.f32.gmra.mxu0 %v269
        %v1024 = vpop.f32.mrf.mxu0
        %v1025 = vadd.f32 %v816, %v1024
        %1026 = vmatmul.f32.gmra.mxu0 %v273
        %v1027 = vpop.f32.mrf.mxu0
        %v1028 = vadd.f32 %v819, %v1027
        %1029 = vmatmul.f32.gmra.mxu0 %v277
        %v1030 = vpop.f32.mrf.mxu0
        %v1031 = vadd.f32 %v822, %v1030
        %1032 = vmatmul.f32.gmra.mxu0 %v281
        %v1033 = vpop.f32.mrf.mxu0
        %v1034 = vadd.f32 %v825, %v1033
        %1035 = vmatmul.f32.gmra.mxu0 %v285
        %v1036 = vpop.f32.mrf.mxu0
        %v1037 = vadd.f32 %v828, %v1036
        %1038 = vmatmul.f32.gmra.mxu0 %v289
        %v1039 = vpop.f32.mrf.mxu0
        %v1040 = vadd.f32 %v831, %v1039
        %1041 = vmatmul.f32.gmra.mxu0 %v293
        %v1042 = vpop.f32.mrf.mxu0
        %v1043 = vadd.f32 %v834, %v1042
        %1044 = vmatmul.f32.gmra.mxu0 %v297
        %v1045 = vpop.f32.mrf.mxu0
        %v1046 = vadd.f32 %v837, %v1045
        %1047 = vmatmul.f32.gmra.mxu0 %v301
        %v1048 = vpop.f32.mrf.mxu0
        %v1049 = vadd.f32 %v840, %v1048
        %1050 = vmatmul.f32.gmra.mxu0 %v305
        %v1051 = vpop.f32.mrf.mxu0
        %v1052 = vadd.f32 %v843, %v1051
        %1053 = vmatmul.f32.gmra.mxu0 %v309
        %v1054 = vpop.f32.mrf.mxu0
        %v1055 = vadd.f32 %v846, %v1054
        %1056 = vmatmul.f32.gmra.mxu0 %v313
        %v1057 = vpop.f32.mrf.mxu0
        %v1058 = vadd.f32 %v849, %v1057
        %1059 = vmatmul.f32.gmra.mxu0 %v317
        %v1060 = vpop.f32.mrf.mxu0
        %v1061 = vadd.f32 %v852, %v1060
        %1062 = vmatmul.f32.gmra.mxu0 %v321
        %v1063 = vpop.f32.mrf.mxu0
        %v1064 = vadd.f32 %v855, %v1063
        %1065 = vmatmul.f32.gmra.mxu0 %v325
        %v1066 = vpop.f32.mrf.mxu0
        %v1067 = vadd.f32 %v858, %v1066
        %1068 = vmatmul.f32.gmra.mxu0 %v329
        %v1069 = vpop.f32.mrf.mxu0
        %v1070 = vadd.f32 %v861, %v1069
        %1071 = vmatmul.f32.gmra.mxu0 %v333
        %v1072 = vpop.f32.mrf.mxu0
        %v1073 = vadd.f32 %v864, %v1072
        %1074 = vmatmul.f32.gmra.mxu0 %v337
        %v1075 = vpop.f32.mrf.mxu0
        %v1076 = vadd.f32 %v867, %v1075
        %1077 = vmatmul.f32.gmra.mxu0 %v341
        %v1078 = vpop.f32.mrf.mxu0
        %v1079 = vadd.f32 %v870, %v1078
        %1080 = vmatmul.f32.gmra.mxu0 %v345
        %v1081 = vpop.f32.mrf.mxu0
        %v1082 = vadd.f32 %v873, %v1081
        %1083 = vmatmul.f32.gmra.mxu0 %v349
        %v1084 = vpop.f32.mrf.mxu0
        %v1085 = vadd.f32 %v876, %v1084
        %1086 = vmatmul.f32.gmra.mxu0 %v353
        %v1087 = vpop.f32.mrf.mxu0
        %v1088 = vadd.f32 %v879, %v1087
        %1089 = vmatmul.f32.gmra.mxu0 %v357
        %v1090 = vpop.f32.mrf.mxu0
        %v1091 = vadd.f32 %v882, %v1090
        %1092 = vmatmul.f32.gmra.mxu0 %v361
        %v1093 = vpop.f32.mrf.mxu0
        %v1094 = vadd.f32 %v885, %v1093
        %1095 = vmatmul.f32.gmra.mxu0 %v365
        %v1096 = vpop.f32.mrf.mxu0
        %v1097 = vadd.f32 %v888, %v1096
        %1098 = vmatmul.f32.gmra.mxu0 %v369
        %v1099 = vpop.f32.mrf.mxu0
        %v1100 = vadd.f32 %v891, %v1099
        %1101 = vmatmul.f32.gmra.mxu0 %v373
        %v1102 = vpop.f32.mrf.mxu0
        %v1103 = vadd.f32 %v894, %v1102
        %1104 = vmatmul.f32.gmra.mxu0 %v377
        %v1105 = vpop.f32.mrf.mxu0
        %v1106 = vadd.f32 %v897, %v1105
        %1107 = vmatmul.f32.gmra.mxu0 %v381
        %v1108 = vpop.f32.mrf.mxu0
        %v1109 = vadd.f32 %v900, %v1108
        %1110 = vmatmul.f32.gmra.mxu0 %v385
        %v1111 = vpop.f32.mrf.mxu0
        %v1112 = vadd.f32 %v903, %v1111
        %1113 = vmatmul.f32.gmra.mxu0 %v389
        %v1114 = vpop.f32.mrf.mxu0
        %v1115 = vadd.f32 %v906, %v1114
        %1116 = vmatmul.f32.gmra.mxu0 %v393
        %v1117 = vpop.f32.mrf.mxu0
        %v1118 = vadd.f32 %v909, %v1117
        %1119 = vmatmul.f32.gmra.mxu0 %v397
        %v1120 = vpop.f32.mrf.mxu0
        %v1121 = vadd.f32 %v912, %v1120
        %1122 = vmatmul.f32.gmra.mxu0 %v401
        %v1123 = vpop.f32.mrf.mxu0
        %v1124 = vadd.f32 %v915, %v1123
        %1125 = vmatmul.f32.gmra.mxu0 %v405
        %v1126 = vpop.f32.mrf.mxu0
        %v1127 = vadd.f32 %v918, %v1126
        %1128 = vmatmul.f32.gmra.mxu0 %v409
        %v1129 = vpop.f32.mrf.mxu0
        %v1130 = vadd.f32 %v921, %v1129
        %1131 = vmatmul.f32.gmra.mxu0 %v413
        %v1132 = vpop.f32.mrf.mxu0
        %v1133 = vadd.f32 %v924, %v1132
        %1134 = vmatmul.f32.gmra.mxu0 %v417
        %v1135 = vpop.f32.mrf.mxu0
        %v1136 = vadd.f32 %v927, %v1135
        %1137 = vmatmul.f32.gmra.mxu0 %v421
        %v1138 = vpop.f32.mrf.mxu0
        %v1139 = vadd.f32 %v930, %v1138
        %1140 = vmatmul.f32.gmra.mxu0 %v425
        %v1141 = vpop.f32.mrf.mxu0
        %v1142 = vadd.f32 %v933, %v1141
        %1143 = vmatmul.f32.gmra.mxu0 %v429
        %v1144 = vpop.f32.mrf.mxu0
        %v1145 = vadd.f32 %v936, %v1144
        %1146 = vmatmul.f32.gmra.mxu0 %v433
        %v1147 = vpop.f32.mrf.mxu0
        %v1148 = vadd.f32 %v939, %v1147
        %1149 = vmatmul.f32.gmra.mxu0 %v437
        %v1150 = vpop.f32.mrf.mxu0
        %v1151 = vadd.f32 %v942, %v1150
        %1152 = vmatmul.f32.gmra.mxu0 %v441
        %v1153 = vpop.f32.mrf.mxu0
        %v1154 = vadd.f32 %v945, %v1153
        %1155 = vmatmul.f32.gmra.mxu0 %v445
        %v1156 = vpop.f32.mrf.mxu0
        %v1157 = vadd.f32 %v948, %v1156
        %1158 = vmatmul.f32.gmra.mxu0 %v449
        %v1159 = vpop.f32.mrf.mxu0
        %v1160 = vadd.f32 %v951, %v1159
        %1161 = vmatmul.f32.gmra.mxu0 %v453
        %v1162 = vpop.f32.mrf.mxu0
        %v1163 = vadd.f32 %v954, %v1162
        %1164 = vmatmul.f32.gmra.mxu0 %v457
        %v1165 = vpop.f32.mrf.mxu0
        %v1166 = vadd.f32 %v957, %v1165
        %1167 = vmatmul.f32.gmra.mxu0 %v461
        %v1168 = vpop.f32.mrf.mxu0
        %v1169 = vadd.f32 %v960, %v1168
        %1170 = vmatmul.f32.gmra.mxu0 %v465
        %v1171 = vpop.f32.mrf.mxu0
        %v1172 = vadd.f32 %v963, %v1171
        %1173 = vmatmul.f32.gmra.mxu0 %v469
        %v1174 = vpop.f32.mrf.mxu0
        %v1175 = vadd.f32 %v966, %v1174
        %1176 = vmatmul.f32.gmra.mxu0 %v473
        %v1177 = vpop.f32.mrf.mxu0
        %v1178 = vadd.f32 %v969, %v1177
        %1179 = vmatmul.f32.gmra.mxu0 %v477
        %v1180 = vpop.f32.mrf.mxu0
        %v1181 = vadd.f32 %v972, %v1180
        %1182 = vmatmul.f32.gmra.mxu0 %v481
        %v1183 = vpop.f32.mrf.mxu0
        %v1184 = vadd.f32 %v975, %v1183
        %1185 = vmatmul.f32.gmra.mxu0 %v485
        %v1186 = vpop.f32.mrf.mxu0
        %v1187 = vadd.f32 %v978, %v1186
        %1188 = vmatmul.f32.gmra.mxu0 %v489
        %v1189 = vpop.f32.mrf.mxu0
        %v1190 = vadd.f32 %v981, %v1189
        %1191 = vmatmul.f32.gmra.mxu0 %v493
        %v1192 = vpop.f32.mrf.mxu0
        %v1193 = vadd.f32 %v984, %v1192
        %1194 = vmatmul.f32.gmra.mxu0 %v497
        %v1195 = vpop.f32.mrf.mxu0
        %v1196 = vadd.f32 %v987, %v1195
        %1197 = vmatmul.f32.gmra.mxu0 %v501
        %v1198 = vpop.f32.mrf.mxu0
        %v1199 = vadd.f32 %v990, %v1198
        %1200 = vmatmul.f32.gmra.mxu0 %v505
        %v1201 = vpop.f32.mrf.mxu0
        %v1202 = vadd.f32 %v993, %v1201
        %1203 = vmatmul.f32.gmra.mxu0 %v509
        %v1204 = vpop.f32.mrf.mxu0
        %v1205 = vadd.f32 %v996, %v1204
        %1206 = vmatmul.f32.gmra.mxu0 %v513
        %v1207 = vpop.f32.mrf.mxu0
        %v1208 = vadd.f32 %v999, %v1207
        %1209 = vdwg.mxu0
        %1210 = vmatpush.msra.mxu0 %v578
        %1211 = vmatpush.msra.mxu0 %v577
        %1212 = vmatpush.msra.mxu0 %v576
        %1213 = vmatpush.msra.mxu0 %v575
        %1214 = vmatpush.msra.mxu0 %v574
        %1215 = vmatpush.msra.mxu0 %v573
        %1216 = vmatpush.msra.mxu0 %v572
        %1217 = vmatpush.msra.mxu0 %v571
        %1218 = vmatpush.msra.mxu0 %v570
        %1219 = vmatpush.msra.mxu0 %v569
        %1220 = vmatpush.msra.mxu0 %v568
        %1221 = vmatpush.msra.mxu0 %v567
        %1222 = vmatpush.msra.mxu0 %v566
        %1223 = vmatpush.msra.mxu0 %v565
        %1224 = vmatpush.msra.mxu0 %v564
        %1225 = vmatpush.msra.mxu0 %v563
        %1226 = vmatmul.f32.gmra.mxu0 %v262
        %v1227 = vpop.f32.mrf.mxu0
        %v1228 = vadd.f32 %v1019, %v1227
        %1229 = vmatmul.f32.gmra.mxu0 %v266
        %v1230 = vpop.f32.mrf.mxu0
        %v1231 = vadd.f32 %v1022, %v1230
        %1232 = vmatmul.f32.gmra.mxu0 %v270
        %v1233 = vpop.f32.mrf.mxu0
        %v1234 = vadd.f32 %v1025, %v1233
        %1235 = vmatmul.f32.gmra.mxu0 %v274
        %v1236 = vpop.f32.mrf.mxu0
        %v1237 = vadd.f32 %v1028, %v1236
        %1238 = vmatmul.f32.gmra.mxu0 %v278
        %v1239 = vpop.f32.mrf.mxu0
        %v1240 = vadd.f32 %v1031, %v1239
        %1241 = vmatmul.f32.gmra.mxu0 %v282
        %v1242 = vpop.f32.mrf.mxu0
        %v1243 = vadd.f32 %v1034, %v1242
        %1244 = vmatmul.f32.gmra.mxu0 %v286
        %v1245 = vpop.f32.mrf.mxu0
        %v1246 = vadd.f32 %v1037, %v1245
        %1247 = vmatmul.f32.gmra.mxu0 %v290
        %v1248 = vpop.f32.mrf.mxu0
        %v1249 = vadd.f32 %v1040, %v1248
        %1250 = vmatmul.f32.gmra.mxu0 %v294
        %v1251 = vpop.f32.mrf.mxu0
        %v1252 = vadd.f32 %v1043, %v1251
        %1253 = vmatmul.f32.gmra.mxu0 %v298
        %v1254 = vpop.f32.mrf.mxu0
        %v1255 = vadd.f32 %v1046, %v1254
        %1256 = vmatmul.f32.gmra.mxu0 %v302
        %v1257 = vpop.f32.mrf.mxu0
        %v1258 = vadd.f32 %v1049, %v1257
        %1259 = vmatmul.f32.gmra.mxu0 %v306
        %v1260 = vpop.f32.mrf.mxu0
        %v1261 = vadd.f32 %v1052, %v1260
        %1262 = vmatmul.f32.gmra.mxu0 %v310
        %v1263 = vpop.f32.mrf.mxu0
        %v1264 = vadd.f32 %v1055, %v1263
        %1265 = vmatmul.f32.gmra.mxu0 %v314
        %v1266 = vpop.f32.mrf.mxu0
        %v1267 = vadd.f32 %v1058, %v1266
        %1268 = vmatmul.f32.gmra.mxu0 %v318
        %v1269 = vpop.f32.mrf.mxu0
        %v1270 = vadd.f32 %v1061, %v1269
        %1271 = vmatmul.f32.gmra.mxu0 %v322
        %v1272 = vpop.f32.mrf.mxu0
        %v1273 = vadd.f32 %v1064, %v1272
        %1274 = vmatmul.f32.gmra.mxu0 %v326
        %v1275 = vpop.f32.mrf.mxu0
        %v1276 = vadd.f32 %v1067, %v1275
        %1277 = vmatmul.f32.gmra.mxu0 %v330
        %v1278 = vpop.f32.mrf.mxu0
        %v1279 = vadd.f32 %v1070, %v1278
        %1280 = vmatmul.f32.gmra.mxu0 %v334
        %v1281 = vpop.f32.mrf.mxu0
        %v1282 = vadd.f32 %v1073, %v1281
        %1283 = vmatmul.f32.gmra.mxu0 %v338
        %v1284 = vpop.f32.mrf.mxu0
        %v1285 = vadd.f32 %v1076, %v1284
        %1286 = vmatmul.f32.gmra.mxu0 %v342
        %v1287 = vpop.f32.mrf.mxu0
        %v1288 = vadd.f32 %v1079, %v1287
        %1289 = vmatmul.f32.gmra.mxu0 %v346
        %v1290 = vpop.f32.mrf.mxu0
        %v1291 = vadd.f32 %v1082, %v1290
        %1292 = vmatmul.f32.gmra.mxu0 %v350
        %v1293 = vpop.f32.mrf.mxu0
        %v1294 = vadd.f32 %v1085, %v1293
        %1295 = vmatmul.f32.gmra.mxu0 %v354
        %v1296 = vpop.f32.mrf.mxu0
        %v1297 = vadd.f32 %v1088, %v1296
        %1298 = vmatmul.f32.gmra.mxu0 %v358
        %v1299 = vpop.f32.mrf.mxu0
        %v1300 = vadd.f32 %v1091, %v1299
        %1301 = vmatmul.f32.gmra.mxu0 %v362
        %v1302 = vpop.f32.mrf.mxu0
        %v1303 = vadd.f32 %v1094, %v1302
        %1304 = vmatmul.f32.gmra.mxu0 %v366
        %v1305 = vpop.f32.mrf.mxu0
        %v1306 = vadd.f32 %v1097, %v1305
        %1307 = vmatmul.f32.gmra.mxu0 %v370
        %v1308 = vpop.f32.mrf.mxu0
        %v1309 = vadd.f32 %v1100, %v1308
        %1310 = vmatmul.f32.gmra.mxu0 %v374
        %v1311 = vpop.f32.mrf.mxu0
        %v1312 = vadd.f32 %v1103, %v1311
        %1313 = vmatmul.f32.gmra.mxu0 %v378
        %v1314 = vpop.f32.mrf.mxu0
        %v1315 = vadd.f32 %v1106, %v1314
        %1316 = vmatmul.f32.gmra.mxu0 %v382
        %v1317 = vpop.f32.mrf.mxu0
        %v1318 = vadd.f32 %v1109, %v1317
        %1319 = vmatmul.f32.gmra.mxu0 %v386
        %v1320 = vpop.f32.mrf.mxu0
        %v1321 = vadd.f32 %v1112, %v1320
        %1322 = vmatmul.f32.gmra.mxu0 %v390
        %v1323 = vpop.f32.mrf.mxu0
        %v1324 = vadd.f32 %v1115, %v1323
        %1325 = vmatmul.f32.gmra.mxu0 %v394
        %v1326 = vpop.f32.mrf.mxu0
        %v1327 = vadd.f32 %v1118, %v1326
        %1328 = vmatmul.f32.gmra.mxu0 %v398
        %v1329 = vpop.f32.mrf.mxu0
        %v1330 = vadd.f32 %v1121, %v1329
        %1331 = vmatmul.f32.gmra.mxu0 %v402
        %v1332 = vpop.f32.mrf.mxu0
        %v1333 = vadd.f32 %v1124, %v1332
        %1334 = vmatmul.f32.gmra.mxu0 %v406
        %v1335 = vpop.f32.mrf.mxu0
        %v1336 = vadd.f32 %v1127, %v1335
        %1337 = vmatmul.f32.gmra.mxu0 %v410
        %v1338 = vpop.f32.mrf.mxu0
        %v1339 = vadd.f32 %v1130, %v1338
        %1340 = vmatmul.f32.gmra.mxu0 %v414
        %v1341 = vpop.f32.mrf.mxu0
        %v1342 = vadd.f32 %v1133, %v1341
        %1343 = vmatmul.f32.gmra.mxu0 %v418
        %v1344 = vpop.f32.mrf.mxu0
        %v1345 = vadd.f32 %v1136, %v1344
        %1346 = vmatmul.f32.gmra.mxu0 %v422
        %v1347 = vpop.f32.mrf.mxu0
        %v1348 = vadd.f32 %v1139, %v1347
        %1349 = vmatmul.f32.gmra.mxu0 %v426
        %v1350 = vpop.f32.mrf.mxu0
        %v1351 = vadd.f32 %v1142, %v1350
        %1352 = vmatmul.f32.gmra.mxu0 %v430
        %v1353 = vpop.f32.mrf.mxu0
        %v1354 = vadd.f32 %v1145, %v1353
        %1355 = vmatmul.f32.gmra.mxu0 %v434
        %v1356 = vpop.f32.mrf.mxu0
        %v1357 = vadd.f32 %v1148, %v1356
        %1358 = vmatmul.f32.gmra.mxu0 %v438
        %v1359 = vpop.f32.mrf.mxu0
        %v1360 = vadd.f32 %v1151, %v1359
        %1361 = vmatmul.f32.gmra.mxu0 %v442
        %v1362 = vpop.f32.mrf.mxu0
        %v1363 = vadd.f32 %v1154, %v1362
        %1364 = vmatmul.f32.gmra.mxu0 %v446
        %v1365 = vpop.f32.mrf.mxu0
        %v1366 = vadd.f32 %v1157, %v1365
        %1367 = vmatmul.f32.gmra.mxu0 %v450
        %v1368 = vpop.f32.mrf.mxu0
        %v1369 = vadd.f32 %v1160, %v1368
        %1370 = vmatmul.f32.gmra.mxu0 %v454
        %v1371 = vpop.f32.mrf.mxu0
        %v1372 = vadd.f32 %v1163, %v1371
        %1373 = vmatmul.f32.gmra.mxu0 %v458
        %v1374 = vpop.f32.mrf.mxu0
        %v1375 = vadd.f32 %v1166, %v1374
        %1376 = vmatmul.f32.gmra.mxu0 %v462
        %v1377 = vpop.f32.mrf.mxu0
        %v1378 = vadd.f32 %v1169, %v1377
        %1379 = vmatmul.f32.gmra.mxu0 %v466
        %v1380 = vpop.f32.mrf.mxu0
        %v1381 = vadd.f32 %v1172, %v1380
        %1382 = vmatmul.f32.gmra.mxu0 %v470
        %v1383 = vpop.f32.mrf.mxu0
        %v1384 = vadd.f32 %v1175, %v1383
        %1385 = vmatmul.f32.gmra.mxu0 %v474
        %v1386 = vpop.f32.mrf.mxu0
        %v1387 = vadd.f32 %v1178, %v1386
        %1388 = vmatmul.f32.gmra.mxu0 %v478
        %v1389 = vpop.f32.mrf.mxu0
        %v1390 = vadd.f32 %v1181, %v1389
        %1391 = vmatmul.f32.gmra.mxu0 %v482
        %v1392 = vpop.f32.mrf.mxu0
        %v1393 = vadd.f32 %v1184, %v1392
        %1394 = vmatmul.f32.gmra.mxu0 %v486
        %v1395 = vpop.f32.mrf.mxu0
        %v1396 = vadd.f32 %v1187, %v1395
        %1397 = vmatmul.f32.gmra.mxu0 %v490
        %v1398 = vpop.f32.mrf.mxu0
        %v1399 = vadd.f32 %v1190, %v1398
        %1400 = vmatmul.f32.gmra.mxu0 %v494
        %v1401 = vpop.f32.mrf.mxu0
        %v1402 = vadd.f32 %v1193, %v1401
        %1403 = vmatmul.f32.gmra.mxu0 %v498
        %v1404 = vpop.f32.mrf.mxu0
        %v1405 = vadd.f32 %v1196, %v1404
        %1406 = vmatmul.f32.gmra.mxu0 %v502
        %v1407 = vpop.f32.mrf.mxu0
        %v1408 = vadd.f32 %v1199, %v1407
        %1409 = vmatmul.f32.gmra.mxu0 %v506
        %v1410 = vpop.f32.mrf.mxu0
        %v1411 = vadd.f32 %v1202, %v1410
        %1412 = vmatmul.f32.gmra.mxu0 %v510
        %v1413 = vpop.f32.mrf.mxu0
        %v1414 = vadd.f32 %v1205, %v1413
        %1415 = vmatmul.f32.gmra.mxu0 %v514
        %v1416 = vpop.f32.mrf.mxu0
        %v1417 = vadd.f32 %v1208, %v1416
        %1418 = vdwg.mxu0
        %v1419 = vtanh.pop %v1228
        %v1420 = vtanh.pop %v1231
        %v1421 = vtanh.pop %v1234
        %v1422 = vtanh.pop %v1237
        %v1423 = vtanh.pop %v1240
        %v1424 = vtanh.pop %v1243
        %v1425 = vtanh.pop %v1246
        %v1426 = vtanh.pop %v1249
        %v1427 = vtanh.pop %v1252
        %v1428 = vtanh.pop %v1255
        %v1429 = vtanh.pop %v1258
        %v1430 = vtanh.pop %v1261
        %v1431 = vtanh.pop %v1264
        %v1432 = vtanh.pop %v1267
        %v1433 = vtanh.pop %v1270
        %v1434 = vtanh.pop %v1273
        %v1435 = vtanh.pop %v1276
        %v1436 = vtanh.pop %v1279
        %v1437 = vtanh.pop %v1282
        %v1438 = vtanh.pop %v1285
        %v1439 = vtanh.pop %v1288
        %v1440 = vtanh.pop %v1291
        %v1441 = vtanh.pop %v1294
        %v1442 = vtanh.pop %v1297
        %v1443 = vtanh.pop %v1300
        %v1444 = vtanh.pop %v1303
        %v1445 = vtanh.pop %v1306
        %v1446 = vtanh.pop %v1309
        %v1447 = vtanh.pop %v1312
        %v1448 = vtanh.pop %v1315
        %v1449 = vtanh.pop %v1318
        %v1450 = vtanh.pop %v1321
        %v1451 = vtanh.pop %v1324
        %v1452 = vtanh.pop %v1327
        %v1453 = vtanh.pop %v1330
        %v1454 = vtanh.pop %v1333
        %v1455 = vtanh.pop %v1336
        %v1456 = vtanh.pop %v1339
        %v1457 = vtanh.pop %v1342
        %v1458 = vtanh.pop %v1345
        %v1459 = vtanh.pop %v1348
        %v1460 = vtanh.pop %v1351
        %v1461 = vtanh.pop %v1354
        %v1462 = vtanh.pop %v1357
        %v1463 = vtanh.pop %v1360
        %v1464 = vtanh.pop %v1363
        %v1465 = vtanh.pop %v1366
        %v1466 = vtanh.pop %v1369
        %v1467 = vtanh.pop %v1372
        %v1468 = vtanh.pop %v1375
        %v1469 = vtanh.pop %v1378
        %v1470 = vtanh.pop %v1381
        %v1471 = vtanh.pop %v1384
        %v1472 = vtanh.pop %v1387
        %v1473 = vtanh.pop %v1390
        %v1474 = vtanh.pop %v1393
        %v1475 = vtanh.pop %v1396
        %v1476 = vtanh.pop %v1399
        %v1477 = vtanh.pop %v1402
        %v1478 = vtanh.pop %v1405
        %v1479 = vtanh.pop %v1408
        %v1480 = vtanh.pop %v1411
        %v1481 = vtanh.pop %v1414
        %v1482 = vtanh.pop %v1417
        %s1483 = scalar_lea.vmem %s245, %s253
        %1484 = vst [vmem:[%s1483] sm:$0xff] %v1419
        %1485 = vst [vmem:[%s1483 + $0x8] sm:$0xff] %v1420
        %1486 = vst [vmem:[%s1483 + $0x10] sm:$0xff] %v1421
        %1487 = vst [vmem:[%s1483 + $0x18] sm:$0xff] %v1422
        %1488 = vst [vmem:[%s1483 + $0x20] sm:$0xff] %v1423
        %1489 = vst [vmem:[%s1483 + $0x28] sm:$0xff] %v1424
        %1490 = vst [vmem:[%s1483 + $0x30] sm:$0xff] %v1425
        %1491 = vst [vmem:[%s1483 + $0x38] sm:$0xff] %v1426
        %1492 = vst [vmem:[%s1483 + $0x40] sm:$0xff] %v1427
        %1493 = vst [vmem:[%s1483 + $0x48] sm:$0xff] %v1428
        %1494 = vst [vmem:[%s1483 + $0x50] sm:$0xff] %v1429
        %1495 = vst [vmem:[%s1483 + $0x58] sm:$0xff] %v1430
        %1496 = vst [vmem:[%s1483 + $0x60] sm:$0xff] %v1431
        %1497 = vst [vmem:[%s1483 + $0x68] sm:$0xff] %v1432
        %1498 = vst [vmem:[%s1483 + $0x70] sm:$0xff] %v1433
        %1499 = vst [vmem:[%s1483 + $0x78] sm:$0xff] %v1434
        %1500 = vst [vmem:[%s1483 + $0x80] sm:$0xff] %v1435
        %1501 = vst [vmem:[%s1483 + $0x88] sm:$0xff] %v1436
        %1502 = vst [vmem:[%s1483 + $0x90] sm:$0xff] %v1437
        %1503 = vst [vmem:[%s1483 + $0x98] sm:$0xff] %v1438
        %1504 = vst [vmem:[%s1483 + $0xa0] sm:$0xff] %v1439
        %1505 = vst [vmem:[%s1483 + $0xa8] sm:$0xff] %v1440
        %1506 = vst [vmem:[%s1483 + $0xb0] sm:$0xff] %v1441
        %1507 = vst [vmem:[%s1483 + $0xb8] sm:$0xff] %v1442
        %1508 = vst [vmem:[%s1483 + $0xc0] sm:$0xff] %v1443
        %1509 = vst [vmem:[%s1483 + $0xc8] sm:$0xff] %v1444
        %1510 = vst [vmem:[%s1483 + $0xd0] sm:$0xff] %v1445
        %1511 = vst [vmem:[%s1483 + $0xd8] sm:$0xff] %v1446
        %1512 = vst [vmem:[%s1483 + $0xe0] sm:$0xff] %v1447
        %1513 = vst [vmem:[%s1483 + $0xe8] sm:$0xff] %v1448
        %1514 = vst [vmem:[%s1483 + $0xf0] sm:$0xff] %v1449
        %1515 = vst [vmem:[%s1483 + $0xf8] sm:$0xff] %v1450
        %1516 = vst [vmem:[%s1483 + $0x100] sm:$0xff] %v1451
        %1517 = vst [vmem:[%s1483 + $0x108] sm:$0xff] %v1452
        %1518 = vst [vmem:[%s1483 + $0x110] sm:$0xff] %v1453
        %1519 = vst [vmem:[%s1483 + $0x118] sm:$0xff] %v1454
        %1520 = vst [vmem:[%s1483 + $0x120] sm:$0xff] %v1455
        %1521 = vst [vmem:[%s1483 + $0x128] sm:$0xff] %v1456
        %1522 = vst [vmem:[%s1483 + $0x130] sm:$0xff] %v1457
        %1523 = vst [vmem:[%s1483 + $0x138] sm:$0xff] %v1458
        %1524 = vst [vmem:[%s1483 + $0x140] sm:$0xff] %v1459
        %1525 = vst [vmem:[%s1483 + $0x148] sm:$0xff] %v1460
        %1526 = vst [vmem:[%s1483 + $0x150] sm:$0xff] %v1461
        %1527 = vst [vmem:[%s1483 + $0x158] sm:$0xff] %v1462
        %1528 = vst [vmem:[%s1483 + $0x160] sm:$0xff] %v1463
        %1529 = vst [vmem:[%s1483 + $0x168] sm:$0xff] %v1464
        %1530 = vst [vmem:[%s1483 + $0x170] sm:$0xff] %v1465
        %1531 = vst [vmem:[%s1483 + $0x178] sm:$0xff] %v1466
        %1532 = vst [vmem:[%s1483 + $0x180] sm:$0xff] %v1467
        %1533 = vst [vmem:[%s1483 + $0x188] sm:$0xff] %v1468
        %1534 = vst [vmem:[%s1483 + $0x190] sm:$0xff] %v1469
        %1535 = vst [vmem:[%s1483 + $0x198] sm:$0xff] %v1470
        %1536 = vst [vmem:[%s1483 + $0x1a0] sm:$0xff] %v1471
        %1537 = vst [vmem:[%s1483 + $0x1a8] sm:$0xff] %v1472
        %1538 = vst [vmem:[%s1483 + $0x1b0] sm:$0xff] %v1473
        %1539 = vst [vmem:[%s1483 + $0x1b8] sm:$0xff] %v1474
        %1540 = vst [vmem:[%s1483 + $0x1c0] sm:$0xff] %v1475
        %1541 = vst [vmem:[%s1483 + $0x1c8] sm:$0xff] %v1476
        %1542 = vst [vmem:[%s1483 + $0x1d0] sm:$0xff] %v1477
        %1543 = vst [vmem:[%s1483 + $0x1d8] sm:$0xff] %v1478
        %1544 = vst [vmem:[%s1483 + $0x1e0] sm:$0xff] %v1479
        %1545 = vst [vmem:[%s1483 + $0x1e8] sm:$0xff] %v1480
        %1546 = vst [vmem:[%s1483 + $0x1f0] sm:$0xff] %v1481
        %1547 = vst [vmem:[%s1483 + $0x1f8] sm:$0xff] %v1482
      $region37: #{model_forward.6} parent=31 // loop_footer
        %s252 = sadd.s32 1, %s248
      $region38: #{model_forward.6} parent=31 // loop_footer_branch
        %247 = sbr.rel target = $region34
      $region39: #{model_forward.6} parent=31 // loop_exit
        _
      %s1548 = smul.u32 384, %s19
      %p1549 = scmp.lt.s32.totalorder %s18, 1
      %s1550 = scalar_select %p1549, %s18, 1
      %p1551 = scmp.lt.s32.totalorder %s1548, 767
      %s1552 = scalar_select %p1551, %s1548, 767
      %s1553 = smul.addr %s1550, 768
      %s1554 = sadd.s32 %s1552, %s1553
      %s1555 = smul.addr %s1554, 8
      %s1556 = scalar_lea.vmem %s3, %s1555
      // Predicated region
      $region40: #{model_forward.6} parent=31 // pred_check
        %p1557 = pneg %p126
      $region41: #{model_forward.6} parent=31 // pred_check_branch
        %1559 = sbr.rel (%p1557) target = $region43
      $region42: #{model_forward.6} parent=31 // pred_region
        %s1560 = smul.u32 384, %s19
      $region43: #{model_forward.6} parent=31 // pred_fallthru
        _
    $region32: #{model_forward.6} parent=5 // pred_fallthru
      _
    %p1561 = scmp.le.s32.totalorder 2, %s9
    // Predicated region
    $region44: #{model_forward.6} parent=5 // pred_check
      %p1562 = pneg %p1561
    $region45: #{model_forward.6} parent=5 // pred_check_branch
      %1564 = sbr.rel (%p1562) target = $region47
    $region46: #{model_forward.6} parent=5 // pred_region
      %s1565 = ssub.s32 %s9, 2
      // Predicated region
      $region48: #{model_forward.6} parent=46 // pred_check
        %p1566 = pneg %p132
      $region49: #{model_forward.6} parent=46 // pred_check_branch
        %1568 = sbr.rel (%p1566) target = $region51
      $region50: #{model_forward.6} parent=46 // pred_region
        %s1569 = smul.u32 384, %s21
        %p1570 = scmp.lt.s32.totalorder %s20, 1
        %s1571 = scalar_select %p1570, %s20, 1
        %p1572 = scmp.lt.s32.totalorder %s1569, 767
        %s1573 = scalar_select %p1572, %s1569, 767
        %s1574 = smul.addr %s1571, 768
        %s1575 = sadd.s32 %s1573, %s1574
        %s1576 = smul.addr %s1575, 8
        %s1577 = scalar_lea.vmem %s3, %s1576
      $region51: #{model_forward.6} parent=46 // pred_fallthru
        _
    $region47: #{model_forward.6} parent=5 // pred_fallthru
      _
  $region6: #{model_forward.6} parent=0 // loop_footer
    %s13 = sadd.s32 1, %s9
  $region7: #{model_forward.6} parent=0 // loop_footer_branch
    %8 = sbr.rel target = $region3
  $region8: #{model_forward.6} parent=0 // loop_exit
    _

// kernel: model_forward.7
$region0: #{model_forward.7}
  #allocation0 [shape = 'u32[]', space=smem, size = 0x4, offset = 0x4, fixed_abs, tag = 'smem constant byte address 0x4 - core index']
  #allocation1 [shape = 'u32[72,128]{1,0:T(1,128)}', space=vmem, size = 0x9000, scoped, tag = 'internal scratch']
  %s0 = inlined_call_operand.vmem [shape: f32[2,2560,896], index: 0, kind: input, shape index: {}]
  %s1 = inlined_call_operand.vmem [shape: f32[2,896,128], index: 1, kind: input, shape index: {}]
  %s2 = inlined_call_operand.vmem [shape: f32[2,1,128], index: 2, kind: input, shape index: {}]
  %s3 = inlined_call_operand.vmem [shape: f32[2,2560,128], index: 3, kind: output, shape index: {}]
  %s4 = sld [smem:[#allocation0]]
  $region52: #{model_forward.7} parent=0
    _
  %s6 = ssub.s32 1, %s4
  %s7 = scalar_select 0, %s6, %s4
  loop: start=0, step=1, limit=6
  $region2: #{model_forward.7} parent=0 // loop_pre_header
    _
  $region3: #{model_forward.7} parent=0 // loop_header
    %s9 = sphi 0, %s13
    %p10 = scmp.ge.s32.totalorder %s9, 6
    %s16 = sphi 0, %s28
    %s17 = sphi 0, %s24
    %s18 = sphi 0, %s16
    %s19 = sphi 0, %s17
    %s20 = sphi 0, %s18
    %s21 = sphi 0, %s19
    %s33 = sphi 0, %s35
    %s36 = sphi 0, %s33
    %s37 = sphi 0, %s36
    %s53 = sphi 0, %s37
    %s59 = sphi 0, %s61
    %s62 = sphi 0, %s59
    %s63 = sphi 0, %s62
    %s79 = sphi 0, %s63
    %s85 = sphi 0, %s87
    %s88 = sphi 0, %s85
    %s89 = sphi 0, %s88
    %s105 = sphi 0, %s89
    %s113 = sphi 0, %s115
    %s116 = sphi 0, %s113
    %s117 = sphi 0, %s116
    %s133 = sphi 0, %s117
  $region4: #{model_forward.7} parent=0 // loop_header_branch
    %12 = sbr.rel (%p10) target = $region8
  $region5: #{model_forward.7} parent=0 // loop_body
    %s14 = ssub.s32 %s9, 1
    %s15 = ssub.s32 %s9, 2
    %s22 = sadd.s32 1, %s17
    %p23 = scmp.ge.s32.totalorder %s22, 2
    %s24 = scalar_select %p23, 0, %s22
    %s25 = sadd.s32 1, %s16
    %s26 = scalar_select %p23, %s25, %s16
    %p27 = scmp.ge.s32.totalorder %s26, 2
    %s28 = scalar_select %p27, 0, %s26
    %s29 = ssub.s32 %s16, %s28
    %s30 = ssub.s32 %s17, %s24
    %s31 = sor.u32 %s29, %s30
    %p32 = scmp.eq.s32.totalorder %s31, 0
    %s34 = sadd.s32 %s33, 1
    %s35 = scalar_select %p32, %s33, %s34
    %p38 = pneg %p32
    %p39 = scmp.eq.s32.totalorder %s9, 3
    %p40 = por %p38, %p39
    %p41 = scmp.ne.s32.totalorder %s33, %s36
    %p42 = scmp.eq.s32.totalorder %s9, 0
    %p43 = por %p41, %p42
    %p44 = scmp.ne.s32.totalorder %s33, %s36
    %p45 = scmp.eq.s32.totalorder %s14, 3
    %p46 = por %p44, %p45
    %p47 = scmp.ne.s32.totalorder %s36, %s37
    %p48 = scmp.eq.s32.totalorder %s14, 0
    %p49 = por %p47, %p48
    %p50 = scmp.ne.s32.totalorder %s36, %s37
    %p51 = scmp.eq.s32.totalorder %s15, 3
    %p52 = por %p50, %p51
    %p54 = scmp.ne.s32.totalorder %s37, %s53
    %p55 = scmp.eq.s32.totalorder %s15, 0
    %p56 = por %p54, %p55
    %s57 = ssub.s32 %s16, %s28
    %p58 = scmp.eq.s32.totalorder %s57, 0
    %s60 = sadd.s32 %s59, 1
    %s61 = scalar_select %p58, %s59, %s60
    %p64 = pneg %p58
    %p65 = scmp.eq.s32.totalorder %s9, 3
    %p66 = por %p64, %p65
    %p67 = scmp.ne.s32.totalorder %s59, %s62
    %p68 = scmp.eq.s32.totalorder %s9, 0
    %p69 = por %p67, %p68
    %p70 = scmp.ne.s32.totalorder %s59, %s62
    %p71 = scmp.eq.s32.totalorder %s14, 3
    %p72 = por %p70, %p71
    %p73 = scmp.ne.s32.totalorder %s62, %s63
    %p74 = scmp.eq.s32.totalorder %s14, 0
    %p75 = por %p73, %p74
    %p76 = scmp.ne.s32.totalorder %s62, %s63
    %p77 = scmp.eq.s32.totalorder %s15, 3
    %p78 = por %p76, %p77
    %p80 = scmp.ne.s32.totalorder %s63, %s79
    %p81 = scmp.eq.s32.totalorder %s15, 0
    %p82 = por %p80, %p81
    %s83 = ssub.s32 %s16, %s28
    %p84 = scmp.eq.s32.totalorder %s83, 0
    %s86 = sadd.s32 %s85, 1
    %s87 = scalar_select %p84, %s85, %s86
    %p90 = pneg %p84
    %p91 = scmp.eq.s32.totalorder %s9, 3
    %p92 = por %p90, %p91
    %p93 = scmp.ne.s32.totalorder %s85, %s88
    %p94 = scmp.eq.s32.totalorder %s9, 0
    %p95 = por %p93, %p94
    %p96 = scmp.ne.s32.totalorder %s85, %s88
    %p97 = scmp.eq.s32.totalorder %s14, 3
    %p98 = por %p96, %p97
    %p99 = scmp.ne.s32.totalorder %s88, %s89
    %p100 = scmp.eq.s32.totalorder %s14, 0
    %p101 = por %p99, %p100
    %p102 = scmp.ne.s32.totalorder %s88, %s89
    %p103 = scmp.eq.s32.totalorder %s15, 3
    %p104 = por %p102, %p103
    %p106 = scmp.ne.s32.totalorder %s89, %s105
    %p107 = scmp.eq.s32.totalorder %s15, 0
    %p108 = por %p106, %p107
    %s109 = ssub.s32 %s16, %s28
    %s110 = ssub.s32 %s17, %s24
    %s111 = sor.u32 %s109, %s110
    %p112 = scmp.eq.s32.totalorder %s111, 0
    %s114 = sadd.s32 %s113, 1
    %s115 = scalar_select %p112, %s113, %s114
    %p118 = pneg %p112
    %p119 = scmp.eq.s32.totalorder %s9, 3
    %p120 = por %p118, %p119
    %p121 = scmp.ne.s32.totalorder %s113, %s116
    %p122 = scmp.eq.s32.totalorder %s9, 0
    %p123 = por %p121, %p122
    %p124 = scmp.ne.s32.totalorder %s113, %s116
    %p125 = scmp.eq.s32.totalorder %s14, 3
    %p126 = por %p124, %p125
    %p127 = scmp.ne.s32.totalorder %s116, %s117
    %p128 = scmp.eq.s32.totalorder %s14, 0
    %p129 = por %p127, %p128
    %p130 = scmp.ne.s32.totalorder %s116, %s117
    %p131 = scmp.eq.s32.totalorder %s15, 3
    %p132 = por %p130, %p131
    %p134 = scmp.ne.s32.totalorder %s117, %s133
    %p135 = scmp.eq.s32.totalorder %s15, 0
    %p136 = por %p134, %p135
    %p137 = scmp.le.s32.totalorder 1, %s9
    %p138 = scmp.lt.s32.totalorder %s9, 5
    %p139 = pnand %p137, %p138
    %p140 = pneg %p139
    // Predicated region
    $region9: #{model_forward.7} parent=5 // pred_check
      _
    $region10: #{model_forward.7} parent=5 // pred_check_branch
      %142 = sbr.rel (%p139) target = $region12
    $region11: #{model_forward.7} parent=5 // pred_region
      %s143 = ssub.s32 %s9, 1
    $region12: #{model_forward.7} parent=5 // pred_fallthru
      _
    %p144 = scmp.lt.s32.totalorder %s9, 4
    // Predicated region
    $region13: #{model_forward.7} parent=5 // pred_check
      %p145 = pneg %p144
    $region14: #{model_forward.7} parent=5 // pred_check_branch
      %147 = sbr.rel (%p145) target = $region16
    $region15: #{model_forward.7} parent=5 // pred_region
      // Predicated region
      $region17: #{model_forward.7} parent=15 // pred_check
        %p148 = pneg %p43
      $region18: #{model_forward.7} parent=15 // pred_check_branch
        %150 = sbr.rel (%p148) target = $region20
      $region19: #{model_forward.7} parent=15 // pred_region
        %s151 = smul.u32 160, %s17
        %p152 = scmp.lt.s32.totalorder %s16, 1
        %s153 = scalar_select %p152, %s16, 1
        %p154 = scmp.lt.s32.totalorder %s151, 319
        %s155 = scalar_select %p154, %s151, 319
        %s156 = smul.addr %s155, 7
        %s157 = smul.addr %s153, 2240
        %s158 = sadd.s32 %s156, %s157
        %s159 = smul.addr %s158, 8
        %s160 = scalar_lea.vmem %s0, %s159
        %s161 = smul.u32 160, %s17
      $region20: #{model_forward.7} parent=15 // pred_fallthru
        _
      // Predicated region
      $region21: #{model_forward.7} parent=15 // pred_check
        %p162 = pneg %p69
      $region22: #{model_forward.7} parent=15 // pred_check_branch
        %164 = sbr.rel (%p162) target = $region24
      $region23: #{model_forward.7} parent=15 // pred_region
        %p165 = scmp.lt.s32.totalorder %s16, 1
        %s166 = scalar_select %p165, %s16, 1
        %s167 = smul.addr %s166, 112
        %s168 = smul.addr %s167, 8
        %s169 = scalar_lea.vmem %s1, %s168
      $region24: #{model_forward.7} parent=15 // pred_fallthru
        _
      // Predicated region
      $region25: #{model_forward.7} parent=15 // pred_check
        %p170 = pneg %p95
      $region26: #{model_forward.7} parent=15 // pred_check_branch
        %172 = sbr.rel (%p170) target = $region28
      $region27: #{model_forward.7} parent=15 // pred_region
        %p173 = scmp.lt.s32.totalorder %s16, 1
        %s174 = scalar_select %p173, %s16, 1
        %s175 = scalar_lea.vmem %s2, %s174
      $region28: #{model_forward.7} parent=15 // pred_fallthru
        _
    $region16: #{model_forward.7} parent=5 // pred_fallthru
      _
    %p176 = scmp.le.s32.totalorder 1, %s9
    %p177 = scmp.lt.s32.totalorder %s9, 5
    %p178 = pnand %p176, %p177
    %p179 = pneg %p178
    // Predicated region
    $region29: #{model_forward.7} parent=5 // pred_check
      _
    $region30: #{model_forward.7} parent=5 // pred_check_branch
      %181 = sbr.rel (%p178) target = $region32
    $region31: #{model_forward.7} parent=5 // pred_region
      %s182 = ssub.s32 %s9, 1
      %s183 = smul.u32 160, %s19
      %p184 = scmp.lt.s32.totalorder %s18, 1
      %s185 = scalar_select %p184, %s18, 1
      %p186 = scmp.lt.s32.totalorder %s183, 319
      %s187 = scalar_select %p186, %s183, 319
      %s188 = smul.addr %s187, 7
      %s189 = smul.addr %s185, 2240
      %s190 = sadd.s32 %s188, %s189
      %s191 = smul.addr %s190, 8
      %s192 = scalar_lea.vmem %s0, %s191
      %p193 = pneg %p49
      %p194 = pneg %p46
      %p195 = scmp.lt.s32.totalorder %s18, 1
      %s196 = scalar_select %p195, %s18, 1
      %s197 = smul.addr %s196, 112
      %s198 = smul.addr %s197, 8
      %s199 = scalar_lea.vmem %s1, %s198
      %p200 = pneg %p75
      %p201 = pneg %p72
      %p202 = scmp.lt.s32.totalorder %s18, 1
      %s203 = scalar_select %p202, %s18, 1
      %s204 = scalar_lea.vmem %s2, %s203
      %p205 = pneg %p101
      %p206 = pneg %p98
      %p207 = pneg %p129
      %p208 = pneg %p126
      %s209 = smul.u32 160, %s19
      %p210 = scmp.lt.s32.totalorder %s18, 1
      %s211 = scalar_select %p210, %s18, 1
      %p212 = scmp.lt.s32.totalorder %s209, 319
      %s213 = scalar_select %p212, %s209, 319
      %s214 = smul.addr %s211, 320
      %s215 = sadd.s32 %s213, %s214
      %s216 = smul.addr %s215, 8
      %s217 = scalar_lea.vmem %s3, %s216
      %s218 = smul.u32 160, %s19
      %p219 = scmp.lt.s32.totalorder %s18, 1
      %s220 = scalar_select %p219, %s18, 1
      %p221 = scmp.lt.s32.totalorder %s218, 319
      %s222 = scalar_select %p221, %s218, 319
      %s223 = smul.addr %s222, 7
      %s224 = smul.addr %s220, 2240
      %s225 = sadd.s32 %s223, %s224
      %s226 = smul.addr %s225, 8
      %s227 = scalar_lea.vmem %s0, %s226
      %s228 = smul.u32 160, %s19
      %p229 = scmp.lt.s32.totalorder %s18, 1
      %s230 = scalar_select %p229, %s18, 1
      %s231 = smul.addr %s230, 112
      %s232 = smul.addr %s231, 8
      %s233 = scalar_lea.vmem %s1, %s232
      %p234 = scmp.lt.s32.totalorder %s18, 1
      %s235 = scalar_select %p234, %s18, 1
      %s236 = scalar_lea.vmem %s2, %s235
      %s237 = smul.u32 160, %s19
      %p238 = scmp.lt.s32.totalorder %s18, 1
      %s239 = scalar_select %p238, %s18, 1
      %p240 = scmp.lt.s32.totalorder %s237, 319
      %s241 = scalar_select %p240, %s237, 319
      %s242 = smul.addr %s239, 320
      %s243 = sadd.s32 %s241, %s242
      %s244 = smul.addr %s243, 8
      %s245 = scalar_lea.vmem %s3, %s244
      %s246 = smul.u32 160, %s19
      loop: start=0, step=1, limit=4
      $region33: #{model_forward.7} parent=31 // loop_pre_header
        _
      $region34: #{model_forward.7} parent=31 // loop_header
        %s248 = sphi 0, %s252
        %p249 = scmp.ge.s32.totalorder %s248, 4
      $region35: #{model_forward.7} parent=31 // loop_header_branch
        %251 = sbr.rel (%p249) target = $region39
      $region36: #{model_forward.7} parent=31 // loop_body
        %s253 = smul.u32 %s248, 320
        %s254 = sshra.s32 %s253, 3
        %s255 = sand.u32 %s253, 7
        %s256 = smul.u32 %s254, 7
        %s257 = smul.addr %s256, 8
        %s258 = scalar_lea.vmem %s227, %s257
        %v259 = vld [vmem:[%s258] sm:$0xff]
        %v260 = vld [vmem:[%s258 + $0x8] sm:$0xff]
        %v261 = vld [vmem:[%s258 + $0x10] sm:$0xff]
        %v262 = vld [vmem:[%s258 + $0x18] sm:$0xff]
        %v263 = vld [vmem:[%s258 + $0x20] sm:$0xff]
        %v264 = vld [vmem:[%s258 + $0x28] sm:$0xff]
        %v265 = vld [vmem:[%s258 + $0x30] sm:$0xff]
        %v266 = vld [vmem:[%s258 + $0x38] sm:$0xff]
        %v267 = vld [vmem:[%s258 + $0x40] sm:$0xff]
        %v268 = vld [vmem:[%s258 + $0x48] sm:$0xff]
        %v269 = vld [vmem:[%s258 + $0x50] sm:$0xff]
        %v270 = vld [vmem:[%s258 + $0x58] sm:$0xff]
        %v271 = vld [vmem:[%s258 + $0x60] sm:$0xff]
        %v272 = vld [vmem:[%s258 + $0x68] sm:$0xff]
        %v273 = vld [vmem:[%s258 + $0x70] sm:$0xff]
        %v274 = vld [vmem:[%s258 + $0x78] sm:$0xff]
        %v275 = vld [vmem:[%s258 + $0x80] sm:$0xff]
        %v276 = vld [vmem:[%s258 + $0x88] sm:$0xff]
        %v277 = vld [vmem:[%s258 + $0x90] sm:$0xff]
        %v278 = vld [vmem:[%s258 + $0x98] sm:$0xff]
        %v279 = vld [vmem:[%s258 + $0xa0] sm:$0xff]
        %v280 = vld [vmem:[%s258 + $0xa8] sm:$0xff]
        %v281 = vld [vmem:[%s258 + $0xb0] sm:$0xff]
        %v282 = vld [vmem:[%s258 + $0xb8] sm:$0xff]
        %v283 = vld [vmem:[%s258 + $0xc0] sm:$0xff]
        %v284 = vld [vmem:[%s258 + $0xc8] sm:$0xff]
        %v285 = vld [vmem:[%s258 + $0xd0] sm:$0xff]
        %v286 = vld [vmem:[%s258 + $0xd8] sm:$0xff]
        %v287 = vld [vmem:[%s258 + $0xe0] sm:$0xff]
        %v288 = vld [vmem:[%s258 + $0xe8] sm:$0xff]
        %v289 = vld [vmem:[%s258 + $0xf0] sm:$0xff]
        %v290 = vld [vmem:[%s258 + $0xf8] sm:$0xff]
        %v291 = vld [vmem:[%s258 + $0x100] sm:$0xff]
        %v292 = vld [vmem:[%s258 + $0x108] sm:$0xff]
        %v293 = vld [vmem:[%s258 + $0x110] sm:$0xff]
        %v294 = vld [vmem:[%s258 + $0x118] sm:$0xff]
        %v295 = vld [vmem:[%s258 + $0x120] sm:$0xff]
        %v296 = vld [vmem:[%s258 + $0x128] sm:$0xff]
        %v297 = vld [vmem:[%s258 + $0x130] sm:$0xff]
        %v298 = vld [vmem:[%s258 + $0x138] sm:$0xff]
        %v299 = vld [vmem:[%s258 + $0x140] sm:$0xff]
        %v300 = vld [vmem:[%s258 + $0x148] sm:$0xff]
        %v301 = vld [vmem:[%s258 + $0x150] sm:$0xff]
        %v302 = vld [vmem:[%s258 + $0x158] sm:$0xff]
        %v303 = vld [vmem:[%s258 + $0x160] sm:$0xff]
        %v304 = vld [vmem:[%s258 + $0x168] sm:$0xff]
        %v305 = vld [vmem:[%s258 + $0x170] sm:$0xff]
        %v306 = vld [vmem:[%s258 + $0x178] sm:$0xff]
        %v307 = vld [vmem:[%s258 + $0x180] sm:$0xff]
        %v308 = vld [vmem:[%s258 + $0x188] sm:$0xff]
        %v309 = vld [vmem:[%s258 + $0x190] sm:$0xff]
        %v310 = vld [vmem:[%s258 + $0x198] sm:$0xff]
        %v311 = vld [vmem:[%s258 + $0x1a0] sm:$0xff]
        %v312 = vld [vmem:[%s258 + $0x1a8] sm:$0xff]
        %v313 = vld [vmem:[%s258 + $0x1b0] sm:$0xff]
        %v314 = vld [vmem:[%s258 + $0x1b8] sm:$0xff]
        %v315 = vld [vmem:[%s258 + $0x1c0] sm:$0xff]
        %v316 = vld [vmem:[%s258 + $0x1c8] sm:$0xff]
        %v317 = vld [vmem:[%s258 + $0x1d0] sm:$0xff]
        %v318 = vld [vmem:[%s258 + $0x1d8] sm:$0xff]
        %v319 = vld [vmem:[%s258 + $0x1e0] sm:$0xff]
        %v320 = vld [vmem:[%s258 + $0x1e8] sm:$0xff]
        %v321 = vld [vmem:[%s258 + $0x1f0] sm:$0xff]
        %v322 = vld [vmem:[%s258 + $0x1f8] sm:$0xff]
        %v323 = vld [vmem:[%s258 + $0x200] sm:$0xff]
        %v324 = vld [vmem:[%s258 + $0x208] sm:$0xff]
        %v325 = vld [vmem:[%s258 + $0x210] sm:$0xff]
        %v326 = vld [vmem:[%s258 + $0x218] sm:$0xff]
        %v327 = vld [vmem:[%s258 + $0x220] sm:$0xff]
        %v328 = vld [vmem:[%s258 + $0x228] sm:$0xff]
        %v329 = vld [vmem:[%s258 + $0x230] sm:$0xff]
        %v330 = vld [vmem:[%s258 + $0x238] sm:$0xff]
        %v331 = vld [vmem:[%s258 + $0x240] sm:$0xff]
        %v332 = vld [vmem:[%s258 + $0x248] sm:$0xff]
        %v333 = vld [vmem:[%s258 + $0x250] sm:$0xff]
        %v334 = vld [vmem:[%s258 + $0x258] sm:$0xff]
        %v335 = vld [vmem:[%s258 + $0x260] sm:$0xff]
        %v336 = vld [vmem:[%s258 + $0x268] sm:$0xff]
        %v337 = vld [vmem:[%s258 + $0x270] sm:$0xff]
        %v338 = vld [vmem:[%s258 + $0x278] sm:$0xff]
        %v339 = vld [vmem:[%s258 + $0x280] sm:$0xff]
        %v340 = vld [vmem:[%s258 + $0x288] sm:$0xff]
        %v341 = vld [vmem:[%s258 + $0x290] sm:$0xff]
        %v342 = vld [vmem:[%s258 + $0x298] sm:$0xff]
        %v343 = vld [vmem:[%s258 + $0x2a0] sm:$0xff]
        %v344 = vld [vmem:[%s258 + $0x2a8] sm:$0xff]
        %v345 = vld [vmem:[%s258 + $0x2b0] sm:$0xff]
        %v346 = vld [vmem:[%s258 + $0x2b8] sm:$0xff]
        %v347 = vld [vmem:[%s258 + $0x2c0] sm:$0xff]
        %v348 = vld [vmem:[%s258 + $0x2c8] sm:$0xff]
        %v349 = vld [vmem:[%s258 + $0x2d0] sm:$0xff]
        %v350 = vld [vmem:[%s258 + $0x2d8] sm:$0xff]
        %v351 = vld [vmem:[%s258 + $0x2e0] sm:$0xff]
        %v352 = vld [vmem:[%s258 + $0x2e8] sm:$0xff]
        %v353 = vld [vmem:[%s258 + $0x2f0] sm:$0xff]
        %v354 = vld [vmem:[%s258 + $0x2f8] sm:$0xff]
        %v355 = vld [vmem:[%s258 + $0x300] sm:$0xff]
        %v356 = vld [vmem:[%s258 + $0x308] sm:$0xff]
        %v357 = vld [vmem:[%s258 + $0x310] sm:$0xff]
        %v358 = vld [vmem:[%s258 + $0x318] sm:$0xff]
        %v359 = vld [vmem:[%s258 + $0x320] sm:$0xff]
        %v360 = vld [vmem:[%s258 + $0x328] sm:$0xff]
        %v361 = vld [vmem:[%s258 + $0x330] sm:$0xff]
        %v362 = vld [vmem:[%s258 + $0x338] sm:$0xff]
        %v363 = vld [vmem:[%s258 + $0x340] sm:$0xff]
        %v364 = vld [vmem:[%s258 + $0x348] sm:$0xff]
        %v365 = vld [vmem:[%s258 + $0x350] sm:$0xff]
        %v366 = vld [vmem:[%s258 + $0x358] sm:$0xff]
        %v367 = vld [vmem:[%s258 + $0x360] sm:$0xff]
        %v368 = vld [vmem:[%s258 + $0x368] sm:$0xff]
        %v369 = vld [vmem:[%s258 + $0x370] sm:$0xff]
        %v370 = vld [vmem:[%s258 + $0x378] sm:$0xff]
        %v371 = vld [vmem:[%s258 + $0x380] sm:$0xff]
        %v372 = vld [vmem:[%s258 + $0x388] sm:$0xff]
        %v373 = vld [vmem:[%s258 + $0x390] sm:$0xff]
        %v374 = vld [vmem:[%s258 + $0x398] sm:$0xff]
        %v375 = vld [vmem:[%s258 + $0x3a0] sm:$0xff]
        %v376 = vld [vmem:[%s258 + $0x3a8] sm:$0xff]
        %v377 = vld [vmem:[%s258 + $0x3b0] sm:$0xff]
        %v378 = vld [vmem:[%s258 + $0x3b8] sm:$0xff]
        %v379 = vld [vmem:[%s258 + $0x3c0] sm:$0xff]
        %v380 = vld [vmem:[%s258 + $0x3c8] sm:$0xff]
        %v381 = vld [vmem:[%s258 + $0x3d0] sm:$0xff]
        %v382 = vld [vmem:[%s258 + $0x3d8] sm:$0xff]
        %v383 = vld [vmem:[%s258 + $0x3e0] sm:$0xff]
        %v384 = vld [vmem:[%s258 + $0x3e8] sm:$0xff]
        %v385 = vld [vmem:[%s258 + $0x3f0] sm:$0xff]
        %v386 = vld [vmem:[%s258 + $0x3f8] sm:$0xff]
        %v387 = vld [vmem:[%s258 + $0x400] sm:$0xff]
        %v388 = vld [vmem:[%s258 + $0x408] sm:$0xff]
        %v389 = vld [vmem:[%s258 + $0x410] sm:$0xff]
        %v390 = vld [vmem:[%s258 + $0x418] sm:$0xff]
        %v391 = vld [vmem:[%s258 + $0x420] sm:$0xff]
        %v392 = vld [vmem:[%s258 + $0x428] sm:$0xff]
        %v393 = vld [vmem:[%s258 + $0x430] sm:$0xff]
        %v394 = vld [vmem:[%s258 + $0x438] sm:$0xff]
        %v395 = vld [vmem:[%s258 + $0x440] sm:$0xff]
        %v396 = vld [vmem:[%s258 + $0x448] sm:$0xff]
        %v397 = vld [vmem:[%s258 + $0x450] sm:$0xff]
        %v398 = vld [vmem:[%s258 + $0x458] sm:$0xff]
        %v399 = vld [vmem:[%s258 + $0x460] sm:$0xff]
        %v400 = vld [vmem:[%s258 + $0x468] sm:$0xff]
        %v401 = vld [vmem:[%s258 + $0x470] sm:$0xff]
        %v402 = vld [vmem:[%s258 + $0x478] sm:$0xff]
        %v403 = vld [vmem:[%s258 + $0x480] sm:$0xff]
        %v404 = vld [vmem:[%s258 + $0x488] sm:$0xff]
        %v405 = vld [vmem:[%s258 + $0x490] sm:$0xff]
        %v406 = vld [vmem:[%s258 + $0x498] sm:$0xff]
        %v407 = vld [vmem:[%s258 + $0x4a0] sm:$0xff]
        %v408 = vld [vmem:[%s258 + $0x4a8] sm:$0xff]
        %v409 = vld [vmem:[%s258 + $0x4b0] sm:$0xff]
        %v410 = vld [vmem:[%s258 + $0x4b8] sm:$0xff]
        %v411 = vld [vmem:[%s258 + $0x4c0] sm:$0xff]
        %v412 = vld [vmem:[%s258 + $0x4c8] sm:$0xff]
        %v413 = vld [vmem:[%s258 + $0x4d0] sm:$0xff]
        %v414 = vld [vmem:[%s258 + $0x4d8] sm:$0xff]
        %v415 = vld [vmem:[%s258 + $0x4e0] sm:$0xff]
        %v416 = vld [vmem:[%s258 + $0x4e8] sm:$0xff]
        %v417 = vld [vmem:[%s258 + $0x4f0] sm:$0xff]
        %v418 = vld [vmem:[%s258 + $0x4f8] sm:$0xff]
        %v419 = vld [vmem:[%s258 + $0x500] sm:$0xff]
        %v420 = vld [vmem:[%s258 + $0x508] sm:$0xff]
        %v421 = vld [vmem:[%s258 + $0x510] sm:$0xff]
        %v422 = vld [vmem:[%s258 + $0x518] sm:$0xff]
        %v423 = vld [vmem:[%s258 + $0x520] sm:$0xff]
        %v424 = vld [vmem:[%s258 + $0x528] sm:$0xff]
        %v425 = vld [vmem:[%s258 + $0x530] sm:$0xff]
        %v426 = vld [vmem:[%s258 + $0x538] sm:$0xff]
        %v427 = vld [vmem:[%s258 + $0x540] sm:$0xff]
        %v428 = vld [vmem:[%s258 + $0x548] sm:$0xff]
        %v429 = vld [vmem:[%s258 + $0x550] sm:$0xff]
        %v430 = vld [vmem:[%s258 + $0x558] sm:$0xff]
        %v431 = vld [vmem:[%s258 + $0x560] sm:$0xff]
        %v432 = vld [vmem:[%s258 + $0x568] sm:$0xff]
        %v433 = vld [vmem:[%s258 + $0x570] sm:$0xff]
        %v434 = vld [vmem:[%s258 + $0x578] sm:$0xff]
        %v435 = vld [vmem:[%s258 + $0x580] sm:$0xff]
        %v436 = vld [vmem:[%s258 + $0x588] sm:$0xff]
        %v437 = vld [vmem:[%s258 + $0x590] sm:$0xff]
        %v438 = vld [vmem:[%s258 + $0x598] sm:$0xff]
        %v439 = vld [vmem:[%s258 + $0x5a0] sm:$0xff]
        %v440 = vld [vmem:[%s258 + $0x5a8] sm:$0xff]
        %v441 = vld [vmem:[%s258 + $0x5b0] sm:$0xff]
        %v442 = vld [vmem:[%s258 + $0x5b8] sm:$0xff]
        %v443 = vld [vmem:[%s258 + $0x5c0] sm:$0xff]
        %v444 = vld [vmem:[%s258 + $0x5c8] sm:$0xff]
        %v445 = vld [vmem:[%s258 + $0x5d0] sm:$0xff]
        %v446 = vld [vmem:[%s258 + $0x5d8] sm:$0xff]
        %v447 = vld [vmem:[%s258 + $0x5e0] sm:$0xff]
        %v448 = vld [vmem:[%s258 + $0x5e8] sm:$0xff]
        %v449 = vld [vmem:[%s258 + $0x5f0] sm:$0xff]
        %v450 = vld [vmem:[%s258 + $0x5f8] sm:$0xff]
        %v451 = vld [vmem:[%s258 + $0x600] sm:$0xff]
        %v452 = vld [vmem:[%s258 + $0x608] sm:$0xff]
        %v453 = vld [vmem:[%s258 + $0x610] sm:$0xff]
        %v454 = vld [vmem:[%s258 + $0x618] sm:$0xff]
        %v455 = vld [vmem:[%s258 + $0x620] sm:$0xff]
        %v456 = vld [vmem:[%s258 + $0x628] sm:$0xff]
        %v457 = vld [vmem:[%s258 + $0x630] sm:$0xff]
        %v458 = vld [vmem:[%s258 + $0x638] sm:$0xff]
        %v459 = vld [vmem:[%s258 + $0x640] sm:$0xff]
        %v460 = vld [vmem:[%s258 + $0x648] sm:$0xff]
        %v461 = vld [vmem:[%s258 + $0x650] sm:$0xff]
        %v462 = vld [vmem:[%s258 + $0x658] sm:$0xff]
        %v463 = vld [vmem:[%s258 + $0x660] sm:$0xff]
        %v464 = vld [vmem:[%s258 + $0x668] sm:$0xff]
        %v465 = vld [vmem:[%s258 + $0x670] sm:$0xff]
        %v466 = vld [vmem:[%s258 + $0x678] sm:$0xff]
        %v467 = vld [vmem:[%s258 + $0x680] sm:$0xff]
        %v468 = vld [vmem:[%s258 + $0x688] sm:$0xff]
        %v469 = vld [vmem:[%s258 + $0x690] sm:$0xff]
        %v470 = vld [vmem:[%s258 + $0x698] sm:$0xff]
        %v471 = vld [vmem:[%s258 + $0x6a0] sm:$0xff]
        %v472 = vld [vmem:[%s258 + $0x6a8] sm:$0xff]
        %v473 = vld [vmem:[%s258 + $0x6b0] sm:$0xff]
        %v474 = vld [vmem:[%s258 + $0x6b8] sm:$0xff]
        %v475 = vld [vmem:[%s258 + $0x6c0] sm:$0xff]
        %v476 = vld [vmem:[%s258 + $0x6c8] sm:$0xff]
        %v477 = vld [vmem:[%s258 + $0x6d0] sm:$0xff]
        %v478 = vld [vmem:[%s258 + $0x6d8] sm:$0xff]
        %v479 = vld [vmem:[%s258 + $0x6e0] sm:$0xff]
        %v480 = vld [vmem:[%s258 + $0x6e8] sm:$0xff]
        %v481 = vld [vmem:[%s258 + $0x6f0] sm:$0xff]
        %v482 = vld [vmem:[%s258 + $0x6f8] sm:$0xff]
        %v483 = vld [vmem:[%s258 + $0x700] sm:$0xff]
        %v484 = vld [vmem:[%s258 + $0x708] sm:$0xff]
        %v485 = vld [vmem:[%s258 + $0x710] sm:$0xff]
        %v486 = vld [vmem:[%s258 + $0x718] sm:$0xff]
        %v487 = vld [vmem:[%s258 + $0x720] sm:$0xff]
        %v488 = vld [vmem:[%s258 + $0x728] sm:$0xff]
        %v489 = vld [vmem:[%s258 + $0x730] sm:$0xff]
        %v490 = vld [vmem:[%s258 + $0x738] sm:$0xff]
        %v491 = vld [vmem:[%s258 + $0x740] sm:$0xff]
        %v492 = vld [vmem:[%s258 + $0x748] sm:$0xff]
        %v493 = vld [vmem:[%s258 + $0x750] sm:$0xff]
        %v494 = vld [vmem:[%s258 + $0x758] sm:$0xff]
        %v495 = vld [vmem:[%s258 + $0x760] sm:$0xff]
        %v496 = vld [vmem:[%s258 + $0x768] sm:$0xff]
        %v497 = vld [vmem:[%s258 + $0x770] sm:$0xff]
        %v498 = vld [vmem:[%s258 + $0x778] sm:$0xff]
        %v499 = vld [vmem:[%s258 + $0x780] sm:$0xff]
        %v500 = vld [vmem:[%s258 + $0x788] sm:$0xff]
        %v501 = vld [vmem:[%s258 + $0x790] sm:$0xff]
        %v502 = vld [vmem:[%s258 + $0x798] sm:$0xff]
        %v503 = vld [vmem:[%s258 + $0x7a0] sm:$0xff]
        %v504 = vld [vmem:[%s258 + $0x7a8] sm:$0xff]
        %v505 = vld [vmem:[%s258 + $0x7b0] sm:$0xff]
        %v506 = vld [vmem:[%s258 + $0x7b8] sm:$0xff]
        %v507 = vld [vmem:[%s258 + $0x7c0] sm:$0xff]
        %v508 = vld [vmem:[%s258 + $0x7c8] sm:$0xff]
        %v509 = vld [vmem:[%s258 + $0x7d0] sm:$0xff]
        %v510 = vld [vmem:[%s258 + $0x7d8] sm:$0xff]
        %v511 = vld [vmem:[%s258 + $0x7e0] sm:$0xff]
        %v512 = vld [vmem:[%s258 + $0x7e8] sm:$0xff]
        %v513 = vld [vmem:[%s258 + $0x7f0] sm:$0xff]
        %v514 = vld [vmem:[%s258 + $0x7f8] sm:$0xff]
        %v515 = vld [vmem:[%s258 + $0x800] sm:$0xff]
        %v516 = vld [vmem:[%s258 + $0x808] sm:$0xff]
        %v517 = vld [vmem:[%s258 + $0x810] sm:$0xff]
        %v518 = vld [vmem:[%s258 + $0x818] sm:$0xff]
        %v519 = vld [vmem:[%s258 + $0x820] sm:$0xff]
        %v520 = vld [vmem:[%s258 + $0x828] sm:$0xff]
        %v521 = vld [vmem:[%s258 + $0x830] sm:$0xff]
        %v522 = vld [vmem:[%s258 + $0x838] sm:$0xff]
        %v523 = vld [vmem:[%s258 + $0x840] sm:$0xff]
        %v524 = vld [vmem:[%s258 + $0x848] sm:$0xff]
        %v525 = vld [vmem:[%s258 + $0x850] sm:$0xff]
        %v526 = vld [vmem:[%s258 + $0x858] sm:$0xff]
        %v527 = vld [vmem:[%s258 + $0x860] sm:$0xff]
        %v528 = vld [vmem:[%s258 + $0x868] sm:$0xff]
        %v529 = vld [vmem:[%s258 + $0x870] sm:$0xff]
        %v530 = vld [vmem:[%s258 + $0x878] sm:$0xff]
        %v531 = vld [vmem:[%s258 + $0x880] sm:$0xff]
        %v532 = vld [vmem:[%s258 + $0x888] sm:$0xff]
        %v533 = vld [vmem:[%s258 + $0x890] sm:$0xff]
        %v534 = vld [vmem:[%s258 + $0x898] sm:$0xff]
        %v535 = vld [vmem:[%s258 + $0x8a0] sm:$0xff]
        %v536 = vld [vmem:[%s258 + $0x8a8] sm:$0xff]
        %v537 = vld [vmem:[%s258 + $0x8b0] sm:$0xff]
        %v538 = vld [vmem:[%s258 + $0x8b8] sm:$0xff]
        %v539 = vld [vmem:[%s233] sm:$0xff]
        %v540 = vld [vmem:[%s233 + $0x8] sm:$0xff]
        %v541 = vld [vmem:[%s233 + $0x10] sm:$0xff]
        %v542 = vld [vmem:[%s233 + $0x18] sm:$0xff]
        %v543 = vld [vmem:[%s233 + $0x20] sm:$0xff]
        %v544 = vld [vmem:[%s233 + $0x28] sm:$0xff]
        %v545 = vld [vmem:[%s233 + $0x30] sm:$0xff]
        %v546 = vld [vmem:[%s233 + $0x38] sm:$0xff]
        %v547 = vld [vmem:[%s233 + $0x40] sm:$0xff]
        %v548 = vld [vmem:[%s233 + $0x48] sm:$0xff]
        %v549 = vld [vmem:[%s233 + $0x50] sm:$0xff]
        %v550 = vld [vmem:[%s233 + $0x58] sm:$0xff]
        %v551 = vld [vmem:[%s233 + $0x60] sm:$0xff]
        %v552 = vld [vmem:[%s233 + $0x68] sm:$0xff]
        %v553 = vld [vmem:[%s233 + $0x70] sm:$0xff]
        %v554 = vld [vmem:[%s233 + $0x78] sm:$0xff]
        %v555 = vld [vmem:[%s233 + $0x80] sm:$0xff]
        %v556 = vld [vmem:[%s233 + $0x88] sm:$0xff]
        %v557 = vld [vmem:[%s233 + $0x90] sm:$0xff]
        %v558 = vld [vmem:[%s233 + $0x98] sm:$0xff]
        %v559 = vld [vmem:[%s233 + $0xa0] sm:$0xff]
        %v560 = vld [vmem:[%s233 + $0xa8] sm:$0xff]
        %v561 = vld [vmem:[%s233 + $0xb0] sm:$0xff]
        %v562 = vld [vmem:[%s233 + $0xb8] sm:$0xff]
        %v563 = vld [vmem:[%s233 + $0xc0] sm:$0xff]
        %v564 = vld [vmem:[%s233 + $0xc8] sm:$0xff]
        %v565 = vld [vmem:[%s233 + $0xd0] sm:$0xff]
        %v566 = vld [vmem:[%s233 + $0xd8] sm:$0xff]
        %v567 = vld [vmem:[%s233 + $0xe0] sm:$0xff]
        %v568 = vld [vmem:[%s233 + $0xe8] sm:$0xff]
        %v569 = vld [vmem:[%s233 + $0xf0] sm:$0xff]
        %v570 = vld [vmem:[%s233 + $0xf8] sm:$0xff]
        %v571 = vld [vmem:[%s233 + $0x100] sm:$0xff]
        %v572 = vld [vmem:[%s233 + $0x108] sm:$0xff]
        %v573 = vld [vmem:[%s233 + $0x110] sm:$0xff]
        %v574 = vld [vmem:[%s233 + $0x118] sm:$0xff]
        %v575 = vld [vmem:[%s233 + $0x120] sm:$0xff]
        %v576 = vld [vmem:[%s233 + $0x128] sm:$0xff]
        %v577 = vld [vmem:[%s233 + $0x130] sm:$0xff]
        %v578 = vld [vmem:[%s233 + $0x138] sm:$0xff]
        %v579 = vld [vmem:[%s233 + $0x140] sm:$0xff]
        %v580 = vld [vmem:[%s233 + $0x148] sm:$0xff]
        %v581 = vld [vmem:[%s233 + $0x150] sm:$0xff]
        %v582 = vld [vmem:[%s233 + $0x158] sm:$0xff]
        %v583 = vld [vmem:[%s233 + $0x160] sm:$0xff]
        %v584 = vld [vmem:[%s233 + $0x168] sm:$0xff]
        %v585 = vld [vmem:[%s233 + $0x170] sm:$0xff]
        %v586 = vld [vmem:[%s233 + $0x178] sm:$0xff]
        %v587 = vld [vmem:[%s233 + $0x180] sm:$0xff]
        %v588 = vld [vmem:[%s233 + $0x188] sm:$0xff]
        %v589 = vld [vmem:[%s233 + $0x190] sm:$0xff]
        %v590 = vld [vmem:[%s233 + $0x198] sm:$0xff]
        %v591 = vld [vmem:[%s233 + $0x1a0] sm:$0xff]
        %v592 = vld [vmem:[%s233 + $0x1a8] sm:$0xff]
        %v593 = vld [vmem:[%s233 + $0x1b0] sm:$0xff]
        %v594 = vld [vmem:[%s233 + $0x1b8] sm:$0xff]
        %v595 = vld [vmem:[%s233 + $0x1c0] sm:$0xff]
        %v596 = vld [vmem:[%s233 + $0x1c8] sm:$0xff]
        %v597 = vld [vmem:[%s233 + $0x1d0] sm:$0xff]
        %v598 = vld [vmem:[%s233 + $0x1d8] sm:$0xff]
        %v599 = vld [vmem:[%s233 + $0x1e0] sm:$0xff]
        %v600 = vld [vmem:[%s233 + $0x1e8] sm:$0xff]
        %v601 = vld [vmem:[%s233 + $0x1f0] sm:$0xff]
        %v602 = vld [vmem:[%s233 + $0x1f8] sm:$0xff]
        %v603 = vld [vmem:[%s233 + $0x200] sm:$0xff]
        %v604 = vld [vmem:[%s233 + $0x208] sm:$0xff]
        %v605 = vld [vmem:[%s233 + $0x210] sm:$0xff]
        %v606 = vld [vmem:[%s233 + $0x218] sm:$0xff]
        %v607 = vld [vmem:[%s233 + $0x220] sm:$0xff]
        %v608 = vld [vmem:[%s233 + $0x228] sm:$0xff]
        %v609 = vld [vmem:[%s233 + $0x230] sm:$0xff]
        %v610 = vld [vmem:[%s233 + $0x238] sm:$0xff]
        %v611 = vld [vmem:[%s233 + $0x240] sm:$0xff]
        %v612 = vld [vmem:[%s233 + $0x248] sm:$0xff]
        %v613 = vld [vmem:[%s233 + $0x250] sm:$0xff]
        %v614 = vld [vmem:[%s233 + $0x258] sm:$0xff]
        %v615 = vld [vmem:[%s233 + $0x260] sm:$0xff]
        %v616 = vld [vmem:[%s233 + $0x268] sm:$0xff]
        %v617 = vld [vmem:[%s233 + $0x270] sm:$0xff]
        %v618 = vld [vmem:[%s233 + $0x278] sm:$0xff]
        %v619 = vld [vmem:[%s233 + $0x280] sm:$0xff]
        %v620 = vld [vmem:[%s233 + $0x288] sm:$0xff]
        %v621 = vld [vmem:[%s233 + $0x290] sm:$0xff]
        %v622 = vld [vmem:[%s233 + $0x298] sm:$0xff]
        %v623 = vld [vmem:[%s233 + $0x2a0] sm:$0xff]
        %v624 = vld [vmem:[%s233 + $0x2a8] sm:$0xff]
        %v625 = vld [vmem:[%s233 + $0x2b0] sm:$0xff]
        %v626 = vld [vmem:[%s233 + $0x2b8] sm:$0xff]
        %v627 = vld [vmem:[%s233 + $0x2c0] sm:$0xff]
        %v628 = vld [vmem:[%s233 + $0x2c8] sm:$0xff]
        %v629 = vld [vmem:[%s233 + $0x2d0] sm:$0xff]
        %v630 = vld [vmem:[%s233 + $0x2d8] sm:$0xff]
        %v631 = vld [vmem:[%s233 + $0x2e0] sm:$0xff]
        %v632 = vld [vmem:[%s233 + $0x2e8] sm:$0xff]
        %v633 = vld [vmem:[%s233 + $0x2f0] sm:$0xff]
        %v634 = vld [vmem:[%s233 + $0x2f8] sm:$0xff]
        %v635 = vld [vmem:[%s233 + $0x300] sm:$0xff]
        %v636 = vld [vmem:[%s233 + $0x308] sm:$0xff]
        %v637 = vld [vmem:[%s233 + $0x310] sm:$0xff]
        %v638 = vld [vmem:[%s233 + $0x318] sm:$0xff]
        %v639 = vld [vmem:[%s233 + $0x320] sm:$0xff]
        %v640 = vld [vmem:[%s233 + $0x328] sm:$0xff]
        %v641 = vld [vmem:[%s233 + $0x330] sm:$0xff]
        %v642 = vld [vmem:[%s233 + $0x338] sm:$0xff]
        %v643 = vld [vmem:[%s233 + $0x340] sm:$0xff]
        %v644 = vld [vmem:[%s233 + $0x348] sm:$0xff]
        %v645 = vld [vmem:[%s233 + $0x350] sm:$0xff]
        %v646 = vld [vmem:[%s233 + $0x358] sm:$0xff]
        %v647 = vld [vmem:[%s233 + $0x360] sm:$0xff]
        %v648 = vld [vmem:[%s233 + $0x368] sm:$0xff]
        %v649 = vld [vmem:[%s233 + $0x370] sm:$0xff]
        %v650 = vld [vmem:[%s233 + $0x378] sm:$0xff]
        %v651 = vld [vmem:[%s236] sm:$0x1]
        %v653 = vperm.slane %v651, 0
        %655 = vmatpush.msra.mxu0 %v554
        %656 = vmatpush.msra.mxu0 %v553
        %657 = vmatpush.msra.mxu0 %v552
        %658 = vmatpush.msra.mxu0 %v551
        %659 = vmatpush.msra.mxu0 %v550
        %660 = vmatpush.msra.mxu0 %v549
        %661 = vmatpush.msra.mxu0 %v548
        %662 = vmatpush.msra.mxu0 %v547
        %663 = vmatpush.msra.mxu0 %v546
        %664 = vmatpush.msra.mxu0 %v545
        %665 = vmatpush.msra.mxu0 %v544
        %666 = vmatpush.msra.mxu0 %v543
        %667 = vmatpush.msra.mxu0 %v542
        %668 = vmatpush.msra.mxu0 %v541
        %669 = vmatpush.msra.mxu0 %v540
        %670 = vmatpush.msra.mxu0 %v539
        %671 = vmatmul.f32.gmra.mxu0 %v259
        %v672 = vpop.f32.mrf.mxu0
        %v673 = vadd.f32 %v653, %v672
        %674 = vmatmul.f32.gmra.mxu0 %v266
        %v675 = vpop.f32.mrf.mxu0
        %v676 = vadd.f32 %v653, %v675
        %677 = vmatmul.f32.gmra.mxu0 %v273
        %v678 = vpop.f32.mrf.mxu0
        %v679 = vadd.f32 %v653, %v678
        %680 = vmatmul.f32.gmra.mxu0 %v280
        %v681 = vpop.f32.mrf.mxu0
        %v682 = vadd.f32 %v653, %v681
        %683 = vmatmul.f32.gmra.mxu0 %v287
        %v684 = vpop.f32.mrf.mxu0
        %v685 = vadd.f32 %v653, %v684
        %686 = vmatmul.f32.gmra.mxu0 %v294
        %v687 = vpop.f32.mrf.mxu0
        %v688 = vadd.f32 %v653, %v687
        %689 = vmatmul.f32.gmra.mxu0 %v301
        %v690 = vpop.f32.mrf.mxu0
        %v691 = vadd.f32 %v653, %v690
        %692 = vmatmul.f32.gmra.mxu0 %v308
        %v693 = vpop.f32.mrf.mxu0
        %v694 = vadd.f32 %v653, %v693
        %695 = vmatmul.f32.gmra.mxu0 %v315
        %v696 = vpop.f32.mrf.mxu0
        %v697 = vadd.f32 %v653, %v696
        %698 = vmatmul.f32.gmra.mxu0 %v322
        %v699 = vpop.f32.mrf.mxu0
        %v700 = vadd.f32 %v653, %v699
        %701 = vmatmul.f32.gmra.mxu0 %v329
        %v702 = vpop.f32.mrf.mxu0
        %v703 = vadd.f32 %v653, %v702
        %704 = vmatmul.f32.gmra.mxu0 %v336
        %v705 = vpop.f32.mrf.mxu0
        %v706 = vadd.f32 %v653, %v705
        %707 = vmatmul.f32.gmra.mxu0 %v343
        %v708 = vpop.f32.mrf.mxu0
        %v709 = vadd.f32 %v653, %v708
        %710 = vmatmul.f32.gmra.mxu0 %v350
        %v711 = vpop.f32.mrf.mxu0
        %v712 = vadd.f32 %v653, %v711
        %713 = vmatmul.f32.gmra.mxu0 %v357
        %v714 = vpop.f32.mrf.mxu0
        %v715 = vadd.f32 %v653, %v714
        %716 = vmatmul.f32.gmra.mxu0 %v364
        %v717 = vpop.f32.mrf.mxu0
        %v718 = vadd.f32 %v653, %v717
        %719 = vmatmul.f32.gmra.mxu0 %v371
        %v720 = vpop.f32.mrf.mxu0
        %v721 = vadd.f32 %v653, %v720
        %722 = vmatmul.f32.gmra.mxu0 %v378
        %v723 = vpop.f32.mrf.mxu0
        %v724 = vadd.f32 %v653, %v723
        %725 = vmatmul.f32.gmra.mxu0 %v385
        %v726 = vpop.f32.mrf.mxu0
        %v727 = vadd.f32 %v653, %v726
        %728 = vmatmul.f32.gmra.mxu0 %v392
        %v729 = vpop.f32.mrf.mxu0
        %v730 = vadd.f32 %v653, %v729
        %731 = vmatmul.f32.gmra.mxu0 %v399
        %v732 = vpop.f32.mrf.mxu0
        %v733 = vadd.f32 %v653, %v732
        %734 = vmatmul.f32.gmra.mxu0 %v406
        %v735 = vpop.f32.mrf.mxu0
        %v736 = vadd.f32 %v653, %v735
        %737 = vmatmul.f32.gmra.mxu0 %v413
        %v738 = vpop.f32.mrf.mxu0
        %v739 = vadd.f32 %v653, %v738
        %740 = vmatmul.f32.gmra.mxu0 %v420
        %v741 = vpop.f32.mrf.mxu0
        %v742 = vadd.f32 %v653, %v741
        %743 = vmatmul.f32.gmra.mxu0 %v427
        %v744 = vpop.f32.mrf.mxu0
        %v745 = vadd.f32 %v653, %v744
        %746 = vmatmul.f32.gmra.mxu0 %v434
        %v747 = vpop.f32.mrf.mxu0
        %v748 = vadd.f32 %v653, %v747
        %749 = vmatmul.f32.gmra.mxu0 %v441
        %v750 = vpop.f32.mrf.mxu0
        %v751 = vadd.f32 %v653, %v750
        %752 = vmatmul.f32.gmra.mxu0 %v448
        %v753 = vpop.f32.mrf.mxu0
        %v754 = vadd.f32 %v653, %v753
        %755 = vmatmul.f32.gmra.mxu0 %v455
        %v756 = vpop.f32.mrf.mxu0
        %v757 = vadd.f32 %v653, %v756
        %758 = vmatmul.f32.gmra.mxu0 %v462
        %v759 = vpop.f32.mrf.mxu0
        %v760 = vadd.f32 %v653, %v759
        %761 = vmatmul.f32.gmra.mxu0 %v469
        %v762 = vpop.f32.mrf.mxu0
        %v763 = vadd.f32 %v653, %v762
        %764 = vmatmul.f32.gmra.mxu0 %v476
        %v765 = vpop.f32.mrf.mxu0
        %v766 = vadd.f32 %v653, %v765
        %767 = vmatmul.f32.gmra.mxu0 %v483
        %v768 = vpop.f32.mrf.mxu0
        %v769 = vadd.f32 %v653, %v768
        %770 = vmatmul.f32.gmra.mxu0 %v490
        %v771 = vpop.f32.mrf.mxu0
        %v772 = vadd.f32 %v653, %v771
        %773 = vmatmul.f32.gmra.mxu0 %v497
        %v774 = vpop.f32.mrf.mxu0
        %v775 = vadd.f32 %v653, %v774
        %776 = vmatmul.f32.gmra.mxu0 %v504
        %v777 = vpop.f32.mrf.mxu0
        %v778 = vadd.f32 %v653, %v777
        %779 = vmatmul.f32.gmra.mxu0 %v511
        %v780 = vpop.f32.mrf.mxu0
        %v781 = vadd.f32 %v653, %v780
        %782 = vmatmul.f32.gmra.mxu0 %v518
        %v783 = vpop.f32.mrf.mxu0
        %v784 = vadd.f32 %v653, %v783
        %785 = vmatmul.f32.gmra.mxu0 %v525
        %v786 = vpop.f32.mrf.mxu0
        %v787 = vadd.f32 %v653, %v786
        %788 = vmatmul.f32.gmra.mxu0 %v532
        %v789 = vpop.f32.mrf.mxu0
        %v790 = vadd.f32 %v653, %v789
        %791 = vdwg.mxu0
        %792 = vmatpush.msra.mxu0 %v570
        %793 = vmatpush.msra.mxu0 %v569
        %794 = vmatpush.msra.mxu0 %v568
        %795 = vmatpush.msra.mxu0 %v567
        %796 = vmatpush.msra.mxu0 %v566
        %797 = vmatpush.msra.mxu0 %v565
        %798 = vmatpush.msra.mxu0 %v564
        %799 = vmatpush.msra.mxu0 %v563
        %800 = vmatpush.msra.mxu0 %v562
        %801 = vmatpush.msra.mxu0 %v561
        %802 = vmatpush.msra.mxu0 %v560
        %803 = vmatpush.msra.mxu0 %v559
        %804 = vmatpush.msra.mxu0 %v558
        %805 = vmatpush.msra.mxu0 %v557
        %806 = vmatpush.msra.mxu0 %v556
        %807 = vmatpush.msra.mxu0 %v555
        %808 = vmatmul.f32.gmra.mxu0 %v260
        %v809 = vpop.f32.mrf.mxu0
        %v810 = vadd.f32 %v673, %v809
        %811 = vmatmul.f32.gmra.mxu0 %v267
        %v812 = vpop.f32.mrf.mxu0
        %v813 = vadd.f32 %v676, %v812
        %814 = vmatmul.f32.gmra.mxu0 %v274
        %v815 = vpop.f32.mrf.mxu0
        %v816 = vadd.f32 %v679, %v815
        %817 = vmatmul.f32.gmra.mxu0 %v281
        %v818 = vpop.f32.mrf.mxu0
        %v819 = vadd.f32 %v682, %v818
        %820 = vmatmul.f32.gmra.mxu0 %v288
        %v821 = vpop.f32.mrf.mxu0
        %v822 = vadd.f32 %v685, %v821
        %823 = vmatmul.f32.gmra.mxu0 %v295
        %v824 = vpop.f32.mrf.mxu0
        %v825 = vadd.f32 %v688, %v824
        %826 = vmatmul.f32.gmra.mxu0 %v302
        %v827 = vpop.f32.mrf.mxu0
        %v828 = vadd.f32 %v691, %v827
        %829 = vmatmul.f32.gmra.mxu0 %v309
        %v830 = vpop.f32.mrf.mxu0
        %v831 = vadd.f32 %v694, %v830
        %832 = vmatmul.f32.gmra.mxu0 %v316
        %v833 = vpop.f32.mrf.mxu0
        %v834 = vadd.f32 %v697, %v833
        %835 = vmatmul.f32.gmra.mxu0 %v323
        %v836 = vpop.f32.mrf.mxu0
        %v837 = vadd.f32 %v700, %v836
        %838 = vmatmul.f32.gmra.mxu0 %v330
        %v839 = vpop.f32.mrf.mxu0
        %v840 = vadd.f32 %v703, %v839
        %841 = vmatmul.f32.gmra.mxu0 %v337
        %v842 = vpop.f32.mrf.mxu0
        %v843 = vadd.f32 %v706, %v842
        %844 = vmatmul.f32.gmra.mxu0 %v344
        %v845 = vpop.f32.mrf.mxu0
        %v846 = vadd.f32 %v709, %v845
        %847 = vmatmul.f32.gmra.mxu0 %v351
        %v848 = vpop.f32.mrf.mxu0
        %v849 = vadd.f32 %v712, %v848
        %850 = vmatmul.f32.gmra.mxu0 %v358
        %v851 = vpop.f32.mrf.mxu0
        %v852 = vadd.f32 %v715, %v851
        %853 = vmatmul.f32.gmra.mxu0 %v365
        %v854 = vpop.f32.mrf.mxu0
        %v855 = vadd.f32 %v718, %v854
        %856 = vmatmul.f32.gmra.mxu0 %v372
        %v857 = vpop.f32.mrf.mxu0
        %v858 = vadd.f32 %v721, %v857
        %859 = vmatmul.f32.gmra.mxu0 %v379
        %v860 = vpop.f32.mrf.mxu0
        %v861 = vadd.f32 %v724, %v860
        %862 = vmatmul.f32.gmra.mxu0 %v386
        %v863 = vpop.f32.mrf.mxu0
        %v864 = vadd.f32 %v727, %v863
        %865 = vmatmul.f32.gmra.mxu0 %v393
        %v866 = vpop.f32.mrf.mxu0
        %v867 = vadd.f32 %v730, %v866
        %868 = vmatmul.f32.gmra.mxu0 %v400
        %v869 = vpop.f32.mrf.mxu0
        %v870 = vadd.f32 %v733, %v869
        %871 = vmatmul.f32.gmra.mxu0 %v407
        %v872 = vpop.f32.mrf.mxu0
        %v873 = vadd.f32 %v736, %v872
        %874 = vmatmul.f32.gmra.mxu0 %v414
        %v875 = vpop.f32.mrf.mxu0
        %v876 = vadd.f32 %v739, %v875
        %877 = vmatmul.f32.gmra.mxu0 %v421
        %v878 = vpop.f32.mrf.mxu0
        %v879 = vadd.f32 %v742, %v878
        %880 = vmatmul.f32.gmra.mxu0 %v428
        %v881 = vpop.f32.mrf.mxu0
        %v882 = vadd.f32 %v745, %v881
        %883 = vmatmul.f32.gmra.mxu0 %v435
        %v884 = vpop.f32.mrf.mxu0
        %v885 = vadd.f32 %v748, %v884
        %886 = vmatmul.f32.gmra.mxu0 %v442
        %v887 = vpop.f32.mrf.mxu0
        %v888 = vadd.f32 %v751, %v887
        %889 = vmatmul.f32.gmra.mxu0 %v449
        %v890 = vpop.f32.mrf.mxu0
        %v891 = vadd.f32 %v754, %v890
        %892 = vmatmul.f32.gmra.mxu0 %v456
        %v893 = vpop.f32.mrf.mxu0
        %v894 = vadd.f32 %v757, %v893
        %895 = vmatmul.f32.gmra.mxu0 %v463
        %v896 = vpop.f32.mrf.mxu0
        %v897 = vadd.f32 %v760, %v896
        %898 = vmatmul.f32.gmra.mxu0 %v470
        %v899 = vpop.f32.mrf.mxu0
        %v900 = vadd.f32 %v763, %v899
        %901 = vmatmul.f32.gmra.mxu0 %v477
        %v902 = vpop.f32.mrf.mxu0
        %v903 = vadd.f32 %v766, %v902
        %904 = vmatmul.f32.gmra.mxu0 %v484
        %v905 = vpop.f32.mrf.mxu0
        %v906 = vadd.f32 %v769, %v905
        %907 = vmatmul.f32.gmra.mxu0 %v491
        %v908 = vpop.f32.mrf.mxu0
        %v909 = vadd.f32 %v772, %v908
        %910 = vmatmul.f32.gmra.mxu0 %v498
        %v911 = vpop.f32.mrf.mxu0
        %v912 = vadd.f32 %v775, %v911
        %913 = vmatmul.f32.gmra.mxu0 %v505
        %v914 = vpop.f32.mrf.mxu0
        %v915 = vadd.f32 %v778, %v914
        %916 = vmatmul.f32.gmra.mxu0 %v512
        %v917 = vpop.f32.mrf.mxu0
        %v918 = vadd.f32 %v781, %v917
        %919 = vmatmul.f32.gmra.mxu0 %v519
        %v920 = vpop.f32.mrf.mxu0
        %v921 = vadd.f32 %v784, %v920
        %922 = vmatmul.f32.gmra.mxu0 %v526
        %v923 = vpop.f32.mrf.mxu0
        %v924 = vadd.f32 %v787, %v923
        %925 = vmatmul.f32.gmra.mxu0 %v533
        %v926 = vpop.f32.mrf.mxu0
        %v927 = vadd.f32 %v790, %v926
        %928 = vdwg.mxu0
        %929 = vmatpush.msra.mxu0 %v586
        %930 = vmatpush.msra.mxu0 %v585
        %931 = vmatpush.msra.mxu0 %v584
        %932 = vmatpush.msra.mxu0 %v583
        %933 = vmatpush.msra.mxu0 %v582
        %934 = vmatpush.msra.mxu0 %v581
        %935 = vmatpush.msra.mxu0 %v580
        %936 = vmatpush.msra.mxu0 %v579
        %937 = vmatpush.msra.mxu0 %v578
        %938 = vmatpush.msra.mxu0 %v577
        %939 = vmatpush.msra.mxu0 %v576
        %940 = vmatpush.msra.mxu0 %v575
        %941 = vmatpush.msra.mxu0 %v574
        %942 = vmatpush.msra.mxu0 %v573
        %943 = vmatpush.msra.mxu0 %v572
        %944 = vmatpush.msra.mxu0 %v571
        %945 = vmatmul.f32.gmra.mxu0 %v261
        %v946 = vpop.f32.mrf.mxu0
        %v947 = vadd.f32 %v810, %v946
        %948 = vmatmul.f32.gmra.mxu0 %v268
        %v949 = vpop.f32.mrf.mxu0
        %v950 = vadd.f32 %v813, %v949
        %951 = vmatmul.f32.gmra.mxu0 %v275
        %v952 = vpop.f32.mrf.mxu0
        %v953 = vadd.f32 %v816, %v952
        %954 = vmatmul.f32.gmra.mxu0 %v282
        %v955 = vpop.f32.mrf.mxu0
        %v956 = vadd.f32 %v819, %v955
        %957 = vmatmul.f32.gmra.mxu0 %v289
        %v958 = vpop.f32.mrf.mxu0
        %v959 = vadd.f32 %v822, %v958
        %960 = vmatmul.f32.gmra.mxu0 %v296
        %v961 = vpop.f32.mrf.mxu0
        %v962 = vadd.f32 %v825, %v961
        %963 = vmatmul.f32.gmra.mxu0 %v303
        %v964 = vpop.f32.mrf.mxu0
        %v965 = vadd.f32 %v828, %v964
        %966 = vmatmul.f32.gmra.mxu0 %v310
        %v967 = vpop.f32.mrf.mxu0
        %v968 = vadd.f32 %v831, %v967
        %969 = vmatmul.f32.gmra.mxu0 %v317
        %v970 = vpop.f32.mrf.mxu0
        %v971 = vadd.f32 %v834, %v970
        %972 = vmatmul.f32.gmra.mxu0 %v324
        %v973 = vpop.f32.mrf.mxu0
        %v974 = vadd.f32 %v837, %v973
        %975 = vmatmul.f32.gmra.mxu0 %v331
        %v976 = vpop.f32.mrf.mxu0
        %v977 = vadd.f32 %v840, %v976
        %978 = vmatmul.f32.gmra.mxu0 %v338
        %v979 = vpop.f32.mrf.mxu0
        %v980 = vadd.f32 %v843, %v979
        %981 = vmatmul.f32.gmra.mxu0 %v345
        %v982 = vpop.f32.mrf.mxu0
        %v983 = vadd.f32 %v846, %v982
        %984 = vmatmul.f32.gmra.mxu0 %v352
        %v985 = vpop.f32.mrf.mxu0
        %v986 = vadd.f32 %v849, %v985
        %987 = vmatmul.f32.gmra.mxu0 %v359
        %v988 = vpop.f32.mrf.mxu0
        %v989 = vadd.f32 %v852, %v988
        %990 = vmatmul.f32.gmra.mxu0 %v366
        %v991 = vpop.f32.mrf.mxu0
        %v992 = vadd.f32 %v855, %v991
        %993 = vmatmul.f32.gmra.mxu0 %v373
        %v994 = vpop.f32.mrf.mxu0
        %v995 = vadd.f32 %v858, %v994
        %996 = vmatmul.f32.gmra.mxu0 %v380
        %v997 = vpop.f32.mrf.mxu0
        %v998 = vadd.f32 %v861, %v997
        %999 = vmatmul.f32.gmra.mxu0 %v387
        %v1000 = vpop.f32.mrf.mxu0
        %v1001 = vadd.f32 %v864, %v1000
        %1002 = vmatmul.f32.gmra.mxu0 %v394
        %v1003 = vpop.f32.mrf.mxu0
        %v1004 = vadd.f32 %v867, %v1003
        %1005 = vmatmul.f32.gmra.mxu0 %v401
        %v1006 = vpop.f32.mrf.mxu0
        %v1007 = vadd.f32 %v870, %v1006
        %1008 = vmatmul.f32.gmra.mxu0 %v408
        %v1009 = vpop.f32.mrf.mxu0
        %v1010 = vadd.f32 %v873, %v1009
        %1011 = vmatmul.f32.gmra.mxu0 %v415
        %v1012 = vpop.f32.mrf.mxu0
        %v1013 = vadd.f32 %v876, %v1012
        %1014 = vmatmul.f32.gmra.mxu0 %v422
        %v1015 = vpop.f32.mrf.mxu0
        %v1016 = vadd.f32 %v879, %v1015
        %1017 = vmatmul.f32.gmra.mxu0 %v429
        %v1018 = vpop.f32.mrf.mxu0
        %v1019 = vadd.f32 %v882, %v1018
        %1020 = vmatmul.f32.gmra.mxu0 %v436
        %v1021 = vpop.f32.mrf.mxu0
        %v1022 = vadd.f32 %v885, %v1021
        %1023 = vmatmul.f32.gmra.mxu0 %v443
        %v1024 = vpop.f32.mrf.mxu0
        %v1025 = vadd.f32 %v888, %v1024
        %1026 = vmatmul.f32.gmra.mxu0 %v450
        %v1027 = vpop.f32.mrf.mxu0
        %v1028 = vadd.f32 %v891, %v1027
        %1029 = vmatmul.f32.gmra.mxu0 %v457
        %v1030 = vpop.f32.mrf.mxu0
        %v1031 = vadd.f32 %v894, %v1030
        %1032 = vmatmul.f32.gmra.mxu0 %v464
        %v1033 = vpop.f32.mrf.mxu0
        %v1034 = vadd.f32 %v897, %v1033
        %1035 = vmatmul.f32.gmra.mxu0 %v471
        %v1036 = vpop.f32.mrf.mxu0
        %v1037 = vadd.f32 %v900, %v1036
        %1038 = vmatmul.f32.gmra.mxu0 %v478
        %v1039 = vpop.f32.mrf.mxu0
        %v1040 = vadd.f32 %v903, %v1039
        %1041 = vmatmul.f32.gmra.mxu0 %v485
        %v1042 = vpop.f32.mrf.mxu0
        %v1043 = vadd.f32 %v906, %v1042
        %1044 = vmatmul.f32.gmra.mxu0 %v492
        %v1045 = vpop.f32.mrf.mxu0
        %v1046 = vadd.f32 %v909, %v1045
        %1047 = vmatmul.f32.gmra.mxu0 %v499
        %v1048 = vpop.f32.mrf.mxu0
        %v1049 = vadd.f32 %v912, %v1048
        %1050 = vmatmul.f32.gmra.mxu0 %v506
        %v1051 = vpop.f32.mrf.mxu0
        %v1052 = vadd.f32 %v915, %v1051
        %1053 = vmatmul.f32.gmra.mxu0 %v513
        %v1054 = vpop.f32.mrf.mxu0
        %v1055 = vadd.f32 %v918, %v1054
        %1056 = vmatmul.f32.gmra.mxu0 %v520
        %v1057 = vpop.f32.mrf.mxu0
        %v1058 = vadd.f32 %v921, %v1057
        %1059 = vmatmul.f32.gmra.mxu0 %v527
        %v1060 = vpop.f32.mrf.mxu0
        %v1061 = vadd.f32 %v924, %v1060
        %1062 = vmatmul.f32.gmra.mxu0 %v534
        %v1063 = vpop.f32.mrf.mxu0
        %v1064 = vadd.f32 %v927, %v1063
        %1065 = vdwg.mxu0
        %1066 = vmatpush.msra.mxu0 %v602
        %1067 = vmatpush.msra.mxu0 %v601
        %1068 = vmatpush.msra.mxu0 %v600
        %1069 = vmatpush.msra.mxu0 %v599
        %1070 = vmatpush.msra.mxu0 %v598
        %1071 = vmatpush.msra.mxu0 %v597
        %1072 = vmatpush.msra.mxu0 %v596
        %1073 = vmatpush.msra.mxu0 %v595
        %1074 = vmatpush.msra.mxu0 %v594
        %1075 = vmatpush.msra.mxu0 %v593
        %1076 = vmatpush.msra.mxu0 %v592
        %1077 = vmatpush.msra.mxu0 %v591
        %1078 = vmatpush.msra.mxu0 %v590
        %1079 = vmatpush.msra.mxu0 %v589
        %1080 = vmatpush.msra.mxu0 %v588
        %1081 = vmatpush.msra.mxu0 %v587
        %1082 = vmatmul.f32.gmra.mxu0 %v262
        %v1083 = vpop.f32.mrf.mxu0
        %v1084 = vadd.f32 %v947, %v1083
        %1085 = vmatmul.f32.gmra.mxu0 %v269
        %v1086 = vpop.f32.mrf.mxu0
        %v1087 = vadd.f32 %v950, %v1086
        %1088 = vmatmul.f32.gmra.mxu0 %v276
        %v1089 = vpop.f32.mrf.mxu0
        %v1090 = vadd.f32 %v953, %v1089
        %1091 = vmatmul.f32.gmra.mxu0 %v283
        %v1092 = vpop.f32.mrf.mxu0
        %v1093 = vadd.f32 %v956, %v1092
        %1094 = vmatmul.f32.gmra.mxu0 %v290
        %v1095 = vpop.f32.mrf.mxu0
        %v1096 = vadd.f32 %v959, %v1095
        %1097 = vmatmul.f32.gmra.mxu0 %v297
        %v1098 = vpop.f32.mrf.mxu0
        %v1099 = vadd.f32 %v962, %v1098
        %1100 = vmatmul.f32.gmra.mxu0 %v304
        %v1101 = vpop.f32.mrf.mxu0
        %v1102 = vadd.f32 %v965, %v1101
        %1103 = vmatmul.f32.gmra.mxu0 %v311
        %v1104 = vpop.f32.mrf.mxu0
        %v1105 = vadd.f32 %v968, %v1104
        %1106 = vmatmul.f32.gmra.mxu0 %v318
        %v1107 = vpop.f32.mrf.mxu0
        %v1108 = vadd.f32 %v971, %v1107
        %1109 = vmatmul.f32.gmra.mxu0 %v325
        %v1110 = vpop.f32.mrf.mxu0
        %v1111 = vadd.f32 %v974, %v1110
        %1112 = vmatmul.f32.gmra.mxu0 %v332
        %v1113 = vpop.f32.mrf.mxu0
        %v1114 = vadd.f32 %v977, %v1113
        %1115 = vmatmul.f32.gmra.mxu0 %v339
        %v1116 = vpop.f32.mrf.mxu0
        %v1117 = vadd.f32 %v980, %v1116
        %1118 = vmatmul.f32.gmra.mxu0 %v346
        %v1119 = vpop.f32.mrf.mxu0
        %v1120 = vadd.f32 %v983, %v1119
        %1121 = vmatmul.f32.gmra.mxu0 %v353
        %v1122 = vpop.f32.mrf.mxu0
        %v1123 = vadd.f32 %v986, %v1122
        %1124 = vmatmul.f32.gmra.mxu0 %v360
        %v1125 = vpop.f32.mrf.mxu0
        %v1126 = vadd.f32 %v989, %v1125
        %1127 = vmatmul.f32.gmra.mxu0 %v367
        %v1128 = vpop.f32.mrf.mxu0
        %v1129 = vadd.f32 %v992, %v1128
        %1130 = vmatmul.f32.gmra.mxu0 %v374
        %v1131 = vpop.f32.mrf.mxu0
        %v1132 = vadd.f32 %v995, %v1131
        %1133 = vmatmul.f32.gmra.mxu0 %v381
        %v1134 = vpop.f32.mrf.mxu0
        %v1135 = vadd.f32 %v998, %v1134
        %1136 = vmatmul.f32.gmra.mxu0 %v388
        %v1137 = vpop.f32.mrf.mxu0
        %v1138 = vadd.f32 %v1001, %v1137
        %1139 = vmatmul.f32.gmra.mxu0 %v395
        %v1140 = vpop.f32.mrf.mxu0
        %v1141 = vadd.f32 %v1004, %v1140
        %1142 = vmatmul.f32.gmra.mxu0 %v402
        %v1143 = vpop.f32.mrf.mxu0
        %v1144 = vadd.f32 %v1007, %v1143
        %1145 = vmatmul.f32.gmra.mxu0 %v409
        %v1146 = vpop.f32.mrf.mxu0
        %v1147 = vadd.f32 %v1010, %v1146
        %1148 = vmatmul.f32.gmra.mxu0 %v416
        %v1149 = vpop.f32.mrf.mxu0
        %v1150 = vadd.f32 %v1013, %v1149
        %1151 = vmatmul.f32.gmra.mxu0 %v423
        %v1152 = vpop.f32.mrf.mxu0
        %v1153 = vadd.f32 %v1016, %v1152
        %1154 = vmatmul.f32.gmra.mxu0 %v430
        %v1155 = vpop.f32.mrf.mxu0
        %v1156 = vadd.f32 %v1019, %v1155
        %1157 = vmatmul.f32.gmra.mxu0 %v437
        %v1158 = vpop.f32.mrf.mxu0
        %v1159 = vadd.f32 %v1022, %v1158
        %1160 = vmatmul.f32.gmra.mxu0 %v444
        %v1161 = vpop.f32.mrf.mxu0
        %v1162 = vadd.f32 %v1025, %v1161
        %1163 = vmatmul.f32.gmra.mxu0 %v451
        %v1164 = vpop.f32.mrf.mxu0
        %v1165 = vadd.f32 %v1028, %v1164
        %1166 = vmatmul.f32.gmra.mxu0 %v458
        %v1167 = vpop.f32.mrf.mxu0
        %v1168 = vadd.f32 %v1031, %v1167
        %1169 = vmatmul.f32.gmra.mxu0 %v465
        %v1170 = vpop.f32.mrf.mxu0
        %v1171 = vadd.f32 %v1034, %v1170
        %1172 = vmatmul.f32.gmra.mxu0 %v472
        %v1173 = vpop.f32.mrf.mxu0
        %v1174 = vadd.f32 %v1037, %v1173
        %1175 = vmatmul.f32.gmra.mxu0 %v479
        %v1176 = vpop.f32.mrf.mxu0
        %v1177 = vadd.f32 %v1040, %v1176
        %1178 = vmatmul.f32.gmra.mxu0 %v486
        %v1179 = vpop.f32.mrf.mxu0
        %v1180 = vadd.f32 %v1043, %v1179
        %1181 = vmatmul.f32.gmra.mxu0 %v493
        %v1182 = vpop.f32.mrf.mxu0
        %v1183 = vadd.f32 %v1046, %v1182
        %1184 = vmatmul.f32.gmra.mxu0 %v500
        %v1185 = vpop.f32.mrf.mxu0
        %v1186 = vadd.f32 %v1049, %v1185
        %1187 = vmatmul.f32.gmra.mxu0 %v507
        %v1188 = vpop.f32.mrf.mxu0
        %v1189 = vadd.f32 %v1052, %v1188
        %1190 = vmatmul.f32.gmra.mxu0 %v514
        %v1191 = vpop.f32.mrf.mxu0
        %v1192 = vadd.f32 %v1055, %v1191
        %1193 = vmatmul.f32.gmra.mxu0 %v521
        %v1194 = vpop.f32.mrf.mxu0
        %v1195 = vadd.f32 %v1058, %v1194
        %1196 = vmatmul.f32.gmra.mxu0 %v528
        %v1197 = vpop.f32.mrf.mxu0
        %v1198 = vadd.f32 %v1061, %v1197
        %1199 = vmatmul.f32.gmra.mxu0 %v535
        %v1200 = vpop.f32.mrf.mxu0
        %v1201 = vadd.f32 %v1064, %v1200
        %1202 = vdwg.mxu0
        %1203 = vmatpush.msra.mxu0 %v618
        %1204 = vmatpush.msra.mxu0 %v617
        %1205 = vmatpush.msra.mxu0 %v616
        %1206 = vmatpush.msra.mxu0 %v615
        %1207 = vmatpush.msra.mxu0 %v614
        %1208 = vmatpush.msra.mxu0 %v613
        %1209 = vmatpush.msra.mxu0 %v612
        %1210 = vmatpush.msra.mxu0 %v611
        %1211 = vmatpush.msra.mxu0 %v610
        %1212 = vmatpush.msra.mxu0 %v609
        %1213 = vmatpush.msra.mxu0 %v608
        %1214 = vmatpush.msra.mxu0 %v607
        %1215 = vmatpush.msra.mxu0 %v606
        %1216 = vmatpush.msra.mxu0 %v605
        %1217 = vmatpush.msra.mxu0 %v604
        %1218 = vmatpush.msra.mxu0 %v603
        %1219 = vmatmul.f32.gmra.mxu0 %v263
        %v1220 = vpop.f32.mrf.mxu0
        %v1221 = vadd.f32 %v1084, %v1220
        %1222 = vmatmul.f32.gmra.mxu0 %v270
        %v1223 = vpop.f32.mrf.mxu0
        %v1224 = vadd.f32 %v1087, %v1223
        %1225 = vmatmul.f32.gmra.mxu0 %v277
        %v1226 = vpop.f32.mrf.mxu0
        %v1227 = vadd.f32 %v1090, %v1226
        %1228 = vmatmul.f32.gmra.mxu0 %v284
        %v1229 = vpop.f32.mrf.mxu0
        %v1230 = vadd.f32 %v1093, %v1229
        %1231 = vmatmul.f32.gmra.mxu0 %v291
        %v1232 = vpop.f32.mrf.mxu0
        %v1233 = vadd.f32 %v1096, %v1232
        %1234 = vmatmul.f32.gmra.mxu0 %v298
        %v1235 = vpop.f32.mrf.mxu0
        %v1236 = vadd.f32 %v1099, %v1235
        %1237 = vmatmul.f32.gmra.mxu0 %v305
        %v1238 = vpop.f32.mrf.mxu0
        %v1239 = vadd.f32 %v1102, %v1238
        %1240 = vmatmul.f32.gmra.mxu0 %v312
        %v1241 = vpop.f32.mrf.mxu0
        %v1242 = vadd.f32 %v1105, %v1241
        %1243 = vmatmul.f32.gmra.mxu0 %v319
        %v1244 = vpop.f32.mrf.mxu0
        %v1245 = vadd.f32 %v1108, %v1244
        %1246 = vmatmul.f32.gmra.mxu0 %v326
        %v1247 = vpop.f32.mrf.mxu0
        %v1248 = vadd.f32 %v1111, %v1247
        %1249 = vmatmul.f32.gmra.mxu0 %v333
        %v1250 = vpop.f32.mrf.mxu0
        %v1251 = vadd.f32 %v1114, %v1250
        %1252 = vmatmul.f32.gmra.mxu0 %v340
        %v1253 = vpop.f32.mrf.mxu0
        %v1254 = vadd.f32 %v1117, %v1253
        %1255 = vmatmul.f32.gmra.mxu0 %v347
        %v1256 = vpop.f32.mrf.mxu0
        %v1257 = vadd.f32 %v1120, %v1256
        %1258 = vmatmul.f32.gmra.mxu0 %v354
        %v1259 = vpop.f32.mrf.mxu0
        %v1260 = vadd.f32 %v1123, %v1259
        %1261 = vmatmul.f32.gmra.mxu0 %v361
        %v1262 = vpop.f32.mrf.mxu0
        %v1263 = vadd.f32 %v1126, %v1262
        %1264 = vmatmul.f32.gmra.mxu0 %v368
        %v1265 = vpop.f32.mrf.mxu0
        %v1266 = vadd.f32 %v1129, %v1265
        %1267 = vmatmul.f32.gmra.mxu0 %v375
        %v1268 = vpop.f32.mrf.mxu0
        %v1269 = vadd.f32 %v1132, %v1268
        %1270 = vmatmul.f32.gmra.mxu0 %v382
        %v1271 = vpop.f32.mrf.mxu0
        %v1272 = vadd.f32 %v1135, %v1271
        %1273 = vmatmul.f32.gmra.mxu0 %v389
        %v1274 = vpop.f32.mrf.mxu0
        %v1275 = vadd.f32 %v1138, %v1274
        %1276 = vmatmul.f32.gmra.mxu0 %v396
        %v1277 = vpop.f32.mrf.mxu0
        %v1278 = vadd.f32 %v1141, %v1277
        %1279 = vmatmul.f32.gmra.mxu0 %v403
        %v1280 = vpop.f32.mrf.mxu0
        %v1281 = vadd.f32 %v1144, %v1280
        %1282 = vmatmul.f32.gmra.mxu0 %v410
        %v1283 = vpop.f32.mrf.mxu0
        %v1284 = vadd.f32 %v1147, %v1283
        %1285 = vmatmul.f32.gmra.mxu0 %v417
        %v1286 = vpop.f32.mrf.mxu0
        %v1287 = vadd.f32 %v1150, %v1286
        %1288 = vmatmul.f32.gmra.mxu0 %v424
        %v1289 = vpop.f32.mrf.mxu0
        %v1290 = vadd.f32 %v1153, %v1289
        %1291 = vmatmul.f32.gmra.mxu0 %v431
        %v1292 = vpop.f32.mrf.mxu0
        %v1293 = vadd.f32 %v1156, %v1292
        %1294 = vmatmul.f32.gmra.mxu0 %v438
        %v1295 = vpop.f32.mrf.mxu0
        %v1296 = vadd.f32 %v1159, %v1295
        %1297 = vmatmul.f32.gmra.mxu0 %v445
        %v1298 = vpop.f32.mrf.mxu0
        %v1299 = vadd.f32 %v1162, %v1298
        %1300 = vmatmul.f32.gmra.mxu0 %v452
        %v1301 = vpop.f32.mrf.mxu0
        %v1302 = vadd.f32 %v1165, %v1301
        %1303 = vmatmul.f32.gmra.mxu0 %v459
        %v1304 = vpop.f32.mrf.mxu0
        %v1305 = vadd.f32 %v1168, %v1304
        %1306 = vmatmul.f32.gmra.mxu0 %v466
        %v1307 = vpop.f32.mrf.mxu0
        %v1308 = vadd.f32 %v1171, %v1307
        %1309 = vmatmul.f32.gmra.mxu0 %v473
        %v1310 = vpop.f32.mrf.mxu0
        %v1311 = vadd.f32 %v1174, %v1310
        %1312 = vmatmul.f32.gmra.mxu0 %v480
        %v1313 = vpop.f32.mrf.mxu0
        %v1314 = vadd.f32 %v1177, %v1313
        %1315 = vmatmul.f32.gmra.mxu0 %v487
        %v1316 = vpop.f32.mrf.mxu0
        %v1317 = vadd.f32 %v1180, %v1316
        %1318 = vmatmul.f32.gmra.mxu0 %v494
        %v1319 = vpop.f32.mrf.mxu0
        %v1320 = vadd.f32 %v1183, %v1319
        %1321 = vmatmul.f32.gmra.mxu0 %v501
        %v1322 = vpop.f32.mrf.mxu0
        %v1323 = vadd.f32 %v1186, %v1322
        %1324 = vmatmul.f32.gmra.mxu0 %v508
        %v1325 = vpop.f32.mrf.mxu0
        %v1326 = vadd.f32 %v1189, %v1325
        %1327 = vmatmul.f32.gmra.mxu0 %v515
        %v1328 = vpop.f32.mrf.mxu0
        %v1329 = vadd.f32 %v1192, %v1328
        %1330 = vmatmul.f32.gmra.mxu0 %v522
        %v1331 = vpop.f32.mrf.mxu0
        %v1332 = vadd.f32 %v1195, %v1331
        %1333 = vmatmul.f32.gmra.mxu0 %v529
        %v1334 = vpop.f32.mrf.mxu0
        %v1335 = vadd.f32 %v1198, %v1334
        %1336 = vmatmul.f32.gmra.mxu0 %v536
        %v1337 = vpop.f32.mrf.mxu0
        %v1338 = vadd.f32 %v1201, %v1337
        %1339 = vdwg.mxu0
        %1340 = vmatpush.msra.mxu0 %v634
        %1341 = vmatpush.msra.mxu0 %v633
        %1342 = vmatpush.msra.mxu0 %v632
        %1343 = vmatpush.msra.mxu0 %v631
        %1344 = vmatpush.msra.mxu0 %v630
        %1345 = vmatpush.msra.mxu0 %v629
        %1346 = vmatpush.msra.mxu0 %v628
        %1347 = vmatpush.msra.mxu0 %v627
        %1348 = vmatpush.msra.mxu0 %v626
        %1349 = vmatpush.msra.mxu0 %v625
        %1350 = vmatpush.msra.mxu0 %v624
        %1351 = vmatpush.msra.mxu0 %v623
        %1352 = vmatpush.msra.mxu0 %v622
        %1353 = vmatpush.msra.mxu0 %v621
        %1354 = vmatpush.msra.mxu0 %v620
        %1355 = vmatpush.msra.mxu0 %v619
        %1356 = vmatmul.f32.gmra.mxu0 %v264
        %v1357 = vpop.f32.mrf.mxu0
        %v1358 = vadd.f32 %v1221, %v1357
        %1359 = vmatmul.f32.gmra.mxu0 %v271
        %v1360 = vpop.f32.mrf.mxu0
        %v1361 = vadd.f32 %v1224, %v1360
        %1362 = vmatmul.f32.gmra.mxu0 %v278
        %v1363 = vpop.f32.mrf.mxu0
        %v1364 = vadd.f32 %v1227, %v1363
        %1365 = vmatmul.f32.gmra.mxu0 %v285
        %v1366 = vpop.f32.mrf.mxu0
        %v1367 = vadd.f32 %v1230, %v1366
        %1368 = vmatmul.f32.gmra.mxu0 %v292
        %v1369 = vpop.f32.mrf.mxu0
        %v1370 = vadd.f32 %v1233, %v1369
        %1371 = vmatmul.f32.gmra.mxu0 %v299
        %v1372 = vpop.f32.mrf.mxu0
        %v1373 = vadd.f32 %v1236, %v1372
        %1374 = vmatmul.f32.gmra.mxu0 %v306
        %v1375 = vpop.f32.mrf.mxu0
        %v1376 = vadd.f32 %v1239, %v1375
        %1377 = vmatmul.f32.gmra.mxu0 %v313
        %v1378 = vpop.f32.mrf.mxu0
        %v1379 = vadd.f32 %v1242, %v1378
        %1380 = vmatmul.f32.gmra.mxu0 %v320
        %v1381 = vpop.f32.mrf.mxu0
        %v1382 = vadd.f32 %v1245, %v1381
        %1383 = vmatmul.f32.gmra.mxu0 %v327
        %v1384 = vpop.f32.mrf.mxu0
        %v1385 = vadd.f32 %v1248, %v1384
        %1386 = vmatmul.f32.gmra.mxu0 %v334
        %v1387 = vpop.f32.mrf.mxu0
        %v1388 = vadd.f32 %v1251, %v1387
        %1389 = vmatmul.f32.gmra.mxu0 %v341
        %v1390 = vpop.f32.mrf.mxu0
        %v1391 = vadd.f32 %v1254, %v1390
        %1392 = vmatmul.f32.gmra.mxu0 %v348
        %v1393 = vpop.f32.mrf.mxu0
        %v1394 = vadd.f32 %v1257, %v1393
        %1395 = vmatmul.f32.gmra.mxu0 %v355
        %v1396 = vpop.f32.mrf.mxu0
        %v1397 = vadd.f32 %v1260, %v1396
        %1398 = vmatmul.f32.gmra.mxu0 %v362
        %v1399 = vpop.f32.mrf.mxu0
        %v1400 = vadd.f32 %v1263, %v1399
        %1401 = vmatmul.f32.gmra.mxu0 %v369
        %v1402 = vpop.f32.mrf.mxu0
        %v1403 = vadd.f32 %v1266, %v1402
        %1404 = vmatmul.f32.gmra.mxu0 %v376
        %v1405 = vpop.f32.mrf.mxu0
        %v1406 = vadd.f32 %v1269, %v1405
        %1407 = vmatmul.f32.gmra.mxu0 %v383
        %v1408 = vpop.f32.mrf.mxu0
        %v1409 = vadd.f32 %v1272, %v1408
        %1410 = vmatmul.f32.gmra.mxu0 %v390
        %v1411 = vpop.f32.mrf.mxu0
        %v1412 = vadd.f32 %v1275, %v1411
        %1413 = vmatmul.f32.gmra.mxu0 %v397
        %v1414 = vpop.f32.mrf.mxu0
        %v1415 = vadd.f32 %v1278, %v1414
        %1416 = vmatmul.f32.gmra.mxu0 %v404
        %v1417 = vpop.f32.mrf.mxu0
        %v1418 = vadd.f32 %v1281, %v1417
        %1419 = vmatmul.f32.gmra.mxu0 %v411
        %v1420 = vpop.f32.mrf.mxu0
        %v1421 = vadd.f32 %v1284, %v1420
        %1422 = vmatmul.f32.gmra.mxu0 %v418
        %v1423 = vpop.f32.mrf.mxu0
        %v1424 = vadd.f32 %v1287, %v1423
        %1425 = vmatmul.f32.gmra.mxu0 %v425
        %v1426 = vpop.f32.mrf.mxu0
        %v1427 = vadd.f32 %v1290, %v1426
        %1428 = vmatmul.f32.gmra.mxu0 %v432
        %v1429 = vpop.f32.mrf.mxu0
        %v1430 = vadd.f32 %v1293, %v1429
        %1431 = vmatmul.f32.gmra.mxu0 %v439
        %v1432 = vpop.f32.mrf.mxu0
        %v1433 = vadd.f32 %v1296, %v1432
        %1434 = vmatmul.f32.gmra.mxu0 %v446
        %v1435 = vpop.f32.mrf.mxu0
        %v1436 = vadd.f32 %v1299, %v1435
        %1437 = vmatmul.f32.gmra.mxu0 %v453
        %v1438 = vpop.f32.mrf.mxu0
        %v1439 = vadd.f32 %v1302, %v1438
        %1440 = vmatmul.f32.gmra.mxu0 %v460
        %v1441 = vpop.f32.mrf.mxu0
        %v1442 = vadd.f32 %v1305, %v1441
        %1443 = vmatmul.f32.gmra.mxu0 %v467
        %v1444 = vpop.f32.mrf.mxu0
        %v1445 = vadd.f32 %v1308, %v1444
        %1446 = vmatmul.f32.gmra.mxu0 %v474
        %v1447 = vpop.f32.mrf.mxu0
        %v1448 = vadd.f32 %v1311, %v1447
        %1449 = vmatmul.f32.gmra.mxu0 %v481
        %v1450 = vpop.f32.mrf.mxu0
        %v1451 = vadd.f32 %v1314, %v1450
        %1452 = vmatmul.f32.gmra.mxu0 %v488
        %v1453 = vpop.f32.mrf.mxu0
        %v1454 = vadd.f32 %v1317, %v1453
        %1455 = vmatmul.f32.gmra.mxu0 %v495
        %v1456 = vpop.f32.mrf.mxu0
        %v1457 = vadd.f32 %v1320, %v1456
        %1458 = vmatmul.f32.gmra.mxu0 %v502
        %v1459 = vpop.f32.mrf.mxu0
        %v1460 = vadd.f32 %v1323, %v1459
        %1461 = vmatmul.f32.gmra.mxu0 %v509
        %v1462 = vpop.f32.mrf.mxu0
        %v1463 = vadd.f32 %v1326, %v1462
        %1464 = vmatmul.f32.gmra.mxu0 %v516
        %v1465 = vpop.f32.mrf.mxu0
        %v1466 = vadd.f32 %v1329, %v1465
        %1467 = vmatmul.f32.gmra.mxu0 %v523
        %v1468 = vpop.f32.mrf.mxu0
        %v1469 = vadd.f32 %v1332, %v1468
        %1470 = vmatmul.f32.gmra.mxu0 %v530
        %v1471 = vpop.f32.mrf.mxu0
        %v1472 = vadd.f32 %v1335, %v1471
        %1473 = vmatmul.f32.gmra.mxu0 %v537
        %v1474 = vpop.f32.mrf.mxu0
        %v1475 = vadd.f32 %v1338, %v1474
        %1476 = vdwg.mxu0
        %1477 = vmatpush.msra.mxu0 %v650
        %1478 = vmatpush.msra.mxu0 %v649
        %1479 = vmatpush.msra.mxu0 %v648
        %1480 = vmatpush.msra.mxu0 %v647
        %1481 = vmatpush.msra.mxu0 %v646
        %1482 = vmatpush.msra.mxu0 %v645
        %1483 = vmatpush.msra.mxu0 %v644
        %1484 = vmatpush.msra.mxu0 %v643
        %1485 = vmatpush.msra.mxu0 %v642
        %1486 = vmatpush.msra.mxu0 %v641
        %1487 = vmatpush.msra.mxu0 %v640
        %1488 = vmatpush.msra.mxu0 %v639
        %1489 = vmatpush.msra.mxu0 %v638
        %1490 = vmatpush.msra.mxu0 %v637
        %1491 = vmatpush.msra.mxu0 %v636
        %1492 = vmatpush.msra.mxu0 %v635
        %1493 = vmatmul.f32.gmra.mxu0 %v265
        %v1494 = vpop.f32.mrf.mxu0
        %v1495 = vadd.f32 %v1358, %v1494
        %1496 = vmatmul.f32.gmra.mxu0 %v272
        %v1497 = vpop.f32.mrf.mxu0
        %v1498 = vadd.f32 %v1361, %v1497
        %1499 = vmatmul.f32.gmra.mxu0 %v279
        %v1500 = vpop.f32.mrf.mxu0
        %v1501 = vadd.f32 %v1364, %v1500
        %1502 = vmatmul.f32.gmra.mxu0 %v286
        %v1503 = vpop.f32.mrf.mxu0
        %v1504 = vadd.f32 %v1367, %v1503
        %1505 = vmatmul.f32.gmra.mxu0 %v293
        %v1506 = vpop.f32.mrf.mxu0
        %v1507 = vadd.f32 %v1370, %v1506
        %1508 = vmatmul.f32.gmra.mxu0 %v300
        %v1509 = vpop.f32.mrf.mxu0
        %v1510 = vadd.f32 %v1373, %v1509
        %1511 = vmatmul.f32.gmra.mxu0 %v307
        %v1512 = vpop.f32.mrf.mxu0
        %v1513 = vadd.f32 %v1376, %v1512
        %1514 = vmatmul.f32.gmra.mxu0 %v314
        %v1515 = vpop.f32.mrf.mxu0
        %v1516 = vadd.f32 %v1379, %v1515
        %1517 = vmatmul.f32.gmra.mxu0 %v321
        %v1518 = vpop.f32.mrf.mxu0
        %v1519 = vadd.f32 %v1382, %v1518
        %1520 = vmatmul.f32.gmra.mxu0 %v328
        %v1521 = vpop.f32.mrf.mxu0
        %v1522 = vadd.f32 %v1385, %v1521
        %1523 = vmatmul.f32.gmra.mxu0 %v335
        %v1524 = vpop.f32.mrf.mxu0
        %v1525 = vadd.f32 %v1388, %v1524
        %1526 = vmatmul.f32.gmra.mxu0 %v342
        %v1527 = vpop.f32.mrf.mxu0
        %v1528 = vadd.f32 %v1391, %v1527
        %1529 = vmatmul.f32.gmra.mxu0 %v349
        %v1530 = vpop.f32.mrf.mxu0
        %v1531 = vadd.f32 %v1394, %v1530
        %1532 = vmatmul.f32.gmra.mxu0 %v356
        %v1533 = vpop.f32.mrf.mxu0
        %v1534 = vadd.f32 %v1397, %v1533
        %1535 = vmatmul.f32.gmra.mxu0 %v363
        %v1536 = vpop.f32.mrf.mxu0
        %v1537 = vadd.f32 %v1400, %v1536
        %1538 = vmatmul.f32.gmra.mxu0 %v370
        %v1539 = vpop.f32.mrf.mxu0
        %v1540 = vadd.f32 %v1403, %v1539
        %1541 = vmatmul.f32.gmra.mxu0 %v377
        %v1542 = vpop.f32.mrf.mxu0
        %v1543 = vadd.f32 %v1406, %v1542
        %1544 = vmatmul.f32.gmra.mxu0 %v384
        %v1545 = vpop.f32.mrf.mxu0
        %v1546 = vadd.f32 %v1409, %v1545
        %1547 = vmatmul.f32.gmra.mxu0 %v391
        %v1548 = vpop.f32.mrf.mxu0
        %v1549 = vadd.f32 %v1412, %v1548
        %1550 = vmatmul.f32.gmra.mxu0 %v398
        %v1551 = vpop.f32.mrf.mxu0
        %v1552 = vadd.f32 %v1415, %v1551
        %1553 = vmatmul.f32.gmra.mxu0 %v405
        %v1554 = vpop.f32.mrf.mxu0
        %v1555 = vadd.f32 %v1418, %v1554
        %1556 = vmatmul.f32.gmra.mxu0 %v412
        %v1557 = vpop.f32.mrf.mxu0
        %v1558 = vadd.f32 %v1421, %v1557
        %1559 = vmatmul.f32.gmra.mxu0 %v419
        %v1560 = vpop.f32.mrf.mxu0
        %v1561 = vadd.f32 %v1424, %v1560
        %1562 = vmatmul.f32.gmra.mxu0 %v426
        %v1563 = vpop.f32.mrf.mxu0
        %v1564 = vadd.f32 %v1427, %v1563
        %1565 = vmatmul.f32.gmra.mxu0 %v433
        %v1566 = vpop.f32.mrf.mxu0
        %v1567 = vadd.f32 %v1430, %v1566
        %1568 = vmatmul.f32.gmra.mxu0 %v440
        %v1569 = vpop.f32.mrf.mxu0
        %v1570 = vadd.f32 %v1433, %v1569
        %1571 = vmatmul.f32.gmra.mxu0 %v447
        %v1572 = vpop.f32.mrf.mxu0
        %v1573 = vadd.f32 %v1436, %v1572
        %1574 = vmatmul.f32.gmra.mxu0 %v454
        %v1575 = vpop.f32.mrf.mxu0
        %v1576 = vadd.f32 %v1439, %v1575
        %1577 = vmatmul.f32.gmra.mxu0 %v461
        %v1578 = vpop.f32.mrf.mxu0
        %v1579 = vadd.f32 %v1442, %v1578
        %1580 = vmatmul.f32.gmra.mxu0 %v468
        %v1581 = vpop.f32.mrf.mxu0
        %v1582 = vadd.f32 %v1445, %v1581
        %1583 = vmatmul.f32.gmra.mxu0 %v475
        %v1584 = vpop.f32.mrf.mxu0
        %v1585 = vadd.f32 %v1448, %v1584
        %1586 = vmatmul.f32.gmra.mxu0 %v482
        %v1587 = vpop.f32.mrf.mxu0
        %v1588 = vadd.f32 %v1451, %v1587
        %1589 = vmatmul.f32.gmra.mxu0 %v489
        %v1590 = vpop.f32.mrf.mxu0
        %v1591 = vadd.f32 %v1454, %v1590
        %1592 = vmatmul.f32.gmra.mxu0 %v496
        %v1593 = vpop.f32.mrf.mxu0
        %v1594 = vadd.f32 %v1457, %v1593
        %1595 = vmatmul.f32.gmra.mxu0 %v503
        %v1596 = vpop.f32.mrf.mxu0
        %v1597 = vadd.f32 %v1460, %v1596
        %1598 = vmatmul.f32.gmra.mxu0 %v510
        %v1599 = vpop.f32.mrf.mxu0
        %v1600 = vadd.f32 %v1463, %v1599
        %1601 = vmatmul.f32.gmra.mxu0 %v517
        %v1602 = vpop.f32.mrf.mxu0
        %v1603 = vadd.f32 %v1466, %v1602
        %1604 = vmatmul.f32.gmra.mxu0 %v524
        %v1605 = vpop.f32.mrf.mxu0
        %v1606 = vadd.f32 %v1469, %v1605
        %1607 = vmatmul.f32.gmra.mxu0 %v531
        %v1608 = vpop.f32.mrf.mxu0
        %v1609 = vadd.f32 %v1472, %v1608
        %1610 = vmatmul.f32.gmra.mxu0 %v538
        %v1611 = vpop.f32.mrf.mxu0
        %v1612 = vadd.f32 %v1475, %v1611
        %1613 = vdwg.mxu0
        %v1614 = vtanh.pop %v1495
        %v1615 = vtanh.pop %v1498
        %v1616 = vtanh.pop %v1501
        %v1617 = vtanh.pop %v1504
        %v1618 = vtanh.pop %v1507
        %v1619 = vtanh.pop %v1510
        %v1620 = vtanh.pop %v1513
        %v1621 = vtanh.pop %v1516
        %v1622 = vtanh.pop %v1519
        %v1623 = vtanh.pop %v1522
        %v1624 = vtanh.pop %v1525
        %v1625 = vtanh.pop %v1528
        %v1626 = vtanh.pop %v1531
        %v1627 = vtanh.pop %v1534
        %v1628 = vtanh.pop %v1537
        %v1629 = vtanh.pop %v1540
        %v1630 = vtanh.pop %v1543
        %v1631 = vtanh.pop %v1546
        %v1632 = vtanh.pop %v1549
        %v1633 = vtanh.pop %v1552
        %v1634 = vtanh.pop %v1555
        %v1635 = vtanh.pop %v1558
        %v1636 = vtanh.pop %v1561
        %v1637 = vtanh.pop %v1564
        %v1638 = vtanh.pop %v1567
        %v1639 = vtanh.pop %v1570
        %v1640 = vtanh.pop %v1573
        %v1641 = vtanh.pop %v1576
        %v1642 = vtanh.pop %v1579
        %v1643 = vtanh.pop %v1582
        %v1644 = vtanh.pop %v1585
        %v1645 = vtanh.pop %v1588
        %v1646 = vtanh.pop %v1591
        %v1647 = vtanh.pop %v1594
        %v1648 = vtanh.pop %v1597
        %v1649 = vtanh.pop %v1600
        %v1650 = vtanh.pop %v1603
        %v1651 = vtanh.pop %v1606
        %v1652 = vtanh.pop %v1609
        %v1653 = vtanh.pop %v1612
        %s1654 = scalar_lea.vmem %s245, %s253
        %1655 = vst [vmem:[%s1654] sm:$0xff] %v1614
        %1656 = vst [vmem:[%s1654 + $0x8] sm:$0xff] %v1615
        %1657 = vst [vmem:[%s1654 + $0x10] sm:$0xff] %v1616
        %1658 = vst [vmem:[%s1654 + $0x18] sm:$0xff] %v1617
        %1659 = vst [vmem:[%s1654 + $0x20] sm:$0xff] %v1618
        %1660 = vst [vmem:[%s1654 + $0x28] sm:$0xff] %v1619
        %1661 = vst [vmem:[%s1654 + $0x30] sm:$0xff] %v1620
        %1662 = vst [vmem:[%s1654 + $0x38] sm:$0xff] %v1621
        %1663 = vst [vmem:[%s1654 + $0x40] sm:$0xff] %v1622
        %1664 = vst [vmem:[%s1654 + $0x48] sm:$0xff] %v1623
        %1665 = vst [vmem:[%s1654 + $0x50] sm:$0xff] %v1624
        %1666 = vst [vmem:[%s1654 + $0x58] sm:$0xff] %v1625
        %1667 = vst [vmem:[%s1654 + $0x60] sm:$0xff] %v1626
        %1668 = vst [vmem:[%s1654 + $0x68] sm:$0xff] %v1627
        %1669 = vst [vmem:[%s1654 + $0x70] sm:$0xff] %v1628
        %1670 = vst [vmem:[%s1654 + $0x78] sm:$0xff] %v1629
        %1671 = vst [vmem:[%s1654 + $0x80] sm:$0xff] %v1630
        %1672 = vst [vmem:[%s1654 + $0x88] sm:$0xff] %v1631
        %1673 = vst [vmem:[%s1654 + $0x90] sm:$0xff] %v1632
        %1674 = vst [vmem:[%s1654 + $0x98] sm:$0xff] %v1633
        %1675 = vst [vmem:[%s1654 + $0xa0] sm:$0xff] %v1634
        %1676 = vst [vmem:[%s1654 + $0xa8] sm:$0xff] %v1635
        %1677 = vst [vmem:[%s1654 + $0xb0] sm:$0xff] %v1636
        %1678 = vst [vmem:[%s1654 + $0xb8] sm:$0xff] %v1637
        %1679 = vst [vmem:[%s1654 + $0xc0] sm:$0xff] %v1638
        %1680 = vst [vmem:[%s1654 + $0xc8] sm:$0xff] %v1639
        %1681 = vst [vmem:[%s1654 + $0xd0] sm:$0xff] %v1640
        %1682 = vst [vmem:[%s1654 + $0xd8] sm:$0xff] %v1641
        %1683 = vst [vmem:[%s1654 + $0xe0] sm:$0xff] %v1642
        %1684 = vst [vmem:[%s1654 + $0xe8] sm:$0xff] %v1643
        %1685 = vst [vmem:[%s1654 + $0xf0] sm:$0xff] %v1644
        %1686 = vst [vmem:[%s1654 + $0xf8] sm:$0xff] %v1645
        %1687 = vst [vmem:[%s1654 + $0x100] sm:$0xff] %v1646
        %1688 = vst [vmem:[%s1654 + $0x108] sm:$0xff] %v1647
        %1689 = vst [vmem:[%s1654 + $0x110] sm:$0xff] %v1648
        %1690 = vst [vmem:[%s1654 + $0x118] sm:$0xff] %v1649
        %1691 = vst [vmem:[%s1654 + $0x120] sm:$0xff] %v1650
        %1692 = vst [vmem:[%s1654 + $0x128] sm:$0xff] %v1651
        %1693 = vst [vmem:[%s1654 + $0x130] sm:$0xff] %v1652
        %1694 = vst [vmem:[%s1654 + $0x138] sm:$0xff] %v1653
      $region37: #{model_forward.7} parent=31 // loop_footer
        %s252 = sadd.s32 1, %s248
      $region38: #{model_forward.7} parent=31 // loop_footer_branch
        %247 = sbr.rel target = $region34
      $region39: #{model_forward.7} parent=31 // loop_exit
        _
      %s1695 = smul.u32 160, %s19
      %p1696 = scmp.lt.s32.totalorder %s18, 1
      %s1697 = scalar_select %p1696, %s18, 1
      %p1698 = scmp.lt.s32.totalorder %s1695, 319
      %s1699 = scalar_select %p1698, %s1695, 319
      %s1700 = smul.addr %s1697, 320
      %s1701 = sadd.s32 %s1699, %s1700
      %s1702 = smul.addr %s1701, 8
      %s1703 = scalar_lea.vmem %s3, %s1702
      // Predicated region
      $region40: #{model_forward.7} parent=31 // pred_check
        %p1704 = pneg %p126
      $region41: #{model_forward.7} parent=31 // pred_check_branch
        %1706 = sbr.rel (%p1704) target = $region43
      $region42: #{model_forward.7} parent=31 // pred_region
        %s1707 = smul.u32 160, %s19
      $region43: #{model_forward.7} parent=31 // pred_fallthru
        _
    $region32: #{model_forward.7} parent=5 // pred_fallthru
      _
    %p1708 = scmp.le.s32.totalorder 2, %s9
    // Predicated region
    $region44: #{model_forward.7} parent=5 // pred_check
      %p1709 = pneg %p1708
    $region45: #{model_forward.7} parent=5 // pred_check_branch
      %1711 = sbr.rel (%p1709) target = $region47
    $region46: #{model_forward.7} parent=5 // pred_region
      %s1712 = ssub.s32 %s9, 2
      // Predicated region
      $region48: #{model_forward.7} parent=46 // pred_check
        %p1713 = pneg %p132
      $region49: #{model_forward.7} parent=46 // pred_check_branch
        %1715 = sbr.rel (%p1713) target = $region51
      $region50: #{model_forward.7} parent=46 // pred_region
        %s1716 = smul.u32 160, %s21
        %p1717 = scmp.lt.s32.totalorder %s20, 1
        %s1718 = scalar_select %p1717, %s20, 1
        %p1719 = scmp.lt.s32.totalorder %s1716, 319
        %s1720 = scalar_select %p1719, %s1716, 319
        %s1721 = smul.addr %s1718, 320
        %s1722 = sadd.s32 %s1720, %s1721
        %s1723 = smul.addr %s1722, 8
        %s1724 = scalar_lea.vmem %s3, %s1723
      $region51: #{model_forward.7} parent=46 // pred_fallthru
        _
    $region47: #{model_forward.7} parent=5 // pred_fallthru
      _
  $region6: #{model_forward.7} parent=0 // loop_footer
    %s13 = sadd.s32 1, %s9
  $region7: #{model_forward.7} parent=0 // loop_footer_branch
    %8 = sbr.rel target = $region3
  $region8: #{model_forward.7} parent=0 // loop_exit
    _

// kernel: model_forward.8
$region0: #{model_forward.8}
  #allocation0 [shape = 'u32[]', space=smem, size = 0x4, offset = 0x4, fixed_abs, tag = 'smem constant byte address 0x4 - core index']
  #allocation1 [shape = 'u32[72,128]{1,0:T(1,128)}', space=vmem, size = 0x9000, scoped, tag = 'internal scratch']
  %s0 = inlined_call_operand.vmem [shape: f32[2,8,2560], index: 0, kind: input, shape index: {}]
  %s1 = inlined_call_operand.vmem [shape: f32[2,2560,128], index: 1, kind: input, shape index: {}]
  %s2 = inlined_call_operand.vmem [shape: f32[2,1,128], index: 2, kind: input, shape index: {}]
  %s3 = inlined_call_operand.vmem [shape: f32[2,8,128], index: 3, kind: output, shape index: {}]
  %s4 = sld [smem:[#allocation0]]
  $region45: #{model_forward.8} parent=0
    _
  %s6 = ssub.s32 1, %s4
  %s7 = scalar_select 0, %s6, %s4
  loop: start=0, step=1, limit=4
  $region2: #{model_forward.8} parent=0 // loop_pre_header
    _
  $region3: #{model_forward.8} parent=0 // loop_header
    %s9 = sphi 0, %s13
    %p10 = scmp.ge.s32.totalorder %s9, 4
    %s16 = sphi 0, %s28
    %s17 = sphi 0, %s24
    %s18 = sphi 0, %s16
    %s19 = sphi 0, %s17
    %s20 = sphi 0, %s18
    %s21 = sphi 0, %s19
    %s33 = sphi 0, %s35
    %s36 = sphi 0, %s33
    %s37 = sphi 0, %s36
    %s53 = sphi 0, %s37
    %s59 = sphi 0, %s61
    %s62 = sphi 0, %s59
    %s63 = sphi 0, %s62
    %s79 = sphi 0, %s63
    %s85 = sphi 0, %s87
    %s88 = sphi 0, %s85
    %s89 = sphi 0, %s88
    %s105 = sphi 0, %s89
    %s113 = sphi 0, %s115
    %s116 = sphi 0, %s113
    %s117 = sphi 0, %s116
    %s133 = sphi 0, %s117
  $region4: #{model_forward.8} parent=0 // loop_header_branch
    %12 = sbr.rel (%p10) target = $region8
  $region5: #{model_forward.8} parent=0 // loop_body
    %s14 = ssub.s32 %s9, 1
    %s15 = ssub.s32 %s9, 2
    %s22 = sadd.s32 1, %s17
    %p23 = scmp.ge.s32.totalorder %s22, 1
    %s24 = scalar_select %p23, 0, %s22
    %s25 = sadd.s32 1, %s16
    %s26 = scalar_select %p23, %s25, %s16
    %p27 = scmp.ge.s32.totalorder %s26, 2
    %s28 = scalar_select %p27, 0, %s26
    %s29 = ssub.s32 %s16, %s28
    %s30 = ssub.s32 %s17, %s24
    %s31 = sor.u32 %s29, %s30
    %p32 = scmp.eq.s32.totalorder %s31, 0
    %s34 = sadd.s32 %s33, 1
    %s35 = scalar_select %p32, %s33, %s34
    %p38 = pneg %p32
    %p39 = scmp.eq.s32.totalorder %s9, 1
    %p40 = por %p38, %p39
    %p41 = scmp.ne.s32.totalorder %s33, %s36
    %p42 = scmp.eq.s32.totalorder %s9, 0
    %p43 = por %p41, %p42
    %p44 = scmp.ne.s32.totalorder %s33, %s36
    %p45 = scmp.eq.s32.totalorder %s14, 1
    %p46 = por %p44, %p45
    %p47 = scmp.ne.s32.totalorder %s36, %s37
    %p48 = scmp.eq.s32.totalorder %s14, 0
    %p49 = por %p47, %p48
    %p50 = scmp.ne.s32.totalorder %s36, %s37
    %p51 = scmp.eq.s32.totalorder %s15, 1
    %p52 = por %p50, %p51
    %p54 = scmp.ne.s32.totalorder %s37, %s53
    %p55 = scmp.eq.s32.totalorder %s15, 0
    %p56 = por %p54, %p55
    %s57 = ssub.s32 %s16, %s28
    %p58 = scmp.eq.s32.totalorder %s57, 0
    %s60 = sadd.s32 %s59, 1
    %s61 = scalar_select %p58, %s59, %s60
    %p64 = pneg %p58
    %p65 = scmp.eq.s32.totalorder %s9, 1
    %p66 = por %p64, %p65
    %p67 = scmp.ne.s32.totalorder %s59, %s62
    %p68 = scmp.eq.s32.totalorder %s9, 0
    %p69 = por %p67, %p68
    %p70 = scmp.ne.s32.totalorder %s59, %s62
    %p71 = scmp.eq.s32.totalorder %s14, 1
    %p72 = por %p70, %p71
    %p73 = scmp.ne.s32.totalorder %s62, %s63
    %p74 = scmp.eq.s32.totalorder %s14, 0
    %p75 = por %p73, %p74
    %p76 = scmp.ne.s32.totalorder %s62, %s63
    %p77 = scmp.eq.s32.totalorder %s15, 1
    %p78 = por %p76, %p77
    %p80 = scmp.ne.s32.totalorder %s63, %s79
    %p81 = scmp.eq.s32.totalorder %s15, 0
    %p82 = por %p80, %p81
    %s83 = ssub.s32 %s16, %s28
    %p84 = scmp.eq.s32.totalorder %s83, 0
    %s86 = sadd.s32 %s85, 1
    %s87 = scalar_select %p84, %s85, %s86
    %p90 = pneg %p84
    %p91 = scmp.eq.s32.totalorder %s9, 1
    %p92 = por %p90, %p91
    %p93 = scmp.ne.s32.totalorder %s85, %s88
    %p94 = scmp.eq.s32.totalorder %s9, 0
    %p95 = por %p93, %p94
    %p96 = scmp.ne.s32.totalorder %s85, %s88
    %p97 = scmp.eq.s32.totalorder %s14, 1
    %p98 = por %p96, %p97
    %p99 = scmp.ne.s32.totalorder %s88, %s89
    %p100 = scmp.eq.s32.totalorder %s14, 0
    %p101 = por %p99, %p100
    %p102 = scmp.ne.s32.totalorder %s88, %s89
    %p103 = scmp.eq.s32.totalorder %s15, 1
    %p104 = por %p102, %p103
    %p106 = scmp.ne.s32.totalorder %s89, %s105
    %p107 = scmp.eq.s32.totalorder %s15, 0
    %p108 = por %p106, %p107
    %s109 = ssub.s32 %s16, %s28
    %s110 = ssub.s32 %s17, %s24
    %s111 = sor.u32 %s109, %s110
    %p112 = scmp.eq.s32.totalorder %s111, 0
    %s114 = sadd.s32 %s113, 1
    %s115 = scalar_select %p112, %s113, %s114
    %p118 = pneg %p112
    %p119 = scmp.eq.s32.totalorder %s9, 1
    %p120 = por %p118, %p119
    %p121 = scmp.ne.s32.totalorder %s113, %s116
    %p122 = scmp.eq.s32.totalorder %s9, 0
    %p123 = por %p121, %p122
    %p124 = scmp.ne.s32.totalorder %s113, %s116
    %p125 = scmp.eq.s32.totalorder %s14, 1
    %p126 = por %p124, %p125
    %p127 = scmp.ne.s32.totalorder %s116, %s117
    %p128 = scmp.eq.s32.totalorder %s14, 0
    %p129 = por %p127, %p128
    %p130 = scmp.ne.s32.totalorder %s116, %s117
    %p131 = scmp.eq.s32.totalorder %s15, 1
    %p132 = por %p130, %p131
    %p134 = scmp.ne.s32.totalorder %s117, %s133
    %p135 = scmp.eq.s32.totalorder %s15, 0
    %p136 = por %p134, %p135
    %p137 = scmp.le.s32.totalorder 1, %s9
    %p138 = scmp.lt.s32.totalorder %s9, 3
    %p139 = pnand %p137, %p138
    %p140 = pneg %p139
    // Predicated region
    $region9: #{model_forward.8} parent=5 // pred_check
      _
    $region10: #{model_forward.8} parent=5 // pred_check_branch
      %142 = sbr.rel (%p139) target = $region12
    $region11: #{model_forward.8} parent=5 // pred_region
      %s143 = ssub.s32 %s9, 1
    $region12: #{model_forward.8} parent=5 // pred_fallthru
      _
    %p144 = scmp.lt.s32.totalorder %s9, 2
    // Predicated region
    $region13: #{model_forward.8} parent=5 // pred_check
      %p145 = pneg %p144
    $region14: #{model_forward.8} parent=5 // pred_check_branch
      %147 = sbr.rel (%p145) target = $region16
    $region15: #{model_forward.8} parent=5 // pred_region
      // Predicated region
      $region17: #{model_forward.8} parent=15 // pred_check
        %p148 = pneg %p43
      $region18: #{model_forward.8} parent=15 // pred_check_branch
        %150 = sbr.rel (%p148) target = $region20
      $region19: #{model_forward.8} parent=15 // pred_region
        %p151 = scmp.lt.s32.totalorder %s16, 1
        %s152 = scalar_select %p151, %s16, 1
        %p153 = scmp.lt.s32.totalorder %s17, 0
        %s154 = scalar_select %p153, %s17, 0
        %s155 = smul.addr %s154, 20
        %s156 = smul.addr %s152, 20
        %s157 = sadd.s32 %s155, %s156
        %s158 = smul.addr %s157, 8
        %s159 = scalar_lea.vmem %s0, %s158
      $region20: #{model_forward.8} parent=15 // pred_fallthru
        _
      // Predicated region
      $region21: #{model_forward.8} parent=15 // pred_check
        %p160 = pneg %p69
      $region22: #{model_forward.8} parent=15 // pred_check_branch
        %162 = sbr.rel (%p160) target = $region24
      $region23: #{model_forward.8} parent=15 // pred_region
        %p163 = scmp.lt.s32.totalorder %s16, 1
        %s164 = scalar_select %p163, %s16, 1
        %s165 = smul.addr %s164, 320
        %s166 = smul.addr %s165, 8
        %s167 = scalar_lea.vmem %s1, %s166
      $region24: #{model_forward.8} parent=15 // pred_fallthru
        _
      // Predicated region
      $region25: #{model_forward.8} parent=15 // pred_check
        %p168 = pneg %p95
      $region26: #{model_forward.8} parent=15 // pred_check_branch
        %170 = sbr.rel (%p168) target = $region28
      $region27: #{model_forward.8} parent=15 // pred_region
        %p171 = scmp.lt.s32.totalorder %s16, 1
        %s172 = scalar_select %p171, %s16, 1
        %s173 = scalar_lea.vmem %s2, %s172
      $region28: #{model_forward.8} parent=15 // pred_fallthru
        _
    $region16: #{model_forward.8} parent=5 // pred_fallthru
      _
    %p174 = scmp.le.s32.totalorder 1, %s9
    %p175 = scmp.lt.s32.totalorder %s9, 3
    %p176 = pnand %p174, %p175
    %p177 = pneg %p176
    // Predicated region
    $region29: #{model_forward.8} parent=5 // pred_check
      _
    $region30: #{model_forward.8} parent=5 // pred_check_branch
      %179 = sbr.rel (%p176) target = $region32
    $region31: #{model_forward.8} parent=5 // pred_region
      %s180 = ssub.s32 %s9, 1
      %p181 = scmp.lt.s32.totalorder %s18, 1
      %s182 = scalar_select %p181, %s18, 1
      %p183 = scmp.lt.s32.totalorder %s19, 0
      %s184 = scalar_select %p183, %s19, 0
      %s185 = smul.addr %s184, 20
      %s186 = smul.addr %s182, 20
      %s187 = sadd.s32 %s185, %s186
      %s188 = smul.addr %s187, 8
      %s189 = scalar_lea.vmem %s0, %s188
      %p190 = pneg %p49
      %p191 = pneg %p46
      %p192 = scmp.lt.s32.totalorder %s18, 1
      %s193 = scalar_select %p192, %s18, 1
      %s194 = smul.addr %s193, 320
      %s195 = smul.addr %s194, 8
      %s196 = scalar_lea.vmem %s1, %s195
      %p197 = pneg %p75
      %p198 = pneg %p72
      %p199 = scmp.lt.s32.totalorder %s18, 1
      %s200 = scalar_select %p199, %s18, 1
      %s201 = scalar_lea.vmem %s2, %s200
      %p202 = pneg %p101
      %p203 = pneg %p98
      %p204 = pneg %p129
      %p205 = pneg %p126
      %p206 = scmp.lt.s32.totalorder %s18, 1
      %s207 = scalar_select %p206, %s18, 1
      %p208 = scmp.lt.s32.totalorder %s19, 0
      %s209 = scalar_select %p208, %s19, 0
      %s210 = sadd.s32 %s209, %s207
      %s211 = smul.addr %s210, 8
      %s212 = scalar_lea.vmem %s3, %s211
      %p213 = scmp.lt.s32.totalorder %s18, 1
      %s214 = scalar_select %p213, %s18, 1
      %p215 = scmp.lt.s32.totalorder %s19, 0
      %s216 = scalar_select %p215, %s19, 0
      %s217 = smul.addr %s216, 20
      %s218 = smul.addr %s214, 20
      %s219 = sadd.s32 %s217, %s218
      %s220 = smul.addr %s219, 8
      %s221 = scalar_lea.vmem %s0, %s220
      %p222 = scmp.lt.s32.totalorder %s18, 1
      %s223 = scalar_select %p222, %s18, 1
      %s224 = smul.addr %s223, 320
      %s225 = smul.addr %s224, 8
      %s226 = scalar_lea.vmem %s1, %s225
      %p227 = scmp.lt.s32.totalorder %s18, 1
      %s228 = scalar_select %p227, %s18, 1
      %s229 = scalar_lea.vmem %s2, %s228
      %p230 = scmp.lt.s32.totalorder %s18, 1
      %s231 = scalar_select %p230, %s18, 1
      %p232 = scmp.lt.s32.totalorder %s19, 0
      %s233 = scalar_select %p232, %s19, 0
      %s234 = sadd.s32 %s233, %s231
      %s235 = smul.addr %s234, 8
      %s236 = scalar_lea.vmem %s3, %s235
      %v237 = vld [vmem:[%s221] sm:$0xff]
      %v238 = vld [vmem:[%s221 + $0x8] sm:$0xff]
      %v239 = vld [vmem:[%s221 + $0x10] sm:$0xff]
      %v240 = vld [vmem:[%s221 + $0x18] sm:$0xff]
      %v241 = vld [vmem:[%s221 + $0x20] sm:$0xff]
      %v242 = vld [vmem:[%s221 + $0x28] sm:$0xff]
      %v243 = vld [vmem:[%s221 + $0x30] sm:$0xff]
      %v244 = vld [vmem:[%s221 + $0x38] sm:$0xff]
      %v245 = vld [vmem:[%s221 + $0x40] sm:$0xff]
      %v246 = vld [vmem:[%s221 + $0x48] sm:$0xff]
      %v247 = vld [vmem:[%s221 + $0x50] sm:$0xff]
      %v248 = vld [vmem:[%s221 + $0x58] sm:$0xff]
      %v249 = vld [vmem:[%s221 + $0x60] sm:$0xff]
      %v250 = vld [vmem:[%s221 + $0x68] sm:$0xff]
      %v251 = vld [vmem:[%s221 + $0x70] sm:$0xff]
      %v252 = vld [vmem:[%s221 + $0x78] sm:$0xff]
      %v253 = vld [vmem:[%s221 + $0x80] sm:$0xff]
      %v254 = vld [vmem:[%s221 + $0x88] sm:$0xff]
      %v255 = vld [vmem:[%s221 + $0x90] sm:$0xff]
      %v256 = vld [vmem:[%s221 + $0x98] sm:$0xff]
      %v257 = vld [vmem:[%s226] sm:$0xff]
      %v258 = vld [vmem:[%s226 + $0x8] sm:$0xff]
      %v259 = vld [vmem:[%s226 + $0x10] sm:$0xff]
      %v260 = vld [vmem:[%s226 + $0x18] sm:$0xff]
      %v261 = vld [vmem:[%s226 + $0x20] sm:$0xff]
      %v262 = vld [vmem:[%s226 + $0x28] sm:$0xff]
      %v263 = vld [vmem:[%s226 + $0x30] sm:$0xff]
      %v264 = vld [vmem:[%s226 + $0x38] sm:$0xff]
      %v265 = vld [vmem:[%s226 + $0x40] sm:$0xff]
      %v266 = vld [vmem:[%s226 + $0x48] sm:$0xff]
      %v267 = vld [vmem:[%s226 + $0x50] sm:$0xff]
      %v268 = vld [vmem:[%s226 + $0x58] sm:$0xff]
      %v269 = vld [vmem:[%s226 + $0x60] sm:$0xff]
      %v270 = vld [vmem:[%s226 + $0x68] sm:$0xff]
      %v271 = vld [vmem:[%s226 + $0x70] sm:$0xff]
      %v272 = vld [vmem:[%s226 + $0x78] sm:$0xff]
      %v273 = vld [vmem:[%s226 + $0x80] sm:$0xff]
      %v274 = vld [vmem:[%s226 + $0x88] sm:$0xff]
      %v275 = vld [vmem:[%s226 + $0x90] sm:$0xff]
      %v276 = vld [vmem:[%s226 + $0x98] sm:$0xff]
      %v277 = vld [vmem:[%s226 + $0xa0] sm:$0xff]
      %v278 = vld [vmem:[%s226 + $0xa8] sm:$0xff]
      %v279 = vld [vmem:[%s226 + $0xb0] sm:$0xff]
      %v280 = vld [vmem:[%s226 + $0xb8] sm:$0xff]
      %v281 = vld [vmem:[%s226 + $0xc0] sm:$0xff]
      %v282 = vld [vmem:[%s226 + $0xc8] sm:$0xff]
      %v283 = vld [vmem:[%s226 + $0xd0] sm:$0xff]
      %v284 = vld [vmem:[%s226 + $0xd8] sm:$0xff]
      %v285 = vld [vmem:[%s226 + $0xe0] sm:$0xff]
      %v286 = vld [vmem:[%s226 + $0xe8] sm:$0xff]
      %v287 = vld [vmem:[%s226 + $0xf0] sm:$0xff]
      %v288 = vld [vmem:[%s226 + $0xf8] sm:$0xff]
      %v289 = vld [vmem:[%s226 + $0x100] sm:$0xff]
      %v290 = vld [vmem:[%s226 + $0x108] sm:$0xff]
      %v291 = vld [vmem:[%s226 + $0x110] sm:$0xff]
      %v292 = vld [vmem:[%s226 + $0x118] sm:$0xff]
      %v293 = vld [vmem:[%s226 + $0x120] sm:$0xff]
      %v294 = vld [vmem:[%s226 + $0x128] sm:$0xff]
      %v295 = vld [vmem:[%s226 + $0x130] sm:$0xff]
      %v296 = vld [vmem:[%s226 + $0x138] sm:$0xff]
      %v297 = vld [vmem:[%s226 + $0x140] sm:$0xff]
      %v298 = vld [vmem:[%s226 + $0x148] sm:$0xff]
      %v299 = vld [vmem:[%s226 + $0x150] sm:$0xff]
      %v300 = vld [vmem:[%s226 + $0x158] sm:$0xff]
      %v301 = vld [vmem:[%s226 + $0x160] sm:$0xff]
      %v302 = vld [vmem:[%s226 + $0x168] sm:$0xff]
      %v303 = vld [vmem:[%s226 + $0x170] sm:$0xff]
      %v304 = vld [vmem:[%s226 + $0x178] sm:$0xff]
      %v305 = vld [vmem:[%s226 + $0x180] sm:$0xff]
      %v306 = vld [vmem:[%s226 + $0x188] sm:$0xff]
      %v307 = vld [vmem:[%s226 + $0x190] sm:$0xff]
      %v308 = vld [vmem:[%s226 + $0x198] sm:$0xff]
      %v309 = vld [vmem:[%s226 + $0x1a0] sm:$0xff]
      %v310 = vld [vmem:[%s226 + $0x1a8] sm:$0xff]
      %v311 = vld [vmem:[%s226 + $0x1b0] sm:$0xff]
      %v312 = vld [vmem:[%s226 + $0x1b8] sm:$0xff]
      %v313 = vld [vmem:[%s226 + $0x1c0] sm:$0xff]
      %v314 = vld [vmem:[%s226 + $0x1c8] sm:$0xff]
      %v315 = vld [vmem:[%s226 + $0x1d0] sm:$0xff]
      %v316 = vld [vmem:[%s226 + $0x1d8] sm:$0xff]
      %v317 = vld [vmem:[%s226 + $0x1e0] sm:$0xff]
      %v318 = vld [vmem:[%s226 + $0x1e8] sm:$0xff]
      %v319 = vld [vmem:[%s226 + $0x1f0] sm:$0xff]
      %v320 = vld [vmem:[%s226 + $0x1f8] sm:$0xff]
      %v321 = vld [vmem:[%s226 + $0x200] sm:$0xff]
      %v322 = vld [vmem:[%s226 + $0x208] sm:$0xff]
      %v323 = vld [vmem:[%s226 + $0x210] sm:$0xff]
      %v324 = vld [vmem:[%s226 + $0x218] sm:$0xff]
      %v325 = vld [vmem:[%s226 + $0x220] sm:$0xff]
      %v326 = vld [vmem:[%s226 + $0x228] sm:$0xff]
      %v327 = vld [vmem:[%s226 + $0x230] sm:$0xff]
      %v328 = vld [vmem:[%s226 + $0x238] sm:$0xff]
      %v329 = vld [vmem:[%s226 + $0x240] sm:$0xff]
      %v330 = vld [vmem:[%s226 + $0x248] sm:$0xff]
      %v331 = vld [vmem:[%s226 + $0x250] sm:$0xff]
      %v332 = vld [vmem:[%s226 + $0x258] sm:$0xff]
      %v333 = vld [vmem:[%s226 + $0x260] sm:$0xff]
      %v334 = vld [vmem:[%s226 + $0x268] sm:$0xff]
      %v335 = vld [vmem:[%s226 + $0x270] sm:$0xff]
      %v336 = vld [vmem:[%s226 + $0x278] sm:$0xff]
      %v337 = vld [vmem:[%s226 + $0x280] sm:$0xff]
      %v338 = vld [vmem:[%s226 + $0x288] sm:$0xff]
      %v339 = vld [vmem:[%s226 + $0x290] sm:$0xff]
      %v340 = vld [vmem:[%s226 + $0x298] sm:$0xff]
      %v341 = vld [vmem:[%s226 + $0x2a0] sm:$0xff]
      %v342 = vld [vmem:[%s226 + $0x2a8] sm:$0xff]
      %v343 = vld [vmem:[%s226 + $0x2b0] sm:$0xff]
      %v344 = vld [vmem:[%s226 + $0x2b8] sm:$0xff]
      %v345 = vld [vmem:[%s226 + $0x2c0] sm:$0xff]
      %v346 = vld [vmem:[%s226 + $0x2c8] sm:$0xff]
      %v347 = vld [vmem:[%s226 + $0x2d0] sm:$0xff]
      %v348 = vld [vmem:[%s226 + $0x2d8] sm:$0xff]
      %v349 = vld [vmem:[%s226 + $0x2e0] sm:$0xff]
      %v350 = vld [vmem:[%s226 + $0x2e8] sm:$0xff]
      %v351 = vld [vmem:[%s226 + $0x2f0] sm:$0xff]
      %v352 = vld [vmem:[%s226 + $0x2f8] sm:$0xff]
      %v353 = vld [vmem:[%s226 + $0x300] sm:$0xff]
      %v354 = vld [vmem:[%s226 + $0x308] sm:$0xff]
      %v355 = vld [vmem:[%s226 + $0x310] sm:$0xff]
      %v356 = vld [vmem:[%s226 + $0x318] sm:$0xff]
      %v357 = vld [vmem:[%s226 + $0x320] sm:$0xff]
      %v358 = vld [vmem:[%s226 + $0x328] sm:$0xff]
      %v359 = vld [vmem:[%s226 + $0x330] sm:$0xff]
      %v360 = vld [vmem:[%s226 + $0x338] sm:$0xff]
      %v361 = vld [vmem:[%s226 + $0x340] sm:$0xff]
      %v362 = vld [vmem:[%s226 + $0x348] sm:$0xff]
      %v363 = vld [vmem:[%s226 + $0x350] sm:$0xff]
      %v364 = vld [vmem:[%s226 + $0x358] sm:$0xff]
      %v365 = vld [vmem:[%s226 + $0x360] sm:$0xff]
      %v366 = vld [vmem:[%s226 + $0x368] sm:$0xff]
      %v367 = vld [vmem:[%s226 + $0x370] sm:$0xff]
      %v368 = vld [vmem:[%s226 + $0x378] sm:$0xff]
      %v369 = vld [vmem:[%s226 + $0x380] sm:$0xff]
      %v370 = vld [vmem:[%s226 + $0x388] sm:$0xff]
      %v371 = vld [vmem:[%s226 + $0x390] sm:$0xff]
      %v372 = vld [vmem:[%s226 + $0x398] sm:$0xff]
      %v373 = vld [vmem:[%s226 + $0x3a0] sm:$0xff]
      %v374 = vld [vmem:[%s226 + $0x3a8] sm:$0xff]
      %v375 = vld [vmem:[%s226 + $0x3b0] sm:$0xff]
      %v376 = vld [vmem:[%s226 + $0x3b8] sm:$0xff]
      %v377 = vld [vmem:[%s226 + $0x3c0] sm:$0xff]
      %v378 = vld [vmem:[%s226 + $0x3c8] sm:$0xff]
      %v379 = vld [vmem:[%s226 + $0x3d0] sm:$0xff]
      %v380 = vld [vmem:[%s226 + $0x3d8] sm:$0xff]
      %v381 = vld [vmem:[%s226 + $0x3e0] sm:$0xff]
      %v382 = vld [vmem:[%s226 + $0x3e8] sm:$0xff]
      %v383 = vld [vmem:[%s226 + $0x3f0] sm:$0xff]
      %v384 = vld [vmem:[%s226 + $0x3f8] sm:$0xff]
      %v385 = vld [vmem:[%s226 + $0x400] sm:$0xff]
      %v386 = vld [vmem:[%s226 + $0x408] sm:$0xff]
      %v387 = vld [vmem:[%s226 + $0x410] sm:$0xff]
      %v388 = vld [vmem:[%s226 + $0x418] sm:$0xff]
      %v389 = vld [vmem:[%s226 + $0x420] sm:$0xff]
      %v390 = vld [vmem:[%s226 + $0x428] sm:$0xff]
      %v391 = vld [vmem:[%s226 + $0x430] sm:$0xff]
      %v392 = vld [vmem:[%s226 + $0x438] sm:$0xff]
      %v393 = vld [vmem:[%s226 + $0x440] sm:$0xff]
      %v394 = vld [vmem:[%s226 + $0x448] sm:$0xff]
      %v395 = vld [vmem:[%s226 + $0x450] sm:$0xff]
      %v396 = vld [vmem:[%s226 + $0x458] sm:$0xff]
      %v397 = vld [vmem:[%s226 + $0x460] sm:$0xff]
      %v398 = vld [vmem:[%s226 + $0x468] sm:$0xff]
      %v399 = vld [vmem:[%s226 + $0x470] sm:$0xff]
      %v400 = vld [vmem:[%s226 + $0x478] sm:$0xff]
      %v401 = vld [vmem:[%s226 + $0x480] sm:$0xff]
      %v402 = vld [vmem:[%s226 + $0x488] sm:$0xff]
      %v403 = vld [vmem:[%s226 + $0x490] sm:$0xff]
      %v404 = vld [vmem:[%s226 + $0x498] sm:$0xff]
      %v405 = vld [vmem:[%s226 + $0x4a0] sm:$0xff]
      %v406 = vld [vmem:[%s226 + $0x4a8] sm:$0xff]
      %v407 = vld [vmem:[%s226 + $0x4b0] sm:$0xff]
      %v408 = vld [vmem:[%s226 + $0x4b8] sm:$0xff]
      %v409 = vld [vmem:[%s226 + $0x4c0] sm:$0xff]
      %v410 = vld [vmem:[%s226 + $0x4c8] sm:$0xff]
      %v411 = vld [vmem:[%s226 + $0x4d0] sm:$0xff]
      %v412 = vld [vmem:[%s226 + $0x4d8] sm:$0xff]
      %v413 = vld [vmem:[%s226 + $0x4e0] sm:$0xff]
      %v414 = vld [vmem:[%s226 + $0x4e8] sm:$0xff]
      %v415 = vld [vmem:[%s226 + $0x4f0] sm:$0xff]
      %v416 = vld [vmem:[%s226 + $0x4f8] sm:$0xff]
      %v417 = vld [vmem:[%s226 + $0x500] sm:$0xff]
      %v418 = vld [vmem:[%s226 + $0x508] sm:$0xff]
      %v419 = vld [vmem:[%s226 + $0x510] sm:$0xff]
      %v420 = vld [vmem:[%s226 + $0x518] sm:$0xff]
      %v421 = vld [vmem:[%s226 + $0x520] sm:$0xff]
      %v422 = vld [vmem:[%s226 + $0x528] sm:$0xff]
      %v423 = vld [vmem:[%s226 + $0x530] sm:$0xff]
      %v424 = vld [vmem:[%s226 + $0x538] sm:$0xff]
      %v425 = vld [vmem:[%s226 + $0x540] sm:$0xff]
      %v426 = vld [vmem:[%s226 + $0x548] sm:$0xff]
      %v427 = vld [vmem:[%s226 + $0x550] sm:$0xff]
      %v428 = vld [vmem:[%s226 + $0x558] sm:$0xff]
      %v429 = vld [vmem:[%s226 + $0x560] sm:$0xff]
      %v430 = vld [vmem:[%s226 + $0x568] sm:$0xff]
      %v431 = vld [vmem:[%s226 + $0x570] sm:$0xff]
      %v432 = vld [vmem:[%s226 + $0x578] sm:$0xff]
      %v433 = vld [vmem:[%s226 + $0x580] sm:$0xff]
      %v434 = vld [vmem:[%s226 + $0x588] sm:$0xff]
      %v435 = vld [vmem:[%s226 + $0x590] sm:$0xff]
      %v436 = vld [vmem:[%s226 + $0x598] sm:$0xff]
      %v437 = vld [vmem:[%s226 + $0x5a0] sm:$0xff]
      %v438 = vld [vmem:[%s226 + $0x5a8] sm:$0xff]
      %v439 = vld [vmem:[%s226 + $0x5b0] sm:$0xff]
      %v440 = vld [vmem:[%s226 + $0x5b8] sm:$0xff]
      %v441 = vld [vmem:[%s226 + $0x5c0] sm:$0xff]
      %v442 = vld [vmem:[%s226 + $0x5c8] sm:$0xff]
      %v443 = vld [vmem:[%s226 + $0x5d0] sm:$0xff]
      %v444 = vld [vmem:[%s226 + $0x5d8] sm:$0xff]
      %v445 = vld [vmem:[%s226 + $0x5e0] sm:$0xff]
      %v446 = vld [vmem:[%s226 + $0x5e8] sm:$0xff]
      %v447 = vld [vmem:[%s226 + $0x5f0] sm:$0xff]
      %v448 = vld [vmem:[%s226 + $0x5f8] sm:$0xff]
      %v449 = vld [vmem:[%s226 + $0x600] sm:$0xff]
      %v450 = vld [vmem:[%s226 + $0x608] sm:$0xff]
      %v451 = vld [vmem:[%s226 + $0x610] sm:$0xff]
      %v452 = vld [vmem:[%s226 + $0x618] sm:$0xff]
      %v453 = vld [vmem:[%s226 + $0x620] sm:$0xff]
      %v454 = vld [vmem:[%s226 + $0x628] sm:$0xff]
      %v455 = vld [vmem:[%s226 + $0x630] sm:$0xff]
      %v456 = vld [vmem:[%s226 + $0x638] sm:$0xff]
      %v457 = vld [vmem:[%s226 + $0x640] sm:$0xff]
      %v458 = vld [vmem:[%s226 + $0x648] sm:$0xff]
      %v459 = vld [vmem:[%s226 + $0x650] sm:$0xff]
      %v460 = vld [vmem:[%s226 + $0x658] sm:$0xff]
      %v461 = vld [vmem:[%s226 + $0x660] sm:$0xff]
      %v462 = vld [vmem:[%s226 + $0x668] sm:$0xff]
      %v463 = vld [vmem:[%s226 + $0x670] sm:$0xff]
      %v464 = vld [vmem:[%s226 + $0x678] sm:$0xff]
      %v465 = vld [vmem:[%s226 + $0x680] sm:$0xff]
      %v466 = vld [vmem:[%s226 + $0x688] sm:$0xff]
      %v467 = vld [vmem:[%s226 + $0x690] sm:$0xff]
      %v468 = vld [vmem:[%s226 + $0x698] sm:$0xff]
      %v469 = vld [vmem:[%s226 + $0x6a0] sm:$0xff]
      %v470 = vld [vmem:[%s226 + $0x6a8] sm:$0xff]
      %v471 = vld [vmem:[%s226 + $0x6b0] sm:$0xff]
      %v472 = vld [vmem:[%s226 + $0x6b8] sm:$0xff]
      %v473 = vld [vmem:[%s226 + $0x6c0] sm:$0xff]
      %v474 = vld [vmem:[%s226 + $0x6c8] sm:$0xff]
      %v475 = vld [vmem:[%s226 + $0x6d0] sm:$0xff]
      %v476 = vld [vmem:[%s226 + $0x6d8] sm:$0xff]
      %v477 = vld [vmem:[%s226 + $0x6e0] sm:$0xff]
      %v478 = vld [vmem:[%s226 + $0x6e8] sm:$0xff]
      %v479 = vld [vmem:[%s226 + $0x6f0] sm:$0xff]
      %v480 = vld [vmem:[%s226 + $0x6f8] sm:$0xff]
      %v481 = vld [vmem:[%s226 + $0x700] sm:$0xff]
      %v482 = vld [vmem:[%s226 + $0x708] sm:$0xff]
      %v483 = vld [vmem:[%s226 + $0x710] sm:$0xff]
      %v484 = vld [vmem:[%s226 + $0x718] sm:$0xff]
      %v485 = vld [vmem:[%s226 + $0x720] sm:$0xff]
      %v486 = vld [vmem:[%s226 + $0x728] sm:$0xff]
      %v487 = vld [vmem:[%s226 + $0x730] sm:$0xff]
      %v488 = vld [vmem:[%s226 + $0x738] sm:$0xff]
      %v489 = vld [vmem:[%s226 + $0x740] sm:$0xff]
      %v490 = vld [vmem:[%s226 + $0x748] sm:$0xff]
      %v491 = vld [vmem:[%s226 + $0x750] sm:$0xff]
      %v492 = vld [vmem:[%s226 + $0x758] sm:$0xff]
      %v493 = vld [vmem:[%s226 + $0x760] sm:$0xff]
      %v494 = vld [vmem:[%s226 + $0x768] sm:$0xff]
      %v495 = vld [vmem:[%s226 + $0x770] sm:$0xff]
      %v496 = vld [vmem:[%s226 + $0x778] sm:$0xff]
      %v497 = vld [vmem:[%s226 + $0x780] sm:$0xff]
      %v498 = vld [vmem:[%s226 + $0x788] sm:$0xff]
      %v499 = vld [vmem:[%s226 + $0x790] sm:$0xff]
      %v500 = vld [vmem:[%s226 + $0x798] sm:$0xff]
      %v501 = vld [vmem:[%s226 + $0x7a0] sm:$0xff]
      %v502 = vld [vmem:[%s226 + $0x7a8] sm:$0xff]
      %v503 = vld [vmem:[%s226 + $0x7b0] sm:$0xff]
      %v504 = vld [vmem:[%s226 + $0x7b8] sm:$0xff]
      %v505 = vld [vmem:[%s226 + $0x7c0] sm:$0xff]
      %v506 = vld [vmem:[%s226 + $0x7c8] sm:$0xff]
      %v507 = vld [vmem:[%s226 + $0x7d0] sm:$0xff]
      %v508 = vld [vmem:[%s226 + $0x7d8] sm:$0xff]
      %v509 = vld [vmem:[%s226 + $0x7e0] sm:$0xff]
      %v510 = vld [vmem:[%s226 + $0x7e8] sm:$0xff]
      %v511 = vld [vmem:[%s226 + $0x7f0] sm:$0xff]
      %v512 = vld [vmem:[%s226 + $0x7f8] sm:$0xff]
      %v513 = vld [vmem:[%s226 + $0x800] sm:$0xff]
      %v514 = vld [vmem:[%s226 + $0x808] sm:$0xff]
      %v515 = vld [vmem:[%s226 + $0x810] sm:$0xff]
      %v516 = vld [vmem:[%s226 + $0x818] sm:$0xff]
      %v517 = vld [vmem:[%s226 + $0x820] sm:$0xff]
      %v518 = vld [vmem:[%s226 + $0x828] sm:$0xff]
      %v519 = vld [vmem:[%s226 + $0x830] sm:$0xff]
      %v520 = vld [vmem:[%s226 + $0x838] sm:$0xff]
      %v521 = vld [vmem:[%s226 + $0x840] sm:$0xff]
      %v522 = vld [vmem:[%s226 + $0x848] sm:$0xff]
      %v523 = vld [vmem:[%s226 + $0x850] sm:$0xff]
      %v524 = vld [vmem:[%s226 + $0x858] sm:$0xff]
      %v525 = vld [vmem:[%s226 + $0x860] sm:$0xff]
      %v526 = vld [vmem:[%s226 + $0x868] sm:$0xff]
      %v527 = vld [vmem:[%s226 + $0x870] sm:$0xff]
      %v528 = vld [vmem:[%s226 + $0x878] sm:$0xff]
      %v529 = vld [vmem:[%s226 + $0x880] sm:$0xff]
      %v530 = vld [vmem:[%s226 + $0x888] sm:$0xff]
      %v531 = vld [vmem:[%s226 + $0x890] sm:$0xff]
      %v532 = vld [vmem:[%s226 + $0x898] sm:$0xff]
      %v533 = vld [vmem:[%s226 + $0x8a0] sm:$0xff]
      %v534 = vld [vmem:[%s226 + $0x8a8] sm:$0xff]
      %v535 = vld [vmem:[%s226 + $0x8b0] sm:$0xff]
      %v536 = vld [vmem:[%s226 + $0x8b8] sm:$0xff]
      %v537 = vld [vmem:[%s226 + $0x8c0] sm:$0xff]
      %v538 = vld [vmem:[%s226 + $0x8c8] sm:$0xff]
      %v539 = vld [vmem:[%s226 + $0x8d0] sm:$0xff]
      %v540 = vld [vmem:[%s226 + $0x8d8] sm:$0xff]
      %v541 = vld [vmem:[%s226 + $0x8e0] sm:$0xff]
      %v542 = vld [vmem:[%s226 + $0x8e8] sm:$0xff]
      %v543 = vld [vmem:[%s226 + $0x8f0] sm:$0xff]
      %v544 = vld [vmem:[%s226 + $0x8f8] sm:$0xff]
      %v545 = vld [vmem:[%s226 + $0x900] sm:$0xff]
      %v546 = vld [vmem:[%s226 + $0x908] sm:$0xff]
      %v547 = vld [vmem:[%s226 + $0x910] sm:$0xff]
      %v548 = vld [vmem:[%s226 + $0x918] sm:$0xff]
      %v549 = vld [vmem:[%s226 + $0x920] sm:$0xff]
      %v550 = vld [vmem:[%s226 + $0x928] sm:$0xff]
      %v551 = vld [vmem:[%s226 + $0x930] sm:$0xff]
      %v552 = vld [vmem:[%s226 + $0x938] sm:$0xff]
      %v553 = vld [vmem:[%s226 + $0x940] sm:$0xff]
      %v554 = vld [vmem:[%s226 + $0x948] sm:$0xff]
      %v555 = vld [vmem:[%s226 + $0x950] sm:$0xff]
      %v556 = vld [vmem:[%s226 + $0x958] sm:$0xff]
      %v557 = vld [vmem:[%s226 + $0x960] sm:$0xff]
      %v558 = vld [vmem:[%s226 + $0x968] sm:$0xff]
      %v559 = vld [vmem:[%s226 + $0x970] sm:$0xff]
      %v560 = vld [vmem:[%s226 + $0x978] sm:$0xff]
      %v561 = vld [vmem:[%s226 + $0x980] sm:$0xff]
      %v562 = vld [vmem:[%s226 + $0x988] sm:$0xff]
      %v563 = vld [vmem:[%s226 + $0x990] sm:$0xff]
      %v564 = vld [vmem:[%s226 + $0x998] sm:$0xff]
      %v565 = vld [vmem:[%s226 + $0x9a0] sm:$0xff]
      %v566 = vld [vmem:[%s226 + $0x9a8] sm:$0xff]
      %v567 = vld [vmem:[%s226 + $0x9b0] sm:$0xff]
      %v568 = vld [vmem:[%s226 + $0x9b8] sm:$0xff]
      %v569 = vld [vmem:[%s226 + $0x9c0] sm:$0xff]
      %v570 = vld [vmem:[%s226 + $0x9c8] sm:$0xff]
      %v571 = vld [vmem:[%s226 + $0x9d0] sm:$0xff]
      %v572 = vld [vmem:[%s226 + $0x9d8] sm:$0xff]
      %v573 = vld [vmem:[%s226 + $0x9e0] sm:$0xff]
      %v574 = vld [vmem:[%s226 + $0x9e8] sm:$0xff]
      %v575 = vld [vmem:[%s226 + $0x9f0] sm:$0xff]
      %v576 = vld [vmem:[%s226 + $0x9f8] sm:$0xff]
      %v577 = vld [vmem:[%s229] sm:$0x1]
      %v579 = vperm.slane %v577, 0
      %581 = vmatpush.msra.mxu0 %v272
      %582 = vmatpush.msra.mxu0 %v271
      %583 = vmatpush.msra.mxu0 %v270
      %584 = vmatpush.msra.mxu0 %v269
      %585 = vmatpush.msra.mxu0 %v268
      %586 = vmatpush.msra.mxu0 %v267
      %587 = vmatpush.msra.mxu0 %v266
      %588 = vmatpush.msra.mxu0 %v265
      %589 = vmatpush.msra.mxu0 %v264
      %590 = vmatpush.msra.mxu0 %v263
      %591 = vmatpush.msra.mxu0 %v262
      %592 = vmatpush.msra.mxu0 %v261
      %593 = vmatpush.msra.mxu0 %v260
      %594 = vmatpush.msra.mxu0 %v259
      %595 = vmatpush.msra.mxu0 %v258
      %596 = vmatpush.msra.mxu0 %v257
      %597 = vmatmul.f32.gmra.mxu0 %v237
      %v598 = vpop.f32.mrf.mxu0
      %v599 = vadd.f32 %v579, %v598
      %600 = vdwg.mxu0
      %601 = vmatpush.msra.mxu0 %v288
      %602 = vmatpush.msra.mxu0 %v287
      %603 = vmatpush.msra.mxu0 %v286
      %604 = vmatpush.msra.mxu0 %v285
      %605 = vmatpush.msra.mxu0 %v284
      %606 = vmatpush.msra.mxu0 %v283
      %607 = vmatpush.msra.mxu0 %v282
      %608 = vmatpush.msra.mxu0 %v281
      %609 = vmatpush.msra.mxu0 %v280
      %610 = vmatpush.msra.mxu0 %v279
      %611 = vmatpush.msra.mxu0 %v278
      %612 = vmatpush.msra.mxu0 %v277
      %613 = vmatpush.msra.mxu0 %v276
      %614 = vmatpush.msra.mxu0 %v275
      %615 = vmatpush.msra.mxu0 %v274
      %616 = vmatpush.msra.mxu0 %v273
      %617 = vmatmul.f32.gmra.mxu0 %v238
      %v618 = vpop.f32.mrf.mxu0
      %v619 = vadd.f32 %v599, %v618
      %620 = vdwg.mxu0
      %621 = vmatpush.msra.mxu0 %v304
      %622 = vmatpush.msra.mxu0 %v303
      %623 = vmatpush.msra.mxu0 %v302
      %624 = vmatpush.msra.mxu0 %v301
      %625 = vmatpush.msra.mxu0 %v300
      %626 = vmatpush.msra.mxu0 %v299
      %627 = vmatpush.msra.mxu0 %v298
      %628 = vmatpush.msra.mxu0 %v297
      %629 = vmatpush.msra.mxu0 %v296
      %630 = vmatpush.msra.mxu0 %v295
      %631 = vmatpush.msra.mxu0 %v294
      %632 = vmatpush.msra.mxu0 %v293
      %633 = vmatpush.msra.mxu0 %v292
      %634 = vmatpush.msra.mxu0 %v291
      %635 = vmatpush.msra.mxu0 %v290
      %636 = vmatpush.msra.mxu0 %v289
      %637 = vmatmul.f32.gmra.mxu0 %v239
      %v638 = vpop.f32.mrf.mxu0
      %v639 = vadd.f32 %v619, %v638
      %640 = vdwg.mxu0
      %641 = vmatpush.msra.mxu0 %v320
      %642 = vmatpush.msra.mxu0 %v319
      %643 = vmatpush.msra.mxu0 %v318
      %644 = vmatpush.msra.mxu0 %v317
      %645 = vmatpush.msra.mxu0 %v316
      %646 = vmatpush.msra.mxu0 %v315
      %647 = vmatpush.msra.mxu0 %v314
      %648 = vmatpush.msra.mxu0 %v313
      %649 = vmatpush.msra.mxu0 %v312
      %650 = vmatpush.msra.mxu0 %v311
      %651 = vmatpush.msra.mxu0 %v310
      %652 = vmatpush.msra.mxu0 %v309
      %653 = vmatpush.msra.mxu0 %v308
      %654 = vmatpush.msra.mxu0 %v307
      %655 = vmatpush.msra.mxu0 %v306
      %656 = vmatpush.msra.mxu0 %v305
      %657 = vmatmul.f32.gmra.mxu0 %v240
      %v658 = vpop.f32.mrf.mxu0
      %v659 = vadd.f32 %v639, %v658
      %660 = vdwg.mxu0
      %661 = vmatpush.msra.mxu0 %v336
      %662 = vmatpush.msra.mxu0 %v335
      %663 = vmatpush.msra.mxu0 %v334
      %664 = vmatpush.msra.mxu0 %v333
      %665 = vmatpush.msra.mxu0 %v332
      %666 = vmatpush.msra.mxu0 %v331
      %667 = vmatpush.msra.mxu0 %v330
      %668 = vmatpush.msra.mxu0 %v329
      %669 = vmatpush.msra.mxu0 %v328
      %670 = vmatpush.msra.mxu0 %v327
      %671 = vmatpush.msra.mxu0 %v326
      %672 = vmatpush.msra.mxu0 %v325
      %673 = vmatpush.msra.mxu0 %v324
      %674 = vmatpush.msra.mxu0 %v323
      %675 = vmatpush.msra.mxu0 %v322
      %676 = vmatpush.msra.mxu0 %v321
      %677 = vmatmul.f32.gmra.mxu0 %v241
      %v678 = vpop.f32.mrf.mxu0
      %v679 = vadd.f32 %v659, %v678
      %680 = vdwg.mxu0
      %681 = vmatpush.msra.mxu0 %v352
      %682 = vmatpush.msra.mxu0 %v351
      %683 = vmatpush.msra.mxu0 %v350
      %684 = vmatpush.msra.mxu0 %v349
      %685 = vmatpush.msra.mxu0 %v348
      %686 = vmatpush.msra.mxu0 %v347
      %687 = vmatpush.msra.mxu0 %v346
      %688 = vmatpush.msra.mxu0 %v345
      %689 = vmatpush.msra.mxu0 %v344
      %690 = vmatpush.msra.mxu0 %v343
      %691 = vmatpush.msra.mxu0 %v342
      %692 = vmatpush.msra.mxu0 %v341
      %693 = vmatpush.msra.mxu0 %v340
      %694 = vmatpush.msra.mxu0 %v339
      %695 = vmatpush.msra.mxu0 %v338
      %696 = vmatpush.msra.mxu0 %v337
      %697 = vmatmul.f32.gmra.mxu0 %v242
      %v698 = vpop.f32.mrf.mxu0
      %v699 = vadd.f32 %v679, %v698
      %700 = vdwg.mxu0
      %701 = vmatpush.msra.mxu0 %v368
      %702 = vmatpush.msra.mxu0 %v367
      %703 = vmatpush.msra.mxu0 %v366
      %704 = vmatpush.msra.mxu0 %v365
      %705 = vmatpush.msra.mxu0 %v364
      %706 = vmatpush.msra.mxu0 %v363
      %707 = vmatpush.msra.mxu0 %v362
      %708 = vmatpush.msra.mxu0 %v361
      %709 = vmatpush.msra.mxu0 %v360
      %710 = vmatpush.msra.mxu0 %v359
      %711 = vmatpush.msra.mxu0 %v358
      %712 = vmatpush.msra.mxu0 %v357
      %713 = vmatpush.msra.mxu0 %v356
      %714 = vmatpush.msra.mxu0 %v355
      %715 = vmatpush.msra.mxu0 %v354
      %716 = vmatpush.msra.mxu0 %v353
      %717 = vmatmul.f32.gmra.mxu0 %v243
      %v718 = vpop.f32.mrf.mxu0
      %v719 = vadd.f32 %v699, %v718
      %720 = vdwg.mxu0
      %721 = vmatpush.msra.mxu0 %v384
      %722 = vmatpush.msra.mxu0 %v383
      %723 = vmatpush.msra.mxu0 %v382
      %724 = vmatpush.msra.mxu0 %v381
      %725 = vmatpush.msra.mxu0 %v380
      %726 = vmatpush.msra.mxu0 %v379
      %727 = vmatpush.msra.mxu0 %v378
      %728 = vmatpush.msra.mxu0 %v377
      %729 = vmatpush.msra.mxu0 %v376
      %730 = vmatpush.msra.mxu0 %v375
      %731 = vmatpush.msra.mxu0 %v374
      %732 = vmatpush.msra.mxu0 %v373
      %733 = vmatpush.msra.mxu0 %v372
      %734 = vmatpush.msra.mxu0 %v371
      %735 = vmatpush.msra.mxu0 %v370
      %736 = vmatpush.msra.mxu0 %v369
      %737 = vmatmul.f32.gmra.mxu0 %v244
      %v738 = vpop.f32.mrf.mxu0
      %v739 = vadd.f32 %v719, %v738
      %740 = vdwg.mxu0
      %741 = vmatpush.msra.mxu0 %v400
      %742 = vmatpush.msra.mxu0 %v399
      %743 = vmatpush.msra.mxu0 %v398
      %744 = vmatpush.msra.mxu0 %v397
      %745 = vmatpush.msra.mxu0 %v396
      %746 = vmatpush.msra.mxu0 %v395
      %747 = vmatpush.msra.mxu0 %v394
      %748 = vmatpush.msra.mxu0 %v393
      %749 = vmatpush.msra.mxu0 %v392
      %750 = vmatpush.msra.mxu0 %v391
      %751 = vmatpush.msra.mxu0 %v390
      %752 = vmatpush.msra.mxu0 %v389
      %753 = vmatpush.msra.mxu0 %v388
      %754 = vmatpush.msra.mxu0 %v387
      %755 = vmatpush.msra.mxu0 %v386
      %756 = vmatpush.msra.mxu0 %v385
      %757 = vmatmul.f32.gmra.mxu0 %v245
      %v758 = vpop.f32.mrf.mxu0
      %v759 = vadd.f32 %v739, %v758
      %760 = vdwg.mxu0
      %761 = vmatpush.msra.mxu0 %v416
      %762 = vmatpush.msra.mxu0 %v415
      %763 = vmatpush.msra.mxu0 %v414
      %764 = vmatpush.msra.mxu0 %v413
      %765 = vmatpush.msra.mxu0 %v412
      %766 = vmatpush.msra.mxu0 %v411
      %767 = vmatpush.msra.mxu0 %v410
      %768 = vmatpush.msra.mxu0 %v409
      %769 = vmatpush.msra.mxu0 %v408
      %770 = vmatpush.msra.mxu0 %v407
      %771 = vmatpush.msra.mxu0 %v406
      %772 = vmatpush.msra.mxu0 %v405
      %773 = vmatpush.msra.mxu0 %v404
      %774 = vmatpush.msra.mxu0 %v403
      %775 = vmatpush.msra.mxu0 %v402
      %776 = vmatpush.msra.mxu0 %v401
      %777 = vmatmul.f32.gmra.mxu0 %v246
      %v778 = vpop.f32.mrf.mxu0
      %v779 = vadd.f32 %v759, %v778
      %780 = vdwg.mxu0
      %781 = vmatpush.msra.mxu0 %v432
      %782 = vmatpush.msra.mxu0 %v431
      %783 = vmatpush.msra.mxu0 %v430
      %784 = vmatpush.msra.mxu0 %v429
      %785 = vmatpush.msra.mxu0 %v428
      %786 = vmatpush.msra.mxu0 %v427
      %787 = vmatpush.msra.mxu0 %v426
      %788 = vmatpush.msra.mxu0 %v425
      %789 = vmatpush.msra.mxu0 %v424
      %790 = vmatpush.msra.mxu0 %v423
      %791 = vmatpush.msra.mxu0 %v422
      %792 = vmatpush.msra.mxu0 %v421
      %793 = vmatpush.msra.mxu0 %v420
      %794 = vmatpush.msra.mxu0 %v419
      %795 = vmatpush.msra.mxu0 %v418
      %796 = vmatpush.msra.mxu0 %v417
      %797 = vmatmul.f32.gmra.mxu0 %v247
      %v798 = vpop.f32.mrf.mxu0
      %v799 = vadd.f32 %v779, %v798
      %800 = vdwg.mxu0
      %801 = vmatpush.msra.mxu0 %v448
      %802 = vmatpush.msra.mxu0 %v447
      %803 = vmatpush.msra.mxu0 %v446
      %804 = vmatpush.msra.mxu0 %v445
      %805 = vmatpush.msra.mxu0 %v444
      %806 = vmatpush.msra.mxu0 %v443
      %807 = vmatpush.msra.mxu0 %v442
      %808 = vmatpush.msra.mxu0 %v441
      %809 = vmatpush.msra.mxu0 %v440
      %810 = vmatpush.msra.mxu0 %v439
      %811 = vmatpush.msra.mxu0 %v438
      %812 = vmatpush.msra.mxu0 %v437
      %813 = vmatpush.msra.mxu0 %v436
      %814 = vmatpush.msra.mxu0 %v435
      %815 = vmatpush.msra.mxu0 %v434
      %816 = vmatpush.msra.mxu0 %v433
      %817 = vmatmul.f32.gmra.mxu0 %v248
      %v818 = vpop.f32.mrf.mxu0
      %v819 = vadd.f32 %v799, %v818
      %820 = vdwg.mxu0
      %821 = vmatpush.msra.mxu0 %v464
      %822 = vmatpush.msra.mxu0 %v463
      %823 = vmatpush.msra.mxu0 %v462
      %824 = vmatpush.msra.mxu0 %v461
      %825 = vmatpush.msra.mxu0 %v460
      %826 = vmatpush.msra.mxu0 %v459
      %827 = vmatpush.msra.mxu0 %v458
      %828 = vmatpush.msra.mxu0 %v457
      %829 = vmatpush.msra.mxu0 %v456
      %830 = vmatpush.msra.mxu0 %v455
      %831 = vmatpush.msra.mxu0 %v454
      %832 = vmatpush.msra.mxu0 %v453
      %833 = vmatpush.msra.mxu0 %v452
      %834 = vmatpush.msra.mxu0 %v451
      %835 = vmatpush.msra.mxu0 %v450
      %836 = vmatpush.msra.mxu0 %v449
      %837 = vmatmul.f32.gmra.mxu0 %v249
      %v838 = vpop.f32.mrf.mxu0
      %v839 = vadd.f32 %v819, %v838
      %840 = vdwg.mxu0
      %841 = vmatpush.msra.mxu0 %v480
      %842 = vmatpush.msra.mxu0 %v479
      %843 = vmatpush.msra.mxu0 %v478
      %844 = vmatpush.msra.mxu0 %v477
      %845 = vmatpush.msra.mxu0 %v476
      %846 = vmatpush.msra.mxu0 %v475
      %847 = vmatpush.msra.mxu0 %v474
      %848 = vmatpush.msra.mxu0 %v473
      %849 = vmatpush.msra.mxu0 %v472
      %850 = vmatpush.msra.mxu0 %v471
      %851 = vmatpush.msra.mxu0 %v470
      %852 = vmatpush.msra.mxu0 %v469
      %853 = vmatpush.msra.mxu0 %v468
      %854 = vmatpush.msra.mxu0 %v467
      %855 = vmatpush.msra.mxu0 %v466
      %856 = vmatpush.msra.mxu0 %v465
      %857 = vmatmul.f32.gmra.mxu0 %v250
      %v858 = vpop.f32.mrf.mxu0
      %v859 = vadd.f32 %v839, %v858
      %860 = vdwg.mxu0
      %861 = vmatpush.msra.mxu0 %v496
      %862 = vmatpush.msra.mxu0 %v495
      %863 = vmatpush.msra.mxu0 %v494
      %864 = vmatpush.msra.mxu0 %v493
      %865 = vmatpush.msra.mxu0 %v492
      %866 = vmatpush.msra.mxu0 %v491
      %867 = vmatpush.msra.mxu0 %v490
      %868 = vmatpush.msra.mxu0 %v489
      %869 = vmatpush.msra.mxu0 %v488
      %870 = vmatpush.msra.mxu0 %v487
      %871 = vmatpush.msra.mxu0 %v486
      %872 = vmatpush.msra.mxu0 %v485
      %873 = vmatpush.msra.mxu0 %v484
      %874 = vmatpush.msra.mxu0 %v483
      %875 = vmatpush.msra.mxu0 %v482
      %876 = vmatpush.msra.mxu0 %v481
      %877 = vmatmul.f32.gmra.mxu0 %v251
      %v878 = vpop.f32.mrf.mxu0
      %v879 = vadd.f32 %v859, %v878
      %880 = vdwg.mxu0
      %881 = vmatpush.msra.mxu0 %v512
      %882 = vmatpush.msra.mxu0 %v511
      %883 = vmatpush.msra.mxu0 %v510
      %884 = vmatpush.msra.mxu0 %v509
      %885 = vmatpush.msra.mxu0 %v508
      %886 = vmatpush.msra.mxu0 %v507
      %887 = vmatpush.msra.mxu0 %v506
      %888 = vmatpush.msra.mxu0 %v505
      %889 = vmatpush.msra.mxu0 %v504
      %890 = vmatpush.msra.mxu0 %v503
      %891 = vmatpush.msra.mxu0 %v502
      %892 = vmatpush.msra.mxu0 %v501
      %893 = vmatpush.msra.mxu0 %v500
      %894 = vmatpush.msra.mxu0 %v499
      %895 = vmatpush.msra.mxu0 %v498
      %896 = vmatpush.msra.mxu0 %v497
      %897 = vmatmul.f32.gmra.mxu0 %v252
      %v898 = vpop.f32.mrf.mxu0
      %v899 = vadd.f32 %v879, %v898
      %900 = vdwg.mxu0
      %901 = vmatpush.msra.mxu0 %v528
      %902 = vmatpush.msra.mxu0 %v527
      %903 = vmatpush.msra.mxu0 %v526
      %904 = vmatpush.msra.mxu0 %v525
      %905 = vmatpush.msra.mxu0 %v524
      %906 = vmatpush.msra.mxu0 %v523
      %907 = vmatpush.msra.mxu0 %v522
      %908 = vmatpush.msra.mxu0 %v521
      %909 = vmatpush.msra.mxu0 %v520
      %910 = vmatpush.msra.mxu0 %v519
      %911 = vmatpush.msra.mxu0 %v518
      %912 = vmatpush.msra.mxu0 %v517
      %913 = vmatpush.msra.mxu0 %v516
      %914 = vmatpush.msra.mxu0 %v515
      %915 = vmatpush.msra.mxu0 %v514
      %916 = vmatpush.msra.mxu0 %v513
      %917 = vmatmul.f32.gmra.mxu0 %v253
      %v918 = vpop.f32.mrf.mxu0
      %v919 = vadd.f32 %v899, %v918
      %920 = vdwg.mxu0
      %921 = vmatpush.msra.mxu0 %v544
      %922 = vmatpush.msra.mxu0 %v543
      %923 = vmatpush.msra.mxu0 %v542
      %924 = vmatpush.msra.mxu0 %v541
      %925 = vmatpush.msra.mxu0 %v540
      %926 = vmatpush.msra.mxu0 %v539
      %927 = vmatpush.msra.mxu0 %v538
      %928 = vmatpush.msra.mxu0 %v537
      %929 = vmatpush.msra.mxu0 %v536
      %930 = vmatpush.msra.mxu0 %v535
      %931 = vmatpush.msra.mxu0 %v534
      %932 = vmatpush.msra.mxu0 %v533
      %933 = vmatpush.msra.mxu0 %v532
      %934 = vmatpush.msra.mxu0 %v531
      %935 = vmatpush.msra.mxu0 %v530
      %936 = vmatpush.msra.mxu0 %v529
      %937 = vmatmul.f32.gmra.mxu0 %v254
      %v938 = vpop.f32.mrf.mxu0
      %v939 = vadd.f32 %v919, %v938
      %940 = vdwg.mxu0
      %941 = vmatpush.msra.mxu0 %v560
      %942 = vmatpush.msra.mxu0 %v559
      %943 = vmatpush.msra.mxu0 %v558
      %944 = vmatpush.msra.mxu0 %v557
      %945 = vmatpush.msra.mxu0 %v556
      %946 = vmatpush.msra.mxu0 %v555
      %947 = vmatpush.msra.mxu0 %v554
      %948 = vmatpush.msra.mxu0 %v553
      %949 = vmatpush.msra.mxu0 %v552
      %950 = vmatpush.msra.mxu0 %v551
      %951 = vmatpush.msra.mxu0 %v550
      %952 = vmatpush.msra.mxu0 %v549
      %953 = vmatpush.msra.mxu0 %v548
      %954 = vmatpush.msra.mxu0 %v547
      %955 = vmatpush.msra.mxu0 %v546
      %956 = vmatpush.msra.mxu0 %v545
      %957 = vmatmul.f32.gmra.mxu0 %v255
      %v958 = vpop.f32.mrf.mxu0
      %v959 = vadd.f32 %v939, %v958
      %960 = vdwg.mxu0
      %961 = vmatpush.msra.mxu0 %v576
      %962 = vmatpush.msra.mxu0 %v575
      %963 = vmatpush.msra.mxu0 %v574
      %964 = vmatpush.msra.mxu0 %v573
      %965 = vmatpush.msra.mxu0 %v572
      %966 = vmatpush.msra.mxu0 %v571
      %967 = vmatpush.msra.mxu0 %v570
      %968 = vmatpush.msra.mxu0 %v569
      %969 = vmatpush.msra.mxu0 %v568
      %970 = vmatpush.msra.mxu0 %v567
      %971 = vmatpush.msra.mxu0 %v566
      %972 = vmatpush.msra.mxu0 %v565
      %973 = vmatpush.msra.mxu0 %v564
      %974 = vmatpush.msra.mxu0 %v563
      %975 = vmatpush.msra.mxu0 %v562
      %976 = vmatpush.msra.mxu0 %v561
      %977 = vmatmul.f32.gmra.mxu0 %v256
      %v978 = vpop.f32.mrf.mxu0
      %v979 = vadd.f32 %v959, %v978
      %980 = vdwg.mxu0
      %981 = vst [vmem:[%s236] sm:$0xff] %v979
      %p982 = scmp.lt.s32.totalorder %s18, 1
      %s983 = scalar_select %p982, %s18, 1
      %p984 = scmp.lt.s32.totalorder %s19, 0
      %s985 = scalar_select %p984, %s19, 0
      %s986 = sadd.s32 %s985, %s983
      %s987 = smul.addr %s986, 8
      %s988 = scalar_lea.vmem %s3, %s987
      // Predicated region
      $region33: #{model_forward.8} parent=31 // pred_check
        %p989 = pneg %p126
      $region34: #{model_forward.8} parent=31 // pred_check_branch
        %991 = sbr.rel (%p989) target = $region36
      $region35: #{model_forward.8} parent=31 // pred_region
        _
      $region36: #{model_forward.8} parent=31 // pred_fallthru
        _
    $region32: #{model_forward.8} parent=5 // pred_fallthru
      _
    %p992 = scmp.le.s32.totalorder 2, %s9
    // Predicated region
    $region37: #{model_forward.8} parent=5 // pred_check
      %p993 = pneg %p992
    $region38: #{model_forward.8} parent=5 // pred_check_branch
      %995 = sbr.rel (%p993) target = $region40
    $region39: #{model_forward.8} parent=5 // pred_region
      %s996 = ssub.s32 %s9, 2
      // Predicated region
      $region41: #{model_forward.8} parent=39 // pred_check
        %p997 = pneg %p132
      $region42: #{model_forward.8} parent=39 // pred_check_branch
        %999 = sbr.rel (%p997) target = $region44
      $region43: #{model_forward.8} parent=39 // pred_region
        %p1000 = scmp.lt.s32.totalorder %s20, 1
        %s1001 = scalar_select %p1000, %s20, 1
        %p1002 = scmp.lt.s32.totalorder %s21, 0
        %s1003 = scalar_select %p1002, %s21, 0
        %s1004 = sadd.s32 %s1003, %s1001
        %s1005 = smul.addr %s1004, 8
        %s1006 = scalar_lea.vmem %s3, %s1005
      $region44: #{model_forward.8} parent=39 // pred_fallthru
        _
    $region40: #{model_forward.8} parent=5 // pred_fallthru
      _
  $region6: #{model_forward.8} parent=0 // loop_footer
    %s13 = sadd.s32 1, %s9
  $region7: #{model_forward.8} parent=0 // loop_footer_branch
    %8 = sbr.rel target = $region3
  $region8: #{model_forward.8} parent=0 // loop_exit
    _

// kernel: model_forward.9
$region0: #{model_forward.9}
  #allocation0 [shape = 'u32[]', space=smem, size = 0x4, offset = 0x4, fixed_abs, tag = 'smem constant byte address 0x4 - core index']
  #allocation1 [shape = 'u32[72,128]{1,0:T(1,128)}', space=vmem, size = 0x9000, scoped, tag = 'internal scratch']
  %s0 = inlined_call_operand.vmem [shape: f32[2,4,256], index: 0, kind: input, shape index: {}]
  %s1 = inlined_call_operand.vmem [shape: f32[256,128], index: 1, kind: input, shape index: {}]
  %s2 = inlined_call_operand.vmem [shape: f32[128,128], index: 2, kind: input, shape index: {}]
  %s3 = inlined_call_operand.vmem [shape: f32[1,128], index: 3, kind: input, shape index: {}]
  %s4 = inlined_call_operand.vmem [shape: f32[1,128], index: 4, kind: input, shape index: {}]
  %s5 = inlined_call_operand.vmem [shape: f32[2,1,128], index: 5, kind: input, shape index: {}]
  %s6 = inlined_call_operand.vmem [shape: f32[128,150], index: 6, kind: input, shape index: {}]
  %s7 = inlined_call_operand.vmem [shape: f32[1,150], index: 7, kind: input, shape index: {}]
  %s8 = inlined_call_operand.vmem [shape: f32[2,4,128], index: 8, kind: output, shape index: {0}]
  %s9 = inlined_call_operand.vmem [shape: f32[2,1,150], index: 9, kind: output, shape index: {1}]
  %10 = xla_tuple %s8, %s9
  %s11 = sld [smem:[#allocation0]]
  $region73: #{model_forward.9} parent=0
    _
  %s13 = ssub.s32 1, %s11
  %s14 = scalar_select 0, %s13, %s11
  loop: start=0, step=1, limit=4
  $region2: #{model_forward.9} parent=0 // loop_pre_header
    _
  $region3: #{model_forward.9} parent=0 // loop_header
    %s16 = sphi 0, %s20
    %p17 = scmp.ge.s32.totalorder %s16, 4
    %s26 = sphi 0, %s28
    %s29 = sphi 0, %s26
    %s30 = sphi 0, %s29
    %s46 = sphi 0, %s30
    %s50 = sphi 0, %s50
    %s52 = sphi 0, %s50
    %s53 = sphi 0, %s52
    %s67 = sphi 0, %s53
    %s71 = sphi 0, %s71
    %s73 = sphi 0, %s71
    %s74 = sphi 0, %s73
    %s88 = sphi 0, %s74
    %s92 = sphi 0, %s92
    %s94 = sphi 0, %s92
    %s95 = sphi 0, %s94
    %s109 = sphi 0, %s95
    %s113 = sphi 0, %s113
    %s115 = sphi 0, %s113
    %s116 = sphi 0, %s115
    %s130 = sphi 0, %s116
    %s136 = sphi 0, %s138
    %s139 = sphi 0, %s136
    %s140 = sphi 0, %s139
    %s156 = sphi 0, %s140
    %s160 = sphi 0, %s160
    %s162 = sphi 0, %s160
    %s163 = sphi 0, %s162
    %s177 = sphi 0, %s163
    %s181 = sphi 0, %s181
    %s183 = sphi 0, %s181
    %s184 = sphi 0, %s183
    %s198 = sphi 0, %s184
    %s204 = sphi 0, %s206
    %s207 = sphi 0, %s204
    %s208 = sphi 0, %s207
    %s224 = sphi 0, %s208
    %s230 = sphi 0, %s232
    %s233 = sphi 0, %s230
    %s234 = sphi 0, %s233
    %s250 = sphi 0, %s234
  $region4: #{model_forward.9} parent=0 // loop_header_branch
    %19 = sbr.rel (%p17) target = $region8
  $region5: #{model_forward.9} parent=0 // loop_body
    %s21 = ssub.s32 %s16, 1
    %s22 = ssub.s32 %s16, 2
    %s23 = sadd.s32 %s16, 1
    %s24 = ssub.s32 %s16, %s23
    %p25 = scmp.eq.s32.totalorder %s24, 0
    %s27 = sadd.s32 %s26, 1
    %s28 = scalar_select %p25, %s26, %s27
    %p31 = pneg %p25
    %p32 = scmp.eq.s32.totalorder %s16, 1
    %p33 = por %p31, %p32
    %p34 = scmp.ne.s32.totalorder %s26, %s29
    %p35 = scmp.eq.s32.totalorder %s16, 0
    %p36 = por %p34, %p35
    %p37 = scmp.ne.s32.totalorder %s26, %s29
    %p38 = scmp.eq.s32.totalorder %s21, 1
    %p39 = por %p37, %p38
    %p40 = scmp.ne.s32.totalorder %s29, %s30
    %p41 = scmp.eq.s32.totalorder %s21, 0
    %p42 = por %p40, %p41
    %p43 = scmp.ne.s32.totalorder %s29, %s30
    %p44 = scmp.eq.s32.totalorder %s22, 1
    %p45 = por %p43, %p44
    %p47 = scmp.ne.s32.totalorder %s30, %s46
    %p48 = scmp.eq.s32.totalorder %s22, 0
    %p49 = por %p47, %p48
    %s51 = sadd.s32 %s50, 1
    %p54 = scmp.eq.s32.totalorder %s16, 1
    %p55 = scmp.ne.s32.totalorder %s50, %s52
    %p56 = scmp.eq.s32.totalorder %s16, 0
    %p57 = por %p55, %p56
    %p58 = scmp.ne.s32.totalorder %s50, %s52
    %p59 = scmp.eq.s32.totalorder %s21, 1
    %p60 = por %p58, %p59
    %p61 = scmp.ne.s32.totalorder %s52, %s53
    %p62 = scmp.eq.s32.totalorder %s21, 0
    %p63 = por %p61, %p62
    %p64 = scmp.ne.s32.totalorder %s52, %s53
    %p65 = scmp.eq.s32.totalorder %s22, 1
    %p66 = por %p64, %p65
    %p68 = scmp.ne.s32.totalorder %s53, %s67
    %p69 = scmp.eq.s32.totalorder %s22, 0
    %p70 = por %p68, %p69
    %s72 = sadd.s32 %s71, 1
    %p75 = scmp.eq.s32.totalorder %s16, 1
    %p76 = scmp.ne.s32.totalorder %s71, %s73
    %p77 = scmp.eq.s32.totalorder %s16, 0
    %p78 = por %p76, %p77
    %p79 = scmp.ne.s32.totalorder %s71, %s73
    %p80 = scmp.eq.s32.totalorder %s21, 1
    %p81 = por %p79, %p80
    %p82 = scmp.ne.s32.totalorder %s73, %s74
    %p83 = scmp.eq.s32.totalorder %s21, 0
    %p84 = por %p82, %p83
    %p85 = scmp.ne.s32.totalorder %s73, %s74
    %p86 = scmp.eq.s32.totalorder %s22, 1
    %p87 = por %p85, %p86
    %p89 = scmp.ne.s32.totalorder %s74, %s88
    %p90 = scmp.eq.s32.totalorder %s22, 0
    %p91 = por %p89, %p90
    %s93 = sadd.s32 %s92, 1
    %p96 = scmp.eq.s32.totalorder %s16, 1
    %p97 = scmp.ne.s32.totalorder %s92, %s94
    %p98 = scmp.eq.s32.totalorder %s16, 0
    %p99 = por %p97, %p98
    %p100 = scmp.ne.s32.totalorder %s92, %s94
    %p101 = scmp.eq.s32.totalorder %s21, 1
    %p102 = por %p100, %p101
    %p103 = scmp.ne.s32.totalorder %s94, %s95
    %p104 = scmp.eq.s32.totalorder %s21, 0
    %p105 = por %p103, %p104
    %p106 = scmp.ne.s32.totalorder %s94, %s95
    %p107 = scmp.eq.s32.totalorder %s22, 1
    %p108 = por %p106, %p107
    %p110 = scmp.ne.s32.totalorder %s95, %s109
    %p111 = scmp.eq.s32.totalorder %s22, 0
    %p112 = por %p110, %p111
    %s114 = sadd.s32 %s113, 1
    %p117 = scmp.eq.s32.totalorder %s16, 1
    %p118 = scmp.ne.s32.totalorder %s113, %s115
    %p119 = scmp.eq.s32.totalorder %s16, 0
    %p120 = por %p118, %p119
    %p121 = scmp.ne.s32.totalorder %s113, %s115
    %p122 = scmp.eq.s32.totalorder %s21, 1
    %p123 = por %p121, %p122
    %p124 = scmp.ne.s32.totalorder %s115, %s116
    %p125 = scmp.eq.s32.totalorder %s21, 0
    %p126 = por %p124, %p125
    %p127 = scmp.ne.s32.totalorder %s115, %s116
    %p128 = scmp.eq.s32.totalorder %s22, 1
    %p129 = por %p127, %p128
    %p131 = scmp.ne.s32.totalorder %s116, %s130
    %p132 = scmp.eq.s32.totalorder %s22, 0
    %p133 = por %p131, %p132
    %s134 = ssub.s32 %s16, %s23
    %p135 = scmp.eq.s32.totalorder %s134, 0
    %s137 = sadd.s32 %s136, 1
    %s138 = scalar_select %p135, %s136, %s137
    %p141 = pneg %p135
    %p142 = scmp.eq.s32.totalorder %s16, 1
    %p143 = por %p141, %p142
    %p144 = scmp.ne.s32.totalorder %s136, %s139
    %p145 = scmp.eq.s32.totalorder %s16, 0
    %p146 = por %p144, %p145
    %p147 = scmp.ne.s32.totalorder %s136, %s139
    %p148 = scmp.eq.s32.totalorder %s21, 1
    %p149 = por %p147, %p148
    %p150 = scmp.ne.s32.totalorder %s139, %s140
    %p151 = scmp.eq.s32.totalorder %s21, 0
    %p152 = por %p150, %p151
    %p153 = scmp.ne.s32.totalorder %s139, %s140
    %p154 = scmp.eq.s32.totalorder %s22, 1
    %p155 = por %p153, %p154
    %p157 = scmp.ne.s32.totalorder %s140, %s156
    %p158 = scmp.eq.s32.totalorder %s22, 0
    %p159 = por %p157, %p158
    %s161 = sadd.s32 %s160, 1
    %p164 = scmp.eq.s32.totalorder %s16, 1
    %p165 = scmp.ne.s32.totalorder %s160, %s162
    %p166 = scmp.eq.s32.totalorder %s16, 0
    %p167 = por %p165, %p166
    %p168 = scmp.ne.s32.totalorder %s160, %s162
    %p169 = scmp.eq.s32.totalorder %s21, 1
    %p170 = por %p168, %p169
    %p171 = scmp.ne.s32.totalorder %s162, %s163
    %p172 = scmp.eq.s32.totalorder %s21, 0
    %p173 = por %p171, %p172
    %p174 = scmp.ne.s32.totalorder %s162, %s163
    %p175 = scmp.eq.s32.totalorder %s22, 1
    %p176 = por %p174, %p175
    %p178 = scmp.ne.s32.totalorder %s163, %s177
    %p179 = scmp.eq.s32.totalorder %s22, 0
    %p180 = por %p178, %p179
    %s182 = sadd.s32 %s181, 1
    %p185 = scmp.eq.s32.totalorder %s16, 1
    %p186 = scmp.ne.s32.totalorder %s181, %s183
    %p187 = scmp.eq.s32.totalorder %s16, 0
    %p188 = por %p186, %p187
    %p189 = scmp.ne.s32.totalorder %s181, %s183
    %p190 = scmp.eq.s32.totalorder %s21, 1
    %p191 = por %p189, %p190
    %p192 = scmp.ne.s32.totalorder %s183, %s184
    %p193 = scmp.eq.s32.totalorder %s21, 0
    %p194 = por %p192, %p193
    %p195 = scmp.ne.s32.totalorder %s183, %s184
    %p196 = scmp.eq.s32.totalorder %s22, 1
    %p197 = por %p195, %p196
    %p199 = scmp.ne.s32.totalorder %s184, %s198
    %p200 = scmp.eq.s32.totalorder %s22, 0
    %p201 = por %p199, %p200
    %s202 = ssub.s32 %s16, %s23
    %p203 = scmp.eq.s32.totalorder %s202, 0
    %s205 = sadd.s32 %s204, 1
    %s206 = scalar_select %p203, %s204, %s205
    %p209 = pneg %p203
    %p210 = scmp.eq.s32.totalorder %s16, 1
    %p211 = por %p209, %p210
    %p212 = scmp.ne.s32.totalorder %s204, %s207
    %p213 = scmp.eq.s32.totalorder %s16, 0
    %p214 = por %p212, %p213
    %p215 = scmp.ne.s32.totalorder %s204, %s207
    %p216 = scmp.eq.s32.totalorder %s21, 1
    %p217 = por %p215, %p216
    %p218 = scmp.ne.s32.totalorder %s207, %s208
    %p219 = scmp.eq.s32.totalorder %s21, 0
    %p220 = por %p218, %p219
    %p221 = scmp.ne.s32.totalorder %s207, %s208
    %p222 = scmp.eq.s32.totalorder %s22, 1
    %p223 = por %p221, %p222
    %p225 = scmp.ne.s32.totalorder %s208, %s224
    %p226 = scmp.eq.s32.totalorder %s22, 0
    %p227 = por %p225, %p226
    %s228 = ssub.s32 %s16, %s23
    %p229 = scmp.eq.s32.totalorder %s228, 0
    %s231 = sadd.s32 %s230, 1
    %s232 = scalar_select %p229, %s230, %s231
    %p235 = pneg %p229
    %p236 = scmp.eq.s32.totalorder %s16, 1
    %p237 = por %p235, %p236
    %p238 = scmp.ne.s32.totalorder %s230, %s233
    %p239 = scmp.eq.s32.totalorder %s16, 0
    %p240 = por %p238, %p239
    %p241 = scmp.ne.s32.totalorder %s230, %s233
    %p242 = scmp.eq.s32.totalorder %s21, 1
    %p243 = por %p241, %p242
    %p244 = scmp.ne.s32.totalorder %s233, %s234
    %p245 = scmp.eq.s32.totalorder %s21, 0
    %p246 = por %p244, %p245
    %p247 = scmp.ne.s32.totalorder %s233, %s234
    %p248 = scmp.eq.s32.totalorder %s22, 1
    %p249 = por %p247, %p248
    %p251 = scmp.ne.s32.totalorder %s234, %s250
    %p252 = scmp.eq.s32.totalorder %s22, 0
    %p253 = por %p251, %p252
    %p254 = scmp.le.s32.totalorder 1, %s16
    %p255 = scmp.lt.s32.totalorder %s16, 3
    %p256 = pnand %p254, %p255
    %p257 = pneg %p256
    // Predicated region
    $region9: #{model_forward.9} parent=5 // pred_check
      _
    $region10: #{model_forward.9} parent=5 // pred_check_branch
      %259 = sbr.rel (%p256) target = $region12
    $region11: #{model_forward.9} parent=5 // pred_region
      %s260 = ssub.s32 %s16, 1
      // Predicated region
      $region13: #{model_forward.9} parent=11 // pred_check
        %p261 = pneg %p63
      $region14: #{model_forward.9} parent=11 // pred_check_branch
        %263 = sbr.rel (%p261) target = $region16
      $region15: #{model_forward.9} parent=11 // pred_region
        _
      $region16: #{model_forward.9} parent=11 // pred_fallthru
        _
      // Predicated region
      $region17: #{model_forward.9} parent=11 // pred_check
        %p264 = pneg %p84
      $region18: #{model_forward.9} parent=11 // pred_check_branch
        %266 = sbr.rel (%p264) target = $region20
      $region19: #{model_forward.9} parent=11 // pred_region
        _
      $region20: #{model_forward.9} parent=11 // pred_fallthru
        _
      // Predicated region
      $region21: #{model_forward.9} parent=11 // pred_check
        %p267 = pneg %p105
      $region22: #{model_forward.9} parent=11 // pred_check_branch
        %269 = sbr.rel (%p267) target = $region24
      $region23: #{model_forward.9} parent=11 // pred_region
        _
      $region24: #{model_forward.9} parent=11 // pred_fallthru
        _
      // Predicated region
      $region25: #{model_forward.9} parent=11 // pred_check
        %p270 = pneg %p126
      $region26: #{model_forward.9} parent=11 // pred_check_branch
        %272 = sbr.rel (%p270) target = $region28
      $region27: #{model_forward.9} parent=11 // pred_region
        _
      $region28: #{model_forward.9} parent=11 // pred_fallthru
        _
      // Predicated region
      $region29: #{model_forward.9} parent=11 // pred_check
        %p273 = pneg %p173
      $region30: #{model_forward.9} parent=11 // pred_check_branch
        %275 = sbr.rel (%p273) target = $region32
      $region31: #{model_forward.9} parent=11 // pred_region
        _
      $region32: #{model_forward.9} parent=11 // pred_fallthru
        _
      // Predicated region
      $region33: #{model_forward.9} parent=11 // pred_check
        %p276 = pneg %p194
      $region34: #{model_forward.9} parent=11 // pred_check_branch
        %278 = sbr.rel (%p276) target = $region36
      $region35: #{model_forward.9} parent=11 // pred_region
        _
      $region36: #{model_forward.9} parent=11 // pred_fallthru
        _
    $region12: #{model_forward.9} parent=5 // pred_fallthru
      _
    %p279 = scmp.lt.s32.totalorder %s16, 2
    // Predicated region
    $region37: #{model_forward.9} parent=5 // pred_check
      %p280 = pneg %p279
    $region38: #{model_forward.9} parent=5 // pred_check_branch
      %282 = sbr.rel (%p280) target = $region40
    $region39: #{model_forward.9} parent=5 // pred_region
      // Predicated region
      $region41: #{model_forward.9} parent=39 // pred_check
        %p283 = pneg %p36
      $region42: #{model_forward.9} parent=39 // pred_check_branch
        %285 = sbr.rel (%p283) target = $region44
      $region43: #{model_forward.9} parent=39 // pred_region
        %p286 = scmp.lt.s32.totalorder %s16, 1
        %s287 = scalar_select %p286, %s16, 1
        %s288 = smul.addr %s287, 2
        %s289 = smul.addr %s288, 4
        %s290 = scalar_lea.vmem %s0, %s289
      $region44: #{model_forward.9} parent=39 // pred_fallthru
        _
      // Predicated region
      $region45: #{model_forward.9} parent=39 // pred_check
        %p291 = pneg %p146
      $region46: #{model_forward.9} parent=39 // pred_check_branch
        %293 = sbr.rel (%p291) target = $region48
      $region47: #{model_forward.9} parent=39 // pred_region
        %p294 = scmp.lt.s32.totalorder %s16, 1
        %s295 = scalar_select %p294, %s16, 1
        %s296 = scalar_lea.vmem %s5, %s295
      $region48: #{model_forward.9} parent=39 // pred_fallthru
        _
    $region40: #{model_forward.9} parent=5 // pred_fallthru
      _
    %p297 = scmp.le.s32.totalorder 1, %s16
    %p298 = scmp.lt.s32.totalorder %s16, 3
    %p299 = pnand %p297, %p298
    %p300 = pneg %p299
    // Predicated region
    $region49: #{model_forward.9} parent=5 // pred_check
      _
    $region50: #{model_forward.9} parent=5 // pred_check_branch
      %302 = sbr.rel (%p299) target = $region52
    $region51: #{model_forward.9} parent=5 // pred_region
      %s303 = ssub.s32 %s16, 1
      %p304 = scmp.lt.s32.totalorder %s21, 1
      %s305 = scalar_select %p304, %s21, 1
      %s306 = smul.addr %s305, 2
      %s307 = smul.addr %s306, 4
      %s308 = scalar_lea.vmem %s0, %s307
      %p309 = pneg %p42
      %p310 = pneg %p39
      %p311 = pneg %p63
      %p312 = pneg %p60
      %p313 = pneg %p84
      %p314 = pneg %p81
      %p315 = pneg %p105
      %p316 = pneg %p102
      %p317 = pneg %p126
      %p318 = pneg %p123
      %p319 = scmp.lt.s32.totalorder %s21, 1
      %s320 = scalar_select %p319, %s21, 1
      %s321 = scalar_lea.vmem %s5, %s320
      %p322 = pneg %p152
      %p323 = pneg %p149
      %p324 = pneg %p173
      %p325 = pneg %p170
      %p326 = pneg %p194
      %p327 = pneg %p191
      %p328 = pneg %p220
      %p329 = pneg %p217
      %p330 = scmp.lt.s32.totalorder %s21, 1
      %s331 = scalar_select %p330, %s21, 1
      %s332 = smul.addr %s331, 4
      %s333 = scalar_lea.vmem %s8, %s332
      %p334 = pneg %p246
      %p335 = pneg %p243
      %p336 = scmp.lt.s32.totalorder %s21, 1
      %s337 = scalar_select %p336, %s21, 1
      %s338 = smul.addr %s337, 2
      %s339 = scalar_lea.vmem %s9, %s338
      %p340 = scmp.lt.s32.totalorder %s21, 1
      %s341 = scalar_select %p340, %s21, 1
      %s342 = smul.addr %s341, 2
      %s343 = smul.addr %s342, 4
      %s344 = scalar_lea.vmem %s0, %s343
      %p345 = scmp.lt.s32.totalorder %s21, 1
      %s346 = scalar_select %p345, %s21, 1
      %s347 = scalar_lea.vmem %s5, %s346
      %p348 = scmp.lt.s32.totalorder %s21, 1
      %s349 = scalar_select %p348, %s21, 1
      %s350 = smul.addr %s349, 4
      %s351 = scalar_lea.vmem %s8, %s350
      %p352 = scmp.lt.s32.totalorder %s21, 1
      %s353 = scalar_select %p352, %s21, 1
      %s354 = smul.addr %s353, 2
      %s355 = scalar_lea.vmem %s9, %s354
      %v356 = vld [vmem:[%s344] sm:$0xff]
      %v357 = vld [vmem:[%s1] sm:$0xff]
      %v358 = vld [vmem:[%s1 + $0x8] sm:$0xff]
      %v359 = vld [vmem:[%s1 + $0x10] sm:$0xff]
      %v360 = vld [vmem:[%s1 + $0x18] sm:$0xff]
      %v361 = vld [vmem:[%s1 + $0x20] sm:$0xff]
      %v362 = vld [vmem:[%s1 + $0x28] sm:$0xff]
      %v363 = vld [vmem:[%s1 + $0x30] sm:$0xff]
      %v364 = vld [vmem:[%s1 + $0x38] sm:$0xff]
      %v365 = vld [vmem:[%s1 + $0x40] sm:$0xff]
      %v366 = vld [vmem:[%s1 + $0x48] sm:$0xff]
      %v367 = vld [vmem:[%s1 + $0x50] sm:$0xff]
      %v368 = vld [vmem:[%s1 + $0x58] sm:$0xff]
      %v369 = vld [vmem:[%s1 + $0x60] sm:$0xff]
      %v370 = vld [vmem:[%s1 + $0x68] sm:$0xff]
      %v371 = vld [vmem:[%s1 + $0x70] sm:$0xff]
      %v372 = vld [vmem:[%s1 + $0x78] sm:$0xff]
      %v373 = vld [vmem:[%s1 + $0x80] sm:$0xff]
      %v374 = vld [vmem:[%s1 + $0x88] sm:$0xff]
      %v375 = vld [vmem:[%s1 + $0x90] sm:$0xff]
      %v376 = vld [vmem:[%s1 + $0x98] sm:$0xff]
      %v377 = vld [vmem:[%s1 + $0xa0] sm:$0xff]
      %v378 = vld [vmem:[%s1 + $0xa8] sm:$0xff]
      %v379 = vld [vmem:[%s1 + $0xb0] sm:$0xff]
      %v380 = vld [vmem:[%s1 + $0xb8] sm:$0xff]
      %v381 = vld [vmem:[%s1 + $0xc0] sm:$0xff]
      %v382 = vld [vmem:[%s1 + $0xc8] sm:$0xff]
      %v383 = vld [vmem:[%s1 + $0xd0] sm:$0xff]
      %v384 = vld [vmem:[%s1 + $0xd8] sm:$0xff]
      %v385 = vld [vmem:[%s1 + $0xe0] sm:$0xff]
      %v386 = vld [vmem:[%s1 + $0xe8] sm:$0xff]
      %v387 = vld [vmem:[%s1 + $0xf0] sm:$0xff]
      %v388 = vld [vmem:[%s1 + $0xf8] sm:$0xff]
      %v389 = vld [vmem:[%s3] sm:$0x1]
      %v391 = vperm.slane %v389, 0
      %394 = vst [vmem:[#allocation1] ss:$2 sm:$0xff] %v356
      %v395 = vld.sshfl [vmem:[#allocation1] sm:$0xff pattern:$0x75316420]
      %v396 = vld.sshfl [vmem:[#allocation1 + $0x8] sm:$0xff pattern:$0x75316420]
      %399 = vmatpush.msra.mxu0 %v372
      %400 = vmatpush.msra.mxu0 %v371
      %401 = vmatpush.msra.mxu0 %v370
      %402 = vmatpush.msra.mxu0 %v369
      %403 = vmatpush.msra.mxu0 %v368
      %404 = vmatpush.msra.mxu0 %v367
      %405 = vmatpush.msra.mxu0 %v366
      %406 = vmatpush.msra.mxu0 %v365
      %407 = vmatpush.msra.mxu0 %v364
      %408 = vmatpush.msra.mxu0 %v363
      %409 = vmatpush.msra.mxu0 %v362
      %410 = vmatpush.msra.mxu0 %v361
      %411 = vmatpush.msra.mxu0 %v360
      %412 = vmatpush.msra.mxu0 %v359
      %413 = vmatpush.msra.mxu0 %v358
      %414 = vmatpush.msra.mxu0 %v357
      %415 = vmatmul.f32.gmra.mxu0 %v395
      %v416 = vpop.f32.mrf.mxu0
      %v417 = vadd.f32 %v391, %v416
      %418 = vdwg.mxu0
      %419 = vmatpush.msra.mxu0 %v388
      %420 = vmatpush.msra.mxu0 %v387
      %421 = vmatpush.msra.mxu0 %v386
      %422 = vmatpush.msra.mxu0 %v385
      %423 = vmatpush.msra.mxu0 %v384
      %424 = vmatpush.msra.mxu0 %v383
      %425 = vmatpush.msra.mxu0 %v382
      %426 = vmatpush.msra.mxu0 %v381
      %427 = vmatpush.msra.mxu0 %v380
      %428 = vmatpush.msra.mxu0 %v379
      %429 = vmatpush.msra.mxu0 %v378
      %430 = vmatpush.msra.mxu0 %v377
      %431 = vmatpush.msra.mxu0 %v376
      %432 = vmatpush.msra.mxu0 %v375
      %433 = vmatpush.msra.mxu0 %v374
      %434 = vmatpush.msra.mxu0 %v373
      %435 = vmatmul.f32.gmra.mxu0 %v396
      %v436 = vpop.f32.mrf.mxu0
      %v437 = vadd.f32 %v417, %v436
      %438 = vdwg.mxu0
      %v439 = vld [vmem:[%s347] sm:$0x1]
      %v440 = vld [vmem:[%s2] sm:$0xff]
      %v441 = vld [vmem:[%s2 + $0x8] sm:$0xff]
      %v442 = vld [vmem:[%s2 + $0x10] sm:$0xff]
      %v443 = vld [vmem:[%s2 + $0x18] sm:$0xff]
      %v444 = vld [vmem:[%s2 + $0x20] sm:$0xff]
      %v445 = vld [vmem:[%s2 + $0x28] sm:$0xff]
      %v446 = vld [vmem:[%s2 + $0x30] sm:$0xff]
      %v447 = vld [vmem:[%s2 + $0x38] sm:$0xff]
      %v448 = vld [vmem:[%s2 + $0x40] sm:$0xff]
      %v449 = vld [vmem:[%s2 + $0x48] sm:$0xff]
      %v450 = vld [vmem:[%s2 + $0x50] sm:$0xff]
      %v451 = vld [vmem:[%s2 + $0x58] sm:$0xff]
      %v452 = vld [vmem:[%s2 + $0x60] sm:$0xff]
      %v453 = vld [vmem:[%s2 + $0x68] sm:$0xff]
      %v454 = vld [vmem:[%s2 + $0x70] sm:$0xff]
      %v455 = vld [vmem:[%s2 + $0x78] sm:$0xff]
      %456 = vmatpush.msra.mxu0 %v455
      %457 = vmatpush.msra.mxu0 %v454
      %458 = vmatpush.msra.mxu0 %v453
      %459 = vmatpush.msra.mxu0 %v452
      %460 = vmatpush.msra.mxu0 %v451
      %461 = vmatpush.msra.mxu0 %v450
      %462 = vmatpush.msra.mxu0 %v449
      %463 = vmatpush.msra.mxu0 %v448
      %464 = vmatpush.msra.mxu0 %v447
      %465 = vmatpush.msra.mxu0 %v446
      %466 = vmatpush.msra.mxu0 %v445
      %467 = vmatpush.msra.mxu0 %v444
      %468 = vmatpush.msra.mxu0 %v443
      %469 = vmatpush.msra.mxu0 %v442
      %470 = vmatpush.msra.mxu0 %v441
      %471 = vmatpush.msra.mxu0 %v440
      %472 = vmatmul.f32.gmra.mxu0 %v439
      %v473 = vpop.f32.mrf.mxu0
      %v474 = vadd.f32 0.0, %v473
      %475 = vdwg.mxu0
      %v476 = vadd.f32 %v437, %v474
      %v477 = vld [vmem:[%s4] sm:$0x1]
      %v478 = vadd.f32 %v476, %v477
      %v479 = vtanh.pop %v478
      %480 = vst [vmem:[%s351] sm:$0x1] %v479
      %v481 = vadd.f32 %v479, 0.0
      %v482 = vld [vmem:[%s2] sm:$0xff]
      %v483 = vld [vmem:[%s2 + $0x8] sm:$0xff]
      %v484 = vld [vmem:[%s2 + $0x10] sm:$0xff]
      %v485 = vld [vmem:[%s2 + $0x18] sm:$0xff]
      %v486 = vld [vmem:[%s2 + $0x20] sm:$0xff]
      %v487 = vld [vmem:[%s2 + $0x28] sm:$0xff]
      %v488 = vld [vmem:[%s2 + $0x30] sm:$0xff]
      %v489 = vld [vmem:[%s2 + $0x38] sm:$0xff]
      %v490 = vld [vmem:[%s2 + $0x40] sm:$0xff]
      %v491 = vld [vmem:[%s2 + $0x48] sm:$0xff]
      %v492 = vld [vmem:[%s2 + $0x50] sm:$0xff]
      %v493 = vld [vmem:[%s2 + $0x58] sm:$0xff]
      %v494 = vld [vmem:[%s2 + $0x60] sm:$0xff]
      %v495 = vld [vmem:[%s2 + $0x68] sm:$0xff]
      %v496 = vld [vmem:[%s2 + $0x70] sm:$0xff]
      %v497 = vld [vmem:[%s2 + $0x78] sm:$0xff]
      %498 = vmatpush.msra.mxu0 %v497
      %499 = vmatpush.msra.mxu0 %v496
      %500 = vmatpush.msra.mxu0 %v495
      %501 = vmatpush.msra.mxu0 %v494
      %502 = vmatpush.msra.mxu0 %v493
      %503 = vmatpush.msra.mxu0 %v492
      %504 = vmatpush.msra.mxu0 %v491
      %505 = vmatpush.msra.mxu0 %v490
      %506 = vmatpush.msra.mxu0 %v489
      %507 = vmatpush.msra.mxu0 %v488
      %508 = vmatpush.msra.mxu0 %v487
      %509 = vmatpush.msra.mxu0 %v486
      %510 = vmatpush.msra.mxu0 %v485
      %511 = vmatpush.msra.mxu0 %v484
      %512 = vmatpush.msra.mxu0 %v483
      %513 = vmatpush.msra.mxu0 %v482
      %514 = vmatmul.f32.gmra.mxu0 %v479
      %v515 = vpop.f32.mrf.mxu0
      %v516 = vadd.f32 0.0, %v515
      %517 = vdwg.mxu0
      %v519 = vrot.slane %v516, 7
      %v521 = vadd.f32 %v437, %v519
      %v522 = vld [vmem:[%s4] sm:$0x1]
      %v524 = vperm.slane %v522, 0
      %v526 = vadd.f32 %v521, %v524
      %v527 = vtanh.pop %v526
      %528 = vst [vmem:[%s351] sm:$0x2] %v527
      %v530 = vrot.slane %v527, 1
      %v532 = vadd.f32 %v481, %v530
      %v533 = vld [vmem:[%s2] sm:$0xff]
      %v534 = vld [vmem:[%s2 + $0x8] sm:$0xff]
      %v535 = vld [vmem:[%s2 + $0x10] sm:$0xff]
      %v536 = vld [vmem:[%s2 + $0x18] sm:$0xff]
      %v537 = vld [vmem:[%s2 + $0x20] sm:$0xff]
      %v538 = vld [vmem:[%s2 + $0x28] sm:$0xff]
      %v539 = vld [vmem:[%s2 + $0x30] sm:$0xff]
      %v540 = vld [vmem:[%s2 + $0x38] sm:$0xff]
      %v541 = vld [vmem:[%s2 + $0x40] sm:$0xff]
      %v542 = vld [vmem:[%s2 + $0x48] sm:$0xff]
      %v543 = vld [vmem:[%s2 + $0x50] sm:$0xff]
      %v544 = vld [vmem:[%s2 + $0x58] sm:$0xff]
      %v545 = vld [vmem:[%s2 + $0x60] sm:$0xff]
      %v546 = vld [vmem:[%s2 + $0x68] sm:$0xff]
      %v547 = vld [vmem:[%s2 + $0x70] sm:$0xff]
      %v548 = vld [vmem:[%s2 + $0x78] sm:$0xff]
      %549 = vmatpush.msra.mxu0 %v548
      %550 = vmatpush.msra.mxu0 %v547
      %551 = vmatpush.msra.mxu0 %v546
      %552 = vmatpush.msra.mxu0 %v545
      %553 = vmatpush.msra.mxu0 %v544
      %554 = vmatpush.msra.mxu0 %v543
      %555 = vmatpush.msra.mxu0 %v542
      %556 = vmatpush.msra.mxu0 %v541
      %557 = vmatpush.msra.mxu0 %v540
      %558 = vmatpush.msra.mxu0 %v539
      %559 = vmatpush.msra.mxu0 %v538
      %560 = vmatpush.msra.mxu0 %v537
      %561 = vmatpush.msra.mxu0 %v536
      %562 = vmatpush.msra.mxu0 %v535
      %563 = vmatpush.msra.mxu0 %v534
      %564 = vmatpush.msra.mxu0 %v533
      %565 = vmatmul.f32.gmra.mxu0 %v530
      %v566 = vpop.f32.mrf.mxu0
      %v567 = vadd.f32 0.0, %v566
      %568 = vdwg.mxu0
      %v570 = vrot.slane %v567, 6
      %v572 = vadd.f32 %v437, %v570
      %v573 = vld [vmem:[%s4] sm:$0x1]
      %v575 = vperm.slane %v573, 0
      %v577 = vadd.f32 %v572, %v575
      %v578 = vtanh.pop %v577
      %579 = vst [vmem:[%s351] sm:$0x4] %v578
      %v581 = vrot.slane %v578, 2
      %v583 = vadd.f32 %v532, %v581
      %v584 = vld [vmem:[%s2] sm:$0xff]
      %v585 = vld [vmem:[%s2 + $0x8] sm:$0xff]
      %v586 = vld [vmem:[%s2 + $0x10] sm:$0xff]
      %v587 = vld [vmem:[%s2 + $0x18] sm:$0xff]
      %v588 = vld [vmem:[%s2 + $0x20] sm:$0xff]
      %v589 = vld [vmem:[%s2 + $0x28] sm:$0xff]
      %v590 = vld [vmem:[%s2 + $0x30] sm:$0xff]
      %v591 = vld [vmem:[%s2 + $0x38] sm:$0xff]
      %v592 = vld [vmem:[%s2 + $0x40] sm:$0xff]
      %v593 = vld [vmem:[%s2 + $0x48] sm:$0xff]
      %v594 = vld [vmem:[%s2 + $0x50] sm:$0xff]
      %v595 = vld [vmem:[%s2 + $0x58] sm:$0xff]
      %v596 = vld [vmem:[%s2 + $0x60] sm:$0xff]
      %v597 = vld [vmem:[%s2 + $0x68] sm:$0xff]
      %v598 = vld [vmem:[%s2 + $0x70] sm:$0xff]
      %v599 = vld [vmem:[%s2 + $0x78] sm:$0xff]
      %600 = vmatpush.msra.mxu0 %v599
      %601 = vmatpush.msra.mxu0 %v598
      %602 = vmatpush.msra.mxu0 %v597
      %603 = vmatpush.msra.mxu0 %v596
      %604 = vmatpush.msra.mxu0 %v595
      %605 = vmatpush.msra.mxu0 %v594
      %606 = vmatpush.msra.mxu0 %v593
      %607 = vmatpush.msra.mxu0 %v592
      %608 = vmatpush.msra.mxu0 %v591
      %609 = vmatpush.msra.mxu0 %v590
      %610 = vmatpush.msra.mxu0 %v589
      %611 = vmatpush.msra.mxu0 %v588
      %612 = vmatpush.msra.mxu0 %v587
      %613 = vmatpush.msra.mxu0 %v586
      %614 = vmatpush.msra.mxu0 %v585
      %615 = vmatpush.msra.mxu0 %v584
      %616 = vmatmul.f32.gmra.mxu0 %v581
      %v617 = vpop.f32.mrf.mxu0
      %v618 = vadd.f32 0.0, %v617
      %619 = vdwg.mxu0
      %v621 = vrot.slane %v618, 5
      %v623 = vadd.f32 %v437, %v621
      %v624 = vld [vmem:[%s4] sm:$0x1]
      %v626 = vperm.slane %v624, 0
      %v628 = vadd.f32 %v623, %v626
      %v629 = vtanh.pop %v628
      %630 = vst [vmem:[%s351] sm:$0x8] %v629
      %v632 = vrot.slane %v629, 3
      %v634 = vadd.f32 %v583, %v632
      %v635 = vmul.f32 %v634, 0.25
      %v636 = vld [vmem:[%s6] sm:$0xff]
      %v637 = vld [vmem:[%s6 + $0x8] sm:$0xff]
      %v638 = vld [vmem:[%s6 + $0x10] sm:$0xff]
      %v639 = vld [vmem:[%s6 + $0x18] sm:$0xff]
      %v640 = vld [vmem:[%s6 + $0x20] sm:$0xff]
      %v641 = vld [vmem:[%s6 + $0x28] sm:$0xff]
      %v642 = vld [vmem:[%s6 + $0x30] sm:$0xff]
      %v643 = vld [vmem:[%s6 + $0x38] sm:$0xff]
      %v644 = vld [vmem:[%s6 + $0x40] sm:$0xff]
      %v645 = vld [vmem:[%s6 + $0x48] sm:$0xff]
      %v646 = vld [vmem:[%s6 + $0x50] sm:$0xff]
      %v647 = vld [vmem:[%s6 + $0x58] sm:$0xff]
      %v648 = vld [vmem:[%s6 + $0x60] sm:$0xff]
      %v649 = vld [vmem:[%s6 + $0x68] sm:$0xff]
      %v650 = vld [vmem:[%s6 + $0x70] sm:$0xff]
      %v651 = vld [vmem:[%s6 + $0x78] sm:$0xff]
      %v652 = vld [vmem:[%s6 + $0x80] sm:$0xff]
      %v653 = vld [vmem:[%s6 + $0x88] sm:$0xff]
      %v654 = vld [vmem:[%s6 + $0x90] sm:$0xff]
      %v655 = vld [vmem:[%s6 + $0x98] sm:$0xff]
      %v656 = vld [vmem:[%s6 + $0xa0] sm:$0xff]
      %v657 = vld [vmem:[%s6 + $0xa8] sm:$0xff]
      %v658 = vld [vmem:[%s6 + $0xb0] sm:$0xff]
      %v659 = vld [vmem:[%s6 + $0xb8] sm:$0xff]
      %v660 = vld [vmem:[%s6 + $0xc0] sm:$0xff]
      %v661 = vld [vmem:[%s6 + $0xc8] sm:$0xff]
      %v662 = vld [vmem:[%s6 + $0xd0] sm:$0xff]
      %v663 = vld [vmem:[%s6 + $0xd8] sm:$0xff]
      %v664 = vld [vmem:[%s6 + $0xe0] sm:$0xff]
      %v665 = vld [vmem:[%s6 + $0xe8] sm:$0xff]
      %v666 = vld [vmem:[%s6 + $0xf0] sm:$0xff]
      %v667 = vld [vmem:[%s6 + $0xf8] sm:$0xff]
      %v668 = vld [vmem:[%s7] sm:$0x3]
      %v670 = vperm.slane %v668, 0
      %v671 = vperm.slane %v668, 1
      %674 = vmatpush.msra.mxu0 %v666
      %675 = vmatpush.msra.mxu0 %v664
      %676 = vmatpush.msra.mxu0 %v662
      %677 = vmatpush.msra.mxu0 %v660
      %678 = vmatpush.msra.mxu0 %v658
      %679 = vmatpush.msra.mxu0 %v656
      %680 = vmatpush.msra.mxu0 %v654
      %681 = vmatpush.msra.mxu0 %v652
      %682 = vmatpush.msra.mxu0 %v650
      %683 = vmatpush.msra.mxu0 %v648
      %684 = vmatpush.msra.mxu0 %v646
      %685 = vmatpush.msra.mxu0 %v644
      %686 = vmatpush.msra.mxu0 %v642
      %687 = vmatpush.msra.mxu0 %v640
      %688 = vmatpush.msra.mxu0 %v638
      %689 = vmatpush.msra.mxu0 %v636
      %690 = vmatmul.f32.gmra.mxu0 %v635
      %v691 = vpop.f32.mrf.mxu0
      %v692 = vadd.f32 %v670, %v691
      %693 = vdwg.mxu0
      %694 = vmatpush.msra.mxu0 %v667
      %695 = vmatpush.msra.mxu0 %v665
      %696 = vmatpush.msra.mxu0 %v663
      %697 = vmatpush.msra.mxu0 %v661
      %698 = vmatpush.msra.mxu0 %v659
      %699 = vmatpush.msra.mxu0 %v657
      %700 = vmatpush.msra.mxu0 %v655
      %701 = vmatpush.msra.mxu0 %v653
      %702 = vmatpush.msra.mxu0 %v651
      %703 = vmatpush.msra.mxu0 %v649
      %704 = vmatpush.msra.mxu0 %v647
      %705 = vmatpush.msra.mxu0 %v645
      %706 = vmatpush.msra.mxu0 %v643
      %707 = vmatpush.msra.mxu0 %v641
      %708 = vmatpush.msra.mxu0 %v639
      %709 = vmatpush.msra.mxu0 %v637
      %710 = vmatmul.f32.gmra.mxu0 %v635
      %v711 = vpop.f32.mrf.mxu0
      %v712 = vadd.f32 %v671, %v711
      %713 = vdwg.mxu0
      %vm714 = vcmask 1040384
      %v715 = vsel %vm714, %v692, -inf
      %vm716 = vcmask 172032
      %v717 = vsel %vm716, %v712, -inf
      %v718 = vmax.f32 %v715, %v717
      %719 = vmax.xlane.f32.xlu0 %v718
      %v720 = vpop.xlane.xlu0 %719
      %v721 = vsub.f32 %v692, %v720
      %v722 = vsub.f32 %v712, %v720
      %v723 = vmul.f32 %v721, 1.442695
      %v724 = vpow.pop %v723
      %v725 = vmul.f32 %v722, 1.442695
      %v726 = vpow.pop %v725
      %v727 = vsel %vm714, %v724, 0.0
      %v728 = vsel %vm716, %v726, 0.0
      %v729 = vadd.f32 %v727, %v728
      %730 = vadd.xlane.f32.xlu0 %v729
      %v731 = vpop.xlane.xlu0 %730
      %v732 = vlog2.pop %v731
      %v733 = vmul.f32 %v732, 0.6931472
      %v734 = vsub.f32 %v721, %v733
      %v735 = vsub.f32 %v722, %v733
      %v738 = vrot.slane %v735, 7
      %v739 = vsel %vm714, %v734, %v738
      %v741 = vlaneseq
      %vm742 = vcmp.ge.s32.totalorder %v741, 0
      %vm743 = vcmp.lt.s32.totalorder %v741, 150
      %vm744 = vmand %vm742, %vm743
      %745 = vst.msk [vmem:[%s355] sm:$0x3] %vm744, %v739
      %p746 = scmp.lt.s32.totalorder %s21, 1
      %s747 = scalar_select %p746, %s21, 1
      %s748 = smul.addr %s747, 4
      %s749 = scalar_lea.vmem %s8, %s748
      %p750 = scmp.lt.s32.totalorder %s21, 1
      %s751 = scalar_select %p750, %s21, 1
      %s752 = smul.addr %s751, 2
      %s753 = scalar_lea.vmem %s9, %s752
      // Predicated region
      $region53: #{model_forward.9} parent=51 // pred_check
        %p754 = pneg %p217
      $region54: #{model_forward.9} parent=51 // pred_check_branch
        %756 = sbr.rel (%p754) target = $region56
      $region55: #{model_forward.9} parent=51 // pred_region
        _
      $region56: #{model_forward.9} parent=51 // pred_fallthru
        _
      // Predicated region
      $region57: #{model_forward.9} parent=51 // pred_check
        %p757 = pneg %p243
      $region58: #{model_forward.9} parent=51 // pred_check_branch
        %759 = sbr.rel (%p757) target = $region60
      $region59: #{model_forward.9} parent=51 // pred_region
        _
      $region60: #{model_forward.9} parent=51 // pred_fallthru
        _
    $region52: #{model_forward.9} parent=5 // pred_fallthru
      _
    %p760 = scmp.le.s32.totalorder 2, %s16
    // Predicated region
    $region61: #{model_forward.9} parent=5 // pred_check
      %p761 = pneg %p760
    $region62: #{model_forward.9} parent=5 // pred_check_branch
      %763 = sbr.rel (%p761) target = $region64
    $region63: #{model_forward.9} parent=5 // pred_region
      %s764 = ssub.s32 %s16, 2
      // Predicated region
      $region65: #{model_forward.9} parent=63 // pred_check
        %p765 = pneg %p223
      $region66: #{model_forward.9} parent=63 // pred_check_branch
        %767 = sbr.rel (%p765) target = $region68
      $region67: #{model_forward.9} parent=63 // pred_region
        %p768 = scmp.lt.s32.totalorder %s22, 1
        %s769 = scalar_select %p768, %s22, 1
        %s770 = smul.addr %s769, 4
        %s771 = scalar_lea.vmem %s8, %s770
      $region68: #{model_forward.9} parent=63 // pred_fallthru
        _
      // Predicated region
      $region69: #{model_forward.9} parent=63 // pred_check
        %p772 = pneg %p249
      $region70: #{model_forward.9} parent=63 // pred_check_branch
        %774 = sbr.rel (%p772) target = $region72
      $region71: #{model_forward.9} parent=63 // pred_region
        %p775 = scmp.lt.s32.totalorder %s22, 1
        %s776 = scalar_select %p775, %s22, 1
        %s777 = smul.addr %s776, 2
        %s778 = scalar_lea.vmem %s9, %s777
      $region72: #{model_forward.9} parent=63 // pred_fallthru
        _
    $region64: #{model_forward.9} parent=5 // pred_fallthru
      _
  $region6: #{model_forward.9} parent=0 // loop_footer
    %s20 = sadd.s32 1, %s16
  $region7: #{model_forward.9} parent=0 // loop_footer_branch
    %15 = sbr.rel target = $region3
  $region8: #{model_forward.9} parent=0 // loop_exit
    _

</llo_original>
